<compile_context>
chip_gen: v7x
topology: tpu7x:2x2x1
jax: 0.10.0
libtpu: 0.0.40
codegen_flags: <defaults>
</compile_context>

<pallas_src>
import math

import jax
import jax.numpy as jnp
from jax import lax
from jax.experimental import pallas as pl
from jax.experimental.pallas import tpu as pltpu


# ---------------------------------------------------------------------------
# Kernel
# ---------------------------------------------------------------------------
def _qwen_block_kernel(hidden_ref, cos_ref, sin_ref, mask_ref,
                       past_k_ref, past_v_ref,
                       ln1_ref, wqkv_ref, bqkv_ref, wo_ref, ln2_ref,
                       w12_ref, wmlp_ref,
                       out_ref, pk_ref, pv_ref,
                       hn_s):
    f32 = jnp.float32
    bf16 = jnp.bfloat16
    eps = 1e-6

    _, S, H = hidden_ref.shape
    _, NH, P, HD = past_k_ref.shape
    T = P + S
    half = HD // 2
    j = pl.program_id(1)

    # ---- ln_1 + QKV + RoPE + attention + c_proj + ln_2: once per batch row ----
    @pl.when(j == 0)
    def _attention_part():
        x = hidden_ref[...][0].astype(f32)                        # (S, H)

        # RMSNorm (ln_1)
        var = jnp.mean(x * x, axis=-1, keepdims=True)
        xn = x * lax.rsqrt(var + eps) * ln1_ref[...].astype(f32)

        # fused QKV projection (c_attn): bf16 operands on MXU, f32 accumulation
        qkv = jnp.dot(xn.astype(bf16), wqkv_ref[...],
                      preferred_element_type=f32)
        qkv = qkv + bqkv_ref[...].astype(f32)                     # (S, 3H)

        # --- rotary embedding, vectorized over (S, NH) ---
        cos = cos_ref[...][0].astype(f32)                         # (S, HD)
        sin = sin_ref[...][0].astype(f32)
        sign = jnp.where(
            lax.broadcasted_iota(jnp.int32, (1, HD), 1) < half,
            jnp.float32(-1.0), jnp.float32(1.0))                  # (1, HD)

        def rope(t2):                                             # t2: (S*NH, HD)
            # rotate_half == lane roll by HD/2 (XLU slot) times a sign mask
            rot = pltpu.roll(t2, shift=half, axis=1) * sign
            return (t2.reshape(S, NH, HD) * cos[:, None, :]
                    + rot.reshape(S, NH, HD) * sin[:, None, :])   # (S, NH, HD)

        q2 = qkv[:, 0:H].reshape(S * NH, HD)
        k2 = qkv[:, H:2 * H].reshape(S * NH, HD)
        q_r = rope(q2) * (1.0 / math.sqrt(HD))    # fold attn scale into q
        k_r = rope(k2)                                            # (S, NH, HD) f32
        v_r = qkv[:, 2 * H:3 * H].reshape(S, NH, HD)

        # new-token KV slice (f32): the only cache HBM write from the kernel
        pk_ref[...] = k_r[None]                                   # (1, S, NH, HD)
        pv_ref[...] = v_r[None]

        # attention operands stay bf16 end to end (no f32 cache intermediate)
        q_nh = jnp.transpose(q_r, (1, 0, 2)).astype(bf16)         # (NH, S, HD)
        k_nh = jnp.transpose(k_r, (1, 0, 2)).astype(bf16)
        v_nh = jnp.transpose(v_r, (1, 0, 2)).astype(bf16)
        kb = jnp.concatenate([past_k_ref[...][0], k_nh], axis=1)  # (NH, T, HD)
        vb = jnp.concatenate([past_v_ref[...][0], v_nh], axis=1)

        # scores: all heads in one batched MXU contraction (heads = batch dim)
        sc = jnp.einsum('nqd,nkd->nqk', q_nh, kb,
                        preferred_element_type=f32)               # (NH, S, T)
        q_pos = P + lax.broadcasted_iota(jnp.int32, (S, T), 0)
        k_pos = lax.broadcasted_iota(jnp.int32, (S, T), 1)
        causal = (k_pos <= q_pos)[None, :, :]
        madd = mask_ref[...][0, 0].astype(f32)[None, :, :]        # additive mask
        sc = jnp.where(causal, sc, jnp.float32(-1e30)) + madd
        m = jnp.max(sc, axis=-1, keepdims=True)
        p = jnp.exp(sc - m)
        denom = jnp.sum(p, axis=-1, keepdims=True)
        p = p * pl.reciprocal(denom, approx=True)                 # EUP slot
        ctx = jnp.einsum('nqk,nkd->nqd', p.astype(bf16), vb,
                         preferred_element_type=f32)              # (NH, S, HD)

        # attention output projection: one (S, H) x (H, H) MXU contraction
        ctx_sh = jnp.transpose(ctx, (1, 0, 2)).reshape(S, H)
        proj = jnp.dot(ctx_sh.astype(bf16), wo_ref[...],
                       preferred_element_type=f32)                # (S, H)

        hidden = x + proj

        # RMSNorm (ln_2); stash normalized activations for the MLP tiles
        var2 = jnp.mean(hidden * hidden, axis=-1, keepdims=True)
        hn = hidden * lax.rsqrt(var2 + eps) * ln2_ref[...].astype(f32)
        hn_s[...] = hn.astype(bf16)

        # output block is resident across the FF reduction axis: seed it with
        # the post-attention residual and accumulate MLP tiles on top.
        out_ref[...] = hidden[None]

    # ---- MLP: one FF tile per grid step (streamed fused gate|up + down tiles) ----
    hn = hn_s[...]                                                # (S, H) bf16
    ftile = w12_ref.shape[1] // 2
    a = jnp.dot(hn, w12_ref[...], preferred_element_type=f32)     # (S, 2*ft)
    a1 = a[:, :ftile]
    a2 = a[:, ftile:]
    inter = (a1 * (a2 / (1.0 + jnp.exp(-a2)))).astype(bf16)       # a1 * silu(a2)
    out_ref[...] += jnp.dot(inter, wmlp_ref[...],
                            preferred_element_type=f32)[None]     # (1, S, H)


# ---------------------------------------------------------------------------
# Wrapper
# ---------------------------------------------------------------------------
def qwen_block_cache(hidden_states, position_ids, attention_mask,
                     past_k, past_v, params, *, ff_tile=256,
                     vmem_limit_bytes=64 * 1024 * 1024):
    B, S, H = hidden_states.shape
    _, P, NH, HD = past_k.shape
    T = P + S
    FF = params["w1"].shape[1]
    assert H == NH * HD
    ft = ff_tile if (FF % ff_tile == 0) else FF
    nfb = FF // ft

    # Glue outside the kernel: rotary-table gather (self.cos_emb[position_ids]).
    cos_pos = jnp.take(params["cos_emb"], position_ids, axis=0)   # (B, S, HD) f32
    sin_pos = jnp.take(params["sin_emb"], position_ids, axis=0)

    # Free wrapper-side layout plumbing: head-major past KV (HD = lane axis),
    # and per-tile interleaved gate|up weight so each streamed tile is (H, 2*ft).
    past_k_t = jnp.transpose(past_k, (0, 2, 1, 3))                # (B, NH, P, HD)
    past_v_t = jnp.transpose(past_v, (0, 2, 1, 3))
    w12 = jnp.concatenate(
        [params["w1"].reshape(H, nfb, ft), params["w2"].reshape(H, nfb, ft)],
        axis=-1).reshape(H, 2 * FF)                               # (H, 2*FF)

    def per_batch(shape):
        rest = (0,) * (len(shape) - 1)
        return pl.BlockSpec((1,) + tuple(shape[1:]), lambda b, j: (b,) + rest)

    def whole(shape):
        zeros = (0,) * len(shape)
        return pl.BlockSpec(tuple(shape), lambda b, j: zeros)

    out_shapes = (
        jax.ShapeDtypeStruct((B, S, H), jnp.float32),             # block output
        jax.ShapeDtypeStruct((B, S, NH, HD), jnp.float32),        # new K rows
        jax.ShapeDtypeStruct((B, S, NH, HD), jnp.float32),        # new V rows
    )

    out, k_new, v_new = pl.pallas_call(
        _qwen_block_kernel,
        out_shape=out_shapes,
        grid=(B, nfb),
        in_specs=[
            per_batch((B, S, H)),                  # hidden_states
            per_batch((B, S, HD)),                 # cos_pos
            per_batch((B, S, HD)),                 # sin_pos
            per_batch((B, 1, S, T)),               # additive attention mask
            per_batch((B, NH, P, HD)),             # past_k (head-major, bf16)
            per_batch((B, NH, P, HD)),             # past_v (head-major, bf16)
            whole((1, H)),                         # ln_1 weight
            whole((H, 3 * H)),                     # c_attn weight
            whole((1, 3 * H)),                     # c_attn bias
            whole((H, H)),                         # c_proj weight
            whole((1, H)),                         # ln_2 weight
            pl.BlockSpec((H, 2 * ft), lambda b, j: (0, j)),   # fused w1|w2 tile
            pl.BlockSpec((ft, H), lambda b, j: (j, 0)),       # mlp c_proj tile
        ],
        out_specs=(
            per_batch((B, S, H)),
            per_batch((B, S, NH, HD)),
            per_batch((B, S, NH, HD)),
        ),
        scratch_shapes=[pltpu.VMEM((S, H), jnp.bfloat16)],
        compiler_params=pltpu.CompilerParams(
            dimension_semantics=("parallel", "arbitrary"),
            vmem_limit_bytes=vmem_limit_bytes),
    )(hidden_states, cos_pos, sin_pos, attention_mask, past_k_t, past_v_t,
      params["ln1_w"], params["wqkv"], params["bqkv"], params["wo"],
      params["ln2_w"], w12, params["wmlp"])

    # Full f32 present cache per the torch `.float()` contract; the kernel only
    # wrote the S new rows, the O(T) copy of the past happens once here.
    present_k = jnp.concatenate([past_k.astype(jnp.float32), k_new], axis=1)
    present_v = jnp.concatenate([past_v.astype(jnp.float32), v_new], axis=1)
    return out, present_k, present_v


# ---------------------------------------------------------------------------
# Synthetic parameters + pure-JAX reference
# ---------------------------------------------------------------------------
def init_params(key, H, NH, HD, FF, max_seq):
    ks = jax.random.split(key, 8)
    scale = 0.05
    dt = jnp.bfloat16
    params = dict(
        ln1_w=(1.0 + 0.1 * jax.random.normal(ks[0], (1, H))).astype(dt),
        ln2_w=(1.0 + 0.1 * jax.random.normal(ks[1], (1, H))).astype(dt),
        wqkv=(scale * jax.random.normal(ks[2], (H, 3 * H))).astype(dt),
        bqkv=(scale * jax.random.normal(ks[3], (1, 3 * H))).astype(dt),
        wo=(scale * jax.random.normal(ks[4], (H, H))).astype(dt),
        w1=(scale * jax.random.normal(ks[5], (H, FF))).astype(dt),
        w2=(scale * jax.random.normal(ks[6], (H, FF))).astype(dt),
        wmlp=(scale * jax.random.normal(ks[7], (FF, H))).astype(dt),
    )
    inv_freq = 1.0 / (10000.0 ** (jnp.arange(0, HD, 2, dtype=jnp.float32) / HD))
    pos = jnp.arange(max_seq, dtype=jnp.float32)
    freqs = jnp.outer(pos, inv_freq)
    emb = jnp.concatenate([freqs, freqs], axis=-1)                # (max_seq, HD)
    params["cos_emb"] = jnp.cos(emb)
    params["sin_emb"] = jnp.sin(emb)
    return params


def reference(hidden_states, position_ids, attention_mask, past_k, past_v,
              params):
    f32, bf16 = jnp.float32, jnp.bfloat16
    eps = 1e-6
    B, S, H = hidden_states.shape
    _, P, NH, HD = past_k.shape
    T = P + S
    half = HD // 2

    cos = jnp.take(params["cos_emb"], position_ids, axis=0)[:, :, None, :]
    sin = jnp.take(params["sin_emb"], position_ids, axis=0)[:, :, None, :]

    x = hidden_states.astype(f32)
    var = jnp.mean(x * x, axis=-1, keepdims=True)
    xn = x * lax.rsqrt(var + eps) * params["ln1_w"].astype(f32)

    qkv = jnp.dot(xn.reshape(B * S, H).astype(bf16), params["wqkv"],
                  preferred_element_type=f32) + params["bqkv"].astype(f32)
    q = qkv[:, 0:H].reshape(B, S, NH, HD)
    k = qkv[:, H:2 * H].reshape(B, S, NH, HD)
    v = qkv[:, 2 * H:3 * H].reshape(B, S, NH, HD)

    def rot(t):
        return jnp.concatenate([-t[..., half:], t[..., :half]], axis=-1)

    q = (q * cos + rot(q) * sin) * (1.0 / math.sqrt(HD))
    k = k * cos + rot(k) * sin

    present_k = jnp.concatenate([past_k.astype(f32), k], axis=1)
    present_v = jnp.concatenate([past_v.astype(f32), v], axis=1)

    sc = jnp.einsum('bsnd,btnd->bnst', q.astype(bf16), present_k.astype(bf16),
                    preferred_element_type=f32)
    q_pos = P + jnp.arange(S)[:, None]
    k_pos = jnp.arange(T)[None, :]
    causal = (k_pos <= q_pos)[None, None]
    sc = jnp.where(causal, sc, jnp.float32(-1e30)) + attention_mask.astype(f32)
    p = jax.nn.softmax(sc, axis=-1)
    ctx = jnp.einsum('bnst,btnd->bsnd', p.astype(bf16), present_v.astype(bf16),
                     preferred_element_type=f32)
    proj = jnp.dot(ctx.reshape(B * S, H).astype(bf16), params["wo"],
                   preferred_element_type=f32).reshape(B, S, H)
    hidden = x + proj

    var2 = jnp.mean(hidden * hidden, axis=-1, keepdims=True)
    hn = hidden * lax.rsqrt(var2 + eps) * params["ln2_w"].astype(f32)
    hn_b = hn.reshape(B * S, H).astype(bf16)
    a1 = jnp.dot(hn_b, params["w1"], preferred_element_type=f32)
    a2 = jnp.dot(hn_b, params["w2"], preferred_element_type=f32)
    inter = (a1 * (a2 / (1.0 + jnp.exp(-a2)))).astype(bf16)
    mlp = jnp.dot(inter, params["wmlp"],
                  preferred_element_type=f32).reshape(B, S, H)
    return hidden + mlp, present_k, present_v


if __name__ == "__main__":
    # Decode step: 1 new token, 8 cached tokens; HD=128 mirrors real Qwen.
    B, S, P = 1, 1, 8
    NH, HD = 4, 128
    H = NH * HD            # 512
    FF = 512               # MLP width per branch -> 2 streamed FF tiles of 256
    MAX_SEQ = 32

    key = jax.random.PRNGKey(0)
    kp, kh, kk, kv = jax.random.split(key, 4)
    params = init_params(kp, H, NH, HD, FF, MAX_SEQ)

    hidden_states = (0.5 * jax.random.normal(kh, (B, S, H))).astype(jnp.bfloat16)
    past_k = (0.5 * jax.random.normal(kk, (B, P, NH, HD))).astype(jnp.bfloat16)
    past_v = (0.5 * jax.random.normal(kv, (B, P, NH, HD))).astype(jnp.bfloat16)
    position_ids = jnp.full((B, S), P, dtype=jnp.int32)           # current token position
    attention_mask = jnp.zeros((B, 1, S, P + S), dtype=jnp.bfloat16)  # additive mask

    out, present_k, present_v = qwen_block_cache(
        hidden_states, position_ids, attention_mask, past_k, past_v, params)
    jax.block_until_ready((out, present_k, present_v))

    ref_out, ref_k, ref_v = reference(
        hidden_states, position_ids, attention_mask, past_k, past_v, params)

    assert out.dtype == jnp.float32
    assert present_k.dtype == jnp.float32 and present_v.dtype == jnp.float32
    assert out.shape == (B, S, H)
    assert present_k.shape == (B, P + S, NH, HD)
    assert jnp.allclose(out, ref_out, atol=2e-2, rtol=2e-2)
    assert jnp.allclose(present_k, ref_k, atol=2e-2, rtol=2e-2)
    assert jnp.allclose(present_v, ref_v, atol=2e-2, rtol=2e-2)

    print("KERNEL_OK")
</pallas_src>

<mosaic_0001>
module attributes {stable_mosaic.version = 11 : i64} {
  func.func @_qwen_block_kernel(%arg0: i32, %arg1: i32, %arg2: memref<1x1x512xbf16, #tpu.memory_space<vmem>>, %arg3: memref<1x1x128xf32, #tpu.memory_space<vmem>>, %arg4: memref<1x1x128xf32, #tpu.memory_space<vmem>>, %arg5: memref<1x1x1x9xbf16, #tpu.memory_space<vmem>>, %arg6: memref<1x4x8x128xbf16, #tpu.memory_space<vmem>>, %arg7: memref<1x4x8x128xbf16, #tpu.memory_space<vmem>>, %arg8: memref<1x512xbf16, #tpu.memory_space<vmem>>, %arg9: memref<512x1536xbf16, #tpu.memory_space<vmem>>, %arg10: memref<1x1536xbf16, #tpu.memory_space<vmem>>, %arg11: memref<512x512xbf16, #tpu.memory_space<vmem>>, %arg12: memref<1x512xbf16, #tpu.memory_space<vmem>>, %arg13: memref<512x512xbf16, #tpu.memory_space<vmem>>, %arg14: memref<256x512xbf16, #tpu.memory_space<vmem>>, %arg15: memref<1x1x512xf32, #tpu.memory_space<vmem>>, %arg16: memref<1x1x4x128xf32, #tpu.memory_space<vmem>>, %arg17: memref<1x1x4x128xf32, #tpu.memory_space<vmem>>, %arg18: memref<1x512xbf16, #tpu.memory_space<vmem>>) attributes {dimension_semantics = [#tpu.dimension_semantics<parallel>, #tpu.dimension_semantics<arbitrary>], iteration_bounds = array<i64: 1, 2>, scalar_prefetch = 0 : i64, scratch_operands = 1 : i64, tpu.core_type = #tpu.core_type<tc>, window_params = [{transform_indices = @transform_0, window_bounds = array<i64: 1, 1, 512>}, {transform_indices = @transform_1, window_bounds = array<i64: 1, 1, 128>}, {transform_indices = @transform_2, window_bounds = array<i64: 1, 1, 128>}, {transform_indices = @transform_3, window_bounds = array<i64: 1, 1, 1, 9>}, {transform_indices = @transform_4, window_bounds = array<i64: 1, 4, 8, 128>}, {transform_indices = @transform_5, window_bounds = array<i64: 1, 4, 8, 128>}, {pipeline_mode = #tpu.pipeline_mode<synchronous>, transform_indices = @transform_6, window_bounds = array<i64: 1, 512>}, {pipeline_mode = #tpu.pipeline_mode<synchronous>, transform_indices = @transform_7, window_bounds = array<i64: 512, 1536>}, {pipeline_mode = #tpu.pipeline_mode<synchronous>, transform_indices = @transform_8, window_bounds = array<i64: 1, 1536>}, {pipeline_mode = #tpu.pipeline_mode<synchronous>, transform_indices = @transform_9, window_bounds = array<i64: 512, 512>}, {pipeline_mode = #tpu.pipeline_mode<synchronous>, transform_indices = @transform_10, window_bounds = array<i64: 1, 512>}, {transform_indices = @transform_11, window_bounds = array<i64: 512, 512>}, {transform_indices = @transform_12, window_bounds = array<i64: 256, 512>}, {transform_indices = @transform_13, window_bounds = array<i64: 1, 1, 512>}, {transform_indices = @transform_14, window_bounds = array<i64: 1, 1, 4, 128>}, {transform_indices = @transform_15, window_bounds = array<i64: 1, 1, 4, 128>}]} {
    %c0_i32 = arith.constant 0 : i32
    %0 = arith.cmpi eq, %arg1, %c0_i32 : i32
    %1 = arith.extui %0 : i1 to i32
    %c0_i32_0 = arith.constant 0 : i32
    %2 = arith.cmpi ne, %1, %c0_i32_0 : i32
    scf.if %2 {
      %c0_15 = arith.constant 0 : index
      %c0_16 = arith.constant 0 : index
      %c0_17 = arith.constant 0 : index
      %22 = vector.load %arg2[%c0_15, %c0_16, %c0_17] : memref<1x1x512xbf16, #tpu.memory_space<vmem>>, vector<1x1x512xbf16>
      %23 = vector.shape_cast %22 : vector<1x1x512xbf16> to vector<1x512xbf16>
      %24 = arith.extf %23 : vector<1x512xbf16> to vector<1x512xf32>
      %25 = arith.mulf %24, %24 : vector<1x512xf32>
      %cst_18 = arith.constant dense<0.000000e+00> : vector<1xf32>
      %26 = vector.multi_reduction <add>, %25, %cst_18 [1] : vector<1x512xf32> to vector<1xf32>
      %27 = vector.shape_cast %26 : vector<1xf32> to vector<1x1xf32>
      %cst_19 = arith.constant 5.120000e+02 : f32
      %28 = vector.broadcast %cst_19 : f32 to vector<1x1xf32>
      %29 = arith.divf %27, %28 : vector<1x1xf32>
      %cst_20 = arith.constant 9.99999997E-7 : f32
      %30 = vector.broadcast %cst_20 : f32 to vector<1x1xf32>
      %31 = arith.addf %29, %30 : vector<1x1xf32>
      %32 = math.rsqrt %31 : vector<1x1xf32>
      %33 = vector.broadcast %32 : vector<1x1xf32> to vector<1x512xf32>
      %34 = arith.mulf %24, %33 : vector<1x512xf32>
      %c0_21 = arith.constant 0 : index
      %c0_22 = arith.constant 0 : index
      %35 = vector.load %arg8[%c0_21, %c0_22] : memref<1x512xbf16, #tpu.memory_space<vmem>>, vector<1x512xbf16>
      %36 = arith.extf %35 : vector<1x512xbf16> to vector<1x512xf32>
      %37 = arith.mulf %34, %36 : vector<1x512xf32>
      %38 = arith.truncf %37 : vector<1x512xf32> to vector<1x512xbf16>
      %c0_23 = arith.constant 0 : index
      %c0_24 = arith.constant 0 : index
      %39 = vector.load %arg9[%c0_23, %c0_24] : memref<512x1536xbf16, #tpu.memory_space<vmem>>, vector<512x1536xbf16>
      %cst_25 = arith.constant dense<0.000000e+00> : vector<1x1536xf32>
      %40 = tpu.matmul %38, %39, %cst_25 {dimension_numbers = #tpu.dot_dimension_numbers<[1], [0], [0], [1], [0, 0, 1, 1], [], []>} : vector<1x512xbf16>, vector<512x1536xbf16>, vector<1x1536xf32> -> vector<1x1536xf32>
      %c0_26 = arith.constant 0 : index
      %c0_27 = arith.constant 0 : index
      %41 = vector.load %arg10[%c0_26, %c0_27] : memref<1x1536xbf16, #tpu.memory_space<vmem>>, vector<1x1536xbf16>
      %42 = arith.extf %41 : vector<1x1536xbf16> to vector<1x1536xf32>
      %43 = arith.addf %40, %42 : vector<1x1536xf32>
      %c0_28 = arith.constant 0 : index
      %c0_29 = arith.constant 0 : index
      %c0_30 = arith.constant 0 : index
      %44 = vector.load %arg3[%c0_28, %c0_29, %c0_30] : memref<1x1x128xf32, #tpu.memory_space<vmem>>, vector<1x1x128xf32>
      %45 = vector.shape_cast %44 : vector<1x1x128xf32> to vector<1x128xf32>
      %c0_31 = arith.constant 0 : index
      %c0_32 = arith.constant 0 : index
      %c0_33 = arith.constant 0 : index
      %46 = vector.load %arg4[%c0_31, %c0_32, %c0_33] : memref<1x1x128xf32, #tpu.memory_space<vmem>>, vector<1x1x128xf32>
      %47 = vector.shape_cast %46 : vector<1x1x128xf32> to vector<1x128xf32>
      %48 = tpu.iota {dimensions = array<i32: 1>} : vector<1x128xi32>
      %c64_i32 = arith.constant 64 : i32
      %49 = vector.broadcast %c64_i32 : i32 to vector<1x128xi32>
      %50 = arith.cmpi slt, %48, %49 : vector<1x128xi32>
      %cst_34 = arith.constant -1.000000e+00 : f32
      %cst_35 = arith.constant 1.000000e+00 : f32
      %51 = vector.broadcast %cst_34 : f32 to vector<1x128xf32>
      %52 = vector.broadcast %cst_35 : f32 to vector<1x128xf32>
      %53 = arith.select %50, %51, %52 : vector<1x128xi1>, vector<1x128xf32>
      %54 = vector.extract_strided_slice %43 {offsets = [0, 0], sizes = [1, 512], strides = [1, 1]} : vector<1x1536xf32> to vector<1x512xf32>
      %55 = vector.shape_cast %54 : vector<1x512xf32> to vector<4x128xf32>
      %56 = vector.extract_strided_slice %43 {offsets = [0, 512], sizes = [1, 512], strides = [1, 1]} : vector<1x1536xf32> to vector<1x512xf32>
      %57 = vector.shape_cast %56 : vector<1x512xf32> to vector<4x128xf32>
      %c64_i32_36 = arith.constant 64 : i32
      %58 = tpu.dynamic_rotate %55 by %c64_i32_36 dim 1 : vector<4x128xf32>, i32 -> vector<4x128xf32>
      %59 = vector.broadcast %53 : vector<1x128xf32> to vector<4x128xf32>
      %60 = arith.mulf %58, %59 : vector<4x128xf32>
      %61 = vector.shape_cast %55 : vector<4x128xf32> to vector<1x4x128xf32>
      %62 = vector.shape_cast %45 : vector<1x128xf32> to vector<1x1x128xf32>
      %63 = vector.broadcast %62 : vector<1x1x128xf32> to vector<1x4x128xf32>
      %64 = arith.mulf %61, %63 : vector<1x4x128xf32>
      %65 = vector.shape_cast %60 : vector<4x128xf32> to vector<1x4x128xf32>
      %66 = vector.shape_cast %47 : vector<1x128xf32> to vector<1x1x128xf32>
      %67 = vector.broadcast %66 : vector<1x1x128xf32> to vector<1x4x128xf32>
      %68 = arith.mulf %65, %67 : vector<1x4x128xf32>
      %69 = arith.addf %64, %68 : vector<1x4x128xf32>
      %cst_37 = arith.constant 0.0883883461 : f32
      %70 = vector.broadcast %cst_37 : f32 to vector<1x4x128xf32>
      %71 = arith.mulf %69, %70 : vector<1x4x128xf32>
      %c64_i32_38 = arith.constant 64 : i32
      %72 = tpu.dynamic_rotate %57 by %c64_i32_38 dim 1 : vector<4x128xf32>, i32 -> vector<4x128xf32>
      %73 = vector.broadcast %53 : vector<1x128xf32> to vector<4x128xf32>
      %74 = arith.mulf %72, %73 : vector<4x128xf32>
      %75 = vector.shape_cast %57 : vector<4x128xf32> to vector<1x4x128xf32>
      %76 = vector.shape_cast %45 : vector<1x128xf32> to vector<1x1x128xf32>
      %77 = vector.broadcast %76 : vector<1x1x128xf32> to vector<1x4x128xf32>
      %78 = arith.mulf %75, %77 : vector<1x4x128xf32>
      %79 = vector.shape_cast %74 : vector<4x128xf32> to vector<1x4x128xf32>
      %80 = vector.shape_cast %47 : vector<1x128xf32> to vector<1x1x128xf32>
      %81 = vector.broadcast %80 : vector<1x1x128xf32> to vector<1x4x128xf32>
      %82 = arith.mulf %79, %81 : vector<1x4x128xf32>
      %83 = arith.addf %78, %82 : vector<1x4x128xf32>
      %84 = vector.extract_strided_slice %43 {offsets = [0, 1024], sizes = [1, 512], strides = [1, 1]} : vector<1x1536xf32> to vector<1x512xf32>
      %85 = vector.shape_cast %84 : vector<1x512xf32> to vector<1x4x128xf32>
      %86 = vector.shape_cast %83 : vector<1x4x128xf32> to vector<1x1x4x128xf32>
      %c0_39 = arith.constant 0 : index
      %c0_40 = arith.constant 0 : index
      %c0_41 = arith.constant 0 : index
      %c0_42 = arith.constant 0 : index
      %87 = vector.load %arg16[%c0_39, %c0_40, %c0_41, %c0_42] : memref<1x1x4x128xf32, #tpu.memory_space<vmem>>, vector<1x1x4x128xf32>
      tpu.vector_store %arg16[%c0_39, %c0_40, %c0_41, %c0_42], %86 {strides = array<i32>} : memref<1x1x4x128xf32, #tpu.memory_space<vmem>>, vector<1x1x4x128xf32>,
      %88 = vector.shape_cast %85 : vector<1x4x128xf32> to vector<1x1x4x128xf32>
      %c0_43 = arith.constant 0 : index
      %c0_44 = arith.constant 0 : index
      %c0_45 = arith.constant 0 : index
      %c0_46 = arith.constant 0 : index
      %89 = vector.load %arg17[%c0_43, %c0_44, %c0_45, %c0_46] : memref<1x1x4x128xf32, #tpu.memory_space<vmem>>, vector<1x1x4x128xf32>
      tpu.vector_store %arg17[%c0_43, %c0_44, %c0_45, %c0_46], %88 {strides = array<i32>} : memref<1x1x4x128xf32, #tpu.memory_space<vmem>>, vector<1x1x4x128xf32>,
      %90 = tpu.transpose %71, [1, 0, 2] : vector<1x4x128xf32> -> vector<4x1x128xf32>
      %91 = arith.truncf %90 : vector<4x1x128xf32> to vector<4x1x128xbf16>
      %92 = tpu.transpose %83, [1, 0, 2] : vector<1x4x128xf32> -> vector<4x1x128xf32>
      %93 = arith.truncf %92 : vector<4x1x128xf32> to vector<4x1x128xbf16>
      %94 = tpu.transpose %85, [1, 0, 2] : vector<1x4x128xf32> -> vector<4x1x128xf32>
      %95 = arith.truncf %94 : vector<4x1x128xf32> to vector<4x1x128xbf16>
      %c0_47 = arith.constant 0 : index
      %c0_48 = arith.constant 0 : index
      %c0_49 = arith.constant 0 : index
      %c0_50 = arith.constant 0 : index
      %96 = vector.load %arg6[%c0_47, %c0_48, %c0_49, %c0_50] : memref<1x4x8x128xbf16, #tpu.memory_space<vmem>>, vector<1x4x8x128xbf16>
      %97 = vector.shape_cast %96 : vector<1x4x8x128xbf16> to vector<4x8x128xbf16>
      %98 = tpu.concatenate %97, %93 in 1 : vector<4x8x128xbf16>, vector<4x1x128xbf16> -> vector<4x9x128xbf16>
      %c0_51 = arith.constant 0 : index
      %c0_52 = arith.constant 0 : index
      %c0_53 = arith.constant 0 : index
      %c0_54 = arith.constant 0 : index
      %99 = vector.load %arg7[%c0_51, %c0_52, %c0_53, %c0_54] : memref<1x4x8x128xbf16, #tpu.memory_space<vmem>>, vector<1x4x8x128xbf16>
      %100 = vector.shape_cast %99 : vector<1x4x8x128xbf16> to vector<4x8x128xbf16>
      %101 = tpu.concatenate %100, %95 in 1 : vector<4x8x128xbf16>, vector<4x1x128xbf16> -> vector<4x9x128xbf16>
      "tpu.trace_start"() <{level = 10 : i32, message = "nqd,nkd->nqk"}> : () -> ()
      %cst_55 = arith.constant dense<0.000000e+00> : vector<4x1x9xf32>
      %102 = tpu.matmul %91, %98, %cst_55 {dimension_numbers = #tpu.dot_dimension_numbers<[2], [2], [1], [1], [0, 0, 0, 1, 1, 1], [0], [0]>} : vector<4x1x128xbf16>, vector<4x9x128xbf16>, vector<4x1x9xf32> -> vector<4x1x9xf32>
      "tpu.trace_stop"() : () -> ()
      %103 = tpu.iota {dimensions = array<i32: 0>} : vector<1x9xi32>
      %c8_i32 = arith.constant 8 : i32
      %104 = vector.broadcast %c8_i32 : i32 to vector<1x9xi32>
      %105 = arith.addi %104, %103 : vector<1x9xi32>
      %106 = tpu.iota {dimensions = array<i32: 1>} : vector<1x9xi32>
      %107 = arith.cmpi sle, %106, %105 : vector<1x9xi32>
      %108 = vector.shape_cast %107 : vector<1x9xi1> to vector<1x1x9xi1>
      %c0_56 = arith.constant 0 : index
      %c0_57 = arith.constant 0 : index
      %c0_58 = arith.constant 0 : index
      %c0_59 = arith.constant 0 : index
      %109 = vector.load %arg5[%c0_56, %c0_57, %c0_58, %c0_59] : memref<1x1x1x9xbf16, #tpu.memory_space<vmem>>, vector<1x1x1x9xbf16>
      %110 = vector.shape_cast %109 : vector<1x1x1x9xbf16> to vector<1x9xbf16>
      %111 = arith.extf %110 : vector<1x9xbf16> to vector<1x9xf32>
      %112 = vector.shape_cast %111 : vector<1x9xf32> to vector<1x1x9xf32>
      %cst_60 = arith.constant -1.000000e+30 : f32
      %113 = vector.shape_cast %108 : vector<1x1x9xi1> to vector<1x1x9xi1>
      %114 = vector.broadcast %113 : vector<1x1x9xi1> to vector<4x1x9xi1>
      %115 = vector.broadcast %cst_60 : f32 to vector<4x1x9xf32>
      %116 = arith.select %114, %102, %115 : vector<4x1x9xi1>, vector<4x1x9xf32>
      %117 = vector.broadcast %112 : vector<1x1x9xf32> to vector<4x1x9xf32>
      %118 = arith.addf %116, %117 : vector<4x1x9xf32>
      %cst_61 = arith.constant dense<0xFF800000> : vector<4x1xf32>
      %119 = vector.multi_reduction <maximumf>, %118, %cst_61 [2] : vector<4x1x9xf32> to vector<4x1xf32>
      %120 = vector.shape_cast %119 : vector<4x1xf32> to vector<4x1x1xf32>
      %121 = vector.broadcast %120 : vector<4x1x1xf32> to vector<4x1x9xf32>
      %122 = arith.subf %118, %121 : vector<4x1x9xf32>
      %123 = math.exp %122 : vector<4x1x9xf32>
      %cst_62 = arith.constant dense<0.000000e+00> : vector<4x1xf32>
      %124 = vector.multi_reduction <add>, %123, %cst_62 [2] : vector<4x1x9xf32> to vector<4x1xf32>
      %125 = vector.shape_cast %124 : vector<4x1xf32> to vector<4x1x1xf32>
      %126 = tpu.reciprocal %125 {approx = true} : vector<4x1x1xf32> -> vector<4x1x1xf32>
      %127 = vector.broadcast %126 : vector<4x1x1xf32> to vector<4x1x9xf32>
      %128 = arith.mulf %123, %127 : vector<4x1x9xf32>
      %129 = arith.truncf %128 : vector<4x1x9xf32> to vector<4x1x9xbf16>
      "tpu.trace_start"() <{level = 10 : i32, message = "nqk,nkd->nqd"}> : () -> ()
      %cst_63 = arith.constant dense<0.000000e+00> : vector<4x1x128xf32>
      %130 = tpu.matmul %129, %101, %cst_63 {dimension_numbers = #tpu.dot_dimension_numbers<[2], [1], [1], [2], [0, 0, 0, 1, 1, 2], [0], [0]>} : vector<4x1x9xbf16>, vector<4x9x128xbf16>, vector<4x1x128xf32> -> vector<4x1x128xf32>
      "tpu.trace_stop"() : () -> ()
      %131 = tpu.transpose %130, [1, 0, 2] : vector<4x1x128xf32> -> vector<1x4x128xf32>
      %132 = vector.shape_cast %131 : vector<1x4x128xf32> to vector<1x512xf32>
      %133 = arith.truncf %132 : vector<1x512xf32> to vector<1x512xbf16>
      %c0_64 = arith.constant 0 : index
      %c0_65 = arith.constant 0 : index
      %134 = vector.load %arg11[%c0_64, %c0_65] : memref<512x512xbf16, #tpu.memory_space<vmem>>, vector<512x512xbf16>
      %cst_66 = arith.constant dense<0.000000e+00> : vector<1x512xf32>
      %135 = tpu.matmul %133, %134, %cst_66 {dimension_numbers = #tpu.dot_dimension_numbers<[1], [0], [0], [1], [0, 0, 1, 1], [], []>} : vector<1x512xbf16>, vector<512x512xbf16>, vector<1x512xf32> -> vector<1x512xf32>
      %136 = arith.addf %24, %135 : vector<1x512xf32>
      %137 = arith.mulf %136, %136 : vector<1x512xf32>
      %cst_67 = arith.constant dense<0.000000e+00> : vector<1xf32>
      %138 = vector.multi_reduction <add>, %137, %cst_67 [1] : vector<1x512xf32> to vector<1xf32>
      %139 = vector.shape_cast %138 : vector<1xf32> to vector<1x1xf32>
      %cst_68 = arith.constant 5.120000e+02 : f32
      %140 = vector.broadcast %cst_68 : f32 to vector<1x1xf32>
      %141 = arith.divf %139, %140 : vector<1x1xf32>
      %cst_69 = arith.constant 9.99999997E-7 : f32
      %142 = vector.broadcast %cst_69 : f32 to vector<1x1xf32>
      %143 = arith.addf %141, %142 : vector<1x1xf32>
      %144 = math.rsqrt %143 : vector<1x1xf32>
      %145 = vector.broadcast %144 : vector<1x1xf32> to vector<1x512xf32>
      %146 = arith.mulf %136, %145 : vector<1x512xf32>
      %c0_70 = arith.constant 0 : index
      %c0_71 = arith.constant 0 : index
      %147 = vector.load %arg12[%c0_70, %c0_71] : memref<1x512xbf16, #tpu.memory_space<vmem>>, vector<1x512xbf16>
      %148 = arith.extf %147 : vector<1x512xbf16> to vector<1x512xf32>
      %149 = arith.mulf %146, %148 : vector<1x512xf32>
      %150 = arith.truncf %149 : vector<1x512xf32> to vector<1x512xbf16>
      %c0_72 = arith.constant 0 : index
      %c0_73 = arith.constant 0 : index
      %151 = vector.load %arg18[%c0_72, %c0_73] : memref<1x512xbf16, #tpu.memory_space<vmem>>, vector<1x512xbf16>
      tpu.vector_store %arg18[%c0_72, %c0_73], %150 {strides = array<i32>} : memref<1x512xbf16, #tpu.memory_space<vmem>>, vector<1x512xbf16>,
      %152 = vector.shape_cast %136 : vector<1x512xf32> to vector<1x1x512xf32>
      %c0_74 = arith.constant 0 : index
      %c0_75 = arith.constant 0 : index
      %c0_76 = arith.constant 0 : index
      %153 = vector.load %arg15[%c0_74, %c0_75, %c0_76] : memref<1x1x512xf32, #tpu.memory_space<vmem>>, vector<1x1x512xf32>
      tpu.vector_store %arg15[%c0_74, %c0_75, %c0_76], %152 {strides = array<i32>} : memref<1x1x512xf32, #tpu.memory_space<vmem>>, vector<1x1x512xf32>,
    } else {
    }
    %c0 = arith.constant 0 : index
    %c0_1 = arith.constant 0 : index
    %3 = vector.load %arg18[%c0, %c0_1] : memref<1x512xbf16, #tpu.memory_space<vmem>>, vector<1x512xbf16>
    %c0_2 = arith.constant 0 : index
    %c0_3 = arith.constant 0 : index
    %4 = vector.load %arg13[%c0_2, %c0_3] : memref<512x512xbf16, #tpu.memory_space<vmem>>, vector<512x512xbf16>
    %cst = arith.constant dense<0.000000e+00> : vector<1x512xf32>
    %5 = tpu.matmul %3, %4, %cst {dimension_numbers = #tpu.dot_dimension_numbers<[1], [0], [0], [1], [0, 0, 1, 1], [], []>} : vector<1x512xbf16>, vector<512x512xbf16>, vector<1x512xf32> -> vector<1x512xf32>
    %6 = vector.extract_strided_slice %5 {offsets = [0, 0], sizes = [1, 256], strides = [1, 1]} : vector<1x512xf32> to vector<1x256xf32>
    %7 = vector.extract_strided_slice %5 {offsets = [0, 256], sizes = [1, 256], strides = [1, 1]} : vector<1x512xf32> to vector<1x256xf32>
    %cst_4 = arith.constant 0.000000e+00 : f32
    %8 = vector.broadcast %cst_4 : f32 to vector<1x256xf32>
    %9 = arith.subf %8, %7 : vector<1x256xf32>
    %10 = math.exp %9 : vector<1x256xf32>
    %cst_5 = arith.constant 1.000000e+00 : f32
    %11 = vector.broadcast %cst_5 : f32 to vector<1x256xf32>
    %12 = arith.addf %11, %10 : vector<1x256xf32>
    %13 = arith.divf %7, %12 : vector<1x256xf32>
    %14 = arith.mulf %6, %13 : vector<1x256xf32>
    %15 = arith.truncf %14 : vector<1x256xf32> to vector<1x256xbf16>
    %c0_6 = arith.constant 0 : index
    %c0_7 = arith.constant 0 : index
    %c0_8 = arith.constant 0 : index
    %16 = vector.load %arg15[%c0_6, %c0_7, %c0_8] : memref<1x1x512xf32, #tpu.memory_space<vmem>>, vector<1x1x512xf32>
    %c0_9 = arith.constant 0 : index
    %c0_10 = arith.constant 0 : index
    %17 = vector.load %arg14[%c0_9, %c0_10] : memref<256x512xbf16, #tpu.memory_space<vmem>>, vector<256x512xbf16>
    %cst_11 = arith.constant dense<0.000000e+00> : vector<1x512xf32>
    %18 = tpu.matmul %15, %17, %cst_11 {dimension_numbers = #tpu.dot_dimension_numbers<[1], [0], [0], [1], [0, 0, 1, 1], [], []>} : vector<1x256xbf16>, vector<256x512xbf16>, vector<1x512xf32> -> vector<1x512xf32>
    %19 = vector.shape_cast %18 : vector<1x512xf32> to vector<1x1x512xf32>
    %20 = arith.addf %16, %19 : vector<1x1x512xf32>
    %c0_12 = arith.constant 0 : index
    %c0_13 = arith.constant 0 : index
    %c0_14 = arith.constant 0 : index
    %21 = vector.load %arg15[%c0_12, %c0_13, %c0_14] : memref<1x1x512xf32, #tpu.memory_space<vmem>>, vector<1x1x512xf32>
    tpu.vector_store %arg15[%c0_12, %c0_13, %c0_14], %20 {strides = array<i32>} : memref<1x1x512xf32, #tpu.memory_space<vmem>>, vector<1x1x512xf32>,
    return
  }
  func.func @transform_0(%arg0: i32, %arg1: i32) -> (i32, i32, i32) {
    %c0_i32 = arith.constant 0 : i32
    %c0_i32_0 = arith.constant 0 : i32
    %c0_i32_1 = arith.constant 0 : i32
    return %arg0, %c0_i32, %c0_i32_0 : i32, i32, i32
  }
  func.func @transform_1(%arg0: i32, %arg1: i32) -> (i32, i32, i32) {
    %c0_i32 = arith.constant 0 : i32
    %c0_i32_0 = arith.constant 0 : i32
    %c0_i32_1 = arith.constant 0 : i32
    return %arg0, %c0_i32, %c0_i32_0 : i32, i32, i32
  }
  func.func @transform_2(%arg0: i32, %arg1: i32) -> (i32, i32, i32) {
    %c0_i32 = arith.constant 0 : i32
    %c0_i32_0 = arith.constant 0 : i32
    %c0_i32_1 = arith.constant 0 : i32
    return %arg0, %c0_i32, %c0_i32_0 : i32, i32, i32
  }
  func.func @transform_3(%arg0: i32, %arg1: i32) -> (i32, i32, i32, i32) {
    %c0_i32 = arith.constant 0 : i32
    %c0_i32_0 = arith.constant 0 : i32
    %c0_i32_1 = arith.constant 0 : i32
    %c0_i32_2 = arith.constant 0 : i32
    return %arg0, %c0_i32, %c0_i32_0, %c0_i32_1 : i32, i32, i32, i32
  }
  func.func @transform_4(%arg0: i32, %arg1: i32) -> (i32, i32, i32, i32) {
    %c0_i32 = arith.constant 0 : i32
    %c0_i32_0 = arith.constant 0 : i32
    %c0_i32_1 = arith.constant 0 : i32
    %c0_i32_2 = arith.constant 0 : i32
    return %arg0, %c0_i32, %c0_i32_0, %c0_i32_1 : i32, i32, i32, i32
  }
  func.func @transform_5(%arg0: i32, %arg1: i32) -> (i32, i32, i32, i32) {
    %c0_i32 = arith.constant 0 : i32
    %c0_i32_0 = arith.constant 0 : i32
    %c0_i32_1 = arith.constant 0 : i32
    %c0_i32_2 = arith.constant 0 : i32
    return %arg0, %c0_i32, %c0_i32_0, %c0_i32_1 : i32, i32, i32, i32
  }
  func.func @transform_6(%arg0: i32, %arg1: i32) -> (i32, i32) {
    %c0_i32 = arith.constant 0 : i32
    %c0_i32_0 = arith.constant 0 : i32
    %c0_i32_1 = arith.constant 0 : i32
    return %c0_i32, %c0_i32_0 : i32, i32
  }
  func.func @transform_7(%arg0: i32, %arg1: i32) -> (i32, i32) {
    %c0_i32 = arith.constant 0 : i32
    %c0_i32_0 = arith.constant 0 : i32
    %c0_i32_1 = arith.constant 0 : i32
    return %c0_i32, %c0_i32_0 : i32, i32
  }
  func.func @transform_8(%arg0: i32, %arg1: i32) -> (i32, i32) {
    %c0_i32 = arith.constant 0 : i32
    %c0_i32_0 = arith.constant 0 : i32
    %c0_i32_1 = arith.constant 0 : i32
    return %c0_i32, %c0_i32_0 : i32, i32
  }
  func.func @transform_9(%arg0: i32, %arg1: i32) -> (i32, i32) {
    %c0_i32 = arith.constant 0 : i32
    %c0_i32_0 = arith.constant 0 : i32
    %c0_i32_1 = arith.constant 0 : i32
    return %c0_i32, %c0_i32_0 : i32, i32
  }
  func.func @transform_10(%arg0: i32, %arg1: i32) -> (i32, i32) {
    %c0_i32 = arith.constant 0 : i32
    %c0_i32_0 = arith.constant 0 : i32
    %c0_i32_1 = arith.constant 0 : i32
    return %c0_i32, %c0_i32_0 : i32, i32
  }
  func.func @transform_11(%arg0: i32, %arg1: i32) -> (i32, i32) {
    %c0_i32 = arith.constant 0 : i32
    %c0_i32_0 = arith.constant 0 : i32
    return %c0_i32, %arg1 : i32, i32
  }
  func.func @transform_12(%arg0: i32, %arg1: i32) -> (i32, i32) {
    %c0_i32 = arith.constant 0 : i32
    %c0_i32_0 = arith.constant 0 : i32
    return %arg1, %c0_i32 : i32, i32
  }
  func.func @transform_13(%arg0: i32, %arg1: i32) -> (i32, i32, i32) {
    %c0_i32 = arith.constant 0 : i32
    %c0_i32_0 = arith.constant 0 : i32
    %c0_i32_1 = arith.constant 0 : i32
    return %arg0, %c0_i32, %c0_i32_0 : i32, i32, i32
  }
  func.func @transform_14(%arg0: i32, %arg1: i32) -> (i32, i32, i32, i32) {
    %c0_i32 = arith.constant 0 : i32
    %c0_i32_0 = arith.constant 0 : i32
    %c0_i32_1 = arith.constant 0 : i32
    %c0_i32_2 = arith.constant 0 : i32
    return %arg0, %c0_i32, %c0_i32_0, %c0_i32_1 : i32, i32, i32, i32
  }
  func.func @transform_15(%arg0: i32, %arg1: i32) -> (i32, i32, i32, i32) {
    %c0_i32 = arith.constant 0 : i32
    %c0_i32_0 = arith.constant 0 : i32
    %c0_i32_1 = arith.constant 0 : i32
    %c0_i32_2 = arith.constant 0 : i32
    return %arg0, %c0_i32, %c0_i32_0, %c0_i32_1 : i32, i32, i32, i32
  }
}

</mosaic_0001>

<llo_original>
// kernel: tpu_custom_call.1
$region0: #{tpu_custom_call.1}
  #allocation0 [shape = 'u32[]', space=smem, size = 0x4, offset = 0x4, fixed_abs, tag = 'smem constant byte address 0x4 - core index']
  #allocation1 [shape = 'u32[144,128]{1,0:T(1,128)}', space=vmem, size = 0x12000, scoped, tag = 'internal scratch']
  #allocation2 [shape = 'bf16[1,512]{1,0:T(2,128)(2,1)}', space=vmem, size = 0x800, scoped, tag = 'scratch operand']
  %s0 = inlined_call_operand.hbm [shape: bf16[1,1,512], index: 0, kind: input, shape index: {}]
  %s1 = inlined_call_operand.hbm [shape: f32[1,1,128], index: 1, kind: input, shape index: {}]
  %s2 = inlined_call_operand.hbm [shape: f32[1,1,128], index: 2, kind: input, shape index: {}]
  %s3 = inlined_call_operand.hbm [shape: bf16[1,1,1,9], index: 3, kind: input, shape index: {}]
  %s4 = inlined_call_operand.hbm [shape: bf16[1,4,8,128], index: 4, kind: input, shape index: {}]
  %s5 = inlined_call_operand.hbm [shape: bf16[1,4,8,128], index: 5, kind: input, shape index: {}]
  %s6 = inlined_call_operand.hbm [shape: bf16[1,512], index: 6, kind: input, shape index: {}]
  %s7 = inlined_call_operand.hbm [shape: bf16[512,1536], index: 7, kind: input, shape index: {}]
  %s8 = inlined_call_operand.hbm [shape: bf16[1,1536], index: 8, kind: input, shape index: {}]
  %s9 = inlined_call_operand.hbm [shape: bf16[512,512], index: 9, kind: input, shape index: {}]
  %s10 = inlined_call_operand.hbm [shape: bf16[1,512], index: 10, kind: input, shape index: {}]
  %s11 = inlined_call_operand.hbm [shape: bf16[512,1024], index: 11, kind: input, shape index: {}]
  %s12 = inlined_call_operand.hbm [shape: bf16[512,512], index: 12, kind: input, shape index: {}]
  %s13 = inlined_call_operand.hbm [shape: f32[1,1,512], index: 13, kind: output, shape index: {0}]
  %s14 = inlined_call_operand.hbm [shape: f32[1,1,4,128], index: 14, kind: output, shape index: {1}]
  %s15 = inlined_call_operand.hbm [shape: f32[1,1,4,128], index: 15, kind: output, shape index: {2}]
  %16 = xla_tuple %s13, %s14, %s15
  %s17 = sld [smem:[#allocation0]]
  $region157: #{tpu_custom_call.1} parent=0
    _
  %s19 = ssub.s32 1, %s17
  %s20 = scalar_select 0, %s19, %s17
  $region1: #{tpu_custom_call.1} parent=0
    #allocation3 [shape = 'u8[2048]{0}', space=vmem, size = 0x800, scoped, tag = 'input window, operand 0, single buffered']
    #allocation4 [shape = 's32[2]{0}', space=sflag, size = 0x8, scoped, tag = 'scoped memory for tpu_custom_call.1']
    #allocation5 [shape = 's32[2]{0}', space=sflag, size = 0x8, scoped, tag = 'scoped memory for tpu_custom_call.1']
    #allocation6 [shape = 'u8[512]{0}', space=vmem, size = 0x400, scoped, tag = 'input window, operand 1, single buffered']
    #allocation7 [shape = 's32[1]{0}', space=sflag, size = 0x4, scoped, tag = 'scoped memory for tpu_custom_call.1']
    #allocation8 [shape = 'u8[512]{0}', space=vmem, size = 0x400, scoped, tag = 'input window, operand 2, single buffered']
    #allocation9 [shape = 'u8[512]{0}', space=vmem, size = 0x400, scoped, tag = 'input window, operand 3, single buffered']
    #allocation10 [shape = 's32[1]{0}', space=sflag, size = 0x4, scoped, tag = 'scoped memory for tpu_custom_call.1']
    #allocation11 [shape = 'u8[8192]{0}', space=vmem, size = 0x2000, scoped, tag = 'input window, operand 4, single buffered']
    #allocation12 [shape = 'u8[8192]{0}', space=vmem, size = 0x2000, scoped, tag = 'input window, operand 5, single buffered']
    #allocation13 [shape = 's32[1]{0}', space=sflag, size = 0x4, scoped, tag = 'scoped memory for tpu_custom_call.1']
    #allocation14 [shape = 'u8[2048]{0}', space=vmem, size = 0x800, scoped, tag = 'input window, operand 6, single buffered']
    #allocation15 [shape = 'u8[1572864]{0}', space=vmem, size = 0x180000, scoped, tag = 'input window, operand 7, single buffered']
    #allocation16 [shape = 's32[1]{0}', space=sflag, size = 0x4, scoped, tag = 'scoped memory for tpu_custom_call.1']
    #allocation17 [shape = 'u8[6144]{0}', space=vmem, size = 0x1800, scoped, tag = 'input window, operand 8, single buffered']
    #allocation18 [shape = 'u8[524288]{0}', space=vmem, size = 0x80000, scoped, tag = 'input window, operand 9, single buffered']
    #allocation19 [shape = 's32[1]{0}', space=sflag, size = 0x4, scoped, tag = 'scoped memory for tpu_custom_call.1']
    #allocation20 [shape = 'u8[2048]{0}', space=vmem, size = 0x800, scoped, tag = 'input window, operand 10, single buffered']
    #allocation21 [shape = 'u8[1048576]{0}', space=vmem, size = 0x100000, scoped, tag = 'input window, operand 11']
    #allocation22 [shape = 's32[2]{0}', space=sflag, size = 0x8, scoped, tag = 'scoped memory for tpu_custom_call.1']
    #allocation23 [shape = 'u8[524288]{0}', space=vmem, size = 0x80000, scoped, tag = 'input window, operand 12']
    #allocation24 [shape = 'u8[2048]{0}', space=vmem, size = 0x800, scoped, tag = 'output window, operand 0, single buffered']
    #allocation25 [shape = 'u8[2048]{0}', space=vmem, size = 0x800, scoped, tag = 'output window, operand 1, single buffered']
    #allocation26 [shape = 's32[1]{0}', space=sflag, size = 0x4, scoped, tag = 'scoped memory for tpu_custom_call.1']
    #allocation27 [shape = 'u8[2048]{0}', space=vmem, size = 0x800, scoped, tag = 'output window, operand 2, single buffered']
    %21 = vsyncpa [#allocation4], 0
    %22 = vsyncpa [#allocation7], 0
    %23 = vsyncpa [#allocation10], 0
    %24 = vsyncpa [#allocation13], 0
    %25 = vsyncpa [#allocation16], 0
    %26 = vsyncpa [#allocation19], 0
    %27 = vsyncpa [#allocation22], 0
    %s28 = scalar_lea.sflag [#allocation22], 1
    %29 = vsyncpa %s28, 0
    %30 = vsyncpa [#allocation5], 0
    %31 = vsyncpa [#allocation26], 0
    loop: start=0, step=1, limit=4
    $region2: #{tpu_custom_call.1} parent=1 // loop_pre_header
      _
    $region3: #{tpu_custom_call.1} parent=1 // loop_header
      %s33 = sphi 0, %s37
      %p34 = scmp.ge.s32.totalorder %s33, 4
      %s40 = sphi 0, %s52
      %s41 = sphi 0, %s48
      %s42 = sphi 0, %s40
      %s43 = sphi 0, %s41
      %s44 = sphi 0, %s42
      %s45 = sphi 0, %s43
      %s55 = sphi 0, %s57
      %s58 = sphi 0, %s55
      %s59 = sphi 0, %s58
      %s75 = sphi 0, %s59
      %s81 = sphi 0, %s83
      %s84 = sphi 0, %s81
      %s85 = sphi 0, %s84
      %s101 = sphi 0, %s85
      %s107 = sphi 0, %s109
      %s110 = sphi 0, %s107
      %s111 = sphi 0, %s110
      %s127 = sphi 0, %s111
      %s133 = sphi 0, %s135
      %s136 = sphi 0, %s133
      %s137 = sphi 0, %s136
      %s153 = sphi 0, %s137
      %s159 = sphi 0, %s161
      %s162 = sphi 0, %s159
      %s163 = sphi 0, %s162
      %s179 = sphi 0, %s163
      %s185 = sphi 0, %s187
      %s188 = sphi 0, %s185
      %s189 = sphi 0, %s188
      %s205 = sphi 0, %s189
      %s209 = sphi 0, %s209
      %s211 = sphi 0, %s209
      %s212 = sphi 0, %s211
      %s226 = sphi 0, %s212
      %s230 = sphi 0, %s230
      %s232 = sphi 0, %s230
      %s233 = sphi 0, %s232
      %s247 = sphi 0, %s233
      %s251 = sphi 0, %s251
      %s253 = sphi 0, %s251
      %s254 = sphi 0, %s253
      %s268 = sphi 0, %s254
      %s272 = sphi 0, %s272
      %s274 = sphi 0, %s272
      %s275 = sphi 0, %s274
      %s289 = sphi 0, %s275
      %s293 = sphi 0, %s293
      %s295 = sphi 0, %s293
      %s296 = sphi 0, %s295
      %s310 = sphi 0, %s296
      %s316 = sphi 0, %s318
      %s319 = sphi 0, %s316
      %s320 = sphi 0, %s319
      %s336 = sphi 0, %s320
      %s342 = sphi 0, %s344
      %s345 = sphi 0, %s342
      %s346 = sphi 0, %s345
      %s362 = sphi 0, %s346
      %s368 = sphi 0, %s370
      %s371 = sphi 0, %s368
      %s372 = sphi 0, %s371
      %s388 = sphi 0, %s372
      %s394 = sphi 0, %s396
      %s397 = sphi 0, %s394
      %s398 = sphi 0, %s397
      %s414 = sphi 0, %s398
      %s420 = sphi 0, %s422
      %s423 = sphi 0, %s420
      %s424 = sphi 0, %s423
      %s440 = sphi 0, %s424
    $region4: #{tpu_custom_call.1} parent=1 // loop_header_branch
      %36 = sbr.rel (%p34) target = $region8
    $region5: #{tpu_custom_call.1} parent=1 // loop_body
      %s38 = ssub.s32 %s33, 1
      %s39 = ssub.s32 %s33, 2
      %s46 = sadd.s32 1, %s41
      %p47 = scmp.ge.s32.totalorder %s46, 2
      %s48 = scalar_select %p47, 0, %s46
      %s49 = sadd.s32 1, %s40
      %s50 = scalar_select %p47, %s49, %s40
      %p51 = scmp.ge.s32.totalorder %s50, 1
      %s52 = scalar_select %p51, 0, %s50
      %s53 = ssub.s32 %s40, %s52
      %p54 = scmp.eq.s32.totalorder %s53, 0
      %s56 = sadd.s32 %s55, 1
      %s57 = scalar_select %p54, %s55, %s56
      %p60 = pneg %p54
      %p61 = scmp.eq.s32.totalorder %s33, 1
      %p62 = por %p60, %p61
      %p63 = scmp.ne.s32.totalorder %s55, %s58
      %p64 = scmp.eq.s32.totalorder %s33, 0
      %p65 = por %p63, %p64
      %p66 = scmp.ne.s32.totalorder %s55, %s58
      %p67 = scmp.eq.s32.totalorder %s38, 1
      %p68 = por %p66, %p67
      %p69 = scmp.ne.s32.totalorder %s58, %s59
      %p70 = scmp.eq.s32.totalorder %s38, 0
      %p71 = por %p69, %p70
      %p72 = scmp.ne.s32.totalorder %s58, %s59
      %p73 = scmp.eq.s32.totalorder %s39, 1
      %p74 = por %p72, %p73
      %p76 = scmp.ne.s32.totalorder %s59, %s75
      %p77 = scmp.eq.s32.totalorder %s39, 0
      %p78 = por %p76, %p77
      %s79 = ssub.s32 %s40, %s52
      %p80 = scmp.eq.s32.totalorder %s79, 0
      %s82 = sadd.s32 %s81, 1
      %s83 = scalar_select %p80, %s81, %s82
      %p86 = pneg %p80
      %p87 = scmp.eq.s32.totalorder %s33, 1
      %p88 = por %p86, %p87
      %p89 = scmp.ne.s32.totalorder %s81, %s84
      %p90 = scmp.eq.s32.totalorder %s33, 0
      %p91 = por %p89, %p90
      %p92 = scmp.ne.s32.totalorder %s81, %s84
      %p93 = scmp.eq.s32.totalorder %s38, 1
      %p94 = por %p92, %p93
      %p95 = scmp.ne.s32.totalorder %s84, %s85
      %p96 = scmp.eq.s32.totalorder %s38, 0
      %p97 = por %p95, %p96
      %p98 = scmp.ne.s32.totalorder %s84, %s85
      %p99 = scmp.eq.s32.totalorder %s39, 1
      %p100 = por %p98, %p99
      %p102 = scmp.ne.s32.totalorder %s85, %s101
      %p103 = scmp.eq.s32.totalorder %s39, 0
      %p104 = por %p102, %p103
      %s105 = ssub.s32 %s40, %s52
      %p106 = scmp.eq.s32.totalorder %s105, 0
      %s108 = sadd.s32 %s107, 1
      %s109 = scalar_select %p106, %s107, %s108
      %p112 = pneg %p106
      %p113 = scmp.eq.s32.totalorder %s33, 1
      %p114 = por %p112, %p113
      %p115 = scmp.ne.s32.totalorder %s107, %s110
      %p116 = scmp.eq.s32.totalorder %s33, 0
      %p117 = por %p115, %p116
      %p118 = scmp.ne.s32.totalorder %s107, %s110
      %p119 = scmp.eq.s32.totalorder %s38, 1
      %p120 = por %p118, %p119
      %p121 = scmp.ne.s32.totalorder %s110, %s111
      %p122 = scmp.eq.s32.totalorder %s38, 0
      %p123 = por %p121, %p122
      %p124 = scmp.ne.s32.totalorder %s110, %s111
      %p125 = scmp.eq.s32.totalorder %s39, 1
      %p126 = por %p124, %p125
      %p128 = scmp.ne.s32.totalorder %s111, %s127
      %p129 = scmp.eq.s32.totalorder %s39, 0
      %p130 = por %p128, %p129
      %s131 = ssub.s32 %s40, %s52
      %p132 = scmp.eq.s32.totalorder %s131, 0
      %s134 = sadd.s32 %s133, 1
      %s135 = scalar_select %p132, %s133, %s134
      %p138 = pneg %p132
      %p139 = scmp.eq.s32.totalorder %s33, 1
      %p140 = por %p138, %p139
      %p141 = scmp.ne.s32.totalorder %s133, %s136
      %p142 = scmp.eq.s32.totalorder %s33, 0
      %p143 = por %p141, %p142
      %p144 = scmp.ne.s32.totalorder %s133, %s136
      %p145 = scmp.eq.s32.totalorder %s38, 1
      %p146 = por %p144, %p145
      %p147 = scmp.ne.s32.totalorder %s136, %s137
      %p148 = scmp.eq.s32.totalorder %s38, 0
      %p149 = por %p147, %p148
      %p150 = scmp.ne.s32.totalorder %s136, %s137
      %p151 = scmp.eq.s32.totalorder %s39, 1
      %p152 = por %p150, %p151
      %p154 = scmp.ne.s32.totalorder %s137, %s153
      %p155 = scmp.eq.s32.totalorder %s39, 0
      %p156 = por %p154, %p155
      %s157 = ssub.s32 %s40, %s52
      %p158 = scmp.eq.s32.totalorder %s157, 0
      %s160 = sadd.s32 %s159, 1
      %s161 = scalar_select %p158, %s159, %s160
      %p164 = pneg %p158
      %p165 = scmp.eq.s32.totalorder %s33, 1
      %p166 = por %p164, %p165
      %p167 = scmp.ne.s32.totalorder %s159, %s162
      %p168 = scmp.eq.s32.totalorder %s33, 0
      %p169 = por %p167, %p168
      %p170 = scmp.ne.s32.totalorder %s159, %s162
      %p171 = scmp.eq.s32.totalorder %s38, 1
      %p172 = por %p170, %p171
      %p173 = scmp.ne.s32.totalorder %s162, %s163
      %p174 = scmp.eq.s32.totalorder %s38, 0
      %p175 = por %p173, %p174
      %p176 = scmp.ne.s32.totalorder %s162, %s163
      %p177 = scmp.eq.s32.totalorder %s39, 1
      %p178 = por %p176, %p177
      %p180 = scmp.ne.s32.totalorder %s163, %s179
      %p181 = scmp.eq.s32.totalorder %s39, 0
      %p182 = por %p180, %p181
      %s183 = ssub.s32 %s40, %s52
      %p184 = scmp.eq.s32.totalorder %s183, 0
      %s186 = sadd.s32 %s185, 1
      %s187 = scalar_select %p184, %s185, %s186
      %p190 = pneg %p184
      %p191 = scmp.eq.s32.totalorder %s33, 1
      %p192 = por %p190, %p191
      %p193 = scmp.ne.s32.totalorder %s185, %s188
      %p194 = scmp.eq.s32.totalorder %s33, 0
      %p195 = por %p193, %p194
      %p196 = scmp.ne.s32.totalorder %s185, %s188
      %p197 = scmp.eq.s32.totalorder %s38, 1
      %p198 = por %p196, %p197
      %p199 = scmp.ne.s32.totalorder %s188, %s189
      %p200 = scmp.eq.s32.totalorder %s38, 0
      %p201 = por %p199, %p200
      %p202 = scmp.ne.s32.totalorder %s188, %s189
      %p203 = scmp.eq.s32.totalorder %s39, 1
      %p204 = por %p202, %p203
      %p206 = scmp.ne.s32.totalorder %s189, %s205
      %p207 = scmp.eq.s32.totalorder %s39, 0
      %p208 = por %p206, %p207
      %s210 = sadd.s32 %s209, 1
      %p213 = scmp.eq.s32.totalorder %s33, 1
      %p214 = scmp.ne.s32.totalorder %s209, %s211
      %p215 = scmp.eq.s32.totalorder %s33, 0
      %p216 = por %p214, %p215
      %p217 = scmp.ne.s32.totalorder %s209, %s211
      %p218 = scmp.eq.s32.totalorder %s38, 1
      %p219 = por %p217, %p218
      %p220 = scmp.ne.s32.totalorder %s211, %s212
      %p221 = scmp.eq.s32.totalorder %s38, 0
      %p222 = por %p220, %p221
      %p223 = scmp.ne.s32.totalorder %s211, %s212
      %p224 = scmp.eq.s32.totalorder %s39, 1
      %p225 = por %p223, %p224
      %p227 = scmp.ne.s32.totalorder %s212, %s226
      %p228 = scmp.eq.s32.totalorder %s39, 0
      %p229 = por %p227, %p228
      %s231 = sadd.s32 %s230, 1
      %p234 = scmp.eq.s32.totalorder %s33, 1
      %p235 = scmp.ne.s32.totalorder %s230, %s232
      %p236 = scmp.eq.s32.totalorder %s33, 0
      %p237 = por %p235, %p236
      %p238 = scmp.ne.s32.totalorder %s230, %s232
      %p239 = scmp.eq.s32.totalorder %s38, 1
      %p240 = por %p238, %p239
      %p241 = scmp.ne.s32.totalorder %s232, %s233
      %p242 = scmp.eq.s32.totalorder %s38, 0
      %p243 = por %p241, %p242
      %p244 = scmp.ne.s32.totalorder %s232, %s233
      %p245 = scmp.eq.s32.totalorder %s39, 1
      %p246 = por %p244, %p245
      %p248 = scmp.ne.s32.totalorder %s233, %s247
      %p249 = scmp.eq.s32.totalorder %s39, 0
      %p250 = por %p248, %p249
      %s252 = sadd.s32 %s251, 1
      %p255 = scmp.eq.s32.totalorder %s33, 1
      %p256 = scmp.ne.s32.totalorder %s251, %s253
      %p257 = scmp.eq.s32.totalorder %s33, 0
      %p258 = por %p256, %p257
      %p259 = scmp.ne.s32.totalorder %s251, %s253
      %p260 = scmp.eq.s32.totalorder %s38, 1
      %p261 = por %p259, %p260
      %p262 = scmp.ne.s32.totalorder %s253, %s254
      %p263 = scmp.eq.s32.totalorder %s38, 0
      %p264 = por %p262, %p263
      %p265 = scmp.ne.s32.totalorder %s253, %s254
      %p266 = scmp.eq.s32.totalorder %s39, 1
      %p267 = por %p265, %p266
      %p269 = scmp.ne.s32.totalorder %s254, %s268
      %p270 = scmp.eq.s32.totalorder %s39, 0
      %p271 = por %p269, %p270
      %s273 = sadd.s32 %s272, 1
      %p276 = scmp.eq.s32.totalorder %s33, 1
      %p277 = scmp.ne.s32.totalorder %s272, %s274
      %p278 = scmp.eq.s32.totalorder %s33, 0
      %p279 = por %p277, %p278
      %p280 = scmp.ne.s32.totalorder %s272, %s274
      %p281 = scmp.eq.s32.totalorder %s38, 1
      %p282 = por %p280, %p281
      %p283 = scmp.ne.s32.totalorder %s274, %s275
      %p284 = scmp.eq.s32.totalorder %s38, 0
      %p285 = por %p283, %p284
      %p286 = scmp.ne.s32.totalorder %s274, %s275
      %p287 = scmp.eq.s32.totalorder %s39, 1
      %p288 = por %p286, %p287
      %p290 = scmp.ne.s32.totalorder %s275, %s289
      %p291 = scmp.eq.s32.totalorder %s39, 0
      %p292 = por %p290, %p291
      %s294 = sadd.s32 %s293, 1
      %p297 = scmp.eq.s32.totalorder %s33, 1
      %p298 = scmp.ne.s32.totalorder %s293, %s295
      %p299 = scmp.eq.s32.totalorder %s33, 0
      %p300 = por %p298, %p299
      %p301 = scmp.ne.s32.totalorder %s293, %s295
      %p302 = scmp.eq.s32.totalorder %s38, 1
      %p303 = por %p301, %p302
      %p304 = scmp.ne.s32.totalorder %s295, %s296
      %p305 = scmp.eq.s32.totalorder %s38, 0
      %p306 = por %p304, %p305
      %p307 = scmp.ne.s32.totalorder %s295, %s296
      %p308 = scmp.eq.s32.totalorder %s39, 1
      %p309 = por %p307, %p308
      %p311 = scmp.ne.s32.totalorder %s296, %s310
      %p312 = scmp.eq.s32.totalorder %s39, 0
      %p313 = por %p311, %p312
      %s314 = ssub.s32 %s41, %s48
      %p315 = scmp.eq.s32.totalorder %s314, 0
      %s317 = sadd.s32 %s316, 1
      %s318 = scalar_select %p315, %s316, %s317
      %p321 = pneg %p315
      %p322 = scmp.eq.s32.totalorder %s33, 1
      %p323 = por %p321, %p322
      %p324 = scmp.ne.s32.totalorder %s316, %s319
      %p325 = scmp.eq.s32.totalorder %s33, 0
      %p326 = por %p324, %p325
      %p327 = scmp.ne.s32.totalorder %s316, %s319
      %p328 = scmp.eq.s32.totalorder %s38, 1
      %p329 = por %p327, %p328
      %p330 = scmp.ne.s32.totalorder %s319, %s320
      %p331 = scmp.eq.s32.totalorder %s38, 0
      %p332 = por %p330, %p331
      %p333 = scmp.ne.s32.totalorder %s319, %s320
      %p334 = scmp.eq.s32.totalorder %s39, 1
      %p335 = por %p333, %p334
      %p337 = scmp.ne.s32.totalorder %s320, %s336
      %p338 = scmp.eq.s32.totalorder %s39, 0
      %p339 = por %p337, %p338
      %s340 = ssub.s32 %s41, %s48
      %p341 = scmp.eq.s32.totalorder %s340, 0
      %s343 = sadd.s32 %s342, 1
      %s344 = scalar_select %p341, %s342, %s343
      %p347 = pneg %p341
      %p348 = scmp.eq.s32.totalorder %s33, 1
      %p349 = por %p347, %p348
      %p350 = scmp.ne.s32.totalorder %s342, %s345
      %p351 = scmp.eq.s32.totalorder %s33, 0
      %p352 = por %p350, %p351
      %p353 = scmp.ne.s32.totalorder %s342, %s345
      %p354 = scmp.eq.s32.totalorder %s38, 1
      %p355 = por %p353, %p354
      %p356 = scmp.ne.s32.totalorder %s345, %s346
      %p357 = scmp.eq.s32.totalorder %s38, 0
      %p358 = por %p356, %p357
      %p359 = scmp.ne.s32.totalorder %s345, %s346
      %p360 = scmp.eq.s32.totalorder %s39, 1
      %p361 = por %p359, %p360
      %p363 = scmp.ne.s32.totalorder %s346, %s362
      %p364 = scmp.eq.s32.totalorder %s39, 0
      %p365 = por %p363, %p364
      %s366 = ssub.s32 %s40, %s52
      %p367 = scmp.eq.s32.totalorder %s366, 0
      %s369 = sadd.s32 %s368, 1
      %s370 = scalar_select %p367, %s368, %s369
      %p373 = pneg %p367
      %p374 = scmp.eq.s32.totalorder %s33, 1
      %p375 = por %p373, %p374
      %p376 = scmp.ne.s32.totalorder %s368, %s371
      %p377 = scmp.eq.s32.totalorder %s33, 0
      %p378 = por %p376, %p377
      %p379 = scmp.ne.s32.totalorder %s368, %s371
      %p380 = scmp.eq.s32.totalorder %s38, 1
      %p381 = por %p379, %p380
      %p382 = scmp.ne.s32.totalorder %s371, %s372
      %p383 = scmp.eq.s32.totalorder %s38, 0
      %p384 = por %p382, %p383
      %p385 = scmp.ne.s32.totalorder %s371, %s372
      %p386 = scmp.eq.s32.totalorder %s39, 1
      %p387 = por %p385, %p386
      %p389 = scmp.ne.s32.totalorder %s372, %s388
      %p390 = scmp.eq.s32.totalorder %s39, 0
      %p391 = por %p389, %p390
      %s392 = ssub.s32 %s40, %s52
      %p393 = scmp.eq.s32.totalorder %s392, 0
      %s395 = sadd.s32 %s394, 1
      %s396 = scalar_select %p393, %s394, %s395
      %p399 = pneg %p393
      %p400 = scmp.eq.s32.totalorder %s33, 1
      %p401 = por %p399, %p400
      %p402 = scmp.ne.s32.totalorder %s394, %s397
      %p403 = scmp.eq.s32.totalorder %s33, 0
      %p404 = por %p402, %p403
      %p405 = scmp.ne.s32.totalorder %s394, %s397
      %p406 = scmp.eq.s32.totalorder %s38, 1
      %p407 = por %p405, %p406
      %p408 = scmp.ne.s32.totalorder %s397, %s398
      %p409 = scmp.eq.s32.totalorder %s38, 0
      %p410 = por %p408, %p409
      %p411 = scmp.ne.s32.totalorder %s397, %s398
      %p412 = scmp.eq.s32.totalorder %s39, 1
      %p413 = por %p411, %p412
      %p415 = scmp.ne.s32.totalorder %s398, %s414
      %p416 = scmp.eq.s32.totalorder %s39, 0
      %p417 = por %p415, %p416
      %s418 = ssub.s32 %s40, %s52
      %p419 = scmp.eq.s32.totalorder %s418, 0
      %s421 = sadd.s32 %s420, 1
      %s422 = scalar_select %p419, %s420, %s421
      %p425 = pneg %p419
      %p426 = scmp.eq.s32.totalorder %s33, 1
      %p427 = por %p425, %p426
      %p428 = scmp.ne.s32.totalorder %s420, %s423
      %p429 = scmp.eq.s32.totalorder %s33, 0
      %p430 = por %p428, %p429
      %p431 = scmp.ne.s32.totalorder %s420, %s423
      %p432 = scmp.eq.s32.totalorder %s38, 1
      %p433 = por %p431, %p432
      %p434 = scmp.ne.s32.totalorder %s423, %s424
      %p435 = scmp.eq.s32.totalorder %s38, 0
      %p436 = por %p434, %p435
      %p437 = scmp.ne.s32.totalorder %s423, %s424
      %p438 = scmp.eq.s32.totalorder %s39, 1
      %p439 = por %p437, %p438
      %p441 = scmp.ne.s32.totalorder %s424, %s440
      %p442 = scmp.eq.s32.totalorder %s39, 0
      %p443 = por %p441, %p442
      %p444 = scmp.le.s32.totalorder 1, %s33
      %p445 = scmp.lt.s32.totalorder %s33, 3
      %p446 = pnand %p444, %p445
      %p447 = pneg %p446
      // Predicated region
      $region9: #{tpu_custom_call.1} parent=5 // pred_check
        _
      $region10: #{tpu_custom_call.1} parent=5 // pred_check_branch
        %449 = sbr.rel (%p446) target = $region12
      $region11: #{tpu_custom_call.1} parent=5 // pred_region
        %s450 = ssub.s32 %s33, 1
        // Predicated region
        $region13: #{tpu_custom_call.1} parent=11 // pred_check
          %p451 = pneg %p71
        $region14: #{tpu_custom_call.1} parent=11 // pred_check_branch
          %453 = sbr.rel (%p451) target = $region16
        $region15: #{tpu_custom_call.1} parent=11 // pred_region
          %s455 = ssub.s32 64, 64
          %456 = vsyncadd [#allocation4], %s455
          %s457 = smul.addr %s42, 4
          %s458 = smul.addr %s457, 16
          %s459 = scalar_lea.hbm %s0, %s458
          %s461 = sshll.u32 [#allocation3], 4
          %s462 = int_to_ptr.vmem [resolvable:$true] %s461
          %464 = dma.hbm_to_vmem [thread:$0]  %s459, 64, %s462, [#allocation4]
        $region16: #{tpu_custom_call.1} parent=11 // pred_fallthru
          _
        // Predicated region
        $region17: #{tpu_custom_call.1} parent=11 // pred_check
          %p465 = pneg %p97
        $region18: #{tpu_custom_call.1} parent=11 // pred_check_branch
          %467 = sbr.rel (%p465) target = $region20
        $region19: #{tpu_custom_call.1} parent=11 // pred_region
          %s469 = ssub.s32 16, 16
          %470 = vsyncadd [#allocation7], %s469
          %s471 = smul.addr %s42, 16
          %s472 = scalar_lea.hbm %s1, %s471
          %s474 = sshll.u32 [#allocation6], 4
          %s475 = int_to_ptr.vmem [resolvable:$true] %s474
          %477 = dma.hbm_to_vmem [thread:$0]  %s472, 16, %s475, [#allocation7]
        $region20: #{tpu_custom_call.1} parent=11 // pred_fallthru
          _
        // Predicated region
        $region21: #{tpu_custom_call.1} parent=11 // pred_check
          %p478 = pneg %p123
        $region22: #{tpu_custom_call.1} parent=11 // pred_check_branch
          %480 = sbr.rel (%p478) target = $region24
        $region23: #{tpu_custom_call.1} parent=11 // pred_region
          %s482 = ssub.s32 16, 16
          %483 = vsyncadd [#allocation7], %s482
          %s484 = smul.addr %s42, 16
          %s485 = scalar_lea.hbm %s2, %s484
          %s487 = sshll.u32 [#allocation8], 4
          %s488 = int_to_ptr.vmem [resolvable:$true] %s487
          %490 = dma.hbm_to_vmem [thread:$0]  %s485, 16, %s488, [#allocation7]
        $region24: #{tpu_custom_call.1} parent=11 // pred_fallthru
          _
        // Predicated region
        $region25: #{tpu_custom_call.1} parent=11 // pred_check
          %p491 = pneg %p149
        $region26: #{tpu_custom_call.1} parent=11 // pred_check_branch
          %493 = sbr.rel (%p491) target = $region28
        $region27: #{tpu_custom_call.1} parent=11 // pred_region
          %s495 = ssub.s32 16, 16
          %496 = vsyncadd [#allocation10], %s495
          %s497 = smul.addr %s42, 16
          %s498 = scalar_lea.hbm %s3, %s497
          %s500 = sshll.u32 [#allocation9], 4
          %s501 = int_to_ptr.vmem [resolvable:$true] %s500
          %503 = dma.hbm_to_vmem [thread:$0]  %s498, 16, %s501, [#allocation10]
        $region28: #{tpu_custom_call.1} parent=11 // pred_fallthru
          _
        // Predicated region
        $region29: #{tpu_custom_call.1} parent=11 // pred_check
          %p504 = pneg %p175
        $region30: #{tpu_custom_call.1} parent=11 // pred_check_branch
          %506 = sbr.rel (%p504) target = $region32
        $region31: #{tpu_custom_call.1} parent=11 // pred_region
          %s508 = ssub.s32 256, 256
          %509 = vsyncadd [#allocation10], %s508
          %s510 = smul.addr %s42, 4
          %s511 = smul.addr %s510, 64
          %s512 = scalar_lea.hbm %s4, %s511
          %s513 = sshll.u32 [#allocation11], 4
          %s514 = int_to_ptr.vmem [resolvable:$true] %s513
          %519 = dma.hbm_to_vmem [thread:$0]  %s512, 256, %s514, [#allocation10], 64, 64, 4
        $region32: #{tpu_custom_call.1} parent=11 // pred_fallthru
          _
        // Predicated region
        $region33: #{tpu_custom_call.1} parent=11 // pred_check
          %p520 = pneg %p201
        $region34: #{tpu_custom_call.1} parent=11 // pred_check_branch
          %522 = sbr.rel (%p520) target = $region36
        $region35: #{tpu_custom_call.1} parent=11 // pred_region
          %s524 = ssub.s32 256, 256
          %525 = vsyncadd [#allocation13], %s524
          %s526 = smul.addr %s42, 4
          %s527 = smul.addr %s526, 64
          %s528 = scalar_lea.hbm %s5, %s527
          %s529 = sshll.u32 [#allocation12], 4
          %s530 = int_to_ptr.vmem [resolvable:$true] %s529
          %535 = dma.hbm_to_vmem [thread:$0]  %s528, 256, %s530, [#allocation13], 64, 64, 4
        $region36: #{tpu_custom_call.1} parent=11 // pred_fallthru
          _
        // Predicated region
        $region37: #{tpu_custom_call.1} parent=11 // pred_check
          %p536 = pneg %p222
        $region38: #{tpu_custom_call.1} parent=11 // pred_check_branch
          %538 = sbr.rel (%p536) target = $region40
        $region39: #{tpu_custom_call.1} parent=11 // pred_region
          %s540 = ssub.s32 64, 64
          %541 = vsyncadd [#allocation13], %s540
          %s543 = sshll.u32 [#allocation14], 4
          %s544 = int_to_ptr.vmem [resolvable:$true] %s543
          %546 = dma.hbm_to_vmem [thread:$0]  %s6, 64, %s544, [#allocation13]
        $region40: #{tpu_custom_call.1} parent=11 // pred_fallthru
          _
        // Predicated region
        $region41: #{tpu_custom_call.1} parent=11 // pred_check
          %p547 = pneg %p243
        $region42: #{tpu_custom_call.1} parent=11 // pred_check_branch
          %549 = sbr.rel (%p547) target = $region44
        $region43: #{tpu_custom_call.1} parent=11 // pred_region
          %s551 = ssub.s32 49152, 49152
          %552 = vsyncadd [#allocation16], %s551
          %s553 = sshll.u32 [#allocation15], 4
          %s554 = int_to_ptr.vmem [resolvable:$true] %s553
          %559 = dma.hbm_to_vmem [thread:$0]  %s7, 49152, %s554, [#allocation16], 768, 768, 48
        $region44: #{tpu_custom_call.1} parent=11 // pred_fallthru
          _
        // Predicated region
        $region45: #{tpu_custom_call.1} parent=11 // pred_check
          %p560 = pneg %p264
        $region46: #{tpu_custom_call.1} parent=11 // pred_check_branch
          %562 = sbr.rel (%p560) target = $region48
        $region47: #{tpu_custom_call.1} parent=11 // pred_region
          %s564 = ssub.s32 192, 192
          %565 = vsyncadd [#allocation16], %s564
          %s567 = sshll.u32 [#allocation17], 4
          %s568 = int_to_ptr.vmem [resolvable:$true] %s567
          %570 = dma.hbm_to_vmem [thread:$0]  %s8, 192, %s568, [#allocation16]
        $region48: #{tpu_custom_call.1} parent=11 // pred_fallthru
          _
        // Predicated region
        $region49: #{tpu_custom_call.1} parent=11 // pred_check
          %p571 = pneg %p285
        $region50: #{tpu_custom_call.1} parent=11 // pred_check_branch
          %573 = sbr.rel (%p571) target = $region52
        $region51: #{tpu_custom_call.1} parent=11 // pred_region
          %s575 = ssub.s32 16384, 16384
          %576 = vsyncadd [#allocation19], %s575
          %s577 = sshll.u32 [#allocation18], 4
          %s578 = int_to_ptr.vmem [resolvable:$true] %s577
          %583 = dma.hbm_to_vmem [thread:$0]  %s9, 16384, %s578, [#allocation19], 256, 256, 16
        $region52: #{tpu_custom_call.1} parent=11 // pred_fallthru
          _
        // Predicated region
        $region53: #{tpu_custom_call.1} parent=11 // pred_check
          %p584 = pneg %p306
        $region54: #{tpu_custom_call.1} parent=11 // pred_check_branch
          %586 = sbr.rel (%p584) target = $region56
        $region55: #{tpu_custom_call.1} parent=11 // pred_region
          %s588 = ssub.s32 64, 64
          %589 = vsyncadd [#allocation19], %s588
          %s591 = sshll.u32 [#allocation20], 4
          %s592 = int_to_ptr.vmem [resolvable:$true] %s591
          %594 = dma.hbm_to_vmem [thread:$0]  %s10, 64, %s592, [#allocation19]
        $region56: #{tpu_custom_call.1} parent=11 // pred_fallthru
          _
      $region12: #{tpu_custom_call.1} parent=5 // pred_fallthru
        _
      %p595 = scmp.lt.s32.totalorder %s33, 2
      // Predicated region
      $region57: #{tpu_custom_call.1} parent=5 // pred_check
        %p596 = pneg %p595
      $region58: #{tpu_custom_call.1} parent=5 // pred_check_branch
        %598 = sbr.rel (%p596) target = $region60
      $region59: #{tpu_custom_call.1} parent=5 // pred_region
        // Predicated region
        $region61: #{tpu_custom_call.1} parent=59 // pred_check
          %p599 = pneg %p326
        $region62: #{tpu_custom_call.1} parent=59 // pred_check_branch
          %601 = sbr.rel (%p599) target = $region64
        $region63: #{tpu_custom_call.1} parent=59 // pred_region
          %s602 = sand.u32 %s33, 1
          %s603 = scalar_lea.sflag [#allocation22], %s602
          %s604 = sand.u32 %s316, 1
          %s605 = smul.addr %s604, 1024
          %s606 = scalar_lea.vmem [#allocation21], %s605
          %s607 = smul.u32 4, %s41
          %s609 = ssub.s32 16384, 16384
          %610 = vsyncadd %s603, %s609
          %s611 = smul.addr %s607, 64
          %s612 = scalar_lea.hbm %s11, %s611
          %s613 = sshll.u32 %s606, 4
          %s614 = int_to_ptr.vmem [resolvable:$true] %s613
          %619 = dma.hbm_to_vmem [thread:$0]  %s612, 16384, %s614, %s603, 512, 256, 16
        $region64: #{tpu_custom_call.1} parent=59 // pred_fallthru
          _
        // Predicated region
        $region65: #{tpu_custom_call.1} parent=59 // pred_check
          %p620 = pneg %p352
        $region66: #{tpu_custom_call.1} parent=59 // pred_check_branch
          %622 = sbr.rel (%p620) target = $region68
        $region67: #{tpu_custom_call.1} parent=59 // pred_region
          %s623 = sand.u32 %s33, 1
          %s624 = scalar_lea.sflag [#allocation22], %s623
          %s625 = sand.u32 %s342, 1
          %s626 = smul.addr %s625, 512
          %s627 = scalar_lea.vmem [#allocation23], %s626
          %s628 = smul.u32 32, %s41
          %s630 = ssub.s32 8192, 8192
          %631 = vsyncadd %s624, %s630
          %s632 = smul.addr %s628, 4
          %s633 = smul.addr %s632, 64
          %s634 = scalar_lea.hbm %s12, %s633
          %s635 = sshll.u32 %s627, 4
          %s636 = int_to_ptr.vmem [resolvable:$true] %s635
          %641 = dma.hbm_to_vmem [thread:$0]  %s634, 8192, %s636, %s624, 256, 256, 16
        $region68: #{tpu_custom_call.1} parent=59 // pred_fallthru
          _
      $region60: #{tpu_custom_call.1} parent=5 // pred_fallthru
        _
      %p642 = scmp.le.s32.totalorder 1, %s33
      %p643 = scmp.lt.s32.totalorder %s33, 3
      %p644 = pnand %p642, %p643
      %p645 = pneg %p644
      // Predicated region
      $region69: #{tpu_custom_call.1} parent=5 // pred_check
        _
      $region70: #{tpu_custom_call.1} parent=5 // pred_check_branch
        %647 = sbr.rel (%p644) target = $region72
      $region71: #{tpu_custom_call.1} parent=5 // pred_region
        %s648 = ssub.s32 %s33, 1
        // Predicated region
        $region73: #{tpu_custom_call.1} parent=71 // pred_check
          %p649 = pneg %p71
        $region74: #{tpu_custom_call.1} parent=71 // pred_check_branch
          %651 = sbr.rel (%p649) target = $region76
        $region75: #{tpu_custom_call.1} parent=71 // pred_region
          %652 = dma.done [#allocation4], 64
        $region76: #{tpu_custom_call.1} parent=71 // pred_fallthru
          _
        // Predicated region
        $region77: #{tpu_custom_call.1} parent=71 // pred_check
          %p653 = pneg %p97
        $region78: #{tpu_custom_call.1} parent=71 // pred_check_branch
          %655 = sbr.rel (%p653) target = $region80
        $region79: #{tpu_custom_call.1} parent=71 // pred_region
          %656 = dma.done [#allocation7], 16
        $region80: #{tpu_custom_call.1} parent=71 // pred_fallthru
          _
        // Predicated region
        $region81: #{tpu_custom_call.1} parent=71 // pred_check
          %p657 = pneg %p123
        $region82: #{tpu_custom_call.1} parent=71 // pred_check_branch
          %659 = sbr.rel (%p657) target = $region84
        $region83: #{tpu_custom_call.1} parent=71 // pred_region
          %660 = dma.done [#allocation7], 16
        $region84: #{tpu_custom_call.1} parent=71 // pred_fallthru
          _
        // Predicated region
        $region85: #{tpu_custom_call.1} parent=71 // pred_check
          %p661 = pneg %p149
        $region86: #{tpu_custom_call.1} parent=71 // pred_check_branch
          %663 = sbr.rel (%p661) target = $region88
        $region87: #{tpu_custom_call.1} parent=71 // pred_region
          %664 = dma.done [#allocation10], 16
        $region88: #{tpu_custom_call.1} parent=71 // pred_fallthru
          _
        // Predicated region
        $region89: #{tpu_custom_call.1} parent=71 // pred_check
          %p665 = pneg %p175
        $region90: #{tpu_custom_call.1} parent=71 // pred_check_branch
          %667 = sbr.rel (%p665) target = $region92
        $region91: #{tpu_custom_call.1} parent=71 // pred_region
          %668 = dma.done [#allocation10], 256
        $region92: #{tpu_custom_call.1} parent=71 // pred_fallthru
          _
        // Predicated region
        $region93: #{tpu_custom_call.1} parent=71 // pred_check
          %p669 = pneg %p201
        $region94: #{tpu_custom_call.1} parent=71 // pred_check_branch
          %671 = sbr.rel (%p669) target = $region96
        $region95: #{tpu_custom_call.1} parent=71 // pred_region
          %672 = dma.done [#allocation13], 256
        $region96: #{tpu_custom_call.1} parent=71 // pred_fallthru
          _
        // Predicated region
        $region97: #{tpu_custom_call.1} parent=71 // pred_check
          %p673 = pneg %p222
        $region98: #{tpu_custom_call.1} parent=71 // pred_check_branch
          %675 = sbr.rel (%p673) target = $region100
        $region99: #{tpu_custom_call.1} parent=71 // pred_region
          %676 = dma.done [#allocation13], 64
        $region100: #{tpu_custom_call.1} parent=71 // pred_fallthru
          _
        // Predicated region
        $region101: #{tpu_custom_call.1} parent=71 // pred_check
          %p677 = pneg %p243
        $region102: #{tpu_custom_call.1} parent=71 // pred_check_branch
          %679 = sbr.rel (%p677) target = $region104
        $region103: #{tpu_custom_call.1} parent=71 // pred_region
          %680 = dma.done [#allocation16], 49152
        $region104: #{tpu_custom_call.1} parent=71 // pred_fallthru
          _
        // Predicated region
        $region105: #{tpu_custom_call.1} parent=71 // pred_check
          %p681 = pneg %p264
        $region106: #{tpu_custom_call.1} parent=71 // pred_check_branch
          %683 = sbr.rel (%p681) target = $region108
        $region107: #{tpu_custom_call.1} parent=71 // pred_region
          %684 = dma.done [#allocation16], 192
        $region108: #{tpu_custom_call.1} parent=71 // pred_fallthru
          _
        // Predicated region
        $region109: #{tpu_custom_call.1} parent=71 // pred_check
          %p685 = pneg %p285
        $region110: #{tpu_custom_call.1} parent=71 // pred_check_branch
          %687 = sbr.rel (%p685) target = $region112
        $region111: #{tpu_custom_call.1} parent=71 // pred_region
          %688 = dma.done [#allocation19], 16384
        $region112: #{tpu_custom_call.1} parent=71 // pred_fallthru
          _
        // Predicated region
        $region113: #{tpu_custom_call.1} parent=71 // pred_check
          %p689 = pneg %p306
        $region114: #{tpu_custom_call.1} parent=71 // pred_check_branch
          %691 = sbr.rel (%p689) target = $region116
        $region115: #{tpu_custom_call.1} parent=71 // pred_region
          %692 = dma.done [#allocation19], 64
        $region116: #{tpu_custom_call.1} parent=71 // pred_fallthru
          _
        %s693 = sand.u32 %s38, 1
        %s694 = scalar_lea.sflag [#allocation22], %s693
        %s695 = sand.u32 %s319, 1
        %s696 = smul.addr %s695, 1024
        %s697 = scalar_lea.vmem [#allocation21], %s696
        // Predicated region
        $region117: #{tpu_custom_call.1} parent=71 // pred_check
          %p698 = pneg %p332
        $region118: #{tpu_custom_call.1} parent=71 // pred_check_branch
          %700 = sbr.rel (%p698) target = $region120
        $region119: #{tpu_custom_call.1} parent=71 // pred_region
          %701 = dma.done %s694, 16384
        $region120: #{tpu_custom_call.1} parent=71 // pred_fallthru
          _
        %s702 = sand.u32 %s38, 1
        %s703 = scalar_lea.sflag [#allocation22], %s702
        %s704 = sand.u32 %s345, 1
        %s705 = smul.addr %s704, 512
        %s706 = scalar_lea.vmem [#allocation23], %s705
        // Predicated region
        $region121: #{tpu_custom_call.1} parent=71 // pred_check
          %p707 = pneg %p358
        $region122: #{tpu_custom_call.1} parent=71 // pred_check_branch
          %709 = sbr.rel (%p707) target = $region124
        $region123: #{tpu_custom_call.1} parent=71 // pred_region
          %710 = dma.done %s703, 8192
        $region124: #{tpu_custom_call.1} parent=71 // pred_fallthru
          _
        %p711 = pneg %p71
        %p712 = pneg %p68
        %p713 = pneg %p97
        %p714 = pneg %p94
        %p715 = pneg %p123
        %p716 = pneg %p120
        %p717 = pneg %p149
        %p718 = pneg %p146
        %p719 = pneg %p175
        %p720 = pneg %p172
        %p721 = pneg %p201
        %p722 = pneg %p198
        %p723 = pneg %p222
        %p724 = pneg %p219
        %p725 = pneg %p243
        %p726 = pneg %p240
        %p727 = pneg %p264
        %p728 = pneg %p261
        %p729 = pneg %p285
        %p730 = pneg %p282
        %p731 = pneg %p306
        %p732 = pneg %p303
        %s733 = sand.u32 %s38, 1
        %s734 = scalar_lea.sflag [#allocation22], %s733
        %s735 = sand.u32 %s319, 1
        %s736 = smul.addr %s735, 1024
        %s737 = scalar_lea.vmem [#allocation21], %s736
        %p738 = pneg %p332
        %p739 = pneg %p329
        %s740 = sand.u32 %s38, 1
        %s741 = scalar_lea.sflag [#allocation22], %s740
        %s742 = sand.u32 %s345, 1
        %s743 = smul.addr %s742, 512
        %s744 = scalar_lea.vmem [#allocation23], %s743
        %p745 = pneg %p358
        %p746 = pneg %p355
        %p747 = pneg %p384
        %p748 = pneg %p381
        %p749 = pneg %p410
        %p750 = pneg %p407
        %p751 = pneg %p436
        %p752 = pneg %p433
        %s753 = smul.u32 4, %s43
        %s754 = smul.u32 32, %s43
        %p756 = scmp.eq.s32.totalorder %s43, 0
        // Predicated region
        $region125: #{tpu_custom_call.1} parent=71 // pred_check
          %p757 = pneg %p756
        $region126: #{tpu_custom_call.1} parent=71 // pred_check_branch
          %759 = sbr.rel (%p757) target = $region128
        $region127: #{tpu_custom_call.1} parent=71 // pred_region
          %v760 = vld [vmem:[#allocation3] sm:$0xf]
          %v761 = vunpack.c.l.bf16 %v760
          %v762 = vmul.f32 %v761, %v761
          %v764 = vlaneseq
          %v765 = vshrl.u32 %v764, 7
          %v766 = vsub.s32 0, %v765
          %v767 = vrot.slane %v762, %v766
          %v768 = vlaneseq
          %v769 = vshrl.u32 %v768, 7
          %v770 = vsub.s32 2, %v769
          %v771 = vrot.slane %v762, %v770
          %v772 = vlaneseq
          %v773 = vshrl.u32 %v772, 7
          %v774 = vsub.s32 4, %v773
          %v775 = vrot.slane %v762, %v774
          %v776 = vlaneseq
          %v777 = vshrl.u32 %v776, 7
          %v778 = vsub.s32 6, %v777
          %v779 = vrot.slane %v762, %v778
          %vm784 = vcmask 1040384
          %v785 = vsel %vm784, %v767, 0.0
          %v786 = vsel %vm784, %v771, 0.0
          %v787 = vadd.f32 %v785, %v786
          %v788 = vsel %vm784, %v775, 0.0
          %v789 = vadd.f32 %v787, %v788
          %v790 = vsel %vm784, %v779, 0.0
          %v791 = vadd.f32 %v789, %v790
          %792 = vadd.xlane.f32.xlu0 %v791
          %v793 = vpop.xlane.xlu0 %792
          %v794 = vrcp.pop 512.0
          %v795 = vmul.f32 %v793, %v794
          %v796 = vadd.f32 %v795, 1e-06
          %v797 = vrsqrt.pop %v796
          %v800 = vunpack.c.l.s4 269488144
          %v801 = vunpack.c.0.s8 %v800
          %v802 = vlaneseq
          %v803 = vshrl.u32 %v802, 7
          %v804 = vsub.s32 %v801, %v803
          %v805 = vrot.slane %v797, %v804
          %v807 = vmul.f32 %v761, %v805
          %v808 = vld [vmem:[#allocation14] sm:$0xf]
          %v809 = vunpack.c.l.bf16 %v808
          %v810 = vmul.f32 %v807, %v809
          %v812 = vlaneseq
          %v813 = vshrl.u32 %v812, 7
          %v814 = vsub.s32 0, %v813
          %v815 = vrot.slane %v810, %v814
          %v816 = vlaneseq
          %v817 = vshrl.u32 %v816, 7
          %v818 = vsub.s32 2, %v817
          %v819 = vrot.slane %v810, %v818
          %v820 = vlaneseq
          %v821 = vshrl.u32 %v820, 7
          %v822 = vsub.s32 4, %v821
          %v823 = vrot.slane %v810, %v822
          %v824 = vlaneseq
          %v825 = vshrl.u32 %v824, 7
          %v826 = vsub.s32 6, %v825
          %v827 = vrot.slane %v810, %v826
          %v832 = vpack.c.bf16 %v815, %v815
          %v833 = vpack.c.bf16 %v819, %v819
          %v834 = vpack.c.bf16 %v823, %v823
          %v835 = vpack.c.bf16 %v827, %v827
          %v836 = vld [vmem:[#allocation15] sm:$0xff]
          %v837 = vld [vmem:[#allocation15 + $0x8] sm:$0xff]
          %v838 = vld [vmem:[#allocation15 + $0x10] sm:$0xff]
          %v839 = vld [vmem:[#allocation15 + $0x18] sm:$0xff]
          %v840 = vld [vmem:[#allocation15 + $0x20] sm:$0xff]
          %v841 = vld [vmem:[#allocation15 + $0x28] sm:$0xff]
          %v842 = vld [vmem:[#allocation15 + $0x30] sm:$0xff]
          %v843 = vld [vmem:[#allocation15 + $0x38] sm:$0xff]
          %v844 = vld [vmem:[#allocation15 + $0x40] sm:$0xff]
          %v845 = vld [vmem:[#allocation15 + $0x48] sm:$0xff]
          %v846 = vld [vmem:[#allocation15 + $0x50] sm:$0xff]
          %v847 = vld [vmem:[#allocation15 + $0x58] sm:$0xff]
          %v848 = vld [vmem:[#allocation15 + $0x60] sm:$0xff]
          %v849 = vld [vmem:[#allocation15 + $0x68] sm:$0xff]
          %v850 = vld [vmem:[#allocation15 + $0x70] sm:$0xff]
          %v851 = vld [vmem:[#allocation15 + $0x78] sm:$0xff]
          %v852 = vld [vmem:[#allocation15 + $0x80] sm:$0xff]
          %v853 = vld [vmem:[#allocation15 + $0x88] sm:$0xff]
          %v854 = vld [vmem:[#allocation15 + $0x90] sm:$0xff]
          %v855 = vld [vmem:[#allocation15 + $0x98] sm:$0xff]
          %v856 = vld [vmem:[#allocation15 + $0xa0] sm:$0xff]
          %v857 = vld [vmem:[#allocation15 + $0xa8] sm:$0xff]
          %v858 = vld [vmem:[#allocation15 + $0xb0] sm:$0xff]
          %v859 = vld [vmem:[#allocation15 + $0xb8] sm:$0xff]
          %v860 = vld [vmem:[#allocation15 + $0xc0] sm:$0xff]
          %v861 = vld [vmem:[#allocation15 + $0xc8] sm:$0xff]
          %v862 = vld [vmem:[#allocation15 + $0xd0] sm:$0xff]
          %v863 = vld [vmem:[#allocation15 + $0xd8] sm:$0xff]
          %v864 = vld [vmem:[#allocation15 + $0xe0] sm:$0xff]
          %v865 = vld [vmem:[#allocation15 + $0xe8] sm:$0xff]
          %v866 = vld [vmem:[#allocation15 + $0xf0] sm:$0xff]
          %v867 = vld [vmem:[#allocation15 + $0xf8] sm:$0xff]
          %v868 = vld [vmem:[#allocation15 + $0x100] sm:$0xff]
          %v869 = vld [vmem:[#allocation15 + $0x108] sm:$0xff]
          %v870 = vld [vmem:[#allocation15 + $0x110] sm:$0xff]
          %v871 = vld [vmem:[#allocation15 + $0x118] sm:$0xff]
          %v872 = vld [vmem:[#allocation15 + $0x120] sm:$0xff]
          %v873 = vld [vmem:[#allocation15 + $0x128] sm:$0xff]
          %v874 = vld [vmem:[#allocation15 + $0x130] sm:$0xff]
          %v875 = vld [vmem:[#allocation15 + $0x138] sm:$0xff]
          %v876 = vld [vmem:[#allocation15 + $0x140] sm:$0xff]
          %v877 = vld [vmem:[#allocation15 + $0x148] sm:$0xff]
          %v878 = vld [vmem:[#allocation15 + $0x150] sm:$0xff]
          %v879 = vld [vmem:[#allocation15 + $0x158] sm:$0xff]
          %v880 = vld [vmem:[#allocation15 + $0x160] sm:$0xff]
          %v881 = vld [vmem:[#allocation15 + $0x168] sm:$0xff]
          %v882 = vld [vmem:[#allocation15 + $0x170] sm:$0xff]
          %v883 = vld [vmem:[#allocation15 + $0x178] sm:$0xff]
          %v884 = vld [vmem:[#allocation15 + $0x180] sm:$0xff]
          %v885 = vld [vmem:[#allocation15 + $0x188] sm:$0xff]
          %v886 = vld [vmem:[#allocation15 + $0x190] sm:$0xff]
          %v887 = vld [vmem:[#allocation15 + $0x198] sm:$0xff]
          %v888 = vld [vmem:[#allocation15 + $0x1a0] sm:$0xff]
          %v889 = vld [vmem:[#allocation15 + $0x1a8] sm:$0xff]
          %v890 = vld [vmem:[#allocation15 + $0x1b0] sm:$0xff]
          %v891 = vld [vmem:[#allocation15 + $0x1b8] sm:$0xff]
          %v892 = vld [vmem:[#allocation15 + $0x1c0] sm:$0xff]
          %v893 = vld [vmem:[#allocation15 + $0x1c8] sm:$0xff]
          %v894 = vld [vmem:[#allocation15 + $0x1d0] sm:$0xff]
          %v895 = vld [vmem:[#allocation15 + $0x1d8] sm:$0xff]
          %v896 = vld [vmem:[#allocation15 + $0x1e0] sm:$0xff]
          %v897 = vld [vmem:[#allocation15 + $0x1e8] sm:$0xff]
          %v898 = vld [vmem:[#allocation15 + $0x1f0] sm:$0xff]
          %v899 = vld [vmem:[#allocation15 + $0x1f8] sm:$0xff]
          %v900 = vld [vmem:[#allocation15 + $0x200] sm:$0xff]
          %v901 = vld [vmem:[#allocation15 + $0x208] sm:$0xff]
          %v902 = vld [vmem:[#allocation15 + $0x210] sm:$0xff]
          %v903 = vld [vmem:[#allocation15 + $0x218] sm:$0xff]
          %v904 = vld [vmem:[#allocation15 + $0x220] sm:$0xff]
          %v905 = vld [vmem:[#allocation15 + $0x228] sm:$0xff]
          %v906 = vld [vmem:[#allocation15 + $0x230] sm:$0xff]
          %v907 = vld [vmem:[#allocation15 + $0x238] sm:$0xff]
          %v908 = vld [vmem:[#allocation15 + $0x240] sm:$0xff]
          %v909 = vld [vmem:[#allocation15 + $0x248] sm:$0xff]
          %v910 = vld [vmem:[#allocation15 + $0x250] sm:$0xff]
          %v911 = vld [vmem:[#allocation15 + $0x258] sm:$0xff]
          %v912 = vld [vmem:[#allocation15 + $0x260] sm:$0xff]
          %v913 = vld [vmem:[#allocation15 + $0x268] sm:$0xff]
          %v914 = vld [vmem:[#allocation15 + $0x270] sm:$0xff]
          %v915 = vld [vmem:[#allocation15 + $0x278] sm:$0xff]
          %v916 = vld [vmem:[#allocation15 + $0x280] sm:$0xff]
          %v917 = vld [vmem:[#allocation15 + $0x288] sm:$0xff]
          %v918 = vld [vmem:[#allocation15 + $0x290] sm:$0xff]
          %v919 = vld [vmem:[#allocation15 + $0x298] sm:$0xff]
          %v920 = vld [vmem:[#allocation15 + $0x2a0] sm:$0xff]
          %v921 = vld [vmem:[#allocation15 + $0x2a8] sm:$0xff]
          %v922 = vld [vmem:[#allocation15 + $0x2b0] sm:$0xff]
          %v923 = vld [vmem:[#allocation15 + $0x2b8] sm:$0xff]
          %v924 = vld [vmem:[#allocation15 + $0x2c0] sm:$0xff]
          %v925 = vld [vmem:[#allocation15 + $0x2c8] sm:$0xff]
          %v926 = vld [vmem:[#allocation15 + $0x2d0] sm:$0xff]
          %v927 = vld [vmem:[#allocation15 + $0x2d8] sm:$0xff]
          %v928 = vld [vmem:[#allocation15 + $0x2e0] sm:$0xff]
          %v929 = vld [vmem:[#allocation15 + $0x2e8] sm:$0xff]
          %v930 = vld [vmem:[#allocation15 + $0x2f0] sm:$0xff]
          %v931 = vld [vmem:[#allocation15 + $0x2f8] sm:$0xff]
          %v932 = vld [vmem:[#allocation15 + $0x300] sm:$0xff]
          %v933 = vld [vmem:[#allocation15 + $0x308] sm:$0xff]
          %v934 = vld [vmem:[#allocation15 + $0x310] sm:$0xff]
          %v935 = vld [vmem:[#allocation15 + $0x318] sm:$0xff]
          %v936 = vld [vmem:[#allocation15 + $0x320] sm:$0xff]
          %v937 = vld [vmem:[#allocation15 + $0x328] sm:$0xff]
          %v938 = vld [vmem:[#allocation15 + $0x330] sm:$0xff]
          %v939 = vld [vmem:[#allocation15 + $0x338] sm:$0xff]
          %v940 = vld [vmem:[#allocation15 + $0x340] sm:$0xff]
          %v941 = vld [vmem:[#allocation15 + $0x348] sm:$0xff]
          %v942 = vld [vmem:[#allocation15 + $0x350] sm:$0xff]
          %v943 = vld [vmem:[#allocation15 + $0x358] sm:$0xff]
          %v944 = vld [vmem:[#allocation15 + $0x360] sm:$0xff]
          %v945 = vld [vmem:[#allocation15 + $0x368] sm:$0xff]
          %v946 = vld [vmem:[#allocation15 + $0x370] sm:$0xff]
          %v947 = vld [vmem:[#allocation15 + $0x378] sm:$0xff]
          %v948 = vld [vmem:[#allocation15 + $0x380] sm:$0xff]
          %v949 = vld [vmem:[#allocation15 + $0x388] sm:$0xff]
          %v950 = vld [vmem:[#allocation15 + $0x390] sm:$0xff]
          %v951 = vld [vmem:[#allocation15 + $0x398] sm:$0xff]
          %v952 = vld [vmem:[#allocation15 + $0x3a0] sm:$0xff]
          %v953 = vld [vmem:[#allocation15 + $0x3a8] sm:$0xff]
          %v954 = vld [vmem:[#allocation15 + $0x3b0] sm:$0xff]
          %v955 = vld [vmem:[#allocation15 + $0x3b8] sm:$0xff]
          %v956 = vld [vmem:[#allocation15 + $0x3c0] sm:$0xff]
          %v957 = vld [vmem:[#allocation15 + $0x3c8] sm:$0xff]
          %v958 = vld [vmem:[#allocation15 + $0x3d0] sm:$0xff]
          %v959 = vld [vmem:[#allocation15 + $0x3d8] sm:$0xff]
          %v960 = vld [vmem:[#allocation15 + $0x3e0] sm:$0xff]
          %v961 = vld [vmem:[#allocation15 + $0x3e8] sm:$0xff]
          %v962 = vld [vmem:[#allocation15 + $0x3f0] sm:$0xff]
          %v963 = vld [vmem:[#allocation15 + $0x3f8] sm:$0xff]
          %v964 = vld [vmem:[#allocation15 + $0x400] sm:$0xff]
          %v965 = vld [vmem:[#allocation15 + $0x408] sm:$0xff]
          %v966 = vld [vmem:[#allocation15 + $0x410] sm:$0xff]
          %v967 = vld [vmem:[#allocation15 + $0x418] sm:$0xff]
          %v968 = vld [vmem:[#allocation15 + $0x420] sm:$0xff]
          %v969 = vld [vmem:[#allocation15 + $0x428] sm:$0xff]
          %v970 = vld [vmem:[#allocation15 + $0x430] sm:$0xff]
          %v971 = vld [vmem:[#allocation15 + $0x438] sm:$0xff]
          %v972 = vld [vmem:[#allocation15 + $0x440] sm:$0xff]
          %v973 = vld [vmem:[#allocation15 + $0x448] sm:$0xff]
          %v974 = vld [vmem:[#allocation15 + $0x450] sm:$0xff]
          %v975 = vld [vmem:[#allocation15 + $0x458] sm:$0xff]
          %v976 = vld [vmem:[#allocation15 + $0x460] sm:$0xff]
          %v977 = vld [vmem:[#allocation15 + $0x468] sm:$0xff]
          %v978 = vld [vmem:[#allocation15 + $0x470] sm:$0xff]
          %v979 = vld [vmem:[#allocation15 + $0x478] sm:$0xff]
          %v980 = vld [vmem:[#allocation15 + $0x480] sm:$0xff]
          %v981 = vld [vmem:[#allocation15 + $0x488] sm:$0xff]
          %v982 = vld [vmem:[#allocation15 + $0x490] sm:$0xff]
          %v983 = vld [vmem:[#allocation15 + $0x498] sm:$0xff]
          %v984 = vld [vmem:[#allocation15 + $0x4a0] sm:$0xff]
          %v985 = vld [vmem:[#allocation15 + $0x4a8] sm:$0xff]
          %v986 = vld [vmem:[#allocation15 + $0x4b0] sm:$0xff]
          %v987 = vld [vmem:[#allocation15 + $0x4b8] sm:$0xff]
          %v988 = vld [vmem:[#allocation15 + $0x4c0] sm:$0xff]
          %v989 = vld [vmem:[#allocation15 + $0x4c8] sm:$0xff]
          %v990 = vld [vmem:[#allocation15 + $0x4d0] sm:$0xff]
          %v991 = vld [vmem:[#allocation15 + $0x4d8] sm:$0xff]
          %v992 = vld [vmem:[#allocation15 + $0x4e0] sm:$0xff]
          %v993 = vld [vmem:[#allocation15 + $0x4e8] sm:$0xff]
          %v994 = vld [vmem:[#allocation15 + $0x4f0] sm:$0xff]
          %v995 = vld [vmem:[#allocation15 + $0x4f8] sm:$0xff]
          %v996 = vld [vmem:[#allocation15 + $0x500] sm:$0xff]
          %v997 = vld [vmem:[#allocation15 + $0x508] sm:$0xff]
          %v998 = vld [vmem:[#allocation15 + $0x510] sm:$0xff]
          %v999 = vld [vmem:[#allocation15 + $0x518] sm:$0xff]
          %v1000 = vld [vmem:[#allocation15 + $0x520] sm:$0xff]
          %v1001 = vld [vmem:[#allocation15 + $0x528] sm:$0xff]
          %v1002 = vld [vmem:[#allocation15 + $0x530] sm:$0xff]
          %v1003 = vld [vmem:[#allocation15 + $0x538] sm:$0xff]
          %v1004 = vld [vmem:[#allocation15 + $0x540] sm:$0xff]
          %v1005 = vld [vmem:[#allocation15 + $0x548] sm:$0xff]
          %v1006 = vld [vmem:[#allocation15 + $0x550] sm:$0xff]
          %v1007 = vld [vmem:[#allocation15 + $0x558] sm:$0xff]
          %v1008 = vld [vmem:[#allocation15 + $0x560] sm:$0xff]
          %v1009 = vld [vmem:[#allocation15 + $0x568] sm:$0xff]
          %v1010 = vld [vmem:[#allocation15 + $0x570] sm:$0xff]
          %v1011 = vld [vmem:[#allocation15 + $0x578] sm:$0xff]
          %v1012 = vld [vmem:[#allocation15 + $0x580] sm:$0xff]
          %v1013 = vld [vmem:[#allocation15 + $0x588] sm:$0xff]
          %v1014 = vld [vmem:[#allocation15 + $0x590] sm:$0xff]
          %v1015 = vld [vmem:[#allocation15 + $0x598] sm:$0xff]
          %v1016 = vld [vmem:[#allocation15 + $0x5a0] sm:$0xff]
          %v1017 = vld [vmem:[#allocation15 + $0x5a8] sm:$0xff]
          %v1018 = vld [vmem:[#allocation15 + $0x5b0] sm:$0xff]
          %v1019 = vld [vmem:[#allocation15 + $0x5b8] sm:$0xff]
          %v1020 = vld [vmem:[#allocation15 + $0x5c0] sm:$0xff]
          %v1021 = vld [vmem:[#allocation15 + $0x5c8] sm:$0xff]
          %v1022 = vld [vmem:[#allocation15 + $0x5d0] sm:$0xff]
          %v1023 = vld [vmem:[#allocation15 + $0x5d8] sm:$0xff]
          %v1024 = vld [vmem:[#allocation15 + $0x5e0] sm:$0xff]
          %v1025 = vld [vmem:[#allocation15 + $0x5e8] sm:$0xff]
          %v1026 = vld [vmem:[#allocation15 + $0x5f0] sm:$0xff]
          %v1027 = vld [vmem:[#allocation15 + $0x5f8] sm:$0xff]
          %v1028 = vld [vmem:[#allocation15 + $0x600] sm:$0xff]
          %v1029 = vld [vmem:[#allocation15 + $0x608] sm:$0xff]
          %v1030 = vld [vmem:[#allocation15 + $0x610] sm:$0xff]
          %v1031 = vld [vmem:[#allocation15 + $0x618] sm:$0xff]
          %v1032 = vld [vmem:[#allocation15 + $0x620] sm:$0xff]
          %v1033 = vld [vmem:[#allocation15 + $0x628] sm:$0xff]
          %v1034 = vld [vmem:[#allocation15 + $0x630] sm:$0xff]
          %v1035 = vld [vmem:[#allocation15 + $0x638] sm:$0xff]
          %v1036 = vld [vmem:[#allocation15 + $0x640] sm:$0xff]
          %v1037 = vld [vmem:[#allocation15 + $0x648] sm:$0xff]
          %v1038 = vld [vmem:[#allocation15 + $0x650] sm:$0xff]
          %v1039 = vld [vmem:[#allocation15 + $0x658] sm:$0xff]
          %v1040 = vld [vmem:[#allocation15 + $0x660] sm:$0xff]
          %v1041 = vld [vmem:[#allocation15 + $0x668] sm:$0xff]
          %v1042 = vld [vmem:[#allocation15 + $0x670] sm:$0xff]
          %v1043 = vld [vmem:[#allocation15 + $0x678] sm:$0xff]
          %v1044 = vld [vmem:[#allocation15 + $0x680] sm:$0xff]
          %v1045 = vld [vmem:[#allocation15 + $0x688] sm:$0xff]
          %v1046 = vld [vmem:[#allocation15 + $0x690] sm:$0xff]
          %v1047 = vld [vmem:[#allocation15 + $0x698] sm:$0xff]
          %v1048 = vld [vmem:[#allocation15 + $0x6a0] sm:$0xff]
          %v1049 = vld [vmem:[#allocation15 + $0x6a8] sm:$0xff]
          %v1050 = vld [vmem:[#allocation15 + $0x6b0] sm:$0xff]
          %v1051 = vld [vmem:[#allocation15 + $0x6b8] sm:$0xff]
          %v1052 = vld [vmem:[#allocation15 + $0x6c0] sm:$0xff]
          %v1053 = vld [vmem:[#allocation15 + $0x6c8] sm:$0xff]
          %v1054 = vld [vmem:[#allocation15 + $0x6d0] sm:$0xff]
          %v1055 = vld [vmem:[#allocation15 + $0x6d8] sm:$0xff]
          %v1056 = vld [vmem:[#allocation15 + $0x6e0] sm:$0xff]
          %v1057 = vld [vmem:[#allocation15 + $0x6e8] sm:$0xff]
          %v1058 = vld [vmem:[#allocation15 + $0x6f0] sm:$0xff]
          %v1059 = vld [vmem:[#allocation15 + $0x6f8] sm:$0xff]
          %v1060 = vld [vmem:[#allocation15 + $0x700] sm:$0xff]
          %v1061 = vld [vmem:[#allocation15 + $0x708] sm:$0xff]
          %v1062 = vld [vmem:[#allocation15 + $0x710] sm:$0xff]
          %v1063 = vld [vmem:[#allocation15 + $0x718] sm:$0xff]
          %v1064 = vld [vmem:[#allocation15 + $0x720] sm:$0xff]
          %v1065 = vld [vmem:[#allocation15 + $0x728] sm:$0xff]
          %v1066 = vld [vmem:[#allocation15 + $0x730] sm:$0xff]
          %v1067 = vld [vmem:[#allocation15 + $0x738] sm:$0xff]
          %v1068 = vld [vmem:[#allocation15 + $0x740] sm:$0xff]
          %v1069 = vld [vmem:[#allocation15 + $0x748] sm:$0xff]
          %v1070 = vld [vmem:[#allocation15 + $0x750] sm:$0xff]
          %v1071 = vld [vmem:[#allocation15 + $0x758] sm:$0xff]
          %v1072 = vld [vmem:[#allocation15 + $0x760] sm:$0xff]
          %v1073 = vld [vmem:[#allocation15 + $0x768] sm:$0xff]
          %v1074 = vld [vmem:[#allocation15 + $0x770] sm:$0xff]
          %v1075 = vld [vmem:[#allocation15 + $0x778] sm:$0xff]
          %v1076 = vld [vmem:[#allocation15 + $0x780] sm:$0xff]
          %v1077 = vld [vmem:[#allocation15 + $0x788] sm:$0xff]
          %v1078 = vld [vmem:[#allocation15 + $0x790] sm:$0xff]
          %v1079 = vld [vmem:[#allocation15 + $0x798] sm:$0xff]
          %v1080 = vld [vmem:[#allocation15 + $0x7a0] sm:$0xff]
          %v1081 = vld [vmem:[#allocation15 + $0x7a8] sm:$0xff]
          %v1082 = vld [vmem:[#allocation15 + $0x7b0] sm:$0xff]
          %v1083 = vld [vmem:[#allocation15 + $0x7b8] sm:$0xff]
          %v1084 = vld [vmem:[#allocation15 + $0x7c0] sm:$0xff]
          %v1085 = vld [vmem:[#allocation15 + $0x7c8] sm:$0xff]
          %v1086 = vld [vmem:[#allocation15 + $0x7d0] sm:$0xff]
          %v1087 = vld [vmem:[#allocation15 + $0x7d8] sm:$0xff]
          %v1088 = vld [vmem:[#allocation15 + $0x7e0] sm:$0xff]
          %v1089 = vld [vmem:[#allocation15 + $0x7e8] sm:$0xff]
          %v1090 = vld [vmem:[#allocation15 + $0x7f0] sm:$0xff]
          %v1091 = vld [vmem:[#allocation15 + $0x7f8] sm:$0xff]
          %v1092 = vld [vmem:[#allocation15 + $0x800] sm:$0xff]
          %v1093 = vld [vmem:[#allocation15 + $0x808] sm:$0xff]
          %v1094 = vld [vmem:[#allocation15 + $0x810] sm:$0xff]
          %v1095 = vld [vmem:[#allocation15 + $0x818] sm:$0xff]
          %v1096 = vld [vmem:[#allocation15 + $0x820] sm:$0xff]
          %v1097 = vld [vmem:[#allocation15 + $0x828] sm:$0xff]
          %v1098 = vld [vmem:[#allocation15 + $0x830] sm:$0xff]
          %v1099 = vld [vmem:[#allocation15 + $0x838] sm:$0xff]
          %v1100 = vld [vmem:[#allocation15 + $0x840] sm:$0xff]
          %v1101 = vld [vmem:[#allocation15 + $0x848] sm:$0xff]
          %v1102 = vld [vmem:[#allocation15 + $0x850] sm:$0xff]
          %v1103 = vld [vmem:[#allocation15 + $0x858] sm:$0xff]
          %v1104 = vld [vmem:[#allocation15 + $0x860] sm:$0xff]
          %v1105 = vld [vmem:[#allocation15 + $0x868] sm:$0xff]
          %v1106 = vld [vmem:[#allocation15 + $0x870] sm:$0xff]
          %v1107 = vld [vmem:[#allocation15 + $0x878] sm:$0xff]
          %v1108 = vld [vmem:[#allocation15 + $0x880] sm:$0xff]
          %v1109 = vld [vmem:[#allocation15 + $0x888] sm:$0xff]
          %v1110 = vld [vmem:[#allocation15 + $0x890] sm:$0xff]
          %v1111 = vld [vmem:[#allocation15 + $0x898] sm:$0xff]
          %v1112 = vld [vmem:[#allocation15 + $0x8a0] sm:$0xff]
          %v1113 = vld [vmem:[#allocation15 + $0x8a8] sm:$0xff]
          %v1114 = vld [vmem:[#allocation15 + $0x8b0] sm:$0xff]
          %v1115 = vld [vmem:[#allocation15 + $0x8b8] sm:$0xff]
          %v1116 = vld [vmem:[#allocation15 + $0x8c0] sm:$0xff]
          %v1117 = vld [vmem:[#allocation15 + $0x8c8] sm:$0xff]
          %v1118 = vld [vmem:[#allocation15 + $0x8d0] sm:$0xff]
          %v1119 = vld [vmem:[#allocation15 + $0x8d8] sm:$0xff]
          %v1120 = vld [vmem:[#allocation15 + $0x8e0] sm:$0xff]
          %v1121 = vld [vmem:[#allocation15 + $0x8e8] sm:$0xff]
          %v1122 = vld [vmem:[#allocation15 + $0x8f0] sm:$0xff]
          %v1123 = vld [vmem:[#allocation15 + $0x8f8] sm:$0xff]
          %v1124 = vld [vmem:[#allocation15 + $0x900] sm:$0xff]
          %v1125 = vld [vmem:[#allocation15 + $0x908] sm:$0xff]
          %v1126 = vld [vmem:[#allocation15 + $0x910] sm:$0xff]
          %v1127 = vld [vmem:[#allocation15 + $0x918] sm:$0xff]
          %v1128 = vld [vmem:[#allocation15 + $0x920] sm:$0xff]
          %v1129 = vld [vmem:[#allocation15 + $0x928] sm:$0xff]
          %v1130 = vld [vmem:[#allocation15 + $0x930] sm:$0xff]
          %v1131 = vld [vmem:[#allocation15 + $0x938] sm:$0xff]
          %v1132 = vld [vmem:[#allocation15 + $0x940] sm:$0xff]
          %v1133 = vld [vmem:[#allocation15 + $0x948] sm:$0xff]
          %v1134 = vld [vmem:[#allocation15 + $0x950] sm:$0xff]
          %v1135 = vld [vmem:[#allocation15 + $0x958] sm:$0xff]
          %v1136 = vld [vmem:[#allocation15 + $0x960] sm:$0xff]
          %v1137 = vld [vmem:[#allocation15 + $0x968] sm:$0xff]
          %v1138 = vld [vmem:[#allocation15 + $0x970] sm:$0xff]
          %v1139 = vld [vmem:[#allocation15 + $0x978] sm:$0xff]
          %v1140 = vld [vmem:[#allocation15 + $0x980] sm:$0xff]
          %v1141 = vld [vmem:[#allocation15 + $0x988] sm:$0xff]
          %v1142 = vld [vmem:[#allocation15 + $0x990] sm:$0xff]
          %v1143 = vld [vmem:[#allocation15 + $0x998] sm:$0xff]
          %v1144 = vld [vmem:[#allocation15 + $0x9a0] sm:$0xff]
          %v1145 = vld [vmem:[#allocation15 + $0x9a8] sm:$0xff]
          %v1146 = vld [vmem:[#allocation15 + $0x9b0] sm:$0xff]
          %v1147 = vld [vmem:[#allocation15 + $0x9b8] sm:$0xff]
          %v1148 = vld [vmem:[#allocation15 + $0x9c0] sm:$0xff]
          %v1149 = vld [vmem:[#allocation15 + $0x9c8] sm:$0xff]
          %v1150 = vld [vmem:[#allocation15 + $0x9d0] sm:$0xff]
          %v1151 = vld [vmem:[#allocation15 + $0x9d8] sm:$0xff]
          %v1152 = vld [vmem:[#allocation15 + $0x9e0] sm:$0xff]
          %v1153 = vld [vmem:[#allocation15 + $0x9e8] sm:$0xff]
          %v1154 = vld [vmem:[#allocation15 + $0x9f0] sm:$0xff]
          %v1155 = vld [vmem:[#allocation15 + $0x9f8] sm:$0xff]
          %v1156 = vld [vmem:[#allocation15 + $0xa00] sm:$0xff]
          %v1157 = vld [vmem:[#allocation15 + $0xa08] sm:$0xff]
          %v1158 = vld [vmem:[#allocation15 + $0xa10] sm:$0xff]
          %v1159 = vld [vmem:[#allocation15 + $0xa18] sm:$0xff]
          %v1160 = vld [vmem:[#allocation15 + $0xa20] sm:$0xff]
          %v1161 = vld [vmem:[#allocation15 + $0xa28] sm:$0xff]
          %v1162 = vld [vmem:[#allocation15 + $0xa30] sm:$0xff]
          %v1163 = vld [vmem:[#allocation15 + $0xa38] sm:$0xff]
          %v1164 = vld [vmem:[#allocation15 + $0xa40] sm:$0xff]
          %v1165 = vld [vmem:[#allocation15 + $0xa48] sm:$0xff]
          %v1166 = vld [vmem:[#allocation15 + $0xa50] sm:$0xff]
          %v1167 = vld [vmem:[#allocation15 + $0xa58] sm:$0xff]
          %v1168 = vld [vmem:[#allocation15 + $0xa60] sm:$0xff]
          %v1169 = vld [vmem:[#allocation15 + $0xa68] sm:$0xff]
          %v1170 = vld [vmem:[#allocation15 + $0xa70] sm:$0xff]
          %v1171 = vld [vmem:[#allocation15 + $0xa78] sm:$0xff]
          %v1172 = vld [vmem:[#allocation15 + $0xa80] sm:$0xff]
          %v1173 = vld [vmem:[#allocation15 + $0xa88] sm:$0xff]
          %v1174 = vld [vmem:[#allocation15 + $0xa90] sm:$0xff]
          %v1175 = vld [vmem:[#allocation15 + $0xa98] sm:$0xff]
          %v1176 = vld [vmem:[#allocation15 + $0xaa0] sm:$0xff]
          %v1177 = vld [vmem:[#allocation15 + $0xaa8] sm:$0xff]
          %v1178 = vld [vmem:[#allocation15 + $0xab0] sm:$0xff]
          %v1179 = vld [vmem:[#allocation15 + $0xab8] sm:$0xff]
          %v1180 = vld [vmem:[#allocation15 + $0xac0] sm:$0xff]
          %v1181 = vld [vmem:[#allocation15 + $0xac8] sm:$0xff]
          %v1182 = vld [vmem:[#allocation15 + $0xad0] sm:$0xff]
          %v1183 = vld [vmem:[#allocation15 + $0xad8] sm:$0xff]
          %v1184 = vld [vmem:[#allocation15 + $0xae0] sm:$0xff]
          %v1185 = vld [vmem:[#allocation15 + $0xae8] sm:$0xff]
          %v1186 = vld [vmem:[#allocation15 + $0xaf0] sm:$0xff]
          %v1187 = vld [vmem:[#allocation15 + $0xaf8] sm:$0xff]
          %v1188 = vld [vmem:[#allocation15 + $0xb00] sm:$0xff]
          %v1189 = vld [vmem:[#allocation15 + $0xb08] sm:$0xff]
          %v1190 = vld [vmem:[#allocation15 + $0xb10] sm:$0xff]
          %v1191 = vld [vmem:[#allocation15 + $0xb18] sm:$0xff]
          %v1192 = vld [vmem:[#allocation15 + $0xb20] sm:$0xff]
          %v1193 = vld [vmem:[#allocation15 + $0xb28] sm:$0xff]
          %v1194 = vld [vmem:[#allocation15 + $0xb30] sm:$0xff]
          %v1195 = vld [vmem:[#allocation15 + $0xb38] sm:$0xff]
          %v1196 = vld [vmem:[#allocation15 + $0xb40] sm:$0xff]
          %v1197 = vld [vmem:[#allocation15 + $0xb48] sm:$0xff]
          %v1198 = vld [vmem:[#allocation15 + $0xb50] sm:$0xff]
          %v1199 = vld [vmem:[#allocation15 + $0xb58] sm:$0xff]
          %v1200 = vld [vmem:[#allocation15 + $0xb60] sm:$0xff]
          %v1201 = vld [vmem:[#allocation15 + $0xb68] sm:$0xff]
          %v1202 = vld [vmem:[#allocation15 + $0xb70] sm:$0xff]
          %v1203 = vld [vmem:[#allocation15 + $0xb78] sm:$0xff]
          %v1204 = vld [vmem:[#allocation15 + $0xb80] sm:$0xff]
          %v1205 = vld [vmem:[#allocation15 + $0xb88] sm:$0xff]
          %v1206 = vld [vmem:[#allocation15 + $0xb90] sm:$0xff]
          %v1207 = vld [vmem:[#allocation15 + $0xb98] sm:$0xff]
          %v1208 = vld [vmem:[#allocation15 + $0xba0] sm:$0xff]
          %v1209 = vld [vmem:[#allocation15 + $0xba8] sm:$0xff]
          %v1210 = vld [vmem:[#allocation15 + $0xbb0] sm:$0xff]
          %v1211 = vld [vmem:[#allocation15 + $0xbb8] sm:$0xff]
          %v1212 = vld [vmem:[#allocation15 + $0xbc0] sm:$0xff]
          %v1213 = vld [vmem:[#allocation15 + $0xbc8] sm:$0xff]
          %v1214 = vld [vmem:[#allocation15 + $0xbd0] sm:$0xff]
          %v1215 = vld [vmem:[#allocation15 + $0xbd8] sm:$0xff]
          %v1216 = vld [vmem:[#allocation15 + $0xbe0] sm:$0xff]
          %v1217 = vld [vmem:[#allocation15 + $0xbe8] sm:$0xff]
          %v1218 = vld [vmem:[#allocation15 + $0xbf0] sm:$0xff]
          %v1219 = vld [vmem:[#allocation15 + $0xbf8] sm:$0xff]
          %v1220 = vld [vmem:[#allocation17] sm:$0xff]
          %v1221 = vld [vmem:[#allocation17 + $0x8] sm:$0xf]
          %v1222 = vunpack.c.l.bf16 %v1220
          %v1223 = vunpack.c.h.bf16 %v1220
          %v1224 = vunpack.c.l.bf16 %v1221
          %v1609 = vunpack.c.l.b16 %v836
          %v1610 = vunpack.c.h.b16 %v836
          %v1611 = vunpack.c.l.b16 %v837
          %v1612 = vunpack.c.h.b16 %v837
          %v1613 = vunpack.c.l.b16 %v838
          %v1614 = vunpack.c.h.b16 %v838
          %v1615 = vunpack.c.l.b16 %v839
          %v1616 = vunpack.c.h.b16 %v839
          %v1617 = vunpack.c.l.b16 %v840
          %v1618 = vunpack.c.h.b16 %v840
          %v1619 = vunpack.c.l.b16 %v841
          %v1620 = vunpack.c.h.b16 %v841
          %v1621 = vunpack.c.l.b16 %v842
          %v1622 = vunpack.c.h.b16 %v842
          %v1623 = vunpack.c.l.b16 %v843
          %v1624 = vunpack.c.h.b16 %v843
          %v1625 = vunpack.c.l.b16 %v844
          %v1626 = vunpack.c.h.b16 %v844
          %v1627 = vunpack.c.l.b16 %v845
          %v1628 = vunpack.c.h.b16 %v845
          %v1629 = vunpack.c.l.b16 %v846
          %v1630 = vunpack.c.h.b16 %v846
          %v1631 = vunpack.c.l.b16 %v847
          %v1632 = vunpack.c.h.b16 %v847
          %v1633 = vunpack.c.l.b16 %v848
          %v1634 = vunpack.c.h.b16 %v848
          %v1635 = vunpack.c.l.b16 %v849
          %v1636 = vunpack.c.h.b16 %v849
          %v1637 = vunpack.c.l.b16 %v850
          %v1638 = vunpack.c.h.b16 %v850
          %v1639 = vunpack.c.l.b16 %v851
          %v1640 = vunpack.c.h.b16 %v851
          %v1641 = vunpack.c.l.b16 %v852
          %v1642 = vunpack.c.h.b16 %v852
          %v1643 = vunpack.c.l.b16 %v853
          %v1644 = vunpack.c.h.b16 %v853
          %v1645 = vunpack.c.l.b16 %v854
          %v1646 = vunpack.c.h.b16 %v854
          %v1647 = vunpack.c.l.b16 %v855
          %v1648 = vunpack.c.h.b16 %v855
          %v1649 = vunpack.c.l.b16 %v856
          %v1650 = vunpack.c.h.b16 %v856
          %v1651 = vunpack.c.l.b16 %v857
          %v1652 = vunpack.c.h.b16 %v857
          %v1653 = vunpack.c.l.b16 %v858
          %v1654 = vunpack.c.h.b16 %v858
          %v1655 = vunpack.c.l.b16 %v859
          %v1656 = vunpack.c.h.b16 %v859
          %v1657 = vunpack.c.l.b16 %v860
          %v1658 = vunpack.c.h.b16 %v860
          %v1659 = vunpack.c.l.b16 %v861
          %v1660 = vunpack.c.h.b16 %v861
          %v1661 = vunpack.c.l.b16 %v862
          %v1662 = vunpack.c.h.b16 %v862
          %v1663 = vunpack.c.l.b16 %v863
          %v1664 = vunpack.c.h.b16 %v863
          %v1665 = vunpack.c.l.b16 %v864
          %v1666 = vunpack.c.h.b16 %v864
          %v1667 = vunpack.c.l.b16 %v865
          %v1668 = vunpack.c.h.b16 %v865
          %v1669 = vunpack.c.l.b16 %v866
          %v1670 = vunpack.c.h.b16 %v866
          %v1671 = vunpack.c.l.b16 %v867
          %v1672 = vunpack.c.h.b16 %v867
          %v1673 = vunpack.c.l.b16 %v868
          %v1674 = vunpack.c.h.b16 %v868
          %v1675 = vunpack.c.l.b16 %v869
          %v1676 = vunpack.c.h.b16 %v869
          %v1677 = vunpack.c.l.b16 %v870
          %v1678 = vunpack.c.h.b16 %v870
          %v1679 = vunpack.c.l.b16 %v871
          %v1680 = vunpack.c.h.b16 %v871
          %v1681 = vunpack.c.l.b16 %v872
          %v1682 = vunpack.c.h.b16 %v872
          %v1683 = vunpack.c.l.b16 %v873
          %v1684 = vunpack.c.h.b16 %v873
          %v1685 = vunpack.c.l.b16 %v874
          %v1686 = vunpack.c.h.b16 %v874
          %v1687 = vunpack.c.l.b16 %v875
          %v1688 = vunpack.c.h.b16 %v875
          %v1689 = vunpack.c.l.b16 %v876
          %v1690 = vunpack.c.h.b16 %v876
          %v1691 = vunpack.c.l.b16 %v877
          %v1692 = vunpack.c.h.b16 %v877
          %v1693 = vunpack.c.l.b16 %v878
          %v1694 = vunpack.c.h.b16 %v878
          %v1695 = vunpack.c.l.b16 %v879
          %v1696 = vunpack.c.h.b16 %v879
          %v1697 = vunpack.c.l.b16 %v880
          %v1698 = vunpack.c.h.b16 %v880
          %v1699 = vunpack.c.l.b16 %v881
          %v1700 = vunpack.c.h.b16 %v881
          %v1701 = vunpack.c.l.b16 %v882
          %v1702 = vunpack.c.h.b16 %v882
          %v1703 = vunpack.c.l.b16 %v883
          %v1704 = vunpack.c.h.b16 %v883
          %v1705 = vunpack.c.l.b16 %v884
          %v1706 = vunpack.c.h.b16 %v884
          %v1707 = vunpack.c.l.b16 %v885
          %v1708 = vunpack.c.h.b16 %v885
          %v1709 = vunpack.c.l.b16 %v886
          %v1710 = vunpack.c.h.b16 %v886
          %v1711 = vunpack.c.l.b16 %v887
          %v1712 = vunpack.c.h.b16 %v887
          %v1713 = vunpack.c.l.b16 %v888
          %v1714 = vunpack.c.h.b16 %v888
          %v1715 = vunpack.c.l.b16 %v889
          %v1716 = vunpack.c.h.b16 %v889
          %v1717 = vunpack.c.l.b16 %v890
          %v1718 = vunpack.c.h.b16 %v890
          %v1719 = vunpack.c.l.b16 %v891
          %v1720 = vunpack.c.h.b16 %v891
          %v1721 = vunpack.c.l.b16 %v892
          %v1722 = vunpack.c.h.b16 %v892
          %v1723 = vunpack.c.l.b16 %v893
          %v1724 = vunpack.c.h.b16 %v893
          %v1725 = vunpack.c.l.b16 %v894
          %v1726 = vunpack.c.h.b16 %v894
          %v1727 = vunpack.c.l.b16 %v895
          %v1728 = vunpack.c.h.b16 %v895
          %v1729 = vunpack.c.l.b16 %v896
          %v1730 = vunpack.c.h.b16 %v896
          %v1731 = vunpack.c.l.b16 %v897
          %v1732 = vunpack.c.h.b16 %v897
          %v1733 = vunpack.c.l.b16 %v898
          %v1734 = vunpack.c.h.b16 %v898
          %v1735 = vunpack.c.l.b16 %v899
          %v1736 = vunpack.c.h.b16 %v899
          %v1737 = vunpack.c.l.b16 %v900
          %v1738 = vunpack.c.h.b16 %v900
          %v1739 = vunpack.c.l.b16 %v901
          %v1740 = vunpack.c.h.b16 %v901
          %v1741 = vunpack.c.l.b16 %v902
          %v1742 = vunpack.c.h.b16 %v902
          %v1743 = vunpack.c.l.b16 %v903
          %v1744 = vunpack.c.h.b16 %v903
          %v1745 = vunpack.c.l.b16 %v904
          %v1746 = vunpack.c.h.b16 %v904
          %v1747 = vunpack.c.l.b16 %v905
          %v1748 = vunpack.c.h.b16 %v905
          %v1749 = vunpack.c.l.b16 %v906
          %v1750 = vunpack.c.h.b16 %v906
          %v1751 = vunpack.c.l.b16 %v907
          %v1752 = vunpack.c.h.b16 %v907
          %v1753 = vunpack.c.l.b16 %v908
          %v1754 = vunpack.c.h.b16 %v908
          %v1755 = vunpack.c.l.b16 %v909
          %v1756 = vunpack.c.h.b16 %v909
          %v1757 = vunpack.c.l.b16 %v910
          %v1758 = vunpack.c.h.b16 %v910
          %v1759 = vunpack.c.l.b16 %v911
          %v1760 = vunpack.c.h.b16 %v911
          %v1761 = vunpack.c.l.b16 %v912
          %v1762 = vunpack.c.h.b16 %v912
          %v1763 = vunpack.c.l.b16 %v913
          %v1764 = vunpack.c.h.b16 %v913
          %v1765 = vunpack.c.l.b16 %v914
          %v1766 = vunpack.c.h.b16 %v914
          %v1767 = vunpack.c.l.b16 %v915
          %v1768 = vunpack.c.h.b16 %v915
          %v1769 = vunpack.c.l.b16 %v916
          %v1770 = vunpack.c.h.b16 %v916
          %v1771 = vunpack.c.l.b16 %v917
          %v1772 = vunpack.c.h.b16 %v917
          %v1773 = vunpack.c.l.b16 %v918
          %v1774 = vunpack.c.h.b16 %v918
          %v1775 = vunpack.c.l.b16 %v919
          %v1776 = vunpack.c.h.b16 %v919
          %v1777 = vunpack.c.l.b16 %v920
          %v1778 = vunpack.c.h.b16 %v920
          %v1779 = vunpack.c.l.b16 %v921
          %v1780 = vunpack.c.h.b16 %v921
          %v1781 = vunpack.c.l.b16 %v922
          %v1782 = vunpack.c.h.b16 %v922
          %v1783 = vunpack.c.l.b16 %v923
          %v1784 = vunpack.c.h.b16 %v923
          %v1785 = vunpack.c.l.b16 %v924
          %v1786 = vunpack.c.h.b16 %v924
          %v1787 = vunpack.c.l.b16 %v925
          %v1788 = vunpack.c.h.b16 %v925
          %v1789 = vunpack.c.l.b16 %v926
          %v1790 = vunpack.c.h.b16 %v926
          %v1791 = vunpack.c.l.b16 %v927
          %v1792 = vunpack.c.h.b16 %v927
          %v1793 = vunpack.c.l.b16 %v928
          %v1794 = vunpack.c.h.b16 %v928
          %v1795 = vunpack.c.l.b16 %v929
          %v1796 = vunpack.c.h.b16 %v929
          %v1797 = vunpack.c.l.b16 %v930
          %v1798 = vunpack.c.h.b16 %v930
          %v1799 = vunpack.c.l.b16 %v931
          %v1800 = vunpack.c.h.b16 %v931
          %v1801 = vunpack.c.l.b16 %v932
          %v1802 = vunpack.c.h.b16 %v932
          %v1803 = vunpack.c.l.b16 %v933
          %v1804 = vunpack.c.h.b16 %v933
          %v1805 = vunpack.c.l.b16 %v934
          %v1806 = vunpack.c.h.b16 %v934
          %v1807 = vunpack.c.l.b16 %v935
          %v1808 = vunpack.c.h.b16 %v935
          %v1809 = vunpack.c.l.b16 %v936
          %v1810 = vunpack.c.h.b16 %v936
          %v1811 = vunpack.c.l.b16 %v937
          %v1812 = vunpack.c.h.b16 %v937
          %v1813 = vunpack.c.l.b16 %v938
          %v1814 = vunpack.c.h.b16 %v938
          %v1815 = vunpack.c.l.b16 %v939
          %v1816 = vunpack.c.h.b16 %v939
          %v1817 = vunpack.c.l.b16 %v940
          %v1818 = vunpack.c.h.b16 %v940
          %v1819 = vunpack.c.l.b16 %v941
          %v1820 = vunpack.c.h.b16 %v941
          %v1821 = vunpack.c.l.b16 %v942
          %v1822 = vunpack.c.h.b16 %v942
          %v1823 = vunpack.c.l.b16 %v943
          %v1824 = vunpack.c.h.b16 %v943
          %v1825 = vunpack.c.l.b16 %v944
          %v1826 = vunpack.c.h.b16 %v944
          %v1827 = vunpack.c.l.b16 %v945
          %v1828 = vunpack.c.h.b16 %v945
          %v1829 = vunpack.c.l.b16 %v946
          %v1830 = vunpack.c.h.b16 %v946
          %v1831 = vunpack.c.l.b16 %v947
          %v1832 = vunpack.c.h.b16 %v947
          %v1833 = vunpack.c.l.b16 %v948
          %v1834 = vunpack.c.h.b16 %v948
          %v1835 = vunpack.c.l.b16 %v949
          %v1836 = vunpack.c.h.b16 %v949
          %v1837 = vunpack.c.l.b16 %v950
          %v1838 = vunpack.c.h.b16 %v950
          %v1839 = vunpack.c.l.b16 %v951
          %v1840 = vunpack.c.h.b16 %v951
          %v1841 = vunpack.c.l.b16 %v952
          %v1842 = vunpack.c.h.b16 %v952
          %v1843 = vunpack.c.l.b16 %v953
          %v1844 = vunpack.c.h.b16 %v953
          %v1845 = vunpack.c.l.b16 %v954
          %v1846 = vunpack.c.h.b16 %v954
          %v1847 = vunpack.c.l.b16 %v955
          %v1848 = vunpack.c.h.b16 %v955
          %v1849 = vunpack.c.l.b16 %v956
          %v1850 = vunpack.c.h.b16 %v956
          %v1851 = vunpack.c.l.b16 %v957
          %v1852 = vunpack.c.h.b16 %v957
          %v1853 = vunpack.c.l.b16 %v958
          %v1854 = vunpack.c.h.b16 %v958
          %v1855 = vunpack.c.l.b16 %v959
          %v1856 = vunpack.c.h.b16 %v959
          %v1857 = vunpack.c.l.b16 %v960
          %v1858 = vunpack.c.h.b16 %v960
          %v1859 = vunpack.c.l.b16 %v961
          %v1860 = vunpack.c.h.b16 %v961
          %v1861 = vunpack.c.l.b16 %v962
          %v1862 = vunpack.c.h.b16 %v962
          %v1863 = vunpack.c.l.b16 %v963
          %v1864 = vunpack.c.h.b16 %v963
          %v1865 = vunpack.c.l.b16 %v964
          %v1866 = vunpack.c.h.b16 %v964
          %v1867 = vunpack.c.l.b16 %v965
          %v1868 = vunpack.c.h.b16 %v965
          %v1869 = vunpack.c.l.b16 %v966
          %v1870 = vunpack.c.h.b16 %v966
          %v1871 = vunpack.c.l.b16 %v967
          %v1872 = vunpack.c.h.b16 %v967
          %v1873 = vunpack.c.l.b16 %v968
          %v1874 = vunpack.c.h.b16 %v968
          %v1875 = vunpack.c.l.b16 %v969
          %v1876 = vunpack.c.h.b16 %v969
          %v1877 = vunpack.c.l.b16 %v970
          %v1878 = vunpack.c.h.b16 %v970
          %v1879 = vunpack.c.l.b16 %v971
          %v1880 = vunpack.c.h.b16 %v971
          %v1881 = vunpack.c.l.b16 %v972
          %v1882 = vunpack.c.h.b16 %v972
          %v1883 = vunpack.c.l.b16 %v973
          %v1884 = vunpack.c.h.b16 %v973
          %v1885 = vunpack.c.l.b16 %v974
          %v1886 = vunpack.c.h.b16 %v974
          %v1887 = vunpack.c.l.b16 %v975
          %v1888 = vunpack.c.h.b16 %v975
          %v1889 = vunpack.c.l.b16 %v976
          %v1890 = vunpack.c.h.b16 %v976
          %v1891 = vunpack.c.l.b16 %v977
          %v1892 = vunpack.c.h.b16 %v977
          %v1893 = vunpack.c.l.b16 %v978
          %v1894 = vunpack.c.h.b16 %v978
          %v1895 = vunpack.c.l.b16 %v979
          %v1896 = vunpack.c.h.b16 %v979
          %v1897 = vunpack.c.l.b16 %v980
          %v1898 = vunpack.c.h.b16 %v980
          %v1899 = vunpack.c.l.b16 %v981
          %v1900 = vunpack.c.h.b16 %v981
          %v1901 = vunpack.c.l.b16 %v982
          %v1902 = vunpack.c.h.b16 %v982
          %v1903 = vunpack.c.l.b16 %v983
          %v1904 = vunpack.c.h.b16 %v983
          %v1905 = vunpack.c.l.b16 %v984
          %v1906 = vunpack.c.h.b16 %v984
          %v1907 = vunpack.c.l.b16 %v985
          %v1908 = vunpack.c.h.b16 %v985
          %v1909 = vunpack.c.l.b16 %v986
          %v1910 = vunpack.c.h.b16 %v986
          %v1911 = vunpack.c.l.b16 %v987
          %v1912 = vunpack.c.h.b16 %v987
          %v1913 = vunpack.c.l.b16 %v988
          %v1914 = vunpack.c.h.b16 %v988
          %v1915 = vunpack.c.l.b16 %v989
          %v1916 = vunpack.c.h.b16 %v989
          %v1917 = vunpack.c.l.b16 %v990
          %v1918 = vunpack.c.h.b16 %v990
          %v1919 = vunpack.c.l.b16 %v991
          %v1920 = vunpack.c.h.b16 %v991
          %v1921 = vunpack.c.l.b16 %v992
          %v1922 = vunpack.c.h.b16 %v992
          %v1923 = vunpack.c.l.b16 %v993
          %v1924 = vunpack.c.h.b16 %v993
          %v1925 = vunpack.c.l.b16 %v994
          %v1926 = vunpack.c.h.b16 %v994
          %v1927 = vunpack.c.l.b16 %v995
          %v1928 = vunpack.c.h.b16 %v995
          %v1929 = vunpack.c.l.b16 %v996
          %v1930 = vunpack.c.h.b16 %v996
          %v1931 = vunpack.c.l.b16 %v997
          %v1932 = vunpack.c.h.b16 %v997
          %v1933 = vunpack.c.l.b16 %v998
          %v1934 = vunpack.c.h.b16 %v998
          %v1935 = vunpack.c.l.b16 %v999
          %v1936 = vunpack.c.h.b16 %v999
          %v1937 = vunpack.c.l.b16 %v1000
          %v1938 = vunpack.c.h.b16 %v1000
          %v1939 = vunpack.c.l.b16 %v1001
          %v1940 = vunpack.c.h.b16 %v1001
          %v1941 = vunpack.c.l.b16 %v1002
          %v1942 = vunpack.c.h.b16 %v1002
          %v1943 = vunpack.c.l.b16 %v1003
          %v1944 = vunpack.c.h.b16 %v1003
          %v1945 = vunpack.c.l.b16 %v1004
          %v1946 = vunpack.c.h.b16 %v1004
          %v1947 = vunpack.c.l.b16 %v1005
          %v1948 = vunpack.c.h.b16 %v1005
          %v1949 = vunpack.c.l.b16 %v1006
          %v1950 = vunpack.c.h.b16 %v1006
          %v1951 = vunpack.c.l.b16 %v1007
          %v1952 = vunpack.c.h.b16 %v1007
          %v1953 = vunpack.c.l.b16 %v1008
          %v1954 = vunpack.c.h.b16 %v1008
          %v1955 = vunpack.c.l.b16 %v1009
          %v1956 = vunpack.c.h.b16 %v1009
          %v1957 = vunpack.c.l.b16 %v1010
          %v1958 = vunpack.c.h.b16 %v1010
          %v1959 = vunpack.c.l.b16 %v1011
          %v1960 = vunpack.c.h.b16 %v1011
          %v1961 = vunpack.c.l.b16 %v1012
          %v1962 = vunpack.c.h.b16 %v1012
          %v1963 = vunpack.c.l.b16 %v1013
          %v1964 = vunpack.c.h.b16 %v1013
          %v1965 = vunpack.c.l.b16 %v1014
          %v1966 = vunpack.c.h.b16 %v1014
          %v1967 = vunpack.c.l.b16 %v1015
          %v1968 = vunpack.c.h.b16 %v1015
          %v1969 = vunpack.c.l.b16 %v1016
          %v1970 = vunpack.c.h.b16 %v1016
          %v1971 = vunpack.c.l.b16 %v1017
          %v1972 = vunpack.c.h.b16 %v1017
          %v1973 = vunpack.c.l.b16 %v1018
          %v1974 = vunpack.c.h.b16 %v1018
          %v1975 = vunpack.c.l.b16 %v1019
          %v1976 = vunpack.c.h.b16 %v1019
          %v1977 = vunpack.c.l.b16 %v1020
          %v1978 = vunpack.c.h.b16 %v1020
          %v1979 = vunpack.c.l.b16 %v1021
          %v1980 = vunpack.c.h.b16 %v1021
          %v1981 = vunpack.c.l.b16 %v1022
          %v1982 = vunpack.c.h.b16 %v1022
          %v1983 = vunpack.c.l.b16 %v1023
          %v1984 = vunpack.c.h.b16 %v1023
          %v1985 = vunpack.c.l.b16 %v1024
          %v1986 = vunpack.c.h.b16 %v1024
          %v1987 = vunpack.c.l.b16 %v1025
          %v1988 = vunpack.c.h.b16 %v1025
          %v1989 = vunpack.c.l.b16 %v1026
          %v1990 = vunpack.c.h.b16 %v1026
          %v1991 = vunpack.c.l.b16 %v1027
          %v1992 = vunpack.c.h.b16 %v1027
          %v1993 = vunpack.c.l.b16 %v1028
          %v1994 = vunpack.c.h.b16 %v1028
          %v1995 = vunpack.c.l.b16 %v1029
          %v1996 = vunpack.c.h.b16 %v1029
          %v1997 = vunpack.c.l.b16 %v1030
          %v1998 = vunpack.c.h.b16 %v1030
          %v1999 = vunpack.c.l.b16 %v1031
          %v2000 = vunpack.c.h.b16 %v1031
          %v2001 = vunpack.c.l.b16 %v1032
          %v2002 = vunpack.c.h.b16 %v1032
          %v2003 = vunpack.c.l.b16 %v1033
          %v2004 = vunpack.c.h.b16 %v1033
          %v2005 = vunpack.c.l.b16 %v1034
          %v2006 = vunpack.c.h.b16 %v1034
          %v2007 = vunpack.c.l.b16 %v1035
          %v2008 = vunpack.c.h.b16 %v1035
          %v2009 = vunpack.c.l.b16 %v1036
          %v2010 = vunpack.c.h.b16 %v1036
          %v2011 = vunpack.c.l.b16 %v1037
          %v2012 = vunpack.c.h.b16 %v1037
          %v2013 = vunpack.c.l.b16 %v1038
          %v2014 = vunpack.c.h.b16 %v1038
          %v2015 = vunpack.c.l.b16 %v1039
          %v2016 = vunpack.c.h.b16 %v1039
          %v2017 = vunpack.c.l.b16 %v1040
          %v2018 = vunpack.c.h.b16 %v1040
          %v2019 = vunpack.c.l.b16 %v1041
          %v2020 = vunpack.c.h.b16 %v1041
          %v2021 = vunpack.c.l.b16 %v1042
          %v2022 = vunpack.c.h.b16 %v1042
          %v2023 = vunpack.c.l.b16 %v1043
          %v2024 = vunpack.c.h.b16 %v1043
          %v2025 = vunpack.c.l.b16 %v1044
          %v2026 = vunpack.c.h.b16 %v1044
          %v2027 = vunpack.c.l.b16 %v1045
          %v2028 = vunpack.c.h.b16 %v1045
          %v2029 = vunpack.c.l.b16 %v1046
          %v2030 = vunpack.c.h.b16 %v1046
          %v2031 = vunpack.c.l.b16 %v1047
          %v2032 = vunpack.c.h.b16 %v1047
          %v2033 = vunpack.c.l.b16 %v1048
          %v2034 = vunpack.c.h.b16 %v1048
          %v2035 = vunpack.c.l.b16 %v1049
          %v2036 = vunpack.c.h.b16 %v1049
          %v2037 = vunpack.c.l.b16 %v1050
          %v2038 = vunpack.c.h.b16 %v1050
          %v2039 = vunpack.c.l.b16 %v1051
          %v2040 = vunpack.c.h.b16 %v1051
          %v2041 = vunpack.c.l.b16 %v1052
          %v2042 = vunpack.c.h.b16 %v1052
          %v2043 = vunpack.c.l.b16 %v1053
          %v2044 = vunpack.c.h.b16 %v1053
          %v2045 = vunpack.c.l.b16 %v1054
          %v2046 = vunpack.c.h.b16 %v1054
          %v2047 = vunpack.c.l.b16 %v1055
          %v2048 = vunpack.c.h.b16 %v1055
          %v2049 = vunpack.c.l.b16 %v1056
          %v2050 = vunpack.c.h.b16 %v1056
          %v2051 = vunpack.c.l.b16 %v1057
          %v2052 = vunpack.c.h.b16 %v1057
          %v2053 = vunpack.c.l.b16 %v1058
          %v2054 = vunpack.c.h.b16 %v1058
          %v2055 = vunpack.c.l.b16 %v1059
          %v2056 = vunpack.c.h.b16 %v1059
          %v2057 = vunpack.c.l.b16 %v1060
          %v2058 = vunpack.c.h.b16 %v1060
          %v2059 = vunpack.c.l.b16 %v1061
          %v2060 = vunpack.c.h.b16 %v1061
          %v2061 = vunpack.c.l.b16 %v1062
          %v2062 = vunpack.c.h.b16 %v1062
          %v2063 = vunpack.c.l.b16 %v1063
          %v2064 = vunpack.c.h.b16 %v1063
          %v2065 = vunpack.c.l.b16 %v1064
          %v2066 = vunpack.c.h.b16 %v1064
          %v2067 = vunpack.c.l.b16 %v1065
          %v2068 = vunpack.c.h.b16 %v1065
          %v2069 = vunpack.c.l.b16 %v1066
          %v2070 = vunpack.c.h.b16 %v1066
          %v2071 = vunpack.c.l.b16 %v1067
          %v2072 = vunpack.c.h.b16 %v1067
          %v2073 = vunpack.c.l.b16 %v1068
          %v2074 = vunpack.c.h.b16 %v1068
          %v2075 = vunpack.c.l.b16 %v1069
          %v2076 = vunpack.c.h.b16 %v1069
          %v2077 = vunpack.c.l.b16 %v1070
          %v2078 = vunpack.c.h.b16 %v1070
          %v2079 = vunpack.c.l.b16 %v1071
          %v2080 = vunpack.c.h.b16 %v1071
          %v2081 = vunpack.c.l.b16 %v1072
          %v2082 = vunpack.c.h.b16 %v1072
          %v2083 = vunpack.c.l.b16 %v1073
          %v2084 = vunpack.c.h.b16 %v1073
          %v2085 = vunpack.c.l.b16 %v1074
          %v2086 = vunpack.c.h.b16 %v1074
          %v2087 = vunpack.c.l.b16 %v1075
          %v2088 = vunpack.c.h.b16 %v1075
          %v2089 = vunpack.c.l.b16 %v1076
          %v2090 = vunpack.c.h.b16 %v1076
          %v2091 = vunpack.c.l.b16 %v1077
          %v2092 = vunpack.c.h.b16 %v1077
          %v2093 = vunpack.c.l.b16 %v1078
          %v2094 = vunpack.c.h.b16 %v1078
          %v2095 = vunpack.c.l.b16 %v1079
          %v2096 = vunpack.c.h.b16 %v1079
          %v2097 = vunpack.c.l.b16 %v1080
          %v2098 = vunpack.c.h.b16 %v1080
          %v2099 = vunpack.c.l.b16 %v1081
          %v2100 = vunpack.c.h.b16 %v1081
          %v2101 = vunpack.c.l.b16 %v1082
          %v2102 = vunpack.c.h.b16 %v1082
          %v2103 = vunpack.c.l.b16 %v1083
          %v2104 = vunpack.c.h.b16 %v1083
          %v2105 = vunpack.c.l.b16 %v1084
          %v2106 = vunpack.c.h.b16 %v1084
          %v2107 = vunpack.c.l.b16 %v1085
          %v2108 = vunpack.c.h.b16 %v1085
          %v2109 = vunpack.c.l.b16 %v1086
          %v2110 = vunpack.c.h.b16 %v1086
          %v2111 = vunpack.c.l.b16 %v1087
          %v2112 = vunpack.c.h.b16 %v1087
          %v2113 = vunpack.c.l.b16 %v1088
          %v2114 = vunpack.c.h.b16 %v1088
          %v2115 = vunpack.c.l.b16 %v1089
          %v2116 = vunpack.c.h.b16 %v1089
          %v2117 = vunpack.c.l.b16 %v1090
          %v2118 = vunpack.c.h.b16 %v1090
          %v2119 = vunpack.c.l.b16 %v1091
          %v2120 = vunpack.c.h.b16 %v1091
          %v2121 = vunpack.c.l.b16 %v1092
          %v2122 = vunpack.c.h.b16 %v1092
          %v2123 = vunpack.c.l.b16 %v1093
          %v2124 = vunpack.c.h.b16 %v1093
          %v2125 = vunpack.c.l.b16 %v1094
          %v2126 = vunpack.c.h.b16 %v1094
          %v2127 = vunpack.c.l.b16 %v1095
          %v2128 = vunpack.c.h.b16 %v1095
          %v2129 = vunpack.c.l.b16 %v1096
          %v2130 = vunpack.c.h.b16 %v1096
          %v2131 = vunpack.c.l.b16 %v1097
          %v2132 = vunpack.c.h.b16 %v1097
          %v2133 = vunpack.c.l.b16 %v1098
          %v2134 = vunpack.c.h.b16 %v1098
          %v2135 = vunpack.c.l.b16 %v1099
          %v2136 = vunpack.c.h.b16 %v1099
          %v2137 = vunpack.c.l.b16 %v1100
          %v2138 = vunpack.c.h.b16 %v1100
          %v2139 = vunpack.c.l.b16 %v1101
          %v2140 = vunpack.c.h.b16 %v1101
          %v2141 = vunpack.c.l.b16 %v1102
          %v2142 = vunpack.c.h.b16 %v1102
          %v2143 = vunpack.c.l.b16 %v1103
          %v2144 = vunpack.c.h.b16 %v1103
          %v2145 = vunpack.c.l.b16 %v1104
          %v2146 = vunpack.c.h.b16 %v1104
          %v2147 = vunpack.c.l.b16 %v1105
          %v2148 = vunpack.c.h.b16 %v1105
          %v2149 = vunpack.c.l.b16 %v1106
          %v2150 = vunpack.c.h.b16 %v1106
          %v2151 = vunpack.c.l.b16 %v1107
          %v2152 = vunpack.c.h.b16 %v1107
          %v2153 = vunpack.c.l.b16 %v1108
          %v2154 = vunpack.c.h.b16 %v1108
          %v2155 = vunpack.c.l.b16 %v1109
          %v2156 = vunpack.c.h.b16 %v1109
          %v2157 = vunpack.c.l.b16 %v1110
          %v2158 = vunpack.c.h.b16 %v1110
          %v2159 = vunpack.c.l.b16 %v1111
          %v2160 = vunpack.c.h.b16 %v1111
          %v2161 = vunpack.c.l.b16 %v1112
          %v2162 = vunpack.c.h.b16 %v1112
          %v2163 = vunpack.c.l.b16 %v1113
          %v2164 = vunpack.c.h.b16 %v1113
          %v2165 = vunpack.c.l.b16 %v1114
          %v2166 = vunpack.c.h.b16 %v1114
          %v2167 = vunpack.c.l.b16 %v1115
          %v2168 = vunpack.c.h.b16 %v1115
          %v2169 = vunpack.c.l.b16 %v1116
          %v2170 = vunpack.c.h.b16 %v1116
          %v2171 = vunpack.c.l.b16 %v1117
          %v2172 = vunpack.c.h.b16 %v1117
          %v2173 = vunpack.c.l.b16 %v1118
          %v2174 = vunpack.c.h.b16 %v1118
          %v2175 = vunpack.c.l.b16 %v1119
          %v2176 = vunpack.c.h.b16 %v1119
          %v2177 = vunpack.c.l.b16 %v1120
          %v2178 = vunpack.c.h.b16 %v1120
          %v2179 = vunpack.c.l.b16 %v1121
          %v2180 = vunpack.c.h.b16 %v1121
          %v2181 = vunpack.c.l.b16 %v1122
          %v2182 = vunpack.c.h.b16 %v1122
          %v2183 = vunpack.c.l.b16 %v1123
          %v2184 = vunpack.c.h.b16 %v1123
          %v2185 = vunpack.c.l.b16 %v1124
          %v2186 = vunpack.c.h.b16 %v1124
          %v2187 = vunpack.c.l.b16 %v1125
          %v2188 = vunpack.c.h.b16 %v1125
          %v2189 = vunpack.c.l.b16 %v1126
          %v2190 = vunpack.c.h.b16 %v1126
          %v2191 = vunpack.c.l.b16 %v1127
          %v2192 = vunpack.c.h.b16 %v1127
          %v2193 = vunpack.c.l.b16 %v1128
          %v2194 = vunpack.c.h.b16 %v1128
          %v2195 = vunpack.c.l.b16 %v1129
          %v2196 = vunpack.c.h.b16 %v1129
          %v2197 = vunpack.c.l.b16 %v1130
          %v2198 = vunpack.c.h.b16 %v1130
          %v2199 = vunpack.c.l.b16 %v1131
          %v2200 = vunpack.c.h.b16 %v1131
          %v2201 = vunpack.c.l.b16 %v1132
          %v2202 = vunpack.c.h.b16 %v1132
          %v2203 = vunpack.c.l.b16 %v1133
          %v2204 = vunpack.c.h.b16 %v1133
          %v2205 = vunpack.c.l.b16 %v1134
          %v2206 = vunpack.c.h.b16 %v1134
          %v2207 = vunpack.c.l.b16 %v1135
          %v2208 = vunpack.c.h.b16 %v1135
          %v2209 = vunpack.c.l.b16 %v1136
          %v2210 = vunpack.c.h.b16 %v1136
          %v2211 = vunpack.c.l.b16 %v1137
          %v2212 = vunpack.c.h.b16 %v1137
          %v2213 = vunpack.c.l.b16 %v1138
          %v2214 = vunpack.c.h.b16 %v1138
          %v2215 = vunpack.c.l.b16 %v1139
          %v2216 = vunpack.c.h.b16 %v1139
          %v2217 = vunpack.c.l.b16 %v1140
          %v2218 = vunpack.c.h.b16 %v1140
          %v2219 = vunpack.c.l.b16 %v1141
          %v2220 = vunpack.c.h.b16 %v1141
          %v2221 = vunpack.c.l.b16 %v1142
          %v2222 = vunpack.c.h.b16 %v1142
          %v2223 = vunpack.c.l.b16 %v1143
          %v2224 = vunpack.c.h.b16 %v1143
          %v2225 = vunpack.c.l.b16 %v1144
          %v2226 = vunpack.c.h.b16 %v1144
          %v2227 = vunpack.c.l.b16 %v1145
          %v2228 = vunpack.c.h.b16 %v1145
          %v2229 = vunpack.c.l.b16 %v1146
          %v2230 = vunpack.c.h.b16 %v1146
          %v2231 = vunpack.c.l.b16 %v1147
          %v2232 = vunpack.c.h.b16 %v1147
          %v2233 = vunpack.c.l.b16 %v1148
          %v2234 = vunpack.c.h.b16 %v1148
          %v2235 = vunpack.c.l.b16 %v1149
          %v2236 = vunpack.c.h.b16 %v1149
          %v2237 = vunpack.c.l.b16 %v1150
          %v2238 = vunpack.c.h.b16 %v1150
          %v2239 = vunpack.c.l.b16 %v1151
          %v2240 = vunpack.c.h.b16 %v1151
          %v2241 = vunpack.c.l.b16 %v1152
          %v2242 = vunpack.c.h.b16 %v1152
          %v2243 = vunpack.c.l.b16 %v1153
          %v2244 = vunpack.c.h.b16 %v1153
          %v2245 = vunpack.c.l.b16 %v1154
          %v2246 = vunpack.c.h.b16 %v1154
          %v2247 = vunpack.c.l.b16 %v1155
          %v2248 = vunpack.c.h.b16 %v1155
          %v2249 = vunpack.c.l.b16 %v1156
          %v2250 = vunpack.c.h.b16 %v1156
          %v2251 = vunpack.c.l.b16 %v1157
          %v2252 = vunpack.c.h.b16 %v1157
          %v2253 = vunpack.c.l.b16 %v1158
          %v2254 = vunpack.c.h.b16 %v1158
          %v2255 = vunpack.c.l.b16 %v1159
          %v2256 = vunpack.c.h.b16 %v1159
          %v2257 = vunpack.c.l.b16 %v1160
          %v2258 = vunpack.c.h.b16 %v1160
          %v2259 = vunpack.c.l.b16 %v1161
          %v2260 = vunpack.c.h.b16 %v1161
          %v2261 = vunpack.c.l.b16 %v1162
          %v2262 = vunpack.c.h.b16 %v1162
          %v2263 = vunpack.c.l.b16 %v1163
          %v2264 = vunpack.c.h.b16 %v1163
          %v2265 = vunpack.c.l.b16 %v1164
          %v2266 = vunpack.c.h.b16 %v1164
          %v2267 = vunpack.c.l.b16 %v1165
          %v2268 = vunpack.c.h.b16 %v1165
          %v2269 = vunpack.c.l.b16 %v1166
          %v2270 = vunpack.c.h.b16 %v1166
          %v2271 = vunpack.c.l.b16 %v1167
          %v2272 = vunpack.c.h.b16 %v1167
          %v2273 = vunpack.c.l.b16 %v1168
          %v2274 = vunpack.c.h.b16 %v1168
          %v2275 = vunpack.c.l.b16 %v1169
          %v2276 = vunpack.c.h.b16 %v1169
          %v2277 = vunpack.c.l.b16 %v1170
          %v2278 = vunpack.c.h.b16 %v1170
          %v2279 = vunpack.c.l.b16 %v1171
          %v2280 = vunpack.c.h.b16 %v1171
          %v2281 = vunpack.c.l.b16 %v1172
          %v2282 = vunpack.c.h.b16 %v1172
          %v2283 = vunpack.c.l.b16 %v1173
          %v2284 = vunpack.c.h.b16 %v1173
          %v2285 = vunpack.c.l.b16 %v1174
          %v2286 = vunpack.c.h.b16 %v1174
          %v2287 = vunpack.c.l.b16 %v1175
          %v2288 = vunpack.c.h.b16 %v1175
          %v2289 = vunpack.c.l.b16 %v1176
          %v2290 = vunpack.c.h.b16 %v1176
          %v2291 = vunpack.c.l.b16 %v1177
          %v2292 = vunpack.c.h.b16 %v1177
          %v2293 = vunpack.c.l.b16 %v1178
          %v2294 = vunpack.c.h.b16 %v1178
          %v2295 = vunpack.c.l.b16 %v1179
          %v2296 = vunpack.c.h.b16 %v1179
          %v2297 = vunpack.c.l.b16 %v1180
          %v2298 = vunpack.c.h.b16 %v1180
          %v2299 = vunpack.c.l.b16 %v1181
          %v2300 = vunpack.c.h.b16 %v1181
          %v2301 = vunpack.c.l.b16 %v1182
          %v2302 = vunpack.c.h.b16 %v1182
          %v2303 = vunpack.c.l.b16 %v1183
          %v2304 = vunpack.c.h.b16 %v1183
          %v2305 = vunpack.c.l.b16 %v1184
          %v2306 = vunpack.c.h.b16 %v1184
          %v2307 = vunpack.c.l.b16 %v1185
          %v2308 = vunpack.c.h.b16 %v1185
          %v2309 = vunpack.c.l.b16 %v1186
          %v2310 = vunpack.c.h.b16 %v1186
          %v2311 = vunpack.c.l.b16 %v1187
          %v2312 = vunpack.c.h.b16 %v1187
          %v2313 = vunpack.c.l.b16 %v1188
          %v2314 = vunpack.c.h.b16 %v1188
          %v2315 = vunpack.c.l.b16 %v1189
          %v2316 = vunpack.c.h.b16 %v1189
          %v2317 = vunpack.c.l.b16 %v1190
          %v2318 = vunpack.c.h.b16 %v1190
          %v2319 = vunpack.c.l.b16 %v1191
          %v2320 = vunpack.c.h.b16 %v1191
          %v2321 = vunpack.c.l.b16 %v1192
          %v2322 = vunpack.c.h.b16 %v1192
          %v2323 = vunpack.c.l.b16 %v1193
          %v2324 = vunpack.c.h.b16 %v1193
          %v2325 = vunpack.c.l.b16 %v1194
          %v2326 = vunpack.c.h.b16 %v1194
          %v2327 = vunpack.c.l.b16 %v1195
          %v2328 = vunpack.c.h.b16 %v1195
          %v2329 = vunpack.c.l.b16 %v1196
          %v2330 = vunpack.c.h.b16 %v1196
          %v2331 = vunpack.c.l.b16 %v1197
          %v2332 = vunpack.c.h.b16 %v1197
          %v2333 = vunpack.c.l.b16 %v1198
          %v2334 = vunpack.c.h.b16 %v1198
          %v2335 = vunpack.c.l.b16 %v1199
          %v2336 = vunpack.c.h.b16 %v1199
          %v2337 = vunpack.c.l.b16 %v1200
          %v2338 = vunpack.c.h.b16 %v1200
          %v2339 = vunpack.c.l.b16 %v1201
          %v2340 = vunpack.c.h.b16 %v1201
          %v2341 = vunpack.c.l.b16 %v1202
          %v2342 = vunpack.c.h.b16 %v1202
          %v2343 = vunpack.c.l.b16 %v1203
          %v2344 = vunpack.c.h.b16 %v1203
          %v2345 = vunpack.c.l.b16 %v1204
          %v2346 = vunpack.c.h.b16 %v1204
          %v2347 = vunpack.c.l.b16 %v1205
          %v2348 = vunpack.c.h.b16 %v1205
          %v2349 = vunpack.c.l.b16 %v1206
          %v2350 = vunpack.c.h.b16 %v1206
          %v2351 = vunpack.c.l.b16 %v1207
          %v2352 = vunpack.c.h.b16 %v1207
          %v2353 = vunpack.c.l.b16 %v1208
          %v2354 = vunpack.c.h.b16 %v1208
          %v2355 = vunpack.c.l.b16 %v1209
          %v2356 = vunpack.c.h.b16 %v1209
          %v2357 = vunpack.c.l.b16 %v1210
          %v2358 = vunpack.c.h.b16 %v1210
          %v2359 = vunpack.c.l.b16 %v1211
          %v2360 = vunpack.c.h.b16 %v1211
          %v2361 = vunpack.c.l.b16 %v1212
          %v2362 = vunpack.c.h.b16 %v1212
          %v2363 = vunpack.c.l.b16 %v1213
          %v2364 = vunpack.c.h.b16 %v1213
          %v2365 = vunpack.c.l.b16 %v1214
          %v2366 = vunpack.c.h.b16 %v1214
          %v2367 = vunpack.c.l.b16 %v1215
          %v2368 = vunpack.c.h.b16 %v1215
          %v2369 = vunpack.c.l.b16 %v1216
          %v2370 = vunpack.c.h.b16 %v1216
          %v2371 = vunpack.c.l.b16 %v1217
          %v2372 = vunpack.c.h.b16 %v1217
          %v2373 = vunpack.c.l.b16 %v1218
          %v2374 = vunpack.c.h.b16 %v1218
          %v2375 = vunpack.c.l.b16 %v1219
          %v2376 = vunpack.c.h.b16 %v1219
          %v2377 = vpack.c.b16 %v1621, %v1609
          %v2378 = vpack.c.b16 %v1622, %v1610
          %v2379 = vpack.c.b16 %v1623, %v1611
          %v2380 = vpack.c.b16 %v1624, %v1612
          %v2381 = vpack.c.b16 %v1625, %v1613
          %v2382 = vpack.c.b16 %v1626, %v1614
          %v2383 = vpack.c.b16 %v1627, %v1615
          %v2384 = vpack.c.b16 %v1628, %v1616
          %v2385 = vpack.c.b16 %v1629, %v1617
          %v2386 = vpack.c.b16 %v1630, %v1618
          %v2387 = vpack.c.b16 %v1631, %v1619
          %v2388 = vpack.c.b16 %v1632, %v1620
          %v2389 = vpack.c.b16 %v1645, %v1633
          %v2390 = vpack.c.b16 %v1646, %v1634
          %v2391 = vpack.c.b16 %v1647, %v1635
          %v2392 = vpack.c.b16 %v1648, %v1636
          %v2393 = vpack.c.b16 %v1649, %v1637
          %v2394 = vpack.c.b16 %v1650, %v1638
          %v2395 = vpack.c.b16 %v1651, %v1639
          %v2396 = vpack.c.b16 %v1652, %v1640
          %v2397 = vpack.c.b16 %v1653, %v1641
          %v2398 = vpack.c.b16 %v1654, %v1642
          %v2399 = vpack.c.b16 %v1655, %v1643
          %v2400 = vpack.c.b16 %v1656, %v1644
          %v2401 = vpack.c.b16 %v1669, %v1657
          %v2402 = vpack.c.b16 %v1670, %v1658
          %v2403 = vpack.c.b16 %v1671, %v1659
          %v2404 = vpack.c.b16 %v1672, %v1660
          %v2405 = vpack.c.b16 %v1673, %v1661
          %v2406 = vpack.c.b16 %v1674, %v1662
          %v2407 = vpack.c.b16 %v1675, %v1663
          %v2408 = vpack.c.b16 %v1676, %v1664
          %v2409 = vpack.c.b16 %v1677, %v1665
          %v2410 = vpack.c.b16 %v1678, %v1666
          %v2411 = vpack.c.b16 %v1679, %v1667
          %v2412 = vpack.c.b16 %v1680, %v1668
          %v2413 = vpack.c.b16 %v1693, %v1681
          %v2414 = vpack.c.b16 %v1694, %v1682
          %v2415 = vpack.c.b16 %v1695, %v1683
          %v2416 = vpack.c.b16 %v1696, %v1684
          %v2417 = vpack.c.b16 %v1697, %v1685
          %v2418 = vpack.c.b16 %v1698, %v1686
          %v2419 = vpack.c.b16 %v1699, %v1687
          %v2420 = vpack.c.b16 %v1700, %v1688
          %v2421 = vpack.c.b16 %v1701, %v1689
          %v2422 = vpack.c.b16 %v1702, %v1690
          %v2423 = vpack.c.b16 %v1703, %v1691
          %v2424 = vpack.c.b16 %v1704, %v1692
          %v2425 = vpack.c.b16 %v1717, %v1705
          %v2426 = vpack.c.b16 %v1718, %v1706
          %v2427 = vpack.c.b16 %v1719, %v1707
          %v2428 = vpack.c.b16 %v1720, %v1708
          %v2429 = vpack.c.b16 %v1721, %v1709
          %v2430 = vpack.c.b16 %v1722, %v1710
          %v2431 = vpack.c.b16 %v1723, %v1711
          %v2432 = vpack.c.b16 %v1724, %v1712
          %v2433 = vpack.c.b16 %v1725, %v1713
          %v2434 = vpack.c.b16 %v1726, %v1714
          %v2435 = vpack.c.b16 %v1727, %v1715
          %v2436 = vpack.c.b16 %v1728, %v1716
          %v2437 = vpack.c.b16 %v1741, %v1729
          %v2438 = vpack.c.b16 %v1742, %v1730
          %v2439 = vpack.c.b16 %v1743, %v1731
          %v2440 = vpack.c.b16 %v1744, %v1732
          %v2441 = vpack.c.b16 %v1745, %v1733
          %v2442 = vpack.c.b16 %v1746, %v1734
          %v2443 = vpack.c.b16 %v1747, %v1735
          %v2444 = vpack.c.b16 %v1748, %v1736
          %v2445 = vpack.c.b16 %v1749, %v1737
          %v2446 = vpack.c.b16 %v1750, %v1738
          %v2447 = vpack.c.b16 %v1751, %v1739
          %v2448 = vpack.c.b16 %v1752, %v1740
          %v2449 = vpack.c.b16 %v1765, %v1753
          %v2450 = vpack.c.b16 %v1766, %v1754
          %v2451 = vpack.c.b16 %v1767, %v1755
          %v2452 = vpack.c.b16 %v1768, %v1756
          %v2453 = vpack.c.b16 %v1769, %v1757
          %v2454 = vpack.c.b16 %v1770, %v1758
          %v2455 = vpack.c.b16 %v1771, %v1759
          %v2456 = vpack.c.b16 %v1772, %v1760
          %v2457 = vpack.c.b16 %v1773, %v1761
          %v2458 = vpack.c.b16 %v1774, %v1762
          %v2459 = vpack.c.b16 %v1775, %v1763
          %v2460 = vpack.c.b16 %v1776, %v1764
          %v2461 = vpack.c.b16 %v1789, %v1777
          %v2462 = vpack.c.b16 %v1790, %v1778
          %v2463 = vpack.c.b16 %v1791, %v1779
          %v2464 = vpack.c.b16 %v1792, %v1780
          %v2465 = vpack.c.b16 %v1793, %v1781
          %v2466 = vpack.c.b16 %v1794, %v1782
          %v2467 = vpack.c.b16 %v1795, %v1783
          %v2468 = vpack.c.b16 %v1796, %v1784
          %v2469 = vpack.c.b16 %v1797, %v1785
          %v2470 = vpack.c.b16 %v1798, %v1786
          %v2471 = vpack.c.b16 %v1799, %v1787
          %v2472 = vpack.c.b16 %v1800, %v1788
          %v2473 = vpack.c.b16 %v1813, %v1801
          %v2474 = vpack.c.b16 %v1814, %v1802
          %v2475 = vpack.c.b16 %v1815, %v1803
          %v2476 = vpack.c.b16 %v1816, %v1804
          %v2477 = vpack.c.b16 %v1817, %v1805
          %v2478 = vpack.c.b16 %v1818, %v1806
          %v2479 = vpack.c.b16 %v1819, %v1807
          %v2480 = vpack.c.b16 %v1820, %v1808
          %v2481 = vpack.c.b16 %v1821, %v1809
          %v2482 = vpack.c.b16 %v1822, %v1810
          %v2483 = vpack.c.b16 %v1823, %v1811
          %v2484 = vpack.c.b16 %v1824, %v1812
          %v2485 = vpack.c.b16 %v1837, %v1825
          %v2486 = vpack.c.b16 %v1838, %v1826
          %v2487 = vpack.c.b16 %v1839, %v1827
          %v2488 = vpack.c.b16 %v1840, %v1828
          %v2489 = vpack.c.b16 %v1841, %v1829
          %v2490 = vpack.c.b16 %v1842, %v1830
          %v2491 = vpack.c.b16 %v1843, %v1831
          %v2492 = vpack.c.b16 %v1844, %v1832
          %v2493 = vpack.c.b16 %v1845, %v1833
          %v2494 = vpack.c.b16 %v1846, %v1834
          %v2495 = vpack.c.b16 %v1847, %v1835
          %v2496 = vpack.c.b16 %v1848, %v1836
          %v2497 = vpack.c.b16 %v1861, %v1849
          %v2498 = vpack.c.b16 %v1862, %v1850
          %v2499 = vpack.c.b16 %v1863, %v1851
          %v2500 = vpack.c.b16 %v1864, %v1852
          %v2501 = vpack.c.b16 %v1865, %v1853
          %v2502 = vpack.c.b16 %v1866, %v1854
          %v2503 = vpack.c.b16 %v1867, %v1855
          %v2504 = vpack.c.b16 %v1868, %v1856
          %v2505 = vpack.c.b16 %v1869, %v1857
          %v2506 = vpack.c.b16 %v1870, %v1858
          %v2507 = vpack.c.b16 %v1871, %v1859
          %v2508 = vpack.c.b16 %v1872, %v1860
          %v2509 = vpack.c.b16 %v1885, %v1873
          %v2510 = vpack.c.b16 %v1886, %v1874
          %v2511 = vpack.c.b16 %v1887, %v1875
          %v2512 = vpack.c.b16 %v1888, %v1876
          %v2513 = vpack.c.b16 %v1889, %v1877
          %v2514 = vpack.c.b16 %v1890, %v1878
          %v2515 = vpack.c.b16 %v1891, %v1879
          %v2516 = vpack.c.b16 %v1892, %v1880
          %v2517 = vpack.c.b16 %v1893, %v1881
          %v2518 = vpack.c.b16 %v1894, %v1882
          %v2519 = vpack.c.b16 %v1895, %v1883
          %v2520 = vpack.c.b16 %v1896, %v1884
          %v2521 = vpack.c.b16 %v1909, %v1897
          %v2522 = vpack.c.b16 %v1910, %v1898
          %v2523 = vpack.c.b16 %v1911, %v1899
          %v2524 = vpack.c.b16 %v1912, %v1900
          %v2525 = vpack.c.b16 %v1913, %v1901
          %v2526 = vpack.c.b16 %v1914, %v1902
          %v2527 = vpack.c.b16 %v1915, %v1903
          %v2528 = vpack.c.b16 %v1916, %v1904
          %v2529 = vpack.c.b16 %v1917, %v1905
          %v2530 = vpack.c.b16 %v1918, %v1906
          %v2531 = vpack.c.b16 %v1919, %v1907
          %v2532 = vpack.c.b16 %v1920, %v1908
          %v2533 = vpack.c.b16 %v1933, %v1921
          %v2534 = vpack.c.b16 %v1934, %v1922
          %v2535 = vpack.c.b16 %v1935, %v1923
          %v2536 = vpack.c.b16 %v1936, %v1924
          %v2537 = vpack.c.b16 %v1937, %v1925
          %v2538 = vpack.c.b16 %v1938, %v1926
          %v2539 = vpack.c.b16 %v1939, %v1927
          %v2540 = vpack.c.b16 %v1940, %v1928
          %v2541 = vpack.c.b16 %v1941, %v1929
          %v2542 = vpack.c.b16 %v1942, %v1930
          %v2543 = vpack.c.b16 %v1943, %v1931
          %v2544 = vpack.c.b16 %v1944, %v1932
          %v2545 = vpack.c.b16 %v1957, %v1945
          %v2546 = vpack.c.b16 %v1958, %v1946
          %v2547 = vpack.c.b16 %v1959, %v1947
          %v2548 = vpack.c.b16 %v1960, %v1948
          %v2549 = vpack.c.b16 %v1961, %v1949
          %v2550 = vpack.c.b16 %v1962, %v1950
          %v2551 = vpack.c.b16 %v1963, %v1951
          %v2552 = vpack.c.b16 %v1964, %v1952
          %v2553 = vpack.c.b16 %v1965, %v1953
          %v2554 = vpack.c.b16 %v1966, %v1954
          %v2555 = vpack.c.b16 %v1967, %v1955
          %v2556 = vpack.c.b16 %v1968, %v1956
          %v2557 = vpack.c.b16 %v1981, %v1969
          %v2558 = vpack.c.b16 %v1982, %v1970
          %v2559 = vpack.c.b16 %v1983, %v1971
          %v2560 = vpack.c.b16 %v1984, %v1972
          %v2561 = vpack.c.b16 %v1985, %v1973
          %v2562 = vpack.c.b16 %v1986, %v1974
          %v2563 = vpack.c.b16 %v1987, %v1975
          %v2564 = vpack.c.b16 %v1988, %v1976
          %v2565 = vpack.c.b16 %v1989, %v1977
          %v2566 = vpack.c.b16 %v1990, %v1978
          %v2567 = vpack.c.b16 %v1991, %v1979
          %v2568 = vpack.c.b16 %v1992, %v1980
          %v2569 = vpack.c.b16 %v2005, %v1993
          %v2570 = vpack.c.b16 %v2006, %v1994
          %v2571 = vpack.c.b16 %v2007, %v1995
          %v2572 = vpack.c.b16 %v2008, %v1996
          %v2573 = vpack.c.b16 %v2009, %v1997
          %v2574 = vpack.c.b16 %v2010, %v1998
          %v2575 = vpack.c.b16 %v2011, %v1999
          %v2576 = vpack.c.b16 %v2012, %v2000
          %v2577 = vpack.c.b16 %v2013, %v2001
          %v2578 = vpack.c.b16 %v2014, %v2002
          %v2579 = vpack.c.b16 %v2015, %v2003
          %v2580 = vpack.c.b16 %v2016, %v2004
          %v2581 = vpack.c.b16 %v2029, %v2017
          %v2582 = vpack.c.b16 %v2030, %v2018
          %v2583 = vpack.c.b16 %v2031, %v2019
          %v2584 = vpack.c.b16 %v2032, %v2020
          %v2585 = vpack.c.b16 %v2033, %v2021
          %v2586 = vpack.c.b16 %v2034, %v2022
          %v2587 = vpack.c.b16 %v2035, %v2023
          %v2588 = vpack.c.b16 %v2036, %v2024
          %v2589 = vpack.c.b16 %v2037, %v2025
          %v2590 = vpack.c.b16 %v2038, %v2026
          %v2591 = vpack.c.b16 %v2039, %v2027
          %v2592 = vpack.c.b16 %v2040, %v2028
          %v2593 = vpack.c.b16 %v2053, %v2041
          %v2594 = vpack.c.b16 %v2054, %v2042
          %v2595 = vpack.c.b16 %v2055, %v2043
          %v2596 = vpack.c.b16 %v2056, %v2044
          %v2597 = vpack.c.b16 %v2057, %v2045
          %v2598 = vpack.c.b16 %v2058, %v2046
          %v2599 = vpack.c.b16 %v2059, %v2047
          %v2600 = vpack.c.b16 %v2060, %v2048
          %v2601 = vpack.c.b16 %v2061, %v2049
          %v2602 = vpack.c.b16 %v2062, %v2050
          %v2603 = vpack.c.b16 %v2063, %v2051
          %v2604 = vpack.c.b16 %v2064, %v2052
          %v2605 = vpack.c.b16 %v2077, %v2065
          %v2606 = vpack.c.b16 %v2078, %v2066
          %v2607 = vpack.c.b16 %v2079, %v2067
          %v2608 = vpack.c.b16 %v2080, %v2068
          %v2609 = vpack.c.b16 %v2081, %v2069
          %v2610 = vpack.c.b16 %v2082, %v2070
          %v2611 = vpack.c.b16 %v2083, %v2071
          %v2612 = vpack.c.b16 %v2084, %v2072
          %v2613 = vpack.c.b16 %v2085, %v2073
          %v2614 = vpack.c.b16 %v2086, %v2074
          %v2615 = vpack.c.b16 %v2087, %v2075
          %v2616 = vpack.c.b16 %v2088, %v2076
          %v2617 = vpack.c.b16 %v2101, %v2089
          %v2618 = vpack.c.b16 %v2102, %v2090
          %v2619 = vpack.c.b16 %v2103, %v2091
          %v2620 = vpack.c.b16 %v2104, %v2092
          %v2621 = vpack.c.b16 %v2105, %v2093
          %v2622 = vpack.c.b16 %v2106, %v2094
          %v2623 = vpack.c.b16 %v2107, %v2095
          %v2624 = vpack.c.b16 %v2108, %v2096
          %v2625 = vpack.c.b16 %v2109, %v2097
          %v2626 = vpack.c.b16 %v2110, %v2098
          %v2627 = vpack.c.b16 %v2111, %v2099
          %v2628 = vpack.c.b16 %v2112, %v2100
          %v2629 = vpack.c.b16 %v2125, %v2113
          %v2630 = vpack.c.b16 %v2126, %v2114
          %v2631 = vpack.c.b16 %v2127, %v2115
          %v2632 = vpack.c.b16 %v2128, %v2116
          %v2633 = vpack.c.b16 %v2129, %v2117
          %v2634 = vpack.c.b16 %v2130, %v2118
          %v2635 = vpack.c.b16 %v2131, %v2119
          %v2636 = vpack.c.b16 %v2132, %v2120
          %v2637 = vpack.c.b16 %v2133, %v2121
          %v2638 = vpack.c.b16 %v2134, %v2122
          %v2639 = vpack.c.b16 %v2135, %v2123
          %v2640 = vpack.c.b16 %v2136, %v2124
          %v2641 = vpack.c.b16 %v2149, %v2137
          %v2642 = vpack.c.b16 %v2150, %v2138
          %v2643 = vpack.c.b16 %v2151, %v2139
          %v2644 = vpack.c.b16 %v2152, %v2140
          %v2645 = vpack.c.b16 %v2153, %v2141
          %v2646 = vpack.c.b16 %v2154, %v2142
          %v2647 = vpack.c.b16 %v2155, %v2143
          %v2648 = vpack.c.b16 %v2156, %v2144
          %v2649 = vpack.c.b16 %v2157, %v2145
          %v2650 = vpack.c.b16 %v2158, %v2146
          %v2651 = vpack.c.b16 %v2159, %v2147
          %v2652 = vpack.c.b16 %v2160, %v2148
          %v2653 = vpack.c.b16 %v2173, %v2161
          %v2654 = vpack.c.b16 %v2174, %v2162
          %v2655 = vpack.c.b16 %v2175, %v2163
          %v2656 = vpack.c.b16 %v2176, %v2164
          %v2657 = vpack.c.b16 %v2177, %v2165
          %v2658 = vpack.c.b16 %v2178, %v2166
          %v2659 = vpack.c.b16 %v2179, %v2167
          %v2660 = vpack.c.b16 %v2180, %v2168
          %v2661 = vpack.c.b16 %v2181, %v2169
          %v2662 = vpack.c.b16 %v2182, %v2170
          %v2663 = vpack.c.b16 %v2183, %v2171
          %v2664 = vpack.c.b16 %v2184, %v2172
          %v2665 = vpack.c.b16 %v2197, %v2185
          %v2666 = vpack.c.b16 %v2198, %v2186
          %v2667 = vpack.c.b16 %v2199, %v2187
          %v2668 = vpack.c.b16 %v2200, %v2188
          %v2669 = vpack.c.b16 %v2201, %v2189
          %v2670 = vpack.c.b16 %v2202, %v2190
          %v2671 = vpack.c.b16 %v2203, %v2191
          %v2672 = vpack.c.b16 %v2204, %v2192
          %v2673 = vpack.c.b16 %v2205, %v2193
          %v2674 = vpack.c.b16 %v2206, %v2194
          %v2675 = vpack.c.b16 %v2207, %v2195
          %v2676 = vpack.c.b16 %v2208, %v2196
          %v2677 = vpack.c.b16 %v2221, %v2209
          %v2678 = vpack.c.b16 %v2222, %v2210
          %v2679 = vpack.c.b16 %v2223, %v2211
          %v2680 = vpack.c.b16 %v2224, %v2212
          %v2681 = vpack.c.b16 %v2225, %v2213
          %v2682 = vpack.c.b16 %v2226, %v2214
          %v2683 = vpack.c.b16 %v2227, %v2215
          %v2684 = vpack.c.b16 %v2228, %v2216
          %v2685 = vpack.c.b16 %v2229, %v2217
          %v2686 = vpack.c.b16 %v2230, %v2218
          %v2687 = vpack.c.b16 %v2231, %v2219
          %v2688 = vpack.c.b16 %v2232, %v2220
          %v2689 = vpack.c.b16 %v2245, %v2233
          %v2690 = vpack.c.b16 %v2246, %v2234
          %v2691 = vpack.c.b16 %v2247, %v2235
          %v2692 = vpack.c.b16 %v2248, %v2236
          %v2693 = vpack.c.b16 %v2249, %v2237
          %v2694 = vpack.c.b16 %v2250, %v2238
          %v2695 = vpack.c.b16 %v2251, %v2239
          %v2696 = vpack.c.b16 %v2252, %v2240
          %v2697 = vpack.c.b16 %v2253, %v2241
          %v2698 = vpack.c.b16 %v2254, %v2242
          %v2699 = vpack.c.b16 %v2255, %v2243
          %v2700 = vpack.c.b16 %v2256, %v2244
          %v2701 = vpack.c.b16 %v2269, %v2257
          %v2702 = vpack.c.b16 %v2270, %v2258
          %v2703 = vpack.c.b16 %v2271, %v2259
          %v2704 = vpack.c.b16 %v2272, %v2260
          %v2705 = vpack.c.b16 %v2273, %v2261
          %v2706 = vpack.c.b16 %v2274, %v2262
          %v2707 = vpack.c.b16 %v2275, %v2263
          %v2708 = vpack.c.b16 %v2276, %v2264
          %v2709 = vpack.c.b16 %v2277, %v2265
          %v2710 = vpack.c.b16 %v2278, %v2266
          %v2711 = vpack.c.b16 %v2279, %v2267
          %v2712 = vpack.c.b16 %v2280, %v2268
          %v2713 = vpack.c.b16 %v2293, %v2281
          %v2714 = vpack.c.b16 %v2294, %v2282
          %v2715 = vpack.c.b16 %v2295, %v2283
          %v2716 = vpack.c.b16 %v2296, %v2284
          %v2717 = vpack.c.b16 %v2297, %v2285
          %v2718 = vpack.c.b16 %v2298, %v2286
          %v2719 = vpack.c.b16 %v2299, %v2287
          %v2720 = vpack.c.b16 %v2300, %v2288
          %v2721 = vpack.c.b16 %v2301, %v2289
          %v2722 = vpack.c.b16 %v2302, %v2290
          %v2723 = vpack.c.b16 %v2303, %v2291
          %v2724 = vpack.c.b16 %v2304, %v2292
          %v2725 = vpack.c.b16 %v2317, %v2305
          %v2726 = vpack.c.b16 %v2318, %v2306
          %v2727 = vpack.c.b16 %v2319, %v2307
          %v2728 = vpack.c.b16 %v2320, %v2308
          %v2729 = vpack.c.b16 %v2321, %v2309
          %v2730 = vpack.c.b16 %v2322, %v2310
          %v2731 = vpack.c.b16 %v2323, %v2311
          %v2732 = vpack.c.b16 %v2324, %v2312
          %v2733 = vpack.c.b16 %v2325, %v2313
          %v2734 = vpack.c.b16 %v2326, %v2314
          %v2735 = vpack.c.b16 %v2327, %v2315
          %v2736 = vpack.c.b16 %v2328, %v2316
          %v2737 = vpack.c.b16 %v2341, %v2329
          %v2738 = vpack.c.b16 %v2342, %v2330
          %v2739 = vpack.c.b16 %v2343, %v2331
          %v2740 = vpack.c.b16 %v2344, %v2332
          %v2741 = vpack.c.b16 %v2345, %v2333
          %v2742 = vpack.c.b16 %v2346, %v2334
          %v2743 = vpack.c.b16 %v2347, %v2335
          %v2744 = vpack.c.b16 %v2348, %v2336
          %v2745 = vpack.c.b16 %v2349, %v2337
          %v2746 = vpack.c.b16 %v2350, %v2338
          %v2747 = vpack.c.b16 %v2351, %v2339
          %v2748 = vpack.c.b16 %v2352, %v2340
          %v2749 = vpack.c.b16 %v2365, %v2353
          %v2750 = vpack.c.b16 %v2366, %v2354
          %v2751 = vpack.c.b16 %v2367, %v2355
          %v2752 = vpack.c.b16 %v2368, %v2356
          %v2753 = vpack.c.b16 %v2369, %v2357
          %v2754 = vpack.c.b16 %v2370, %v2358
          %v2755 = vpack.c.b16 %v2371, %v2359
          %v2756 = vpack.c.b16 %v2372, %v2360
          %v2757 = vpack.c.b16 %v2373, %v2361
          %v2758 = vpack.c.b16 %v2374, %v2362
          %v2759 = vpack.c.b16 %v2375, %v2363
          %v2760 = vpack.c.b16 %v2376, %v2364
          %v3148 = vlaneseq
          %v3149 = vshrl.u32 %v3148, 7
          %v3150 = vsub.s32 0, %v3149
          %v3151 = vrot.slane %v1222, %v3150
          %v3152 = vlaneseq
          %v3153 = vshrl.u32 %v3152, 7
          %v3154 = vsub.s32 2, %v3153
          %v3155 = vrot.slane %v1222, %v3154
          %v3156 = vlaneseq
          %v3157 = vshrl.u32 %v3156, 7
          %v3158 = vsub.s32 4, %v3157
          %v3159 = vrot.slane %v1222, %v3158
          %v3160 = vlaneseq
          %v3161 = vshrl.u32 %v3160, 7
          %v3162 = vsub.s32 6, %v3161
          %v3163 = vrot.slane %v1222, %v3162
          %v3164 = vlaneseq
          %v3165 = vshrl.u32 %v3164, 7
          %v3166 = vsub.s32 0, %v3165
          %v3167 = vrot.slane %v1223, %v3166
          %v3168 = vlaneseq
          %v3169 = vshrl.u32 %v3168, 7
          %v3170 = vsub.s32 2, %v3169
          %v3171 = vrot.slane %v1223, %v3170
          %v3172 = vlaneseq
          %v3173 = vshrl.u32 %v3172, 7
          %v3174 = vsub.s32 4, %v3173
          %v3175 = vrot.slane %v1223, %v3174
          %v3176 = vlaneseq
          %v3177 = vshrl.u32 %v3176, 7
          %v3178 = vsub.s32 6, %v3177
          %v3179 = vrot.slane %v1223, %v3178
          %v3180 = vlaneseq
          %v3181 = vshrl.u32 %v3180, 7
          %v3182 = vsub.s32 0, %v3181
          %v3183 = vrot.slane %v1224, %v3182
          %v3184 = vlaneseq
          %v3185 = vshrl.u32 %v3184, 7
          %v3186 = vsub.s32 2, %v3185
          %v3187 = vrot.slane %v1224, %v3186
          %v3188 = vlaneseq
          %v3189 = vshrl.u32 %v3188, 7
          %v3190 = vsub.s32 4, %v3189
          %v3191 = vrot.slane %v1224, %v3190
          %v3192 = vlaneseq
          %v3193 = vshrl.u32 %v3192, 7
          %v3194 = vsub.s32 6, %v3193
          %v3195 = vrot.slane %v1224, %v3194
          %3208 = vmatprep.subr.bf16.mxu0 %v2378
          %3209 = vmatpush1.bf16.msra.mxu0 %v2377
          %3210 = vmatprep.subr.bf16.mxu0 %v2390
          %3211 = vmatpush1.bf16.msra.mxu0 %v2389
          %3212 = vmatprep.subr.bf16.mxu0 %v2402
          %3213 = vmatpush1.bf16.msra.mxu0 %v2401
          %3214 = vmatprep.subr.bf16.mxu0 %v2414
          %3215 = vmatpush1.bf16.msra.mxu0 %v2413
          %3216 = vmatprep.subr.bf16.mxu0 %v2426
          %3217 = vmatpush1.bf16.msra.mxu0 %v2425
          %3218 = vmatprep.subr.bf16.mxu0 %v2438
          %3219 = vmatpush1.bf16.msra.mxu0 %v2437
          %3220 = vmatprep.subr.bf16.mxu0 %v2450
          %3221 = vmatpush1.bf16.msra.mxu0 %v2449
          %3222 = vmatprep.subr.bf16.mxu0 %v2462
          %3223 = vmatpush1.bf16.msra.mxu0 %v2461
          %3224 = vmatprep.subr.bf16.mxu0 %v2474
          %3225 = vmatpush1.bf16.msra.mxu0 %v2473
          %3226 = vmatprep.subr.bf16.mxu0 %v2486
          %3227 = vmatpush1.bf16.msra.mxu0 %v2485
          %3228 = vmatprep.subr.bf16.mxu0 %v2498
          %3229 = vmatpush1.bf16.msra.mxu0 %v2497
          %3230 = vmatprep.subr.bf16.mxu0 %v2510
          %3231 = vmatpush1.bf16.msra.mxu0 %v2509
          %3232 = vmatprep.subr.bf16.mxu0 %v2522
          %3233 = vmatpush1.bf16.msra.mxu0 %v2521
          %3234 = vmatprep.subr.bf16.mxu0 %v2534
          %3235 = vmatpush1.bf16.msra.mxu0 %v2533
          %3236 = vmatprep.subr.bf16.mxu0 %v2546
          %3237 = vmatpush1.bf16.msra.mxu0 %v2545
          %3238 = vmatprep.subr.bf16.mxu0 %v2558
          %3239 = vmatpush1.bf16.msra.mxu0 %v2557
          %3240 = vmatprep.mubr.bf16.mxu0 %v833
          %3241 = vmatmul.mubr.bf16.gmra.mrb[0].mxu0 %v832
          %v3242 = vpop.f32.mrb[0].mxu0
          %v3243 = vadd.f32 %v3151, %v3242
          %v3244 = vpop.f32.mrb[0].mxu0
          %v3245 = vadd.f32 %v3155, %v3244
          %v3246 = vpop.f32.mrb[0].mxu0
          %v3247 = vpop.f32.mrb[0].mxu0
          %3248 = vdwg.mxu0
          %3249 = vmatprep.subr.bf16.mxu0 %v2570
          %3250 = vmatpush1.bf16.msra.mxu0 %v2569
          %3251 = vmatprep.subr.bf16.mxu0 %v2582
          %3252 = vmatpush1.bf16.msra.mxu0 %v2581
          %3253 = vmatprep.subr.bf16.mxu0 %v2594
          %3254 = vmatpush1.bf16.msra.mxu0 %v2593
          %3255 = vmatprep.subr.bf16.mxu0 %v2606
          %3256 = vmatpush1.bf16.msra.mxu0 %v2605
          %3257 = vmatprep.subr.bf16.mxu0 %v2618
          %3258 = vmatpush1.bf16.msra.mxu0 %v2617
          %3259 = vmatprep.subr.bf16.mxu0 %v2630
          %3260 = vmatpush1.bf16.msra.mxu0 %v2629
          %3261 = vmatprep.subr.bf16.mxu0 %v2642
          %3262 = vmatpush1.bf16.msra.mxu0 %v2641
          %3263 = vmatprep.subr.bf16.mxu0 %v2654
          %3264 = vmatpush1.bf16.msra.mxu0 %v2653
          %3265 = vmatprep.subr.bf16.mxu0 %v2666
          %3266 = vmatpush1.bf16.msra.mxu0 %v2665
          %3267 = vmatprep.subr.bf16.mxu0 %v2678
          %3268 = vmatpush1.bf16.msra.mxu0 %v2677
          %3269 = vmatprep.subr.bf16.mxu0 %v2690
          %3270 = vmatpush1.bf16.msra.mxu0 %v2689
          %3271 = vmatprep.subr.bf16.mxu0 %v2702
          %3272 = vmatpush1.bf16.msra.mxu0 %v2701
          %3273 = vmatprep.subr.bf16.mxu0 %v2714
          %3274 = vmatpush1.bf16.msra.mxu0 %v2713
          %3275 = vmatprep.subr.bf16.mxu0 %v2726
          %3276 = vmatpush1.bf16.msra.mxu0 %v2725
          %3277 = vmatprep.subr.bf16.mxu0 %v2738
          %3278 = vmatpush1.bf16.msra.mxu0 %v2737
          %3279 = vmatprep.subr.bf16.mxu0 %v2750
          %3280 = vmatpush1.bf16.msra.mxu0 %v2749
          %3281 = vmatprep.mubr.bf16.mxu0 %v835
          %3282 = vmatmul.mubr.bf16.gmra.mrb[0].mxu0 %v834
          %v3283 = vpop.f32.mrb[0].mxu0
          %v3284 = vadd.f32 %v3243, %v3283
          %v3285 = vpop.f32.mrb[0].mxu0
          %v3286 = vadd.f32 %v3245, %v3285
          %v3287 = vpop.f32.mrb[0].mxu0
          %v3288 = vpop.f32.mrb[0].mxu0
          %3289 = vdwg.mxu0
          %3290 = vmatprep.subr.bf16.mxu0 %v2380
          %3291 = vmatpush1.bf16.msra.mxu0 %v2379
          %3292 = vmatprep.subr.bf16.mxu0 %v2392
          %3293 = vmatpush1.bf16.msra.mxu0 %v2391
          %3294 = vmatprep.subr.bf16.mxu0 %v2404
          %3295 = vmatpush1.bf16.msra.mxu0 %v2403
          %3296 = vmatprep.subr.bf16.mxu0 %v2416
          %3297 = vmatpush1.bf16.msra.mxu0 %v2415
          %3298 = vmatprep.subr.bf16.mxu0 %v2428
          %3299 = vmatpush1.bf16.msra.mxu0 %v2427
          %3300 = vmatprep.subr.bf16.mxu0 %v2440
          %3301 = vmatpush1.bf16.msra.mxu0 %v2439
          %3302 = vmatprep.subr.bf16.mxu0 %v2452
          %3303 = vmatpush1.bf16.msra.mxu0 %v2451
          %3304 = vmatprep.subr.bf16.mxu0 %v2464
          %3305 = vmatpush1.bf16.msra.mxu0 %v2463
          %3306 = vmatprep.subr.bf16.mxu0 %v2476
          %3307 = vmatpush1.bf16.msra.mxu0 %v2475
          %3308 = vmatprep.subr.bf16.mxu0 %v2488
          %3309 = vmatpush1.bf16.msra.mxu0 %v2487
          %3310 = vmatprep.subr.bf16.mxu0 %v2500
          %3311 = vmatpush1.bf16.msra.mxu0 %v2499
          %3312 = vmatprep.subr.bf16.mxu0 %v2512
          %3313 = vmatpush1.bf16.msra.mxu0 %v2511
          %3314 = vmatprep.subr.bf16.mxu0 %v2524
          %3315 = vmatpush1.bf16.msra.mxu0 %v2523
          %3316 = vmatprep.subr.bf16.mxu0 %v2536
          %3317 = vmatpush1.bf16.msra.mxu0 %v2535
          %3318 = vmatprep.subr.bf16.mxu0 %v2548
          %3319 = vmatpush1.bf16.msra.mxu0 %v2547
          %3320 = vmatprep.subr.bf16.mxu0 %v2560
          %3321 = vmatpush1.bf16.msra.mxu0 %v2559
          %3322 = vmatprep.mubr.bf16.mxu0 %v833
          %3323 = vmatmul.mubr.bf16.gmra.mrb[0].mxu0 %v832
          %v3324 = vpop.f32.mrb[0].mxu0
          %v3325 = vadd.f32 %v3159, %v3324
          %v3326 = vpop.f32.mrb[0].mxu0
          %v3327 = vadd.f32 %v3163, %v3326
          %v3328 = vpop.f32.mrb[0].mxu0
          %v3329 = vpop.f32.mrb[0].mxu0
          %3330 = vdwg.mxu0
          %3331 = vmatprep.subr.bf16.mxu0 %v2572
          %3332 = vmatpush1.bf16.msra.mxu0 %v2571
          %3333 = vmatprep.subr.bf16.mxu0 %v2584
          %3334 = vmatpush1.bf16.msra.mxu0 %v2583
          %3335 = vmatprep.subr.bf16.mxu0 %v2596
          %3336 = vmatpush1.bf16.msra.mxu0 %v2595
          %3337 = vmatprep.subr.bf16.mxu0 %v2608
          %3338 = vmatpush1.bf16.msra.mxu0 %v2607
          %3339 = vmatprep.subr.bf16.mxu0 %v2620
          %3340 = vmatpush1.bf16.msra.mxu0 %v2619
          %3341 = vmatprep.subr.bf16.mxu0 %v2632
          %3342 = vmatpush1.bf16.msra.mxu0 %v2631
          %3343 = vmatprep.subr.bf16.mxu0 %v2644
          %3344 = vmatpush1.bf16.msra.mxu0 %v2643
          %3345 = vmatprep.subr.bf16.mxu0 %v2656
          %3346 = vmatpush1.bf16.msra.mxu0 %v2655
          %3347 = vmatprep.subr.bf16.mxu0 %v2668
          %3348 = vmatpush1.bf16.msra.mxu0 %v2667
          %3349 = vmatprep.subr.bf16.mxu0 %v2680
          %3350 = vmatpush1.bf16.msra.mxu0 %v2679
          %3351 = vmatprep.subr.bf16.mxu0 %v2692
          %3352 = vmatpush1.bf16.msra.mxu0 %v2691
          %3353 = vmatprep.subr.bf16.mxu0 %v2704
          %3354 = vmatpush1.bf16.msra.mxu0 %v2703
          %3355 = vmatprep.subr.bf16.mxu0 %v2716
          %3356 = vmatpush1.bf16.msra.mxu0 %v2715
          %3357 = vmatprep.subr.bf16.mxu0 %v2728
          %3358 = vmatpush1.bf16.msra.mxu0 %v2727
          %3359 = vmatprep.subr.bf16.mxu0 %v2740
          %3360 = vmatpush1.bf16.msra.mxu0 %v2739
          %3361 = vmatprep.subr.bf16.mxu0 %v2752
          %3362 = vmatpush1.bf16.msra.mxu0 %v2751
          %3363 = vmatprep.mubr.bf16.mxu0 %v835
          %3364 = vmatmul.mubr.bf16.gmra.mrb[0].mxu0 %v834
          %v3365 = vpop.f32.mrb[0].mxu0
          %v3366 = vadd.f32 %v3325, %v3365
          %v3367 = vpop.f32.mrb[0].mxu0
          %v3368 = vadd.f32 %v3327, %v3367
          %v3369 = vpop.f32.mrb[0].mxu0
          %v3370 = vpop.f32.mrb[0].mxu0
          %3371 = vdwg.mxu0
          %3372 = vmatprep.subr.bf16.mxu0 %v2382
          %3373 = vmatpush1.bf16.msra.mxu0 %v2381
          %3374 = vmatprep.subr.bf16.mxu0 %v2394
          %3375 = vmatpush1.bf16.msra.mxu0 %v2393
          %3376 = vmatprep.subr.bf16.mxu0 %v2406
          %3377 = vmatpush1.bf16.msra.mxu0 %v2405
          %3378 = vmatprep.subr.bf16.mxu0 %v2418
          %3379 = vmatpush1.bf16.msra.mxu0 %v2417
          %3380 = vmatprep.subr.bf16.mxu0 %v2430
          %3381 = vmatpush1.bf16.msra.mxu0 %v2429
          %3382 = vmatprep.subr.bf16.mxu0 %v2442
          %3383 = vmatpush1.bf16.msra.mxu0 %v2441
          %3384 = vmatprep.subr.bf16.mxu0 %v2454
          %3385 = vmatpush1.bf16.msra.mxu0 %v2453
          %3386 = vmatprep.subr.bf16.mxu0 %v2466
          %3387 = vmatpush1.bf16.msra.mxu0 %v2465
          %3388 = vmatprep.subr.bf16.mxu0 %v2478
          %3389 = vmatpush1.bf16.msra.mxu0 %v2477
          %3390 = vmatprep.subr.bf16.mxu0 %v2490
          %3391 = vmatpush1.bf16.msra.mxu0 %v2489
          %3392 = vmatprep.subr.bf16.mxu0 %v2502
          %3393 = vmatpush1.bf16.msra.mxu0 %v2501
          %3394 = vmatprep.subr.bf16.mxu0 %v2514
          %3395 = vmatpush1.bf16.msra.mxu0 %v2513
          %3396 = vmatprep.subr.bf16.mxu0 %v2526
          %3397 = vmatpush1.bf16.msra.mxu0 %v2525
          %3398 = vmatprep.subr.bf16.mxu0 %v2538
          %3399 = vmatpush1.bf16.msra.mxu0 %v2537
          %3400 = vmatprep.subr.bf16.mxu0 %v2550
          %3401 = vmatpush1.bf16.msra.mxu0 %v2549
          %3402 = vmatprep.subr.bf16.mxu0 %v2562
          %3403 = vmatpush1.bf16.msra.mxu0 %v2561
          %3404 = vmatprep.mubr.bf16.mxu0 %v833
          %3405 = vmatmul.mubr.bf16.gmra.mrb[0].mxu0 %v832
          %v3406 = vpop.f32.mrb[0].mxu0
          %v3407 = vadd.f32 %v3167, %v3406
          %v3408 = vpop.f32.mrb[0].mxu0
          %v3409 = vadd.f32 %v3171, %v3408
          %v3410 = vpop.f32.mrb[0].mxu0
          %v3411 = vpop.f32.mrb[0].mxu0
          %3412 = vdwg.mxu0
          %3413 = vmatprep.subr.bf16.mxu0 %v2574
          %3414 = vmatpush1.bf16.msra.mxu0 %v2573
          %3415 = vmatprep.subr.bf16.mxu0 %v2586
          %3416 = vmatpush1.bf16.msra.mxu0 %v2585
          %3417 = vmatprep.subr.bf16.mxu0 %v2598
          %3418 = vmatpush1.bf16.msra.mxu0 %v2597
          %3419 = vmatprep.subr.bf16.mxu0 %v2610
          %3420 = vmatpush1.bf16.msra.mxu0 %v2609
          %3421 = vmatprep.subr.bf16.mxu0 %v2622
          %3422 = vmatpush1.bf16.msra.mxu0 %v2621
          %3423 = vmatprep.subr.bf16.mxu0 %v2634
          %3424 = vmatpush1.bf16.msra.mxu0 %v2633
          %3425 = vmatprep.subr.bf16.mxu0 %v2646
          %3426 = vmatpush1.bf16.msra.mxu0 %v2645
          %3427 = vmatprep.subr.bf16.mxu0 %v2658
          %3428 = vmatpush1.bf16.msra.mxu0 %v2657
          %3429 = vmatprep.subr.bf16.mxu0 %v2670
          %3430 = vmatpush1.bf16.msra.mxu0 %v2669
          %3431 = vmatprep.subr.bf16.mxu0 %v2682
          %3432 = vmatpush1.bf16.msra.mxu0 %v2681
          %3433 = vmatprep.subr.bf16.mxu0 %v2694
          %3434 = vmatpush1.bf16.msra.mxu0 %v2693
          %3435 = vmatprep.subr.bf16.mxu0 %v2706
          %3436 = vmatpush1.bf16.msra.mxu0 %v2705
          %3437 = vmatprep.subr.bf16.mxu0 %v2718
          %3438 = vmatpush1.bf16.msra.mxu0 %v2717
          %3439 = vmatprep.subr.bf16.mxu0 %v2730
          %3440 = vmatpush1.bf16.msra.mxu0 %v2729
          %3441 = vmatprep.subr.bf16.mxu0 %v2742
          %3442 = vmatpush1.bf16.msra.mxu0 %v2741
          %3443 = vmatprep.subr.bf16.mxu0 %v2754
          %3444 = vmatpush1.bf16.msra.mxu0 %v2753
          %3445 = vmatprep.mubr.bf16.mxu0 %v835
          %3446 = vmatmul.mubr.bf16.gmra.mrb[0].mxu0 %v834
          %v3447 = vpop.f32.mrb[0].mxu0
          %v3448 = vadd.f32 %v3407, %v3447
          %v3449 = vpop.f32.mrb[0].mxu0
          %v3450 = vadd.f32 %v3409, %v3449
          %v3451 = vpop.f32.mrb[0].mxu0
          %v3452 = vpop.f32.mrb[0].mxu0
          %3453 = vdwg.mxu0
          %3454 = vmatprep.subr.bf16.mxu0 %v2384
          %3455 = vmatpush1.bf16.msra.mxu0 %v2383
          %3456 = vmatprep.subr.bf16.mxu0 %v2396
          %3457 = vmatpush1.bf16.msra.mxu0 %v2395
          %3458 = vmatprep.subr.bf16.mxu0 %v2408
          %3459 = vmatpush1.bf16.msra.mxu0 %v2407
          %3460 = vmatprep.subr.bf16.mxu0 %v2420
          %3461 = vmatpush1.bf16.msra.mxu0 %v2419
          %3462 = vmatprep.subr.bf16.mxu0 %v2432
          %3463 = vmatpush1.bf16.msra.mxu0 %v2431
          %3464 = vmatprep.subr.bf16.mxu0 %v2444
          %3465 = vmatpush1.bf16.msra.mxu0 %v2443
          %3466 = vmatprep.subr.bf16.mxu0 %v2456
          %3467 = vmatpush1.bf16.msra.mxu0 %v2455
          %3468 = vmatprep.subr.bf16.mxu0 %v2468
          %3469 = vmatpush1.bf16.msra.mxu0 %v2467
          %3470 = vmatprep.subr.bf16.mxu0 %v2480
          %3471 = vmatpush1.bf16.msra.mxu0 %v2479
          %3472 = vmatprep.subr.bf16.mxu0 %v2492
          %3473 = vmatpush1.bf16.msra.mxu0 %v2491
          %3474 = vmatprep.subr.bf16.mxu0 %v2504
          %3475 = vmatpush1.bf16.msra.mxu0 %v2503
          %3476 = vmatprep.subr.bf16.mxu0 %v2516
          %3477 = vmatpush1.bf16.msra.mxu0 %v2515
          %3478 = vmatprep.subr.bf16.mxu0 %v2528
          %3479 = vmatpush1.bf16.msra.mxu0 %v2527
          %3480 = vmatprep.subr.bf16.mxu0 %v2540
          %3481 = vmatpush1.bf16.msra.mxu0 %v2539
          %3482 = vmatprep.subr.bf16.mxu0 %v2552
          %3483 = vmatpush1.bf16.msra.mxu0 %v2551
          %3484 = vmatprep.subr.bf16.mxu0 %v2564
          %3485 = vmatpush1.bf16.msra.mxu0 %v2563
          %3486 = vmatprep.mubr.bf16.mxu0 %v833
          %3487 = vmatmul.mubr.bf16.gmra.mrb[0].mxu0 %v832
          %v3488 = vpop.f32.mrb[0].mxu0
          %v3489 = vadd.f32 %v3175, %v3488
          %v3490 = vpop.f32.mrb[0].mxu0
          %v3491 = vadd.f32 %v3179, %v3490
          %v3492 = vpop.f32.mrb[0].mxu0
          %v3493 = vpop.f32.mrb[0].mxu0
          %3494 = vdwg.mxu0
          %3495 = vmatprep.subr.bf16.mxu0 %v2576
          %3496 = vmatpush1.bf16.msra.mxu0 %v2575
          %3497 = vmatprep.subr.bf16.mxu0 %v2588
          %3498 = vmatpush1.bf16.msra.mxu0 %v2587
          %3499 = vmatprep.subr.bf16.mxu0 %v2600
          %3500 = vmatpush1.bf16.msra.mxu0 %v2599
          %3501 = vmatprep.subr.bf16.mxu0 %v2612
          %3502 = vmatpush1.bf16.msra.mxu0 %v2611
          %3503 = vmatprep.subr.bf16.mxu0 %v2624
          %3504 = vmatpush1.bf16.msra.mxu0 %v2623
          %3505 = vmatprep.subr.bf16.mxu0 %v2636
          %3506 = vmatpush1.bf16.msra.mxu0 %v2635
          %3507 = vmatprep.subr.bf16.mxu0 %v2648
          %3508 = vmatpush1.bf16.msra.mxu0 %v2647
          %3509 = vmatprep.subr.bf16.mxu0 %v2660
          %3510 = vmatpush1.bf16.msra.mxu0 %v2659
          %3511 = vmatprep.subr.bf16.mxu0 %v2672
          %3512 = vmatpush1.bf16.msra.mxu0 %v2671
          %3513 = vmatprep.subr.bf16.mxu0 %v2684
          %3514 = vmatpush1.bf16.msra.mxu0 %v2683
          %3515 = vmatprep.subr.bf16.mxu0 %v2696
          %3516 = vmatpush1.bf16.msra.mxu0 %v2695
          %3517 = vmatprep.subr.bf16.mxu0 %v2708
          %3518 = vmatpush1.bf16.msra.mxu0 %v2707
          %3519 = vmatprep.subr.bf16.mxu0 %v2720
          %3520 = vmatpush1.bf16.msra.mxu0 %v2719
          %3521 = vmatprep.subr.bf16.mxu0 %v2732
          %3522 = vmatpush1.bf16.msra.mxu0 %v2731
          %3523 = vmatprep.subr.bf16.mxu0 %v2744
          %3524 = vmatpush1.bf16.msra.mxu0 %v2743
          %3525 = vmatprep.subr.bf16.mxu0 %v2756
          %3526 = vmatpush1.bf16.msra.mxu0 %v2755
          %3527 = vmatprep.mubr.bf16.mxu0 %v835
          %3528 = vmatmul.mubr.bf16.gmra.mrb[0].mxu0 %v834
          %v3529 = vpop.f32.mrb[0].mxu0
          %v3530 = vadd.f32 %v3489, %v3529
          %v3531 = vpop.f32.mrb[0].mxu0
          %v3532 = vadd.f32 %v3491, %v3531
          %v3533 = vpop.f32.mrb[0].mxu0
          %v3534 = vpop.f32.mrb[0].mxu0
          %3535 = vdwg.mxu0
          %3536 = vmatprep.subr.bf16.mxu0 %v2386
          %3537 = vmatpush1.bf16.msra.mxu0 %v2385
          %3538 = vmatprep.subr.bf16.mxu0 %v2398
          %3539 = vmatpush1.bf16.msra.mxu0 %v2397
          %3540 = vmatprep.subr.bf16.mxu0 %v2410
          %3541 = vmatpush1.bf16.msra.mxu0 %v2409
          %3542 = vmatprep.subr.bf16.mxu0 %v2422
          %3543 = vmatpush1.bf16.msra.mxu0 %v2421
          %3544 = vmatprep.subr.bf16.mxu0 %v2434
          %3545 = vmatpush1.bf16.msra.mxu0 %v2433
          %3546 = vmatprep.subr.bf16.mxu0 %v2446
          %3547 = vmatpush1.bf16.msra.mxu0 %v2445
          %3548 = vmatprep.subr.bf16.mxu0 %v2458
          %3549 = vmatpush1.bf16.msra.mxu0 %v2457
          %3550 = vmatprep.subr.bf16.mxu0 %v2470
          %3551 = vmatpush1.bf16.msra.mxu0 %v2469
          %3552 = vmatprep.subr.bf16.mxu0 %v2482
          %3553 = vmatpush1.bf16.msra.mxu0 %v2481
          %3554 = vmatprep.subr.bf16.mxu0 %v2494
          %3555 = vmatpush1.bf16.msra.mxu0 %v2493
          %3556 = vmatprep.subr.bf16.mxu0 %v2506
          %3557 = vmatpush1.bf16.msra.mxu0 %v2505
          %3558 = vmatprep.subr.bf16.mxu0 %v2518
          %3559 = vmatpush1.bf16.msra.mxu0 %v2517
          %3560 = vmatprep.subr.bf16.mxu0 %v2530
          %3561 = vmatpush1.bf16.msra.mxu0 %v2529
          %3562 = vmatprep.subr.bf16.mxu0 %v2542
          %3563 = vmatpush1.bf16.msra.mxu0 %v2541
          %3564 = vmatprep.subr.bf16.mxu0 %v2554
          %3565 = vmatpush1.bf16.msra.mxu0 %v2553
          %3566 = vmatprep.subr.bf16.mxu0 %v2566
          %3567 = vmatpush1.bf16.msra.mxu0 %v2565
          %3568 = vmatprep.mubr.bf16.mxu0 %v833
          %3569 = vmatmul.mubr.bf16.gmra.mrb[0].mxu0 %v832
          %v3570 = vpop.f32.mrb[0].mxu0
          %v3571 = vadd.f32 %v3183, %v3570
          %v3572 = vpop.f32.mrb[0].mxu0
          %v3573 = vadd.f32 %v3187, %v3572
          %v3574 = vpop.f32.mrb[0].mxu0
          %v3575 = vpop.f32.mrb[0].mxu0
          %3576 = vdwg.mxu0
          %3577 = vmatprep.subr.bf16.mxu0 %v2578
          %3578 = vmatpush1.bf16.msra.mxu0 %v2577
          %3579 = vmatprep.subr.bf16.mxu0 %v2590
          %3580 = vmatpush1.bf16.msra.mxu0 %v2589
          %3581 = vmatprep.subr.bf16.mxu0 %v2602
          %3582 = vmatpush1.bf16.msra.mxu0 %v2601
          %3583 = vmatprep.subr.bf16.mxu0 %v2614
          %3584 = vmatpush1.bf16.msra.mxu0 %v2613
          %3585 = vmatprep.subr.bf16.mxu0 %v2626
          %3586 = vmatpush1.bf16.msra.mxu0 %v2625
          %3587 = vmatprep.subr.bf16.mxu0 %v2638
          %3588 = vmatpush1.bf16.msra.mxu0 %v2637
          %3589 = vmatprep.subr.bf16.mxu0 %v2650
          %3590 = vmatpush1.bf16.msra.mxu0 %v2649
          %3591 = vmatprep.subr.bf16.mxu0 %v2662
          %3592 = vmatpush1.bf16.msra.mxu0 %v2661
          %3593 = vmatprep.subr.bf16.mxu0 %v2674
          %3594 = vmatpush1.bf16.msra.mxu0 %v2673
          %3595 = vmatprep.subr.bf16.mxu0 %v2686
          %3596 = vmatpush1.bf16.msra.mxu0 %v2685
          %3597 = vmatprep.subr.bf16.mxu0 %v2698
          %3598 = vmatpush1.bf16.msra.mxu0 %v2697
          %3599 = vmatprep.subr.bf16.mxu0 %v2710
          %3600 = vmatpush1.bf16.msra.mxu0 %v2709
          %3601 = vmatprep.subr.bf16.mxu0 %v2722
          %3602 = vmatpush1.bf16.msra.mxu0 %v2721
          %3603 = vmatprep.subr.bf16.mxu0 %v2734
          %3604 = vmatpush1.bf16.msra.mxu0 %v2733
          %3605 = vmatprep.subr.bf16.mxu0 %v2746
          %3606 = vmatpush1.bf16.msra.mxu0 %v2745
          %3607 = vmatprep.subr.bf16.mxu0 %v2758
          %3608 = vmatpush1.bf16.msra.mxu0 %v2757
          %3609 = vmatprep.mubr.bf16.mxu0 %v835
          %3610 = vmatmul.mubr.bf16.gmra.mrb[0].mxu0 %v834
          %v3611 = vpop.f32.mrb[0].mxu0
          %v3612 = vadd.f32 %v3571, %v3611
          %v3613 = vpop.f32.mrb[0].mxu0
          %v3614 = vadd.f32 %v3573, %v3613
          %v3615 = vpop.f32.mrb[0].mxu0
          %v3616 = vpop.f32.mrb[0].mxu0
          %3617 = vdwg.mxu0
          %3618 = vmatprep.subr.bf16.mxu0 %v2388
          %3619 = vmatpush1.bf16.msra.mxu0 %v2387
          %3620 = vmatprep.subr.bf16.mxu0 %v2400
          %3621 = vmatpush1.bf16.msra.mxu0 %v2399
          %3622 = vmatprep.subr.bf16.mxu0 %v2412
          %3623 = vmatpush1.bf16.msra.mxu0 %v2411
          %3624 = vmatprep.subr.bf16.mxu0 %v2424
          %3625 = vmatpush1.bf16.msra.mxu0 %v2423
          %3626 = vmatprep.subr.bf16.mxu0 %v2436
          %3627 = vmatpush1.bf16.msra.mxu0 %v2435
          %3628 = vmatprep.subr.bf16.mxu0 %v2448
          %3629 = vmatpush1.bf16.msra.mxu0 %v2447
          %3630 = vmatprep.subr.bf16.mxu0 %v2460
          %3631 = vmatpush1.bf16.msra.mxu0 %v2459
          %3632 = vmatprep.subr.bf16.mxu0 %v2472
          %3633 = vmatpush1.bf16.msra.mxu0 %v2471
          %3634 = vmatprep.subr.bf16.mxu0 %v2484
          %3635 = vmatpush1.bf16.msra.mxu0 %v2483
          %3636 = vmatprep.subr.bf16.mxu0 %v2496
          %3637 = vmatpush1.bf16.msra.mxu0 %v2495
          %3638 = vmatprep.subr.bf16.mxu0 %v2508
          %3639 = vmatpush1.bf16.msra.mxu0 %v2507
          %3640 = vmatprep.subr.bf16.mxu0 %v2520
          %3641 = vmatpush1.bf16.msra.mxu0 %v2519
          %3642 = vmatprep.subr.bf16.mxu0 %v2532
          %3643 = vmatpush1.bf16.msra.mxu0 %v2531
          %3644 = vmatprep.subr.bf16.mxu0 %v2544
          %3645 = vmatpush1.bf16.msra.mxu0 %v2543
          %3646 = vmatprep.subr.bf16.mxu0 %v2556
          %3647 = vmatpush1.bf16.msra.mxu0 %v2555
          %3648 = vmatprep.subr.bf16.mxu0 %v2568
          %3649 = vmatpush1.bf16.msra.mxu0 %v2567
          %3650 = vmatprep.mubr.bf16.mxu0 %v833
          %3651 = vmatmul.mubr.bf16.gmra.mrb[0].mxu0 %v832
          %v3652 = vpop.f32.mrb[0].mxu0
          %v3653 = vadd.f32 %v3191, %v3652
          %v3654 = vpop.f32.mrb[0].mxu0
          %v3655 = vadd.f32 %v3195, %v3654
          %v3656 = vpop.f32.mrb[0].mxu0
          %v3657 = vpop.f32.mrb[0].mxu0
          %3658 = vdwg.mxu0
          %3659 = vmatprep.subr.bf16.mxu0 %v2580
          %3660 = vmatpush1.bf16.msra.mxu0 %v2579
          %3661 = vmatprep.subr.bf16.mxu0 %v2592
          %3662 = vmatpush1.bf16.msra.mxu0 %v2591
          %3663 = vmatprep.subr.bf16.mxu0 %v2604
          %3664 = vmatpush1.bf16.msra.mxu0 %v2603
          %3665 = vmatprep.subr.bf16.mxu0 %v2616
          %3666 = vmatpush1.bf16.msra.mxu0 %v2615
          %3667 = vmatprep.subr.bf16.mxu0 %v2628
          %3668 = vmatpush1.bf16.msra.mxu0 %v2627
          %3669 = vmatprep.subr.bf16.mxu0 %v2640
          %3670 = vmatpush1.bf16.msra.mxu0 %v2639
          %3671 = vmatprep.subr.bf16.mxu0 %v2652
          %3672 = vmatpush1.bf16.msra.mxu0 %v2651
          %3673 = vmatprep.subr.bf16.mxu0 %v2664
          %3674 = vmatpush1.bf16.msra.mxu0 %v2663
          %3675 = vmatprep.subr.bf16.mxu0 %v2676
          %3676 = vmatpush1.bf16.msra.mxu0 %v2675
          %3677 = vmatprep.subr.bf16.mxu0 %v2688
          %3678 = vmatpush1.bf16.msra.mxu0 %v2687
          %3679 = vmatprep.subr.bf16.mxu0 %v2700
          %3680 = vmatpush1.bf16.msra.mxu0 %v2699
          %3681 = vmatprep.subr.bf16.mxu0 %v2712
          %3682 = vmatpush1.bf16.msra.mxu0 %v2711
          %3683 = vmatprep.subr.bf16.mxu0 %v2724
          %3684 = vmatpush1.bf16.msra.mxu0 %v2723
          %3685 = vmatprep.subr.bf16.mxu0 %v2736
          %3686 = vmatpush1.bf16.msra.mxu0 %v2735
          %3687 = vmatprep.subr.bf16.mxu0 %v2748
          %3688 = vmatpush1.bf16.msra.mxu0 %v2747
          %3689 = vmatprep.subr.bf16.mxu0 %v2760
          %3690 = vmatpush1.bf16.msra.mxu0 %v2759
          %3691 = vmatprep.mubr.bf16.mxu0 %v835
          %3692 = vmatmul.mubr.bf16.gmra.mrb[0].mxu0 %v834
          %v3693 = vpop.f32.mrb[0].mxu0
          %v3694 = vadd.f32 %v3653, %v3693
          %v3695 = vpop.f32.mrb[0].mxu0
          %v3696 = vadd.f32 %v3655, %v3695
          %v3697 = vpop.f32.mrb[0].mxu0
          %v3698 = vpop.f32.mrb[0].mxu0
          %3699 = vdwg.mxu0
          %v3700 = vld [vmem:[#allocation6] sm:$0x1]
          %v3701 = vld [vmem:[#allocation8] sm:$0x1]
          %v3702 = vlaneseq
          %v3703 = vand.u32 %v3702, 127
          %vm3704 = vcmp.lt.s32.totalorder %v3703, 64
          %v3705 = vsel %vm3704, -1.0, 1.0
          %v3710 = vcombine.low %v3284, %v3286
          %v3711 = vcombine.low %v3366, %v3368
          %v3713 = vunpack.c.l.s4 1983009808
          %v3714 = vunpack.c.0.s8 %v3713
          %v3715 = vlaneseq
          %v3716 = vshrl.u32 %v3715, 7
          %v3717 = vsub.s32 %v3714, %v3716
          %v3718 = vrot.slane %v3710, %v3717
          %v3720 = vunpack.c.l.s4 1983009808
          %v3721 = vunpack.c.0.s8 %v3720
          %v3722 = vlaneseq
          %v3723 = vshrl.u32 %v3722, 7
          %v3724 = vsub.s32 %v3721, %v3723
          %v3725 = vrot.slane %v3711, %v3724
          %v3726 = vcombine.low %v3718, %v3725
          %v3729 = vunpack.c.l.s4 1966171168
          %v3730 = vunpack.c.0.s8 %v3729
          %v3731 = vlaneseq
          %v3732 = vshrl.u32 %v3731, 7
          %v3733 = vsub.s32 %v3730, %v3732
          %v3734 = vrot.slane %v3726, %v3733
          %v3739 = vcombine.low %v3448, %v3450
          %v3740 = vcombine.low %v3530, %v3532
          %v3742 = vunpack.c.l.s4 1983009808
          %v3743 = vunpack.c.0.s8 %v3742
          %v3744 = vlaneseq
          %v3745 = vshrl.u32 %v3744, 7
          %v3746 = vsub.s32 %v3743, %v3745
          %v3747 = vrot.slane %v3739, %v3746
          %v3749 = vunpack.c.l.s4 1983009808
          %v3750 = vunpack.c.0.s8 %v3749
          %v3751 = vlaneseq
          %v3752 = vshrl.u32 %v3751, 7
          %v3753 = vsub.s32 %v3750, %v3752
          %v3754 = vrot.slane %v3740, %v3753
          %v3755 = vcombine.low %v3747, %v3754
          %v3758 = vunpack.c.l.s4 1966171168
          %v3759 = vunpack.c.0.s8 %v3758
          %v3760 = vlaneseq
          %v3761 = vshrl.u32 %v3760, 7
          %v3762 = vsub.s32 %v3759, %v3761
          %v3763 = vrot.slane %v3755, %v3762
          %3764 = vrot.lane.b32.xlu0 %v3734, 64
          %v3765 = vpop.permute.xlu0 %3764
          %v3766 = vmul.f32 %v3765, %v3705
          %v3767 = vcombine.low %v3284, %v3366
          %v3769 = vunpack.c.l.s4 1983009808
          %v3770 = vunpack.c.0.s8 %v3769
          %v3771 = vlaneseq
          %v3772 = vshrl.u32 %v3771, 7
          %v3773 = vsub.s32 %v3770, %v3772
          %v3774 = vrot.slane %v3767, %v3773
          %v3775 = vcombine.low %v3286, %v3368
          %v3777 = vunpack.c.l.s4 1983009808
          %v3778 = vunpack.c.0.s8 %v3777
          %v3779 = vlaneseq
          %v3780 = vshrl.u32 %v3779, 7
          %v3781 = vsub.s32 %v3778, %v3780
          %v3782 = vrot.slane %v3775, %v3781
          %v3783 = vcombine.low %v3774, %v3782
          %v3785 = vunpack.c.l.s4 1934713408
          %v3786 = vunpack.c.0.s8 %v3785
          %v3787 = vlaneseq
          %v3788 = vshrl.u32 %v3787, 7
          %v3789 = vsub.s32 %v3786, %v3788
          %v3790 = vrot.slane %v3783, %v3789
          %v3792 = vlaneseq
          %v3793 = vshrl.u32 %v3792, 7
          %v3794 = vsub.s32 0, %v3793
          %v3795 = vrot.slane %v3700, %v3794
          %v3797 = vmul.f32 %v3790, %v3795
          %v3799 = vlaneseq
          %v3800 = vshrl.u32 %v3799, 7
          %v3801 = vsub.s32 0, %v3800
          %v3802 = vrot.slane %v3701, %v3801
          %v3804 = vmul.f32 %v3766, %v3802
          %v3805 = vadd.f32 %v3797, %v3804
          %3806 = vrot.lane.b32.xlu0 %v3763, 64
          %v3807 = vpop.permute.xlu0 %3806
          %v3808 = vmul.f32 %v3807, %v3705
          %v3809 = vcombine.low %v3448, %v3530
          %v3811 = vunpack.c.l.s4 1983009808
          %v3812 = vunpack.c.0.s8 %v3811
          %v3813 = vlaneseq
          %v3814 = vshrl.u32 %v3813, 7
          %v3815 = vsub.s32 %v3812, %v3814
          %v3816 = vrot.slane %v3809, %v3815
          %v3817 = vcombine.low %v3450, %v3532
          %v3819 = vunpack.c.l.s4 1983009808
          %v3820 = vunpack.c.0.s8 %v3819
          %v3821 = vlaneseq
          %v3822 = vshrl.u32 %v3821, 7
          %v3823 = vsub.s32 %v3820, %v3822
          %v3824 = vrot.slane %v3817, %v3823
          %v3825 = vcombine.low %v3816, %v3824
          %v3827 = vunpack.c.l.s4 1934713408
          %v3828 = vunpack.c.0.s8 %v3827
          %v3829 = vlaneseq
          %v3830 = vshrl.u32 %v3829, 7
          %v3831 = vsub.s32 %v3828, %v3830
          %v3832 = vrot.slane %v3825, %v3831
          %v3833 = vmul.f32 %v3832, %v3795
          %v3834 = vmul.f32 %v3808, %v3802
          %v3835 = vadd.f32 %v3833, %v3834
          %v3836 = vcombine.low %v3612, %v3694
          %v3838 = vunpack.c.l.s4 1983009808
          %v3839 = vunpack.c.0.s8 %v3838
          %v3840 = vlaneseq
          %v3841 = vshrl.u32 %v3840, 7
          %v3842 = vsub.s32 %v3839, %v3841
          %v3843 = vrot.slane %v3836, %v3842
          %v3844 = vcombine.low %v3614, %v3696
          %v3846 = vunpack.c.l.s4 1983009808
          %v3847 = vunpack.c.0.s8 %v3846
          %v3848 = vlaneseq
          %v3849 = vshrl.u32 %v3848, 7
          %v3850 = vsub.s32 %v3847, %v3849
          %v3851 = vrot.slane %v3844, %v3850
          %v3852 = vcombine.low %v3843, %v3851
          %3853 = vst [vmem:[#allocation25] sm:$0xf] %v3835
          %3855 = vst [vmem:[#allocation27] ss:$4 sm:$0x1] %v3612
          %s3857 = scalar_lea.vmem [#allocation27], 1
          %3858 = vst [vmem:[%s3857] ss:$4 sm:$0x1] %v3614
          %s3860 = scalar_lea.vmem [#allocation27], 2
          %3861 = vst [vmem:[%s3860] ss:$4 sm:$0x1] %v3694
          %s3863 = scalar_lea.vmem [#allocation27], 3
          %3864 = vst [vmem:[%s3863] ss:$4 sm:$0x1] %v3696
          %v3865 = vmul.f32 %v3805, 0.088388346
          %v3867 = vunpack.c.l.s4 1983009808
          %v3868 = vunpack.c.0.s8 %v3867
          %v3869 = vlaneseq
          %v3870 = vshrl.u32 %v3869, 7
          %v3871 = vsub.s32 %v3868, %v3870
          %v3872 = vrot.slane %v3865, %v3871
          %v3873 = vcombine.high %v3872, 0.0
          %v3875 = vunpack.c.l.s4 1934713408
          %v3876 = vunpack.c.0.s8 %v3875
          %v3877 = vlaneseq
          %v3878 = vshrl.u32 %v3877, 7
          %v3879 = vsub.s32 %v3876, %v3878
          %v3880 = vrot.slane %v3872, %v3879
          %v3882 = vunpack.c.l.s4 1934713408
          %v3883 = vunpack.c.0.s8 %v3882
          %v3884 = vlaneseq
          %v3885 = vshrl.u32 %v3884, 7
          %v3886 = vsub.s32 %v3883, %v3885
          %v3887 = vrot.slane %v3873, %v3886
          %v3888 = vcombine.high %v3880, 0.0
          %v3889 = vcombine.high %v3887, 0.0
          %v3890 = vpack.c.bf16 %v3880, %v3880
          %v3891 = vpack.c.bf16 %v3888, %v3888
          %v3892 = vpack.c.bf16 %v3887, %v3887
          %v3893 = vpack.c.bf16 %v3889, %v3889
          %v3895 = vunpack.c.l.s4 1983009808
          %v3896 = vunpack.c.0.s8 %v3895
          %v3897 = vlaneseq
          %v3898 = vshrl.u32 %v3897, 7
          %v3899 = vsub.s32 %v3896, %v3898
          %v3900 = vrot.slane %v3835, %v3899
          %v3901 = vcombine.high %v3900, 0.0
          %v3903 = vunpack.c.l.s4 1934713408
          %v3904 = vunpack.c.0.s8 %v3903
          %v3905 = vlaneseq
          %v3906 = vshrl.u32 %v3905, 7
          %v3907 = vsub.s32 %v3904, %v3906
          %v3908 = vrot.slane %v3900, %v3907
          %v3910 = vunpack.c.l.s4 1934713408
          %v3911 = vunpack.c.0.s8 %v3910
          %v3912 = vlaneseq
          %v3913 = vshrl.u32 %v3912, 7
          %v3914 = vsub.s32 %v3911, %v3913
          %v3915 = vrot.slane %v3901, %v3914
          %v3916 = vcombine.high %v3908, 0.0
          %v3917 = vcombine.high %v3915, 0.0
          %v3918 = vpack.c.bf16 %v3908, %v3908
          %v3919 = vpack.c.bf16 %v3916, %v3916
          %v3920 = vpack.c.bf16 %v3915, %v3915
          %v3921 = vpack.c.bf16 %v3917, %v3917
          %v3923 = vunpack.c.l.s4 1934713408
          %v3924 = vunpack.c.0.s8 %v3923
          %v3925 = vlaneseq
          %v3926 = vshrl.u32 %v3925, 7
          %v3927 = vsub.s32 %v3924, %v3926
          %v3928 = vrot.slane %v3852, %v3927
          %v3930 = vunpack.c.l.s4 1983009808
          %v3931 = vunpack.c.0.s8 %v3930
          %v3932 = vlaneseq
          %v3933 = vshrl.u32 %v3932, 7
          %v3934 = vsub.s32 %v3931, %v3933
          %v3935 = vrot.slane %v3928, %v3934
          %v3936 = vcombine.high %v3935, 0.0
          %v3938 = vunpack.c.l.s4 1934713408
          %v3939 = vunpack.c.0.s8 %v3938
          %v3940 = vlaneseq
          %v3941 = vshrl.u32 %v3940, 7
          %v3942 = vsub.s32 %v3939, %v3941
          %v3943 = vrot.slane %v3935, %v3942
          %v3945 = vunpack.c.l.s4 1934713408
          %v3946 = vunpack.c.0.s8 %v3945
          %v3947 = vlaneseq
          %v3948 = vshrl.u32 %v3947, 7
          %v3949 = vsub.s32 %v3946, %v3948
          %v3950 = vrot.slane %v3936, %v3949
          %v3951 = vcombine.high %v3943, 0.0
          %v3952 = vcombine.high %v3950, 0.0
          %v3953 = vpack.c.bf16 %v3943, %v3943
          %v3954 = vpack.c.bf16 %v3951, %v3951
          %v3955 = vpack.c.bf16 %v3950, %v3950
          %v3956 = vpack.c.bf16 %v3952, %v3952
          %v3957 = vld [vmem:[#allocation11] sm:$0xf]
          %v3958 = vld [vmem:[#allocation11 + $0x4] sm:$0xf]
          %v3959 = vld [vmem:[#allocation11 + $0x8] sm:$0xf]
          %v3960 = vld [vmem:[#allocation11 + $0xc] sm:$0xf]
          %v3965 = vrot.slane %v3918, 4
          %v3966 = vrot.slane %v3919, 4
          %v3967 = vrot.slane %v3920, 4
          %v3968 = vrot.slane %v3921, 4
          %vm3969 = vcmask 1043456
          %v3972 = vsel %vm3969, %v3957, %v3965
          %v3976 = vsel %vm3969, %v3958, %v3966
          %v3980 = vsel %vm3969, %v3959, %v3967
          %v3984 = vsel %vm3969, %v3960, %v3968
          %v3986 = vld [vmem:[#allocation12] sm:$0xf]
          %v3987 = vld [vmem:[#allocation12 + $0x4] sm:$0xf]
          %v3988 = vld [vmem:[#allocation12 + $0x8] sm:$0xf]
          %v3989 = vld [vmem:[#allocation12 + $0xc] sm:$0xf]
          %v3994 = vrot.slane %v3953, 4
          %v3995 = vrot.slane %v3954, 4
          %v3996 = vrot.slane %v3955, 4
          %v3997 = vrot.slane %v3956, 4
          %v4000 = vsel %vm3969, %v3986, %v3994
          %v4003 = vsel %vm3969, %v3987, %v3995
          %v4006 = vsel %vm3969, %v3988, %v3996
          %v4009 = vsel %vm3969, %v3989, %v3997
          %4010 = vmatprep.subr.bf16.mxu0 0
          %4011 = vmatpush1.bf16.xpose.msra.mxu0 %v3972
          %4012 = vmatprep.subr.bf16.mxu0 0
          %4013 = vmatpush1.bf16.xpose.msra.mxu0 0
          %4014 = vmatprep.subr.bf16.mxu0 0
          %4015 = vmatpush1.bf16.xpose.msra.mxu0 0
          %4016 = vmatprep.subr.bf16.mxu0 0
          %4017 = vmatpush1.bf16.xpose.msra.mxu0 0
          %4018 = vmatprep.subr.bf16.mxu0 0
          %4019 = vmatpush1.bf16.xpose.msra.mxu0 0
          %4020 = vmatprep.subr.bf16.mxu0 0
          %4021 = vmatpush1.bf16.xpose.msra.mxu0 0
          %4022 = vmatprep.subr.bf16.mxu0 0
          %4023 = vmatpush1.bf16.xpose.msra.mxu0 0
          %4024 = vmatprep.subr.bf16.mxu0 0
          %4025 = vmatpush1.bf16.xpose.msra.mxu0 0
          %4026 = vmatprep.subr.bf16.mxu0 0
          %4027 = vmatpush1.bf16.xpose.msra.mxu0 0
          %4028 = vmatprep.subr.bf16.mxu0 0
          %4029 = vmatpush1.bf16.xpose.msra.mxu0 0
          %4030 = vmatprep.subr.bf16.mxu0 0
          %4031 = vmatpush1.bf16.xpose.msra.mxu0 0
          %4032 = vmatprep.subr.bf16.mxu0 0
          %4033 = vmatpush1.bf16.xpose.msra.mxu0 0
          %4034 = vmatprep.subr.bf16.mxu0 0
          %4035 = vmatpush1.bf16.xpose.msra.mxu0 0
          %4036 = vmatprep.subr.bf16.mxu0 0
          %4037 = vmatpush1.bf16.xpose.msra.mxu0 0
          %4038 = vmatprep.subr.bf16.mxu0 0
          %4039 = vmatpush1.bf16.xpose.msra.mxu0 0
          %4040 = vmatprep.subr.bf16.mxu0 0
          %4041 = vmatpush1.bf16.xpose.msra.mxu0 0
          %4042 = vmatprep.mubr.bf16.mxu0 0
          %4043 = vmatmul.mubr.bf16.gmra.mrb[0].mxu0 %v3890
          %v4044 = vpop.f32.mrb[0].mxu0
          %v4045 = vadd.f32 0.0, %v4044
          %v4046 = vpop.f32.mrb[0].mxu0
          %v4047 = vpop.f32.mrb[0].mxu0
          %v4048 = vpop.f32.mrb[0].mxu0
          %4049 = vdwg.mxu0
          %4050 = vmatprep.subr.bf16.mxu0 0
          %4051 = vmatpush1.bf16.xpose.msra.mxu0 %v3976
          %4052 = vmatprep.subr.bf16.mxu0 0
          %4053 = vmatpush1.bf16.xpose.msra.mxu0 0
          %4054 = vmatprep.subr.bf16.mxu0 0
          %4055 = vmatpush1.bf16.xpose.msra.mxu0 0
          %4056 = vmatprep.subr.bf16.mxu0 0
          %4057 = vmatpush1.bf16.xpose.msra.mxu0 0
          %4058 = vmatprep.subr.bf16.mxu0 0
          %4059 = vmatpush1.bf16.xpose.msra.mxu0 0
          %4060 = vmatprep.subr.bf16.mxu0 0
          %4061 = vmatpush1.bf16.xpose.msra.mxu0 0
          %4062 = vmatprep.subr.bf16.mxu0 0
          %4063 = vmatpush1.bf16.xpose.msra.mxu0 0
          %4064 = vmatprep.subr.bf16.mxu0 0
          %4065 = vmatpush1.bf16.xpose.msra.mxu0 0
          %4066 = vmatprep.subr.bf16.mxu0 0
          %4067 = vmatpush1.bf16.xpose.msra.mxu0 0
          %4068 = vmatprep.subr.bf16.mxu0 0
          %4069 = vmatpush1.bf16.xpose.msra.mxu0 0
          %4070 = vmatprep.subr.bf16.mxu0 0
          %4071 = vmatpush1.bf16.xpose.msra.mxu0 0
          %4072 = vmatprep.subr.bf16.mxu0 0
          %4073 = vmatpush1.bf16.xpose.msra.mxu0 0
          %4074 = vmatprep.subr.bf16.mxu0 0
          %4075 = vmatpush1.bf16.xpose.msra.mxu0 0
          %4076 = vmatprep.subr.bf16.mxu0 0
          %4077 = vmatpush1.bf16.xpose.msra.mxu0 0
          %4078 = vmatprep.subr.bf16.mxu0 0
          %4079 = vmatpush1.bf16.xpose.msra.mxu0 0
          %4080 = vmatprep.subr.bf16.mxu0 0
          %4081 = vmatpush1.bf16.xpose.msra.mxu0 0
          %4082 = vmatprep.mubr.bf16.mxu0 0
          %4083 = vmatmul.mubr.bf16.gmra.mrb[0].mxu0 %v3891
          %v4084 = vpop.f32.mrb[0].mxu0
          %v4085 = vadd.f32 0.0, %v4084
          %v4086 = vpop.f32.mrb[0].mxu0
          %v4087 = vpop.f32.mrb[0].mxu0
          %v4088 = vpop.f32.mrb[0].mxu0
          %4089 = vdwg.mxu0
          %4090 = vmatprep.subr.bf16.mxu0 0
          %4091 = vmatpush1.bf16.xpose.msra.mxu0 %v3980
          %4092 = vmatprep.subr.bf16.mxu0 0
          %4093 = vmatpush1.bf16.xpose.msra.mxu0 0
          %4094 = vmatprep.subr.bf16.mxu0 0
          %4095 = vmatpush1.bf16.xpose.msra.mxu0 0
          %4096 = vmatprep.subr.bf16.mxu0 0
          %4097 = vmatpush1.bf16.xpose.msra.mxu0 0
          %4098 = vmatprep.subr.bf16.mxu0 0
          %4099 = vmatpush1.bf16.xpose.msra.mxu0 0
          %4100 = vmatprep.subr.bf16.mxu0 0
          %4101 = vmatpush1.bf16.xpose.msra.mxu0 0
          %4102 = vmatprep.subr.bf16.mxu0 0
          %4103 = vmatpush1.bf16.xpose.msra.mxu0 0
          %4104 = vmatprep.subr.bf16.mxu0 0
          %4105 = vmatpush1.bf16.xpose.msra.mxu0 0
          %4106 = vmatprep.subr.bf16.mxu0 0
          %4107 = vmatpush1.bf16.xpose.msra.mxu0 0
          %4108 = vmatprep.subr.bf16.mxu0 0
          %4109 = vmatpush1.bf16.xpose.msra.mxu0 0
          %4110 = vmatprep.subr.bf16.mxu0 0
          %4111 = vmatpush1.bf16.xpose.msra.mxu0 0
          %4112 = vmatprep.subr.bf16.mxu0 0
          %4113 = vmatpush1.bf16.xpose.msra.mxu0 0
          %4114 = vmatprep.subr.bf16.mxu0 0
          %4115 = vmatpush1.bf16.xpose.msra.mxu0 0
          %4116 = vmatprep.subr.bf16.mxu0 0
          %4117 = vmatpush1.bf16.xpose.msra.mxu0 0
          %4118 = vmatprep.subr.bf16.mxu0 0
          %4119 = vmatpush1.bf16.xpose.msra.mxu0 0
          %4120 = vmatprep.subr.bf16.mxu0 0
          %4121 = vmatpush1.bf16.xpose.msra.mxu0 0
          %4122 = vmatprep.mubr.bf16.mxu0 0
          %4123 = vmatmul.mubr.bf16.gmra.mrb[0].mxu0 %v3892
          %v4124 = vpop.f32.mrb[0].mxu0
          %v4125 = vadd.f32 0.0, %v4124
          %v4126 = vpop.f32.mrb[0].mxu0
          %v4127 = vpop.f32.mrb[0].mxu0
          %v4128 = vpop.f32.mrb[0].mxu0
          %4129 = vdwg.mxu0
          %4130 = vmatprep.subr.bf16.mxu0 0
          %4131 = vmatpush1.bf16.xpose.msra.mxu0 %v3984
          %4132 = vmatprep.subr.bf16.mxu0 0
          %4133 = vmatpush1.bf16.xpose.msra.mxu0 0
          %4134 = vmatprep.subr.bf16.mxu0 0
          %4135 = vmatpush1.bf16.xpose.msra.mxu0 0
          %4136 = vmatprep.subr.bf16.mxu0 0
          %4137 = vmatpush1.bf16.xpose.msra.mxu0 0
          %4138 = vmatprep.subr.bf16.mxu0 0
          %4139 = vmatpush1.bf16.xpose.msra.mxu0 0
          %4140 = vmatprep.subr.bf16.mxu0 0
          %4141 = vmatpush1.bf16.xpose.msra.mxu0 0
          %4142 = vmatprep.subr.bf16.mxu0 0
          %4143 = vmatpush1.bf16.xpose.msra.mxu0 0
          %4144 = vmatprep.subr.bf16.mxu0 0
          %4145 = vmatpush1.bf16.xpose.msra.mxu0 0
          %4146 = vmatprep.subr.bf16.mxu0 0
          %4147 = vmatpush1.bf16.xpose.msra.mxu0 0
          %4148 = vmatprep.subr.bf16.mxu0 0
          %4149 = vmatpush1.bf16.xpose.msra.mxu0 0
          %4150 = vmatprep.subr.bf16.mxu0 0
          %4151 = vmatpush1.bf16.xpose.msra.mxu0 0
          %4152 = vmatprep.subr.bf16.mxu0 0
          %4153 = vmatpush1.bf16.xpose.msra.mxu0 0
          %4154 = vmatprep.subr.bf16.mxu0 0
          %4155 = vmatpush1.bf16.xpose.msra.mxu0 0
          %4156 = vmatprep.subr.bf16.mxu0 0
          %4157 = vmatpush1.bf16.xpose.msra.mxu0 0
          %4158 = vmatprep.subr.bf16.mxu0 0
          %4159 = vmatpush1.bf16.xpose.msra.mxu0 0
          %4160 = vmatprep.subr.bf16.mxu0 0
          %4161 = vmatpush1.bf16.xpose.msra.mxu0 0
          %4162 = vmatprep.mubr.bf16.mxu0 0
          %4163 = vmatmul.mubr.bf16.gmra.mrb[0].mxu0 %v3893
          %v4164 = vpop.f32.mrb[0].mxu0
          %v4165 = vadd.f32 0.0, %v4164
          %v4166 = vpop.f32.mrb[0].mxu0
          %v4167 = vpop.f32.mrb[0].mxu0
          %v4168 = vpop.f32.mrb[0].mxu0
          %4169 = vdwg.mxu0
          %v4170 = vlaneseq
          %v4171 = vshrl.u32 %v4170, 7
          %v4172 = vadd.s32 %v4171, 8
          %vm4173 = vcmp.le.s32.totalorder %v3703, %v4172
          %v4174 = vld [vmem:[#allocation9] sm:$0x1]
          %v4175 = vunpack.c.l.bf16 %v4174
          %v4176 = vsel %vm4173, 1, 0
          %vm4177 = vcmp.eq.s32.totalorder %v4176, 1
          %v4178 = vsel %vm4177, %v4045, -1e+30
          %v4179 = vsel %vm4177, %v4085, -1e+30
          %v4180 = vsel %vm4177, %v4125, -1e+30
          %v4181 = vsel %vm4177, %v4165, -1e+30
          %v4182 = vadd.f32 %v4178, %v4175
          %v4183 = vadd.f32 %v4179, %v4175
          %v4184 = vadd.f32 %v4180, %v4175
          %v4185 = vadd.f32 %v4181, %v4175
          %vm4186 = vcmask 65536
          %v4187 = vsel %vm4186, %v4182, -inf
          %4188 = vmax.xlane.f32.xlu0 %v4187
          %v4189 = vpop.xlane.xlu0 %4188
          %v4190 = vsel %vm4186, %v4183, -inf
          %4191 = vmax.xlane.f32.xlu0 %v4190
          %v4192 = vpop.xlane.xlu0 %4191
          %v4193 = vsel %vm4186, %v4184, -inf
          %4194 = vmax.xlane.f32.xlu0 %v4193
          %v4195 = vpop.xlane.xlu0 %4194
          %v4196 = vsel %vm4186, %v4185, -inf
          %4197 = vmax.xlane.f32.xlu0 %v4196
          %v4198 = vpop.xlane.xlu0 %4197
          %v4199 = vsub.f32 %v4182, %v4189
          %v4200 = vsub.f32 %v4183, %v4192
          %v4201 = vsub.f32 %v4184, %v4195
          %v4202 = vsub.f32 %v4185, %v4198
          %v4203 = vmul.f32 %v4199, 1.442695
          %v4204 = vpow.pop %v4203
          %v4205 = vmul.f32 %v4200, 1.442695
          %v4206 = vpow.pop %v4205
          %v4207 = vmul.f32 %v4201, 1.442695
          %v4208 = vpow.pop %v4207
          %v4209 = vmul.f32 %v4202, 1.442695
          %v4210 = vpow.pop %v4209
          %v4211 = vsel %vm4186, %v4204, 0.0
          %4212 = vadd.xlane.f32.xlu0 %v4211
          %v4213 = vpop.xlane.xlu0 %4212
          %v4214 = vsel %vm4186, %v4206, 0.0
          %4215 = vadd.xlane.f32.xlu0 %v4214
          %v4216 = vpop.xlane.xlu0 %4215
          %v4217 = vsel %vm4186, %v4208, 0.0
          %4218 = vadd.xlane.f32.xlu0 %v4217
          %v4219 = vpop.xlane.xlu0 %4218
          %v4220 = vsel %vm4186, %v4210, 0.0
          %4221 = vadd.xlane.f32.xlu0 %v4220
          %v4222 = vpop.xlane.xlu0 %4221
          %v4223 = vrcp.pop %v4213
          %v4224 = vrcp.pop %v4216
          %v4225 = vrcp.pop %v4219
          %v4226 = vrcp.pop %v4222
          %v4227 = vmul.f32 %v4204, %v4223
          %v4228 = vmul.f32 %v4206, %v4224
          %v4229 = vmul.f32 %v4208, %v4225
          %v4230 = vmul.f32 %v4210, %v4226
          %v4231 = vpack.c.bf16 %v4227, %v4227
          %v4232 = vpack.c.bf16 %v4228, %v4228
          %v4233 = vpack.c.bf16 %v4229, %v4229
          %v4234 = vpack.c.bf16 %v4230, %v4230
          %vm4235 = vcmask 72704
          %v4237 = vsel %vm4235, %v4231, 0
          %vm4239 = vcmask 1044480
          %v4240 = vsel %vm3969, 4294967295, 65535
          %v4241 = vsel %vm4239, %v4240, 0
          %v4242 = vand.u32 %v4000, %v4241
          %4244 = vmatprep.subr.bf16.mxu0 0
          %4245 = vmatpush1.bf16.msra.mxu0 %v4242
          %4246 = vmatprep.subr.bf16.mxu0 0
          %4247 = vmatpush1.bf16.msra.mxu0 0
          %4248 = vmatprep.subr.bf16.mxu0 0
          %4249 = vmatpush1.bf16.msra.mxu0 0
          %4250 = vmatprep.subr.bf16.mxu0 0
          %4251 = vmatpush1.bf16.msra.mxu0 0
          %4252 = vmatprep.subr.bf16.mxu0 0
          %4253 = vmatpush1.bf16.msra.mxu0 0
          %4254 = vmatprep.subr.bf16.mxu0 0
          %4255 = vmatpush1.bf16.msra.mxu0 0
          %4256 = vmatprep.subr.bf16.mxu0 0
          %4257 = vmatpush1.bf16.msra.mxu0 0
          %4258 = vmatprep.subr.bf16.mxu0 0
          %4259 = vmatpush1.bf16.msra.mxu0 0
          %4260 = vmatprep.subr.bf16.mxu0 0
          %4261 = vmatpush1.bf16.msra.mxu0 0
          %4262 = vmatprep.subr.bf16.mxu0 0
          %4263 = vmatpush1.bf16.msra.mxu0 0
          %4264 = vmatprep.subr.bf16.mxu0 0
          %4265 = vmatpush1.bf16.msra.mxu0 0
          %4266 = vmatprep.subr.bf16.mxu0 0
          %4267 = vmatpush1.bf16.msra.mxu0 0
          %4268 = vmatprep.subr.bf16.mxu0 0
          %4269 = vmatpush1.bf16.msra.mxu0 0
          %4270 = vmatprep.subr.bf16.mxu0 0
          %4271 = vmatpush1.bf16.msra.mxu0 0
          %4272 = vmatprep.subr.bf16.mxu0 0
          %4273 = vmatpush1.bf16.msra.mxu0 0
          %4274 = vmatprep.subr.bf16.mxu0 0
          %4275 = vmatpush1.bf16.msra.mxu0 0
          %4276 = vmatprep.mubr.bf16.mxu0 0
          %4277 = vmatmul.mubr.bf16.gmra.mrb[0].mxu0 %v4237
          %v4278 = vpop.f32.mrb[0].mxu0
          %v4279 = vadd.f32 0.0, %v4278
          %v4280 = vpop.f32.mrb[0].mxu0
          %v4281 = vpop.f32.mrb[0].mxu0
          %v4282 = vpop.f32.mrb[0].mxu0
          %4283 = vdwg.mxu0
          %v4285 = vsel %vm4235, %v4232, 0
          %v4287 = vand.u32 %v4003, %v4241
          %4289 = vmatprep.subr.bf16.mxu0 0
          %4290 = vmatpush1.bf16.msra.mxu0 %v4287
          %4291 = vmatprep.subr.bf16.mxu0 0
          %4292 = vmatpush1.bf16.msra.mxu0 0
          %4293 = vmatprep.subr.bf16.mxu0 0
          %4294 = vmatpush1.bf16.msra.mxu0 0
          %4295 = vmatprep.subr.bf16.mxu0 0
          %4296 = vmatpush1.bf16.msra.mxu0 0
          %4297 = vmatprep.subr.bf16.mxu0 0
          %4298 = vmatpush1.bf16.msra.mxu0 0
          %4299 = vmatprep.subr.bf16.mxu0 0
          %4300 = vmatpush1.bf16.msra.mxu0 0
          %4301 = vmatprep.subr.bf16.mxu0 0
          %4302 = vmatpush1.bf16.msra.mxu0 0
          %4303 = vmatprep.subr.bf16.mxu0 0
          %4304 = vmatpush1.bf16.msra.mxu0 0
          %4305 = vmatprep.subr.bf16.mxu0 0
          %4306 = vmatpush1.bf16.msra.mxu0 0
          %4307 = vmatprep.subr.bf16.mxu0 0
          %4308 = vmatpush1.bf16.msra.mxu0 0
          %4309 = vmatprep.subr.bf16.mxu0 0
          %4310 = vmatpush1.bf16.msra.mxu0 0
          %4311 = vmatprep.subr.bf16.mxu0 0
          %4312 = vmatpush1.bf16.msra.mxu0 0
          %4313 = vmatprep.subr.bf16.mxu0 0
          %4314 = vmatpush1.bf16.msra.mxu0 0
          %4315 = vmatprep.subr.bf16.mxu0 0
          %4316 = vmatpush1.bf16.msra.mxu0 0
          %4317 = vmatprep.subr.bf16.mxu0 0
          %4318 = vmatpush1.bf16.msra.mxu0 0
          %4319 = vmatprep.subr.bf16.mxu0 0
          %4320 = vmatpush1.bf16.msra.mxu0 0
          %4321 = vmatprep.mubr.bf16.mxu0 0
          %4322 = vmatmul.mubr.bf16.gmra.mrb[0].mxu0 %v4285
          %v4323 = vpop.f32.mrb[0].mxu0
          %v4324 = vadd.f32 0.0, %v4323
          %v4325 = vpop.f32.mrb[0].mxu0
          %v4326 = vpop.f32.mrb[0].mxu0
          %v4327 = vpop.f32.mrb[0].mxu0
          %4328 = vdwg.mxu0
          %v4330 = vsel %vm4235, %v4233, 0
          %v4332 = vand.u32 %v4006, %v4241
          %4334 = vmatprep.subr.bf16.mxu0 0
          %4335 = vmatpush1.bf16.msra.mxu0 %v4332
          %4336 = vmatprep.subr.bf16.mxu0 0
          %4337 = vmatpush1.bf16.msra.mxu0 0
          %4338 = vmatprep.subr.bf16.mxu0 0
          %4339 = vmatpush1.bf16.msra.mxu0 0
          %4340 = vmatprep.subr.bf16.mxu0 0
          %4341 = vmatpush1.bf16.msra.mxu0 0
          %4342 = vmatprep.subr.bf16.mxu0 0
          %4343 = vmatpush1.bf16.msra.mxu0 0
          %4344 = vmatprep.subr.bf16.mxu0 0
          %4345 = vmatpush1.bf16.msra.mxu0 0
          %4346 = vmatprep.subr.bf16.mxu0 0
          %4347 = vmatpush1.bf16.msra.mxu0 0
          %4348 = vmatprep.subr.bf16.mxu0 0
          %4349 = vmatpush1.bf16.msra.mxu0 0
          %4350 = vmatprep.subr.bf16.mxu0 0
          %4351 = vmatpush1.bf16.msra.mxu0 0
          %4352 = vmatprep.subr.bf16.mxu0 0
          %4353 = vmatpush1.bf16.msra.mxu0 0
          %4354 = vmatprep.subr.bf16.mxu0 0
          %4355 = vmatpush1.bf16.msra.mxu0 0
          %4356 = vmatprep.subr.bf16.mxu0 0
          %4357 = vmatpush1.bf16.msra.mxu0 0
          %4358 = vmatprep.subr.bf16.mxu0 0
          %4359 = vmatpush1.bf16.msra.mxu0 0
          %4360 = vmatprep.subr.bf16.mxu0 0
          %4361 = vmatpush1.bf16.msra.mxu0 0
          %4362 = vmatprep.subr.bf16.mxu0 0
          %4363 = vmatpush1.bf16.msra.mxu0 0
          %4364 = vmatprep.subr.bf16.mxu0 0
          %4365 = vmatpush1.bf16.msra.mxu0 0
          %4366 = vmatprep.mubr.bf16.mxu0 0
          %4367 = vmatmul.mubr.bf16.gmra.mrb[0].mxu0 %v4330
          %v4368 = vpop.f32.mrb[0].mxu0
          %v4369 = vadd.f32 0.0, %v4368
          %v4370 = vpop.f32.mrb[0].mxu0
          %v4371 = vpop.f32.mrb[0].mxu0
          %v4372 = vpop.f32.mrb[0].mxu0
          %4373 = vdwg.mxu0
          %v4375 = vsel %vm4235, %v4234, 0
          %v4377 = vand.u32 %v4009, %v4241
          %4379 = vmatprep.subr.bf16.mxu0 0
          %4380 = vmatpush1.bf16.msra.mxu0 %v4377
          %4381 = vmatprep.subr.bf16.mxu0 0
          %4382 = vmatpush1.bf16.msra.mxu0 0
          %4383 = vmatprep.subr.bf16.mxu0 0
          %4384 = vmatpush1.bf16.msra.mxu0 0
          %4385 = vmatprep.subr.bf16.mxu0 0
          %4386 = vmatpush1.bf16.msra.mxu0 0
          %4387 = vmatprep.subr.bf16.mxu0 0
          %4388 = vmatpush1.bf16.msra.mxu0 0
          %4389 = vmatprep.subr.bf16.mxu0 0
          %4390 = vmatpush1.bf16.msra.mxu0 0
          %4391 = vmatprep.subr.bf16.mxu0 0
          %4392 = vmatpush1.bf16.msra.mxu0 0
          %4393 = vmatprep.subr.bf16.mxu0 0
          %4394 = vmatpush1.bf16.msra.mxu0 0
          %4395 = vmatprep.subr.bf16.mxu0 0
          %4396 = vmatpush1.bf16.msra.mxu0 0
          %4397 = vmatprep.subr.bf16.mxu0 0
          %4398 = vmatpush1.bf16.msra.mxu0 0
          %4399 = vmatprep.subr.bf16.mxu0 0
          %4400 = vmatpush1.bf16.msra.mxu0 0
          %4401 = vmatprep.subr.bf16.mxu0 0
          %4402 = vmatpush1.bf16.msra.mxu0 0
          %4403 = vmatprep.subr.bf16.mxu0 0
          %4404 = vmatpush1.bf16.msra.mxu0 0
          %4405 = vmatprep.subr.bf16.mxu0 0
          %4406 = vmatpush1.bf16.msra.mxu0 0
          %4407 = vmatprep.subr.bf16.mxu0 0
          %4408 = vmatpush1.bf16.msra.mxu0 0
          %4409 = vmatprep.subr.bf16.mxu0 0
          %4410 = vmatpush1.bf16.msra.mxu0 0
          %4411 = vmatprep.mubr.bf16.mxu0 0
          %4412 = vmatmul.mubr.bf16.gmra.mrb[0].mxu0 %v4375
          %v4413 = vpop.f32.mrb[0].mxu0
          %v4414 = vadd.f32 0.0, %v4413
          %v4415 = vpop.f32.mrb[0].mxu0
          %v4416 = vpop.f32.mrb[0].mxu0
          %v4417 = vpop.f32.mrb[0].mxu0
          %4418 = vdwg.mxu0
          %v4419 = vcombine.low %v4279, %v4369
          %v4421 = vunpack.c.l.s4 1983009808
          %v4422 = vunpack.c.0.s8 %v4421
          %v4423 = vlaneseq
          %v4424 = vshrl.u32 %v4423, 7
          %v4425 = vsub.s32 %v4422, %v4424
          %v4426 = vrot.slane %v4419, %v4425
          %v4427 = vcombine.low %v4324, %v4414
          %v4429 = vunpack.c.l.s4 1983009808
          %v4430 = vunpack.c.0.s8 %v4429
          %v4431 = vlaneseq
          %v4432 = vshrl.u32 %v4431, 7
          %v4433 = vsub.s32 %v4430, %v4432
          %v4434 = vrot.slane %v4427, %v4433
          %v4435 = vcombine.low %v4426, %v4434
          %v4437 = vunpack.c.l.s4 1934713408
          %v4438 = vunpack.c.0.s8 %v4437
          %v4439 = vlaneseq
          %v4440 = vshrl.u32 %v4439, 7
          %v4441 = vsub.s32 %v4438, %v4440
          %v4442 = vrot.slane %v4435, %v4441
          %v4444 = vunpack.c.l.s4 1983009808
          %v4445 = vunpack.c.0.s8 %v4444
          %v4446 = vlaneseq
          %v4447 = vshrl.u32 %v4446, 7
          %v4448 = vsub.s32 %v4445, %v4447
          %v4449 = vrot.slane %v4442, %v4448
          %v4450 = vcombine.high %v4449, 0.0
          %v4452 = vunpack.c.l.s4 1934713408
          %v4453 = vunpack.c.0.s8 %v4452
          %v4454 = vlaneseq
          %v4455 = vshrl.u32 %v4454, 7
          %v4456 = vsub.s32 %v4453, %v4455
          %v4457 = vrot.slane %v4449, %v4456
          %v4459 = vunpack.c.l.s4 1934713408
          %v4460 = vunpack.c.0.s8 %v4459
          %v4461 = vlaneseq
          %v4462 = vshrl.u32 %v4461, 7
          %v4463 = vsub.s32 %v4460, %v4462
          %v4464 = vrot.slane %v4450, %v4463
          %v4465 = vcombine.high %v4457, 0.0
          %v4466 = vcombine.high %v4464, 0.0
          %v4467 = vpack.c.bf16 %v4457, %v4457
          %v4468 = vpack.c.bf16 %v4465, %v4465
          %v4469 = vpack.c.bf16 %v4464, %v4464
          %v4470 = vpack.c.bf16 %v4466, %v4466
          %v4471 = vld [vmem:[#allocation18] sm:$0xff]
          %v4472 = vld [vmem:[#allocation18 + $0x8] sm:$0xff]
          %v4473 = vld [vmem:[#allocation18 + $0x10] sm:$0xff]
          %v4474 = vld [vmem:[#allocation18 + $0x18] sm:$0xff]
          %v4475 = vld [vmem:[#allocation18 + $0x20] sm:$0xff]
          %v4476 = vld [vmem:[#allocation18 + $0x28] sm:$0xff]
          %v4477 = vld [vmem:[#allocation18 + $0x30] sm:$0xff]
          %v4478 = vld [vmem:[#allocation18 + $0x38] sm:$0xff]
          %v4479 = vld [vmem:[#allocation18 + $0x40] sm:$0xff]
          %v4480 = vld [vmem:[#allocation18 + $0x48] sm:$0xff]
          %v4481 = vld [vmem:[#allocation18 + $0x50] sm:$0xff]
          %v4482 = vld [vmem:[#allocation18 + $0x58] sm:$0xff]
          %v4483 = vld [vmem:[#allocation18 + $0x60] sm:$0xff]
          %v4484 = vld [vmem:[#allocation18 + $0x68] sm:$0xff]
          %v4485 = vld [vmem:[#allocation18 + $0x70] sm:$0xff]
          %v4486 = vld [vmem:[#allocation18 + $0x78] sm:$0xff]
          %v4487 = vld [vmem:[#allocation18 + $0x80] sm:$0xff]
          %v4488 = vld [vmem:[#allocation18 + $0x88] sm:$0xff]
          %v4489 = vld [vmem:[#allocation18 + $0x90] sm:$0xff]
          %v4490 = vld [vmem:[#allocation18 + $0x98] sm:$0xff]
          %v4491 = vld [vmem:[#allocation18 + $0xa0] sm:$0xff]
          %v4492 = vld [vmem:[#allocation18 + $0xa8] sm:$0xff]
          %v4493 = vld [vmem:[#allocation18 + $0xb0] sm:$0xff]
          %v4494 = vld [vmem:[#allocation18 + $0xb8] sm:$0xff]
          %v4495 = vld [vmem:[#allocation18 + $0xc0] sm:$0xff]
          %v4496 = vld [vmem:[#allocation18 + $0xc8] sm:$0xff]
          %v4497 = vld [vmem:[#allocation18 + $0xd0] sm:$0xff]
          %v4498 = vld [vmem:[#allocation18 + $0xd8] sm:$0xff]
          %v4499 = vld [vmem:[#allocation18 + $0xe0] sm:$0xff]
          %v4500 = vld [vmem:[#allocation18 + $0xe8] sm:$0xff]
          %v4501 = vld [vmem:[#allocation18 + $0xf0] sm:$0xff]
          %v4502 = vld [vmem:[#allocation18 + $0xf8] sm:$0xff]
          %v4503 = vld [vmem:[#allocation18 + $0x100] sm:$0xff]
          %v4504 = vld [vmem:[#allocation18 + $0x108] sm:$0xff]
          %v4505 = vld [vmem:[#allocation18 + $0x110] sm:$0xff]
          %v4506 = vld [vmem:[#allocation18 + $0x118] sm:$0xff]
          %v4507 = vld [vmem:[#allocation18 + $0x120] sm:$0xff]
          %v4508 = vld [vmem:[#allocation18 + $0x128] sm:$0xff]
          %v4509 = vld [vmem:[#allocation18 + $0x130] sm:$0xff]
          %v4510 = vld [vmem:[#allocation18 + $0x138] sm:$0xff]
          %v4511 = vld [vmem:[#allocation18 + $0x140] sm:$0xff]
          %v4512 = vld [vmem:[#allocation18 + $0x148] sm:$0xff]
          %v4513 = vld [vmem:[#allocation18 + $0x150] sm:$0xff]
          %v4514 = vld [vmem:[#allocation18 + $0x158] sm:$0xff]
          %v4515 = vld [vmem:[#allocation18 + $0x160] sm:$0xff]
          %v4516 = vld [vmem:[#allocation18 + $0x168] sm:$0xff]
          %v4517 = vld [vmem:[#allocation18 + $0x170] sm:$0xff]
          %v4518 = vld [vmem:[#allocation18 + $0x178] sm:$0xff]
          %v4519 = vld [vmem:[#allocation18 + $0x180] sm:$0xff]
          %v4520 = vld [vmem:[#allocation18 + $0x188] sm:$0xff]
          %v4521 = vld [vmem:[#allocation18 + $0x190] sm:$0xff]
          %v4522 = vld [vmem:[#allocation18 + $0x198] sm:$0xff]
          %v4523 = vld [vmem:[#allocation18 + $0x1a0] sm:$0xff]
          %v4524 = vld [vmem:[#allocation18 + $0x1a8] sm:$0xff]
          %v4525 = vld [vmem:[#allocation18 + $0x1b0] sm:$0xff]
          %v4526 = vld [vmem:[#allocation18 + $0x1b8] sm:$0xff]
          %v4527 = vld [vmem:[#allocation18 + $0x1c0] sm:$0xff]
          %v4528 = vld [vmem:[#allocation18 + $0x1c8] sm:$0xff]
          %v4529 = vld [vmem:[#allocation18 + $0x1d0] sm:$0xff]
          %v4530 = vld [vmem:[#allocation18 + $0x1d8] sm:$0xff]
          %v4531 = vld [vmem:[#allocation18 + $0x1e0] sm:$0xff]
          %v4532 = vld [vmem:[#allocation18 + $0x1e8] sm:$0xff]
          %v4533 = vld [vmem:[#allocation18 + $0x1f0] sm:$0xff]
          %v4534 = vld [vmem:[#allocation18 + $0x1f8] sm:$0xff]
          %v4535 = vld [vmem:[#allocation18 + $0x200] sm:$0xff]
          %v4536 = vld [vmem:[#allocation18 + $0x208] sm:$0xff]
          %v4537 = vld [vmem:[#allocation18 + $0x210] sm:$0xff]
          %v4538 = vld [vmem:[#allocation18 + $0x218] sm:$0xff]
          %v4539 = vld [vmem:[#allocation18 + $0x220] sm:$0xff]
          %v4540 = vld [vmem:[#allocation18 + $0x228] sm:$0xff]
          %v4541 = vld [vmem:[#allocation18 + $0x230] sm:$0xff]
          %v4542 = vld [vmem:[#allocation18 + $0x238] sm:$0xff]
          %v4543 = vld [vmem:[#allocation18 + $0x240] sm:$0xff]
          %v4544 = vld [vmem:[#allocation18 + $0x248] sm:$0xff]
          %v4545 = vld [vmem:[#allocation18 + $0x250] sm:$0xff]
          %v4546 = vld [vmem:[#allocation18 + $0x258] sm:$0xff]
          %v4547 = vld [vmem:[#allocation18 + $0x260] sm:$0xff]
          %v4548 = vld [vmem:[#allocation18 + $0x268] sm:$0xff]
          %v4549 = vld [vmem:[#allocation18 + $0x270] sm:$0xff]
          %v4550 = vld [vmem:[#allocation18 + $0x278] sm:$0xff]
          %v4551 = vld [vmem:[#allocation18 + $0x280] sm:$0xff]
          %v4552 = vld [vmem:[#allocation18 + $0x288] sm:$0xff]
          %v4553 = vld [vmem:[#allocation18 + $0x290] sm:$0xff]
          %v4554 = vld [vmem:[#allocation18 + $0x298] sm:$0xff]
          %v4555 = vld [vmem:[#allocation18 + $0x2a0] sm:$0xff]
          %v4556 = vld [vmem:[#allocation18 + $0x2a8] sm:$0xff]
          %v4557 = vld [vmem:[#allocation18 + $0x2b0] sm:$0xff]
          %v4558 = vld [vmem:[#allocation18 + $0x2b8] sm:$0xff]
          %v4559 = vld [vmem:[#allocation18 + $0x2c0] sm:$0xff]
          %v4560 = vld [vmem:[#allocation18 + $0x2c8] sm:$0xff]
          %v4561 = vld [vmem:[#allocation18 + $0x2d0] sm:$0xff]
          %v4562 = vld [vmem:[#allocation18 + $0x2d8] sm:$0xff]
          %v4563 = vld [vmem:[#allocation18 + $0x2e0] sm:$0xff]
          %v4564 = vld [vmem:[#allocation18 + $0x2e8] sm:$0xff]
          %v4565 = vld [vmem:[#allocation18 + $0x2f0] sm:$0xff]
          %v4566 = vld [vmem:[#allocation18 + $0x2f8] sm:$0xff]
          %v4567 = vld [vmem:[#allocation18 + $0x300] sm:$0xff]
          %v4568 = vld [vmem:[#allocation18 + $0x308] sm:$0xff]
          %v4569 = vld [vmem:[#allocation18 + $0x310] sm:$0xff]
          %v4570 = vld [vmem:[#allocation18 + $0x318] sm:$0xff]
          %v4571 = vld [vmem:[#allocation18 + $0x320] sm:$0xff]
          %v4572 = vld [vmem:[#allocation18 + $0x328] sm:$0xff]
          %v4573 = vld [vmem:[#allocation18 + $0x330] sm:$0xff]
          %v4574 = vld [vmem:[#allocation18 + $0x338] sm:$0xff]
          %v4575 = vld [vmem:[#allocation18 + $0x340] sm:$0xff]
          %v4576 = vld [vmem:[#allocation18 + $0x348] sm:$0xff]
          %v4577 = vld [vmem:[#allocation18 + $0x350] sm:$0xff]
          %v4578 = vld [vmem:[#allocation18 + $0x358] sm:$0xff]
          %v4579 = vld [vmem:[#allocation18 + $0x360] sm:$0xff]
          %v4580 = vld [vmem:[#allocation18 + $0x368] sm:$0xff]
          %v4581 = vld [vmem:[#allocation18 + $0x370] sm:$0xff]
          %v4582 = vld [vmem:[#allocation18 + $0x378] sm:$0xff]
          %v4583 = vld [vmem:[#allocation18 + $0x380] sm:$0xff]
          %v4584 = vld [vmem:[#allocation18 + $0x388] sm:$0xff]
          %v4585 = vld [vmem:[#allocation18 + $0x390] sm:$0xff]
          %v4586 = vld [vmem:[#allocation18 + $0x398] sm:$0xff]
          %v4587 = vld [vmem:[#allocation18 + $0x3a0] sm:$0xff]
          %v4588 = vld [vmem:[#allocation18 + $0x3a8] sm:$0xff]
          %v4589 = vld [vmem:[#allocation18 + $0x3b0] sm:$0xff]
          %v4590 = vld [vmem:[#allocation18 + $0x3b8] sm:$0xff]
          %v4591 = vld [vmem:[#allocation18 + $0x3c0] sm:$0xff]
          %v4592 = vld [vmem:[#allocation18 + $0x3c8] sm:$0xff]
          %v4593 = vld [vmem:[#allocation18 + $0x3d0] sm:$0xff]
          %v4594 = vld [vmem:[#allocation18 + $0x3d8] sm:$0xff]
          %v4595 = vld [vmem:[#allocation18 + $0x3e0] sm:$0xff]
          %v4596 = vld [vmem:[#allocation18 + $0x3e8] sm:$0xff]
          %v4597 = vld [vmem:[#allocation18 + $0x3f0] sm:$0xff]
          %v4598 = vld [vmem:[#allocation18 + $0x3f8] sm:$0xff]
          %v4727 = vunpack.c.l.b16 %v4471
          %v4728 = vunpack.c.h.b16 %v4471
          %v4729 = vunpack.c.l.b16 %v4472
          %v4730 = vunpack.c.h.b16 %v4472
          %v4731 = vunpack.c.l.b16 %v4473
          %v4732 = vunpack.c.h.b16 %v4473
          %v4733 = vunpack.c.l.b16 %v4474
          %v4734 = vunpack.c.h.b16 %v4474
          %v4735 = vunpack.c.l.b16 %v4475
          %v4736 = vunpack.c.h.b16 %v4475
          %v4737 = vunpack.c.l.b16 %v4476
          %v4738 = vunpack.c.h.b16 %v4476
          %v4739 = vunpack.c.l.b16 %v4477
          %v4740 = vunpack.c.h.b16 %v4477
          %v4741 = vunpack.c.l.b16 %v4478
          %v4742 = vunpack.c.h.b16 %v4478
          %v4743 = vunpack.c.l.b16 %v4479
          %v4744 = vunpack.c.h.b16 %v4479
          %v4745 = vunpack.c.l.b16 %v4480
          %v4746 = vunpack.c.h.b16 %v4480
          %v4747 = vunpack.c.l.b16 %v4481
          %v4748 = vunpack.c.h.b16 %v4481
          %v4749 = vunpack.c.l.b16 %v4482
          %v4750 = vunpack.c.h.b16 %v4482
          %v4751 = vunpack.c.l.b16 %v4483
          %v4752 = vunpack.c.h.b16 %v4483
          %v4753 = vunpack.c.l.b16 %v4484
          %v4754 = vunpack.c.h.b16 %v4484
          %v4755 = vunpack.c.l.b16 %v4485
          %v4756 = vunpack.c.h.b16 %v4485
          %v4757 = vunpack.c.l.b16 %v4486
          %v4758 = vunpack.c.h.b16 %v4486
          %v4759 = vunpack.c.l.b16 %v4487
          %v4760 = vunpack.c.h.b16 %v4487
          %v4761 = vunpack.c.l.b16 %v4488
          %v4762 = vunpack.c.h.b16 %v4488
          %v4763 = vunpack.c.l.b16 %v4489
          %v4764 = vunpack.c.h.b16 %v4489
          %v4765 = vunpack.c.l.b16 %v4490
          %v4766 = vunpack.c.h.b16 %v4490
          %v4767 = vunpack.c.l.b16 %v4491
          %v4768 = vunpack.c.h.b16 %v4491
          %v4769 = vunpack.c.l.b16 %v4492
          %v4770 = vunpack.c.h.b16 %v4492
          %v4771 = vunpack.c.l.b16 %v4493
          %v4772 = vunpack.c.h.b16 %v4493
          %v4773 = vunpack.c.l.b16 %v4494
          %v4774 = vunpack.c.h.b16 %v4494
          %v4775 = vunpack.c.l.b16 %v4495
          %v4776 = vunpack.c.h.b16 %v4495
          %v4777 = vunpack.c.l.b16 %v4496
          %v4778 = vunpack.c.h.b16 %v4496
          %v4779 = vunpack.c.l.b16 %v4497
          %v4780 = vunpack.c.h.b16 %v4497
          %v4781 = vunpack.c.l.b16 %v4498
          %v4782 = vunpack.c.h.b16 %v4498
          %v4783 = vunpack.c.l.b16 %v4499
          %v4784 = vunpack.c.h.b16 %v4499
          %v4785 = vunpack.c.l.b16 %v4500
          %v4786 = vunpack.c.h.b16 %v4500
          %v4787 = vunpack.c.l.b16 %v4501
          %v4788 = vunpack.c.h.b16 %v4501
          %v4789 = vunpack.c.l.b16 %v4502
          %v4790 = vunpack.c.h.b16 %v4502
          %v4791 = vunpack.c.l.b16 %v4503
          %v4792 = vunpack.c.h.b16 %v4503
          %v4793 = vunpack.c.l.b16 %v4504
          %v4794 = vunpack.c.h.b16 %v4504
          %v4795 = vunpack.c.l.b16 %v4505
          %v4796 = vunpack.c.h.b16 %v4505
          %v4797 = vunpack.c.l.b16 %v4506
          %v4798 = vunpack.c.h.b16 %v4506
          %v4799 = vunpack.c.l.b16 %v4507
          %v4800 = vunpack.c.h.b16 %v4507
          %v4801 = vunpack.c.l.b16 %v4508
          %v4802 = vunpack.c.h.b16 %v4508
          %v4803 = vunpack.c.l.b16 %v4509
          %v4804 = vunpack.c.h.b16 %v4509
          %v4805 = vunpack.c.l.b16 %v4510
          %v4806 = vunpack.c.h.b16 %v4510
          %v4807 = vunpack.c.l.b16 %v4511
          %v4808 = vunpack.c.h.b16 %v4511
          %v4809 = vunpack.c.l.b16 %v4512
          %v4810 = vunpack.c.h.b16 %v4512
          %v4811 = vunpack.c.l.b16 %v4513
          %v4812 = vunpack.c.h.b16 %v4513
          %v4813 = vunpack.c.l.b16 %v4514
          %v4814 = vunpack.c.h.b16 %v4514
          %v4815 = vunpack.c.l.b16 %v4515
          %v4816 = vunpack.c.h.b16 %v4515
          %v4817 = vunpack.c.l.b16 %v4516
          %v4818 = vunpack.c.h.b16 %v4516
          %v4819 = vunpack.c.l.b16 %v4517
          %v4820 = vunpack.c.h.b16 %v4517
          %v4821 = vunpack.c.l.b16 %v4518
          %v4822 = vunpack.c.h.b16 %v4518
          %v4823 = vunpack.c.l.b16 %v4519
          %v4824 = vunpack.c.h.b16 %v4519
          %v4825 = vunpack.c.l.b16 %v4520
          %v4826 = vunpack.c.h.b16 %v4520
          %v4827 = vunpack.c.l.b16 %v4521
          %v4828 = vunpack.c.h.b16 %v4521
          %v4829 = vunpack.c.l.b16 %v4522
          %v4830 = vunpack.c.h.b16 %v4522
          %v4831 = vunpack.c.l.b16 %v4523
          %v4832 = vunpack.c.h.b16 %v4523
          %v4833 = vunpack.c.l.b16 %v4524
          %v4834 = vunpack.c.h.b16 %v4524
          %v4835 = vunpack.c.l.b16 %v4525
          %v4836 = vunpack.c.h.b16 %v4525
          %v4837 = vunpack.c.l.b16 %v4526
          %v4838 = vunpack.c.h.b16 %v4526
          %v4839 = vunpack.c.l.b16 %v4527
          %v4840 = vunpack.c.h.b16 %v4527
          %v4841 = vunpack.c.l.b16 %v4528
          %v4842 = vunpack.c.h.b16 %v4528
          %v4843 = vunpack.c.l.b16 %v4529
          %v4844 = vunpack.c.h.b16 %v4529
          %v4845 = vunpack.c.l.b16 %v4530
          %v4846 = vunpack.c.h.b16 %v4530
          %v4847 = vunpack.c.l.b16 %v4531
          %v4848 = vunpack.c.h.b16 %v4531
          %v4849 = vunpack.c.l.b16 %v4532
          %v4850 = vunpack.c.h.b16 %v4532
          %v4851 = vunpack.c.l.b16 %v4533
          %v4852 = vunpack.c.h.b16 %v4533
          %v4853 = vunpack.c.l.b16 %v4534
          %v4854 = vunpack.c.h.b16 %v4534
          %v4855 = vunpack.c.l.b16 %v4535
          %v4856 = vunpack.c.h.b16 %v4535
          %v4857 = vunpack.c.l.b16 %v4536
          %v4858 = vunpack.c.h.b16 %v4536
          %v4859 = vunpack.c.l.b16 %v4537
          %v4860 = vunpack.c.h.b16 %v4537
          %v4861 = vunpack.c.l.b16 %v4538
          %v4862 = vunpack.c.h.b16 %v4538
          %v4863 = vunpack.c.l.b16 %v4539
          %v4864 = vunpack.c.h.b16 %v4539
          %v4865 = vunpack.c.l.b16 %v4540
          %v4866 = vunpack.c.h.b16 %v4540
          %v4867 = vunpack.c.l.b16 %v4541
          %v4868 = vunpack.c.h.b16 %v4541
          %v4869 = vunpack.c.l.b16 %v4542
          %v4870 = vunpack.c.h.b16 %v4542
          %v4871 = vunpack.c.l.b16 %v4543
          %v4872 = vunpack.c.h.b16 %v4543
          %v4873 = vunpack.c.l.b16 %v4544
          %v4874 = vunpack.c.h.b16 %v4544
          %v4875 = vunpack.c.l.b16 %v4545
          %v4876 = vunpack.c.h.b16 %v4545
          %v4877 = vunpack.c.l.b16 %v4546
          %v4878 = vunpack.c.h.b16 %v4546
          %v4879 = vunpack.c.l.b16 %v4547
          %v4880 = vunpack.c.h.b16 %v4547
          %v4881 = vunpack.c.l.b16 %v4548
          %v4882 = vunpack.c.h.b16 %v4548
          %v4883 = vunpack.c.l.b16 %v4549
          %v4884 = vunpack.c.h.b16 %v4549
          %v4885 = vunpack.c.l.b16 %v4550
          %v4886 = vunpack.c.h.b16 %v4550
          %v4887 = vunpack.c.l.b16 %v4551
          %v4888 = vunpack.c.h.b16 %v4551
          %v4889 = vunpack.c.l.b16 %v4552
          %v4890 = vunpack.c.h.b16 %v4552
          %v4891 = vunpack.c.l.b16 %v4553
          %v4892 = vunpack.c.h.b16 %v4553
          %v4893 = vunpack.c.l.b16 %v4554
          %v4894 = vunpack.c.h.b16 %v4554
          %v4895 = vunpack.c.l.b16 %v4555
          %v4896 = vunpack.c.h.b16 %v4555
          %v4897 = vunpack.c.l.b16 %v4556
          %v4898 = vunpack.c.h.b16 %v4556
          %v4899 = vunpack.c.l.b16 %v4557
          %v4900 = vunpack.c.h.b16 %v4557
          %v4901 = vunpack.c.l.b16 %v4558
          %v4902 = vunpack.c.h.b16 %v4558
          %v4903 = vunpack.c.l.b16 %v4559
          %v4904 = vunpack.c.h.b16 %v4559
          %v4905 = vunpack.c.l.b16 %v4560
          %v4906 = vunpack.c.h.b16 %v4560
          %v4907 = vunpack.c.l.b16 %v4561
          %v4908 = vunpack.c.h.b16 %v4561
          %v4909 = vunpack.c.l.b16 %v4562
          %v4910 = vunpack.c.h.b16 %v4562
          %v4911 = vunpack.c.l.b16 %v4563
          %v4912 = vunpack.c.h.b16 %v4563
          %v4913 = vunpack.c.l.b16 %v4564
          %v4914 = vunpack.c.h.b16 %v4564
          %v4915 = vunpack.c.l.b16 %v4565
          %v4916 = vunpack.c.h.b16 %v4565
          %v4917 = vunpack.c.l.b16 %v4566
          %v4918 = vunpack.c.h.b16 %v4566
          %v4919 = vunpack.c.l.b16 %v4567
          %v4920 = vunpack.c.h.b16 %v4567
          %v4921 = vunpack.c.l.b16 %v4568
          %v4922 = vunpack.c.h.b16 %v4568
          %v4923 = vunpack.c.l.b16 %v4569
          %v4924 = vunpack.c.h.b16 %v4569
          %v4925 = vunpack.c.l.b16 %v4570
          %v4926 = vunpack.c.h.b16 %v4570
          %v4927 = vunpack.c.l.b16 %v4571
          %v4928 = vunpack.c.h.b16 %v4571
          %v4929 = vunpack.c.l.b16 %v4572
          %v4930 = vunpack.c.h.b16 %v4572
          %v4931 = vunpack.c.l.b16 %v4573
          %v4932 = vunpack.c.h.b16 %v4573
          %v4933 = vunpack.c.l.b16 %v4574
          %v4934 = vunpack.c.h.b16 %v4574
          %v4935 = vunpack.c.l.b16 %v4575
          %v4936 = vunpack.c.h.b16 %v4575
          %v4937 = vunpack.c.l.b16 %v4576
          %v4938 = vunpack.c.h.b16 %v4576
          %v4939 = vunpack.c.l.b16 %v4577
          %v4940 = vunpack.c.h.b16 %v4577
          %v4941 = vunpack.c.l.b16 %v4578
          %v4942 = vunpack.c.h.b16 %v4578
          %v4943 = vunpack.c.l.b16 %v4579
          %v4944 = vunpack.c.h.b16 %v4579
          %v4945 = vunpack.c.l.b16 %v4580
          %v4946 = vunpack.c.h.b16 %v4580
          %v4947 = vunpack.c.l.b16 %v4581
          %v4948 = vunpack.c.h.b16 %v4581
          %v4949 = vunpack.c.l.b16 %v4582
          %v4950 = vunpack.c.h.b16 %v4582
          %v4951 = vunpack.c.l.b16 %v4583
          %v4952 = vunpack.c.h.b16 %v4583
          %v4953 = vunpack.c.l.b16 %v4584
          %v4954 = vunpack.c.h.b16 %v4584
          %v4955 = vunpack.c.l.b16 %v4585
          %v4956 = vunpack.c.h.b16 %v4585
          %v4957 = vunpack.c.l.b16 %v4586
          %v4958 = vunpack.c.h.b16 %v4586
          %v4959 = vunpack.c.l.b16 %v4587
          %v4960 = vunpack.c.h.b16 %v4587
          %v4961 = vunpack.c.l.b16 %v4588
          %v4962 = vunpack.c.h.b16 %v4588
          %v4963 = vunpack.c.l.b16 %v4589
          %v4964 = vunpack.c.h.b16 %v4589
          %v4965 = vunpack.c.l.b16 %v4590
          %v4966 = vunpack.c.h.b16 %v4590
          %v4967 = vunpack.c.l.b16 %v4591
          %v4968 = vunpack.c.h.b16 %v4591
          %v4969 = vunpack.c.l.b16 %v4592
          %v4970 = vunpack.c.h.b16 %v4592
          %v4971 = vunpack.c.l.b16 %v4593
          %v4972 = vunpack.c.h.b16 %v4593
          %v4973 = vunpack.c.l.b16 %v4594
          %v4974 = vunpack.c.h.b16 %v4594
          %v4975 = vunpack.c.l.b16 %v4595
          %v4976 = vunpack.c.h.b16 %v4595
          %v4977 = vunpack.c.l.b16 %v4596
          %v4978 = vunpack.c.h.b16 %v4596
          %v4979 = vunpack.c.l.b16 %v4597
          %v4980 = vunpack.c.h.b16 %v4597
          %v4981 = vunpack.c.l.b16 %v4598
          %v4982 = vunpack.c.h.b16 %v4598
          %v4983 = vpack.c.b16 %v4731, %v4727
          %v4984 = vpack.c.b16 %v4732, %v4728
          %v4985 = vpack.c.b16 %v4733, %v4729
          %v4986 = vpack.c.b16 %v4734, %v4730
          %v4987 = vpack.c.b16 %v4739, %v4735
          %v4988 = vpack.c.b16 %v4740, %v4736
          %v4989 = vpack.c.b16 %v4741, %v4737
          %v4990 = vpack.c.b16 %v4742, %v4738
          %v4991 = vpack.c.b16 %v4747, %v4743
          %v4992 = vpack.c.b16 %v4748, %v4744
          %v4993 = vpack.c.b16 %v4749, %v4745
          %v4994 = vpack.c.b16 %v4750, %v4746
          %v4995 = vpack.c.b16 %v4755, %v4751
          %v4996 = vpack.c.b16 %v4756, %v4752
          %v4997 = vpack.c.b16 %v4757, %v4753
          %v4998 = vpack.c.b16 %v4758, %v4754
          %v4999 = vpack.c.b16 %v4763, %v4759
          %v5000 = vpack.c.b16 %v4764, %v4760
          %v5001 = vpack.c.b16 %v4765, %v4761
          %v5002 = vpack.c.b16 %v4766, %v4762
          %v5003 = vpack.c.b16 %v4771, %v4767
          %v5004 = vpack.c.b16 %v4772, %v4768
          %v5005 = vpack.c.b16 %v4773, %v4769
          %v5006 = vpack.c.b16 %v4774, %v4770
          %v5007 = vpack.c.b16 %v4779, %v4775
          %v5008 = vpack.c.b16 %v4780, %v4776
          %v5009 = vpack.c.b16 %v4781, %v4777
          %v5010 = vpack.c.b16 %v4782, %v4778
          %v5011 = vpack.c.b16 %v4787, %v4783
          %v5012 = vpack.c.b16 %v4788, %v4784
          %v5013 = vpack.c.b16 %v4789, %v4785
          %v5014 = vpack.c.b16 %v4790, %v4786
          %v5015 = vpack.c.b16 %v4795, %v4791
          %v5016 = vpack.c.b16 %v4796, %v4792
          %v5017 = vpack.c.b16 %v4797, %v4793
          %v5018 = vpack.c.b16 %v4798, %v4794
          %v5019 = vpack.c.b16 %v4803, %v4799
          %v5020 = vpack.c.b16 %v4804, %v4800
          %v5021 = vpack.c.b16 %v4805, %v4801
          %v5022 = vpack.c.b16 %v4806, %v4802
          %v5023 = vpack.c.b16 %v4811, %v4807
          %v5024 = vpack.c.b16 %v4812, %v4808
          %v5025 = vpack.c.b16 %v4813, %v4809
          %v5026 = vpack.c.b16 %v4814, %v4810
          %v5027 = vpack.c.b16 %v4819, %v4815
          %v5028 = vpack.c.b16 %v4820, %v4816
          %v5029 = vpack.c.b16 %v4821, %v4817
          %v5030 = vpack.c.b16 %v4822, %v4818
          %v5031 = vpack.c.b16 %v4827, %v4823
          %v5032 = vpack.c.b16 %v4828, %v4824
          %v5033 = vpack.c.b16 %v4829, %v4825
          %v5034 = vpack.c.b16 %v4830, %v4826
          %v5035 = vpack.c.b16 %v4835, %v4831
          %v5036 = vpack.c.b16 %v4836, %v4832
          %v5037 = vpack.c.b16 %v4837, %v4833
          %v5038 = vpack.c.b16 %v4838, %v4834
          %v5039 = vpack.c.b16 %v4843, %v4839
          %v5040 = vpack.c.b16 %v4844, %v4840
          %v5041 = vpack.c.b16 %v4845, %v4841
          %v5042 = vpack.c.b16 %v4846, %v4842
          %v5043 = vpack.c.b16 %v4851, %v4847
          %v5044 = vpack.c.b16 %v4852, %v4848
          %v5045 = vpack.c.b16 %v4853, %v4849
          %v5046 = vpack.c.b16 %v4854, %v4850
          %v5047 = vpack.c.b16 %v4859, %v4855
          %v5048 = vpack.c.b16 %v4860, %v4856
          %v5049 = vpack.c.b16 %v4861, %v4857
          %v5050 = vpack.c.b16 %v4862, %v4858
          %v5051 = vpack.c.b16 %v4867, %v4863
          %v5052 = vpack.c.b16 %v4868, %v4864
          %v5053 = vpack.c.b16 %v4869, %v4865
          %v5054 = vpack.c.b16 %v4870, %v4866
          %v5055 = vpack.c.b16 %v4875, %v4871
          %v5056 = vpack.c.b16 %v4876, %v4872
          %v5057 = vpack.c.b16 %v4877, %v4873
          %v5058 = vpack.c.b16 %v4878, %v4874
          %v5059 = vpack.c.b16 %v4883, %v4879
          %v5060 = vpack.c.b16 %v4884, %v4880
          %v5061 = vpack.c.b16 %v4885, %v4881
          %v5062 = vpack.c.b16 %v4886, %v4882
          %v5063 = vpack.c.b16 %v4891, %v4887
          %v5064 = vpack.c.b16 %v4892, %v4888
          %v5065 = vpack.c.b16 %v4893, %v4889
          %v5066 = vpack.c.b16 %v4894, %v4890
          %v5067 = vpack.c.b16 %v4899, %v4895
          %v5068 = vpack.c.b16 %v4900, %v4896
          %v5069 = vpack.c.b16 %v4901, %v4897
          %v5070 = vpack.c.b16 %v4902, %v4898
          %v5071 = vpack.c.b16 %v4907, %v4903
          %v5072 = vpack.c.b16 %v4908, %v4904
          %v5073 = vpack.c.b16 %v4909, %v4905
          %v5074 = vpack.c.b16 %v4910, %v4906
          %v5075 = vpack.c.b16 %v4915, %v4911
          %v5076 = vpack.c.b16 %v4916, %v4912
          %v5077 = vpack.c.b16 %v4917, %v4913
          %v5078 = vpack.c.b16 %v4918, %v4914
          %v5079 = vpack.c.b16 %v4923, %v4919
          %v5080 = vpack.c.b16 %v4924, %v4920
          %v5081 = vpack.c.b16 %v4925, %v4921
          %v5082 = vpack.c.b16 %v4926, %v4922
          %v5083 = vpack.c.b16 %v4931, %v4927
          %v5084 = vpack.c.b16 %v4932, %v4928
          %v5085 = vpack.c.b16 %v4933, %v4929
          %v5086 = vpack.c.b16 %v4934, %v4930
          %v5087 = vpack.c.b16 %v4939, %v4935
          %v5088 = vpack.c.b16 %v4940, %v4936
          %v5089 = vpack.c.b16 %v4941, %v4937
          %v5090 = vpack.c.b16 %v4942, %v4938
          %v5091 = vpack.c.b16 %v4947, %v4943
          %v5092 = vpack.c.b16 %v4948, %v4944
          %v5093 = vpack.c.b16 %v4949, %v4945
          %v5094 = vpack.c.b16 %v4950, %v4946
          %v5095 = vpack.c.b16 %v4955, %v4951
          %v5096 = vpack.c.b16 %v4956, %v4952
          %v5097 = vpack.c.b16 %v4957, %v4953
          %v5098 = vpack.c.b16 %v4958, %v4954
          %v5099 = vpack.c.b16 %v4963, %v4959
          %v5100 = vpack.c.b16 %v4964, %v4960
          %v5101 = vpack.c.b16 %v4965, %v4961
          %v5102 = vpack.c.b16 %v4966, %v4962
          %v5103 = vpack.c.b16 %v4971, %v4967
          %v5104 = vpack.c.b16 %v4972, %v4968
          %v5105 = vpack.c.b16 %v4973, %v4969
          %v5106 = vpack.c.b16 %v4974, %v4970
          %v5107 = vpack.c.b16 %v4979, %v4975
          %v5108 = vpack.c.b16 %v4980, %v4976
          %v5109 = vpack.c.b16 %v4981, %v4977
          %v5110 = vpack.c.b16 %v4982, %v4978
          %5239 = vmatprep.subr.bf16.mxu0 %v4984
          %5240 = vmatpush1.bf16.msra.mxu0 %v4983
          %5241 = vmatprep.subr.bf16.mxu0 %v4988
          %5242 = vmatpush1.bf16.msra.mxu0 %v4987
          %5243 = vmatprep.subr.bf16.mxu0 %v4992
          %5244 = vmatpush1.bf16.msra.mxu0 %v4991
          %5245 = vmatprep.subr.bf16.mxu0 %v4996
          %5246 = vmatpush1.bf16.msra.mxu0 %v4995
          %5247 = vmatprep.subr.bf16.mxu0 %v5000
          %5248 = vmatpush1.bf16.msra.mxu0 %v4999
          %5249 = vmatprep.subr.bf16.mxu0 %v5004
          %5250 = vmatpush1.bf16.msra.mxu0 %v5003
          %5251 = vmatprep.subr.bf16.mxu0 %v5008
          %5252 = vmatpush1.bf16.msra.mxu0 %v5007
          %5253 = vmatprep.subr.bf16.mxu0 %v5012
          %5254 = vmatpush1.bf16.msra.mxu0 %v5011
          %5255 = vmatprep.subr.bf16.mxu0 %v5016
          %5256 = vmatpush1.bf16.msra.mxu0 %v5015
          %5257 = vmatprep.subr.bf16.mxu0 %v5020
          %5258 = vmatpush1.bf16.msra.mxu0 %v5019
          %5259 = vmatprep.subr.bf16.mxu0 %v5024
          %5260 = vmatpush1.bf16.msra.mxu0 %v5023
          %5261 = vmatprep.subr.bf16.mxu0 %v5028
          %5262 = vmatpush1.bf16.msra.mxu0 %v5027
          %5263 = vmatprep.subr.bf16.mxu0 %v5032
          %5264 = vmatpush1.bf16.msra.mxu0 %v5031
          %5265 = vmatprep.subr.bf16.mxu0 %v5036
          %5266 = vmatpush1.bf16.msra.mxu0 %v5035
          %5267 = vmatprep.subr.bf16.mxu0 %v5040
          %5268 = vmatpush1.bf16.msra.mxu0 %v5039
          %5269 = vmatprep.subr.bf16.mxu0 %v5044
          %5270 = vmatpush1.bf16.msra.mxu0 %v5043
          %5271 = vmatprep.mubr.bf16.mxu0 %v4468
          %5272 = vmatmul.mubr.bf16.gmra.mrb[0].mxu0 %v4467
          %v5273 = vpop.f32.mrb[0].mxu0
          %v5274 = vadd.f32 0.0, %v5273
          %v5275 = vpop.f32.mrb[0].mxu0
          %v5276 = vadd.f32 0.0, %v5275
          %v5277 = vpop.f32.mrb[0].mxu0
          %v5278 = vpop.f32.mrb[0].mxu0
          %5279 = vdwg.mxu0
          %5280 = vmatprep.subr.bf16.mxu0 %v5048
          %5281 = vmatpush1.bf16.msra.mxu0 %v5047
          %5282 = vmatprep.subr.bf16.mxu0 %v5052
          %5283 = vmatpush1.bf16.msra.mxu0 %v5051
          %5284 = vmatprep.subr.bf16.mxu0 %v5056
          %5285 = vmatpush1.bf16.msra.mxu0 %v5055
          %5286 = vmatprep.subr.bf16.mxu0 %v5060
          %5287 = vmatpush1.bf16.msra.mxu0 %v5059
          %5288 = vmatprep.subr.bf16.mxu0 %v5064
          %5289 = vmatpush1.bf16.msra.mxu0 %v5063
          %5290 = vmatprep.subr.bf16.mxu0 %v5068
          %5291 = vmatpush1.bf16.msra.mxu0 %v5067
          %5292 = vmatprep.subr.bf16.mxu0 %v5072
          %5293 = vmatpush1.bf16.msra.mxu0 %v5071
          %5294 = vmatprep.subr.bf16.mxu0 %v5076
          %5295 = vmatpush1.bf16.msra.mxu0 %v5075
          %5296 = vmatprep.subr.bf16.mxu0 %v5080
          %5297 = vmatpush1.bf16.msra.mxu0 %v5079
          %5298 = vmatprep.subr.bf16.mxu0 %v5084
          %5299 = vmatpush1.bf16.msra.mxu0 %v5083
          %5300 = vmatprep.subr.bf16.mxu0 %v5088
          %5301 = vmatpush1.bf16.msra.mxu0 %v5087
          %5302 = vmatprep.subr.bf16.mxu0 %v5092
          %5303 = vmatpush1.bf16.msra.mxu0 %v5091
          %5304 = vmatprep.subr.bf16.mxu0 %v5096
          %5305 = vmatpush1.bf16.msra.mxu0 %v5095
          %5306 = vmatprep.subr.bf16.mxu0 %v5100
          %5307 = vmatpush1.bf16.msra.mxu0 %v5099
          %5308 = vmatprep.subr.bf16.mxu0 %v5104
          %5309 = vmatpush1.bf16.msra.mxu0 %v5103
          %5310 = vmatprep.subr.bf16.mxu0 %v5108
          %5311 = vmatpush1.bf16.msra.mxu0 %v5107
          %5312 = vmatprep.mubr.bf16.mxu0 %v4470
          %5313 = vmatmul.mubr.bf16.gmra.mrb[0].mxu0 %v4469
          %v5314 = vpop.f32.mrb[0].mxu0
          %v5315 = vadd.f32 %v5274, %v5314
          %v5316 = vpop.f32.mrb[0].mxu0
          %v5317 = vadd.f32 %v5276, %v5316
          %v5318 = vpop.f32.mrb[0].mxu0
          %v5319 = vpop.f32.mrb[0].mxu0
          %5320 = vdwg.mxu0
          %5321 = vmatprep.subr.bf16.mxu0 %v4986
          %5322 = vmatpush1.bf16.msra.mxu0 %v4985
          %5323 = vmatprep.subr.bf16.mxu0 %v4990
          %5324 = vmatpush1.bf16.msra.mxu0 %v4989
          %5325 = vmatprep.subr.bf16.mxu0 %v4994
          %5326 = vmatpush1.bf16.msra.mxu0 %v4993
          %5327 = vmatprep.subr.bf16.mxu0 %v4998
          %5328 = vmatpush1.bf16.msra.mxu0 %v4997
          %5329 = vmatprep.subr.bf16.mxu0 %v5002
          %5330 = vmatpush1.bf16.msra.mxu0 %v5001
          %5331 = vmatprep.subr.bf16.mxu0 %v5006
          %5332 = vmatpush1.bf16.msra.mxu0 %v5005
          %5333 = vmatprep.subr.bf16.mxu0 %v5010
          %5334 = vmatpush1.bf16.msra.mxu0 %v5009
          %5335 = vmatprep.subr.bf16.mxu0 %v5014
          %5336 = vmatpush1.bf16.msra.mxu0 %v5013
          %5337 = vmatprep.subr.bf16.mxu0 %v5018
          %5338 = vmatpush1.bf16.msra.mxu0 %v5017
          %5339 = vmatprep.subr.bf16.mxu0 %v5022
          %5340 = vmatpush1.bf16.msra.mxu0 %v5021
          %5341 = vmatprep.subr.bf16.mxu0 %v5026
          %5342 = vmatpush1.bf16.msra.mxu0 %v5025
          %5343 = vmatprep.subr.bf16.mxu0 %v5030
          %5344 = vmatpush1.bf16.msra.mxu0 %v5029
          %5345 = vmatprep.subr.bf16.mxu0 %v5034
          %5346 = vmatpush1.bf16.msra.mxu0 %v5033
          %5347 = vmatprep.subr.bf16.mxu0 %v5038
          %5348 = vmatpush1.bf16.msra.mxu0 %v5037
          %5349 = vmatprep.subr.bf16.mxu0 %v5042
          %5350 = vmatpush1.bf16.msra.mxu0 %v5041
          %5351 = vmatprep.subr.bf16.mxu0 %v5046
          %5352 = vmatpush1.bf16.msra.mxu0 %v5045
          %5353 = vmatprep.mubr.bf16.mxu0 %v4468
          %5354 = vmatmul.mubr.bf16.gmra.mrb[0].mxu0 %v4467
          %v5355 = vpop.f32.mrb[0].mxu0
          %v5356 = vadd.f32 0.0, %v5355
          %v5357 = vpop.f32.mrb[0].mxu0
          %v5358 = vadd.f32 0.0, %v5357
          %v5359 = vpop.f32.mrb[0].mxu0
          %v5360 = vpop.f32.mrb[0].mxu0
          %5361 = vdwg.mxu0
          %5362 = vmatprep.subr.bf16.mxu0 %v5050
          %5363 = vmatpush1.bf16.msra.mxu0 %v5049
          %5364 = vmatprep.subr.bf16.mxu0 %v5054
          %5365 = vmatpush1.bf16.msra.mxu0 %v5053
          %5366 = vmatprep.subr.bf16.mxu0 %v5058
          %5367 = vmatpush1.bf16.msra.mxu0 %v5057
          %5368 = vmatprep.subr.bf16.mxu0 %v5062
          %5369 = vmatpush1.bf16.msra.mxu0 %v5061
          %5370 = vmatprep.subr.bf16.mxu0 %v5066
          %5371 = vmatpush1.bf16.msra.mxu0 %v5065
          %5372 = vmatprep.subr.bf16.mxu0 %v5070
          %5373 = vmatpush1.bf16.msra.mxu0 %v5069
          %5374 = vmatprep.subr.bf16.mxu0 %v5074
          %5375 = vmatpush1.bf16.msra.mxu0 %v5073
          %5376 = vmatprep.subr.bf16.mxu0 %v5078
          %5377 = vmatpush1.bf16.msra.mxu0 %v5077
          %5378 = vmatprep.subr.bf16.mxu0 %v5082
          %5379 = vmatpush1.bf16.msra.mxu0 %v5081
          %5380 = vmatprep.subr.bf16.mxu0 %v5086
          %5381 = vmatpush1.bf16.msra.mxu0 %v5085
          %5382 = vmatprep.subr.bf16.mxu0 %v5090
          %5383 = vmatpush1.bf16.msra.mxu0 %v5089
          %5384 = vmatprep.subr.bf16.mxu0 %v5094
          %5385 = vmatpush1.bf16.msra.mxu0 %v5093
          %5386 = vmatprep.subr.bf16.mxu0 %v5098
          %5387 = vmatpush1.bf16.msra.mxu0 %v5097
          %5388 = vmatprep.subr.bf16.mxu0 %v5102
          %5389 = vmatpush1.bf16.msra.mxu0 %v5101
          %5390 = vmatprep.subr.bf16.mxu0 %v5106
          %5391 = vmatpush1.bf16.msra.mxu0 %v5105
          %5392 = vmatprep.subr.bf16.mxu0 %v5110
          %5393 = vmatpush1.bf16.msra.mxu0 %v5109
          %5394 = vmatprep.mubr.bf16.mxu0 %v4470
          %5395 = vmatmul.mubr.bf16.gmra.mrb[0].mxu0 %v4469
          %v5396 = vpop.f32.mrb[0].mxu0
          %v5397 = vadd.f32 %v5356, %v5396
          %v5398 = vpop.f32.mrb[0].mxu0
          %v5399 = vadd.f32 %v5358, %v5398
          %v5400 = vpop.f32.mrb[0].mxu0
          %v5401 = vpop.f32.mrb[0].mxu0
          %5402 = vdwg.mxu0
          %v5407 = vcombine.low %v5315, %v5317
          %v5408 = vcombine.low %v5397, %v5399
          %v5410 = vunpack.c.l.s4 1983009808
          %v5411 = vunpack.c.0.s8 %v5410
          %v5412 = vlaneseq
          %v5413 = vshrl.u32 %v5412, 7
          %v5414 = vsub.s32 %v5411, %v5413
          %v5415 = vrot.slane %v5407, %v5414
          %v5417 = vunpack.c.l.s4 1983009808
          %v5418 = vunpack.c.0.s8 %v5417
          %v5419 = vlaneseq
          %v5420 = vshrl.u32 %v5419, 7
          %v5421 = vsub.s32 %v5418, %v5420
          %v5422 = vrot.slane %v5408, %v5421
          %v5423 = vcombine.low %v5415, %v5422
          %v5425 = vadd.f32 %v761, %v5423
          %v5426 = vmul.f32 %v5425, %v5425
          %v5428 = vlaneseq
          %v5429 = vshrl.u32 %v5428, 7
          %v5430 = vsub.s32 0, %v5429
          %v5431 = vrot.slane %v5426, %v5430
          %v5432 = vlaneseq
          %v5433 = vshrl.u32 %v5432, 7
          %v5434 = vsub.s32 2, %v5433
          %v5435 = vrot.slane %v5426, %v5434
          %v5436 = vlaneseq
          %v5437 = vshrl.u32 %v5436, 7
          %v5438 = vsub.s32 4, %v5437
          %v5439 = vrot.slane %v5426, %v5438
          %v5440 = vlaneseq
          %v5441 = vshrl.u32 %v5440, 7
          %v5442 = vsub.s32 6, %v5441
          %v5443 = vrot.slane %v5426, %v5442
          %v5448 = vsel %vm784, %v5431, 0.0
          %v5449 = vsel %vm784, %v5435, 0.0
          %v5450 = vadd.f32 %v5448, %v5449
          %v5451 = vsel %vm784, %v5439, 0.0
          %v5452 = vadd.f32 %v5450, %v5451
          %v5453 = vsel %vm784, %v5443, 0.0
          %v5454 = vadd.f32 %v5452, %v5453
          %5455 = vadd.xlane.f32.xlu0 %v5454
          %v5456 = vpop.xlane.xlu0 %5455
          %v5457 = vmul.f32 %v5456, %v794
          %v5458 = vadd.f32 %v5457, 1e-06
          %v5459 = vrsqrt.pop %v5458
          %v5462 = vunpack.c.l.s4 269488144
          %v5463 = vunpack.c.0.s8 %v5462
          %v5464 = vlaneseq
          %v5465 = vshrl.u32 %v5464, 7
          %v5466 = vsub.s32 %v5463, %v5465
          %v5467 = vrot.slane %v5459, %v5466
          %v5469 = vmul.f32 %v5425, %v5467
          %v5470 = vld [vmem:[#allocation20] sm:$0xf]
          %v5471 = vunpack.c.l.bf16 %v5470
          %v5472 = vmul.f32 %v5469, %v5471
          %v5474 = vlaneseq
          %v5475 = vshrl.u32 %v5474, 7
          %v5476 = vsub.s32 0, %v5475
          %v5477 = vrot.slane %v5472, %v5476
          %v5478 = vlaneseq
          %v5479 = vshrl.u32 %v5478, 7
          %v5480 = vsub.s32 2, %v5479
          %v5481 = vrot.slane %v5472, %v5480
          %v5482 = vlaneseq
          %v5483 = vshrl.u32 %v5482, 7
          %v5484 = vsub.s32 4, %v5483
          %v5485 = vrot.slane %v5472, %v5484
          %v5486 = vlaneseq
          %v5487 = vshrl.u32 %v5486, 7
          %v5488 = vsub.s32 6, %v5487
          %v5489 = vrot.slane %v5472, %v5488
          %v5494 = vpack.c.bf16 %v5477, %v5477
          %v5495 = vpack.c.bf16 %v5481, %v5481
          %v5496 = vpack.c.bf16 %v5485, %v5485
          %v5497 = vpack.c.bf16 %v5489, %v5489
          %v5502 = vcombine.low %v5494, %v5495
          %v5503 = vcombine.low %v5496, %v5497
          %v5505 = vunpack.c.l.s4 1966171168
          %v5506 = vunpack.c.0.s8 %v5505
          %v5507 = vlaneseq
          %v5508 = vshrl.u32 %v5507, 7
          %v5509 = vsub.s32 %v5506, %v5508
          %v5510 = vrot.slane %v5502, %v5509
          %v5512 = vunpack.c.l.s4 1966171168
          %v5513 = vunpack.c.0.s8 %v5512
          %v5514 = vlaneseq
          %v5515 = vshrl.u32 %v5514, 7
          %v5516 = vsub.s32 %v5513, %v5515
          %v5517 = vrot.slane %v5503, %v5516
          %v5518 = vcombine.low %v5510, %v5517
          %v5520 = vunpack.c.l.s4 1966171168
          %v5521 = vunpack.c.0.s8 %v5520
          %v5522 = vlaneseq
          %v5523 = vshrl.u32 %v5522, 7
          %v5524 = vsub.s32 %v5521, %v5523
          %v5525 = vrot.slane %v5518, %v5524
          %vm5527 = vcmask 1040384
          %vm5528 = vsmask.f32 256
          %vm5529 = vmand %vm5527, %vm5528
          %vm5530 = vcmask 1041409
          %vm5531 = vsmask.f32 1280
          %vm5532 = vmand %vm5530, %vm5531
          %vm5533 = vmor %vm5532, %vm5529
          %vm5534 = vcmask 1042434
          %vm5535 = vsmask.f32 2304
          %vm5536 = vmand %vm5534, %vm5535
          %vm5537 = vmor %vm5536, %vm5533
          %vm5538 = vcmask 1043459
          %vm5539 = vsmask.f32 3328
          %vm5540 = vmand %vm5538, %vm5539
          %vm5541 = vmor %vm5540, %vm5537
          %v5542 = vld [vmem:[#allocation2] sm:$0xf]
          %v5543 = vsel %vm5541, %v5525, %v5542
          %5544 = vst [vmem:[#allocation2] sm:$0xf] %v5543
          %v5547 = vunpack.c.l.s4 1966171168
          %v5548 = vunpack.c.0.s8 %v5547
          %v5549 = vlaneseq
          %v5550 = vshrl.u32 %v5549, 7
          %v5551 = vsub.s32 %v5548, %v5550
          %v5552 = vrot.slane %v5425, %v5551
          %v5554 = vlaneseq
          %vm5555 = vcmp.ge.s32.totalorder %v5554, 0
          %vm5556 = vcmp.lt.s32.totalorder %v5554, 512
          %vm5557 = vmand %vm5555, %vm5556
          %5558 = vst.msk [vmem:[#allocation24] sm:$0xf] %vm5557, %v5552
        $region128: #{tpu_custom_call.1} parent=71 // pred_fallthru
          _
        %v5559 = vld [vmem:[#allocation2] sm:$0xf]
        %v5560 = vld [vmem:[%s697] sm:$0xff]
        %v5561 = vld [vmem:[%s697 + $0x8] sm:$0xff]
        %v5562 = vld [vmem:[%s697 + $0x10] sm:$0xff]
        %v5563 = vld [vmem:[%s697 + $0x18] sm:$0xff]
        %v5564 = vld [vmem:[%s697 + $0x20] sm:$0xff]
        %v5565 = vld [vmem:[%s697 + $0x28] sm:$0xff]
        %v5566 = vld [vmem:[%s697 + $0x30] sm:$0xff]
        %v5567 = vld [vmem:[%s697 + $0x38] sm:$0xff]
        %v5568 = vld [vmem:[%s697 + $0x40] sm:$0xff]
        %v5569 = vld [vmem:[%s697 + $0x48] sm:$0xff]
        %v5570 = vld [vmem:[%s697 + $0x50] sm:$0xff]
        %v5571 = vld [vmem:[%s697 + $0x58] sm:$0xff]
        %v5572 = vld [vmem:[%s697 + $0x60] sm:$0xff]
        %v5573 = vld [vmem:[%s697 + $0x68] sm:$0xff]
        %v5574 = vld [vmem:[%s697 + $0x70] sm:$0xff]
        %v5575 = vld [vmem:[%s697 + $0x78] sm:$0xff]
        %v5576 = vld [vmem:[%s697 + $0x80] sm:$0xff]
        %v5577 = vld [vmem:[%s697 + $0x88] sm:$0xff]
        %v5578 = vld [vmem:[%s697 + $0x90] sm:$0xff]
        %v5579 = vld [vmem:[%s697 + $0x98] sm:$0xff]
        %v5580 = vld [vmem:[%s697 + $0xa0] sm:$0xff]
        %v5581 = vld [vmem:[%s697 + $0xa8] sm:$0xff]
        %v5582 = vld [vmem:[%s697 + $0xb0] sm:$0xff]
        %v5583 = vld [vmem:[%s697 + $0xb8] sm:$0xff]
        %v5584 = vld [vmem:[%s697 + $0xc0] sm:$0xff]
        %v5585 = vld [vmem:[%s697 + $0xc8] sm:$0xff]
        %v5586 = vld [vmem:[%s697 + $0xd0] sm:$0xff]
        %v5587 = vld [vmem:[%s697 + $0xd8] sm:$0xff]
        %v5588 = vld [vmem:[%s697 + $0xe0] sm:$0xff]
        %v5589 = vld [vmem:[%s697 + $0xe8] sm:$0xff]
        %v5590 = vld [vmem:[%s697 + $0xf0] sm:$0xff]
        %v5591 = vld [vmem:[%s697 + $0xf8] sm:$0xff]
        %v5592 = vld [vmem:[%s697 + $0x100] sm:$0xff]
        %v5593 = vld [vmem:[%s697 + $0x108] sm:$0xff]
        %v5594 = vld [vmem:[%s697 + $0x110] sm:$0xff]
        %v5595 = vld [vmem:[%s697 + $0x118] sm:$0xff]
        %v5596 = vld [vmem:[%s697 + $0x120] sm:$0xff]
        %v5597 = vld [vmem:[%s697 + $0x128] sm:$0xff]
        %v5598 = vld [vmem:[%s697 + $0x130] sm:$0xff]
        %v5599 = vld [vmem:[%s697 + $0x138] sm:$0xff]
        %v5600 = vld [vmem:[%s697 + $0x140] sm:$0xff]
        %v5601 = vld [vmem:[%s697 + $0x148] sm:$0xff]
        %v5602 = vld [vmem:[%s697 + $0x150] sm:$0xff]
        %v5603 = vld [vmem:[%s697 + $0x158] sm:$0xff]
        %v5604 = vld [vmem:[%s697 + $0x160] sm:$0xff]
        %v5605 = vld [vmem:[%s697 + $0x168] sm:$0xff]
        %v5606 = vld [vmem:[%s697 + $0x170] sm:$0xff]
        %v5607 = vld [vmem:[%s697 + $0x178] sm:$0xff]
        %v5608 = vld [vmem:[%s697 + $0x180] sm:$0xff]
        %v5609 = vld [vmem:[%s697 + $0x188] sm:$0xff]
        %v5610 = vld [vmem:[%s697 + $0x190] sm:$0xff]
        %v5611 = vld [vmem:[%s697 + $0x198] sm:$0xff]
        %v5612 = vld [vmem:[%s697 + $0x1a0] sm:$0xff]
        %v5613 = vld [vmem:[%s697 + $0x1a8] sm:$0xff]
        %v5614 = vld [vmem:[%s697 + $0x1b0] sm:$0xff]
        %v5615 = vld [vmem:[%s697 + $0x1b8] sm:$0xff]
        %v5616 = vld [vmem:[%s697 + $0x1c0] sm:$0xff]
        %v5617 = vld [vmem:[%s697 + $0x1c8] sm:$0xff]
        %v5618 = vld [vmem:[%s697 + $0x1d0] sm:$0xff]
        %v5619 = vld [vmem:[%s697 + $0x1d8] sm:$0xff]
        %v5620 = vld [vmem:[%s697 + $0x1e0] sm:$0xff]
        %v5621 = vld [vmem:[%s697 + $0x1e8] sm:$0xff]
        %v5622 = vld [vmem:[%s697 + $0x1f0] sm:$0xff]
        %v5623 = vld [vmem:[%s697 + $0x1f8] sm:$0xff]
        %v5624 = vld [vmem:[%s697 + $0x200] sm:$0xff]
        %v5625 = vld [vmem:[%s697 + $0x208] sm:$0xff]
        %v5626 = vld [vmem:[%s697 + $0x210] sm:$0xff]
        %v5627 = vld [vmem:[%s697 + $0x218] sm:$0xff]
        %v5628 = vld [vmem:[%s697 + $0x220] sm:$0xff]
        %v5629 = vld [vmem:[%s697 + $0x228] sm:$0xff]
        %v5630 = vld [vmem:[%s697 + $0x230] sm:$0xff]
        %v5631 = vld [vmem:[%s697 + $0x238] sm:$0xff]
        %v5632 = vld [vmem:[%s697 + $0x240] sm:$0xff]
        %v5633 = vld [vmem:[%s697 + $0x248] sm:$0xff]
        %v5634 = vld [vmem:[%s697 + $0x250] sm:$0xff]
        %v5635 = vld [vmem:[%s697 + $0x258] sm:$0xff]
        %v5636 = vld [vmem:[%s697 + $0x260] sm:$0xff]
        %v5637 = vld [vmem:[%s697 + $0x268] sm:$0xff]
        %v5638 = vld [vmem:[%s697 + $0x270] sm:$0xff]
        %v5639 = vld [vmem:[%s697 + $0x278] sm:$0xff]
        %v5640 = vld [vmem:[%s697 + $0x280] sm:$0xff]
        %v5641 = vld [vmem:[%s697 + $0x288] sm:$0xff]
        %v5642 = vld [vmem:[%s697 + $0x290] sm:$0xff]
        %v5643 = vld [vmem:[%s697 + $0x298] sm:$0xff]
        %v5644 = vld [vmem:[%s697 + $0x2a0] sm:$0xff]
        %v5645 = vld [vmem:[%s697 + $0x2a8] sm:$0xff]
        %v5646 = vld [vmem:[%s697 + $0x2b0] sm:$0xff]
        %v5647 = vld [vmem:[%s697 + $0x2b8] sm:$0xff]
        %v5648 = vld [vmem:[%s697 + $0x2c0] sm:$0xff]
        %v5649 = vld [vmem:[%s697 + $0x2c8] sm:$0xff]
        %v5650 = vld [vmem:[%s697 + $0x2d0] sm:$0xff]
        %v5651 = vld [vmem:[%s697 + $0x2d8] sm:$0xff]
        %v5652 = vld [vmem:[%s697 + $0x2e0] sm:$0xff]
        %v5653 = vld [vmem:[%s697 + $0x2e8] sm:$0xff]
        %v5654 = vld [vmem:[%s697 + $0x2f0] sm:$0xff]
        %v5655 = vld [vmem:[%s697 + $0x2f8] sm:$0xff]
        %v5656 = vld [vmem:[%s697 + $0x300] sm:$0xff]
        %v5657 = vld [vmem:[%s697 + $0x308] sm:$0xff]
        %v5658 = vld [vmem:[%s697 + $0x310] sm:$0xff]
        %v5659 = vld [vmem:[%s697 + $0x318] sm:$0xff]
        %v5660 = vld [vmem:[%s697 + $0x320] sm:$0xff]
        %v5661 = vld [vmem:[%s697 + $0x328] sm:$0xff]
        %v5662 = vld [vmem:[%s697 + $0x330] sm:$0xff]
        %v5663 = vld [vmem:[%s697 + $0x338] sm:$0xff]
        %v5664 = vld [vmem:[%s697 + $0x340] sm:$0xff]
        %v5665 = vld [vmem:[%s697 + $0x348] sm:$0xff]
        %v5666 = vld [vmem:[%s697 + $0x350] sm:$0xff]
        %v5667 = vld [vmem:[%s697 + $0x358] sm:$0xff]
        %v5668 = vld [vmem:[%s697 + $0x360] sm:$0xff]
        %v5669 = vld [vmem:[%s697 + $0x368] sm:$0xff]
        %v5670 = vld [vmem:[%s697 + $0x370] sm:$0xff]
        %v5671 = vld [vmem:[%s697 + $0x378] sm:$0xff]
        %v5672 = vld [vmem:[%s697 + $0x380] sm:$0xff]
        %v5673 = vld [vmem:[%s697 + $0x388] sm:$0xff]
        %v5674 = vld [vmem:[%s697 + $0x390] sm:$0xff]
        %v5675 = vld [vmem:[%s697 + $0x398] sm:$0xff]
        %v5676 = vld [vmem:[%s697 + $0x3a0] sm:$0xff]
        %v5677 = vld [vmem:[%s697 + $0x3a8] sm:$0xff]
        %v5678 = vld [vmem:[%s697 + $0x3b0] sm:$0xff]
        %v5679 = vld [vmem:[%s697 + $0x3b8] sm:$0xff]
        %v5680 = vld [vmem:[%s697 + $0x3c0] sm:$0xff]
        %v5681 = vld [vmem:[%s697 + $0x3c8] sm:$0xff]
        %v5682 = vld [vmem:[%s697 + $0x3d0] sm:$0xff]
        %v5683 = vld [vmem:[%s697 + $0x3d8] sm:$0xff]
        %v5684 = vld [vmem:[%s697 + $0x3e0] sm:$0xff]
        %v5685 = vld [vmem:[%s697 + $0x3e8] sm:$0xff]
        %v5686 = vld [vmem:[%s697 + $0x3f0] sm:$0xff]
        %v5687 = vld [vmem:[%s697 + $0x3f8] sm:$0xff]
        %v5690 = vunpack.c.l.s4 1966171168
        %v5691 = vunpack.c.0.s8 %v5690
        %v5692 = vlaneseq
        %v5693 = vshrl.u32 %v5692, 7
        %v5694 = vsub.s32 %v5691, %v5693
        %v5695 = vrot.slane %v5559, %v5694
        %v5696 = vcombine.high %v5695, %v5695
        %v5698 = vunpack.c.l.s4 1966171168
        %v5699 = vunpack.c.0.s8 %v5698
        %v5700 = vlaneseq
        %v5701 = vshrl.u32 %v5700, 7
        %v5702 = vsub.s32 %v5699, %v5701
        %v5703 = vrot.slane %v5695, %v5702
        %v5705 = vunpack.c.l.s4 1966171168
        %v5706 = vunpack.c.0.s8 %v5705
        %v5707 = vlaneseq
        %v5708 = vshrl.u32 %v5707, 7
        %v5709 = vsub.s32 %v5706, %v5708
        %v5710 = vrot.slane %v5696, %v5709
        %v5711 = vcombine.high %v5703, %v5703
        %v5712 = vcombine.high %v5710, %v5710
        %v5845 = vunpack.c.l.b16 %v5560
        %v5846 = vunpack.c.h.b16 %v5560
        %v5847 = vunpack.c.l.b16 %v5561
        %v5848 = vunpack.c.h.b16 %v5561
        %v5849 = vunpack.c.l.b16 %v5562
        %v5850 = vunpack.c.h.b16 %v5562
        %v5851 = vunpack.c.l.b16 %v5563
        %v5852 = vunpack.c.h.b16 %v5563
        %v5853 = vunpack.c.l.b16 %v5564
        %v5854 = vunpack.c.h.b16 %v5564
        %v5855 = vunpack.c.l.b16 %v5565
        %v5856 = vunpack.c.h.b16 %v5565
        %v5857 = vunpack.c.l.b16 %v5566
        %v5858 = vunpack.c.h.b16 %v5566
        %v5859 = vunpack.c.l.b16 %v5567
        %v5860 = vunpack.c.h.b16 %v5567
        %v5861 = vunpack.c.l.b16 %v5568
        %v5862 = vunpack.c.h.b16 %v5568
        %v5863 = vunpack.c.l.b16 %v5569
        %v5864 = vunpack.c.h.b16 %v5569
        %v5865 = vunpack.c.l.b16 %v5570
        %v5866 = vunpack.c.h.b16 %v5570
        %v5867 = vunpack.c.l.b16 %v5571
        %v5868 = vunpack.c.h.b16 %v5571
        %v5869 = vunpack.c.l.b16 %v5572
        %v5870 = vunpack.c.h.b16 %v5572
        %v5871 = vunpack.c.l.b16 %v5573
        %v5872 = vunpack.c.h.b16 %v5573
        %v5873 = vunpack.c.l.b16 %v5574
        %v5874 = vunpack.c.h.b16 %v5574
        %v5875 = vunpack.c.l.b16 %v5575
        %v5876 = vunpack.c.h.b16 %v5575
        %v5877 = vunpack.c.l.b16 %v5576
        %v5878 = vunpack.c.h.b16 %v5576
        %v5879 = vunpack.c.l.b16 %v5577
        %v5880 = vunpack.c.h.b16 %v5577
        %v5881 = vunpack.c.l.b16 %v5578
        %v5882 = vunpack.c.h.b16 %v5578
        %v5883 = vunpack.c.l.b16 %v5579
        %v5884 = vunpack.c.h.b16 %v5579
        %v5885 = vunpack.c.l.b16 %v5580
        %v5886 = vunpack.c.h.b16 %v5580
        %v5887 = vunpack.c.l.b16 %v5581
        %v5888 = vunpack.c.h.b16 %v5581
        %v5889 = vunpack.c.l.b16 %v5582
        %v5890 = vunpack.c.h.b16 %v5582
        %v5891 = vunpack.c.l.b16 %v5583
        %v5892 = vunpack.c.h.b16 %v5583
        %v5893 = vunpack.c.l.b16 %v5584
        %v5894 = vunpack.c.h.b16 %v5584
        %v5895 = vunpack.c.l.b16 %v5585
        %v5896 = vunpack.c.h.b16 %v5585
        %v5897 = vunpack.c.l.b16 %v5586
        %v5898 = vunpack.c.h.b16 %v5586
        %v5899 = vunpack.c.l.b16 %v5587
        %v5900 = vunpack.c.h.b16 %v5587
        %v5901 = vunpack.c.l.b16 %v5588
        %v5902 = vunpack.c.h.b16 %v5588
        %v5903 = vunpack.c.l.b16 %v5589
        %v5904 = vunpack.c.h.b16 %v5589
        %v5905 = vunpack.c.l.b16 %v5590
        %v5906 = vunpack.c.h.b16 %v5590
        %v5907 = vunpack.c.l.b16 %v5591
        %v5908 = vunpack.c.h.b16 %v5591
        %v5909 = vunpack.c.l.b16 %v5592
        %v5910 = vunpack.c.h.b16 %v5592
        %v5911 = vunpack.c.l.b16 %v5593
        %v5912 = vunpack.c.h.b16 %v5593
        %v5913 = vunpack.c.l.b16 %v5594
        %v5914 = vunpack.c.h.b16 %v5594
        %v5915 = vunpack.c.l.b16 %v5595
        %v5916 = vunpack.c.h.b16 %v5595
        %v5917 = vunpack.c.l.b16 %v5596
        %v5918 = vunpack.c.h.b16 %v5596
        %v5919 = vunpack.c.l.b16 %v5597
        %v5920 = vunpack.c.h.b16 %v5597
        %v5921 = vunpack.c.l.b16 %v5598
        %v5922 = vunpack.c.h.b16 %v5598
        %v5923 = vunpack.c.l.b16 %v5599
        %v5924 = vunpack.c.h.b16 %v5599
        %v5925 = vunpack.c.l.b16 %v5600
        %v5926 = vunpack.c.h.b16 %v5600
        %v5927 = vunpack.c.l.b16 %v5601
        %v5928 = vunpack.c.h.b16 %v5601
        %v5929 = vunpack.c.l.b16 %v5602
        %v5930 = vunpack.c.h.b16 %v5602
        %v5931 = vunpack.c.l.b16 %v5603
        %v5932 = vunpack.c.h.b16 %v5603
        %v5933 = vunpack.c.l.b16 %v5604
        %v5934 = vunpack.c.h.b16 %v5604
        %v5935 = vunpack.c.l.b16 %v5605
        %v5936 = vunpack.c.h.b16 %v5605
        %v5937 = vunpack.c.l.b16 %v5606
        %v5938 = vunpack.c.h.b16 %v5606
        %v5939 = vunpack.c.l.b16 %v5607
        %v5940 = vunpack.c.h.b16 %v5607
        %v5941 = vunpack.c.l.b16 %v5608
        %v5942 = vunpack.c.h.b16 %v5608
        %v5943 = vunpack.c.l.b16 %v5609
        %v5944 = vunpack.c.h.b16 %v5609
        %v5945 = vunpack.c.l.b16 %v5610
        %v5946 = vunpack.c.h.b16 %v5610
        %v5947 = vunpack.c.l.b16 %v5611
        %v5948 = vunpack.c.h.b16 %v5611
        %v5949 = vunpack.c.l.b16 %v5612
        %v5950 = vunpack.c.h.b16 %v5612
        %v5951 = vunpack.c.l.b16 %v5613
        %v5952 = vunpack.c.h.b16 %v5613
        %v5953 = vunpack.c.l.b16 %v5614
        %v5954 = vunpack.c.h.b16 %v5614
        %v5955 = vunpack.c.l.b16 %v5615
        %v5956 = vunpack.c.h.b16 %v5615
        %v5957 = vunpack.c.l.b16 %v5616
        %v5958 = vunpack.c.h.b16 %v5616
        %v5959 = vunpack.c.l.b16 %v5617
        %v5960 = vunpack.c.h.b16 %v5617
        %v5961 = vunpack.c.l.b16 %v5618
        %v5962 = vunpack.c.h.b16 %v5618
        %v5963 = vunpack.c.l.b16 %v5619
        %v5964 = vunpack.c.h.b16 %v5619
        %v5965 = vunpack.c.l.b16 %v5620
        %v5966 = vunpack.c.h.b16 %v5620
        %v5967 = vunpack.c.l.b16 %v5621
        %v5968 = vunpack.c.h.b16 %v5621
        %v5969 = vunpack.c.l.b16 %v5622
        %v5970 = vunpack.c.h.b16 %v5622
        %v5971 = vunpack.c.l.b16 %v5623
        %v5972 = vunpack.c.h.b16 %v5623
        %v5973 = vunpack.c.l.b16 %v5624
        %v5974 = vunpack.c.h.b16 %v5624
        %v5975 = vunpack.c.l.b16 %v5625
        %v5976 = vunpack.c.h.b16 %v5625
        %v5977 = vunpack.c.l.b16 %v5626
        %v5978 = vunpack.c.h.b16 %v5626
        %v5979 = vunpack.c.l.b16 %v5627
        %v5980 = vunpack.c.h.b16 %v5627
        %v5981 = vunpack.c.l.b16 %v5628
        %v5982 = vunpack.c.h.b16 %v5628
        %v5983 = vunpack.c.l.b16 %v5629
        %v5984 = vunpack.c.h.b16 %v5629
        %v5985 = vunpack.c.l.b16 %v5630
        %v5986 = vunpack.c.h.b16 %v5630
        %v5987 = vunpack.c.l.b16 %v5631
        %v5988 = vunpack.c.h.b16 %v5631
        %v5989 = vunpack.c.l.b16 %v5632
        %v5990 = vunpack.c.h.b16 %v5632
        %v5991 = vunpack.c.l.b16 %v5633
        %v5992 = vunpack.c.h.b16 %v5633
        %v5993 = vunpack.c.l.b16 %v5634
        %v5994 = vunpack.c.h.b16 %v5634
        %v5995 = vunpack.c.l.b16 %v5635
        %v5996 = vunpack.c.h.b16 %v5635
        %v5997 = vunpack.c.l.b16 %v5636
        %v5998 = vunpack.c.h.b16 %v5636
        %v5999 = vunpack.c.l.b16 %v5637
        %v6000 = vunpack.c.h.b16 %v5637
        %v6001 = vunpack.c.l.b16 %v5638
        %v6002 = vunpack.c.h.b16 %v5638
        %v6003 = vunpack.c.l.b16 %v5639
        %v6004 = vunpack.c.h.b16 %v5639
        %v6005 = vunpack.c.l.b16 %v5640
        %v6006 = vunpack.c.h.b16 %v5640
        %v6007 = vunpack.c.l.b16 %v5641
        %v6008 = vunpack.c.h.b16 %v5641
        %v6009 = vunpack.c.l.b16 %v5642
        %v6010 = vunpack.c.h.b16 %v5642
        %v6011 = vunpack.c.l.b16 %v5643
        %v6012 = vunpack.c.h.b16 %v5643
        %v6013 = vunpack.c.l.b16 %v5644
        %v6014 = vunpack.c.h.b16 %v5644
        %v6015 = vunpack.c.l.b16 %v5645
        %v6016 = vunpack.c.h.b16 %v5645
        %v6017 = vunpack.c.l.b16 %v5646
        %v6018 = vunpack.c.h.b16 %v5646
        %v6019 = vunpack.c.l.b16 %v5647
        %v6020 = vunpack.c.h.b16 %v5647
        %v6021 = vunpack.c.l.b16 %v5648
        %v6022 = vunpack.c.h.b16 %v5648
        %v6023 = vunpack.c.l.b16 %v5649
        %v6024 = vunpack.c.h.b16 %v5649
        %v6025 = vunpack.c.l.b16 %v5650
        %v6026 = vunpack.c.h.b16 %v5650
        %v6027 = vunpack.c.l.b16 %v5651
        %v6028 = vunpack.c.h.b16 %v5651
        %v6029 = vunpack.c.l.b16 %v5652
        %v6030 = vunpack.c.h.b16 %v5652
        %v6031 = vunpack.c.l.b16 %v5653
        %v6032 = vunpack.c.h.b16 %v5653
        %v6033 = vunpack.c.l.b16 %v5654
        %v6034 = vunpack.c.h.b16 %v5654
        %v6035 = vunpack.c.l.b16 %v5655
        %v6036 = vunpack.c.h.b16 %v5655
        %v6037 = vunpack.c.l.b16 %v5656
        %v6038 = vunpack.c.h.b16 %v5656
        %v6039 = vunpack.c.l.b16 %v5657
        %v6040 = vunpack.c.h.b16 %v5657
        %v6041 = vunpack.c.l.b16 %v5658
        %v6042 = vunpack.c.h.b16 %v5658
        %v6043 = vunpack.c.l.b16 %v5659
        %v6044 = vunpack.c.h.b16 %v5659
        %v6045 = vunpack.c.l.b16 %v5660
        %v6046 = vunpack.c.h.b16 %v5660
        %v6047 = vunpack.c.l.b16 %v5661
        %v6048 = vunpack.c.h.b16 %v5661
        %v6049 = vunpack.c.l.b16 %v5662
        %v6050 = vunpack.c.h.b16 %v5662
        %v6051 = vunpack.c.l.b16 %v5663
        %v6052 = vunpack.c.h.b16 %v5663
        %v6053 = vunpack.c.l.b16 %v5664
        %v6054 = vunpack.c.h.b16 %v5664
        %v6055 = vunpack.c.l.b16 %v5665
        %v6056 = vunpack.c.h.b16 %v5665
        %v6057 = vunpack.c.l.b16 %v5666
        %v6058 = vunpack.c.h.b16 %v5666
        %v6059 = vunpack.c.l.b16 %v5667
        %v6060 = vunpack.c.h.b16 %v5667
        %v6061 = vunpack.c.l.b16 %v5668
        %v6062 = vunpack.c.h.b16 %v5668
        %v6063 = vunpack.c.l.b16 %v5669
        %v6064 = vunpack.c.h.b16 %v5669
        %v6065 = vunpack.c.l.b16 %v5670
        %v6066 = vunpack.c.h.b16 %v5670
        %v6067 = vunpack.c.l.b16 %v5671
        %v6068 = vunpack.c.h.b16 %v5671
        %v6069 = vunpack.c.l.b16 %v5672
        %v6070 = vunpack.c.h.b16 %v5672
        %v6071 = vunpack.c.l.b16 %v5673
        %v6072 = vunpack.c.h.b16 %v5673
        %v6073 = vunpack.c.l.b16 %v5674
        %v6074 = vunpack.c.h.b16 %v5674
        %v6075 = vunpack.c.l.b16 %v5675
        %v6076 = vunpack.c.h.b16 %v5675
        %v6077 = vunpack.c.l.b16 %v5676
        %v6078 = vunpack.c.h.b16 %v5676
        %v6079 = vunpack.c.l.b16 %v5677
        %v6080 = vunpack.c.h.b16 %v5677
        %v6081 = vunpack.c.l.b16 %v5678
        %v6082 = vunpack.c.h.b16 %v5678
        %v6083 = vunpack.c.l.b16 %v5679
        %v6084 = vunpack.c.h.b16 %v5679
        %v6085 = vunpack.c.l.b16 %v5680
        %v6086 = vunpack.c.h.b16 %v5680
        %v6087 = vunpack.c.l.b16 %v5681
        %v6088 = vunpack.c.h.b16 %v5681
        %v6089 = vunpack.c.l.b16 %v5682
        %v6090 = vunpack.c.h.b16 %v5682
        %v6091 = vunpack.c.l.b16 %v5683
        %v6092 = vunpack.c.h.b16 %v5683
        %v6093 = vunpack.c.l.b16 %v5684
        %v6094 = vunpack.c.h.b16 %v5684
        %v6095 = vunpack.c.l.b16 %v5685
        %v6096 = vunpack.c.h.b16 %v5685
        %v6097 = vunpack.c.l.b16 %v5686
        %v6098 = vunpack.c.h.b16 %v5686
        %v6099 = vunpack.c.l.b16 %v5687
        %v6100 = vunpack.c.h.b16 %v5687
        %v6101 = vpack.c.b16 %v5849, %v5845
        %v6102 = vpack.c.b16 %v5850, %v5846
        %v6103 = vpack.c.b16 %v5851, %v5847
        %v6104 = vpack.c.b16 %v5852, %v5848
        %v6105 = vpack.c.b16 %v5857, %v5853
        %v6106 = vpack.c.b16 %v5858, %v5854
        %v6107 = vpack.c.b16 %v5859, %v5855
        %v6108 = vpack.c.b16 %v5860, %v5856
        %v6109 = vpack.c.b16 %v5865, %v5861
        %v6110 = vpack.c.b16 %v5866, %v5862
        %v6111 = vpack.c.b16 %v5867, %v5863
        %v6112 = vpack.c.b16 %v5868, %v5864
        %v6113 = vpack.c.b16 %v5873, %v5869
        %v6114 = vpack.c.b16 %v5874, %v5870
        %v6115 = vpack.c.b16 %v5875, %v5871
        %v6116 = vpack.c.b16 %v5876, %v5872
        %v6117 = vpack.c.b16 %v5881, %v5877
        %v6118 = vpack.c.b16 %v5882, %v5878
        %v6119 = vpack.c.b16 %v5883, %v5879
        %v6120 = vpack.c.b16 %v5884, %v5880
        %v6121 = vpack.c.b16 %v5889, %v5885
        %v6122 = vpack.c.b16 %v5890, %v5886
        %v6123 = vpack.c.b16 %v5891, %v5887
        %v6124 = vpack.c.b16 %v5892, %v5888
        %v6125 = vpack.c.b16 %v5897, %v5893
        %v6126 = vpack.c.b16 %v5898, %v5894
        %v6127 = vpack.c.b16 %v5899, %v5895
        %v6128 = vpack.c.b16 %v5900, %v5896
        %v6129 = vpack.c.b16 %v5905, %v5901
        %v6130 = vpack.c.b16 %v5906, %v5902
        %v6131 = vpack.c.b16 %v5907, %v5903
        %v6132 = vpack.c.b16 %v5908, %v5904
        %v6133 = vpack.c.b16 %v5913, %v5909
        %v6134 = vpack.c.b16 %v5914, %v5910
        %v6135 = vpack.c.b16 %v5915, %v5911
        %v6136 = vpack.c.b16 %v5916, %v5912
        %v6137 = vpack.c.b16 %v5921, %v5917
        %v6138 = vpack.c.b16 %v5922, %v5918
        %v6139 = vpack.c.b16 %v5923, %v5919
        %v6140 = vpack.c.b16 %v5924, %v5920
        %v6141 = vpack.c.b16 %v5929, %v5925
        %v6142 = vpack.c.b16 %v5930, %v5926
        %v6143 = vpack.c.b16 %v5931, %v5927
        %v6144 = vpack.c.b16 %v5932, %v5928
        %v6145 = vpack.c.b16 %v5937, %v5933
        %v6146 = vpack.c.b16 %v5938, %v5934
        %v6147 = vpack.c.b16 %v5939, %v5935
        %v6148 = vpack.c.b16 %v5940, %v5936
        %v6149 = vpack.c.b16 %v5945, %v5941
        %v6150 = vpack.c.b16 %v5946, %v5942
        %v6151 = vpack.c.b16 %v5947, %v5943
        %v6152 = vpack.c.b16 %v5948, %v5944
        %v6153 = vpack.c.b16 %v5953, %v5949
        %v6154 = vpack.c.b16 %v5954, %v5950
        %v6155 = vpack.c.b16 %v5955, %v5951
        %v6156 = vpack.c.b16 %v5956, %v5952
        %v6157 = vpack.c.b16 %v5961, %v5957
        %v6158 = vpack.c.b16 %v5962, %v5958
        %v6159 = vpack.c.b16 %v5963, %v5959
        %v6160 = vpack.c.b16 %v5964, %v5960
        %v6161 = vpack.c.b16 %v5969, %v5965
        %v6162 = vpack.c.b16 %v5970, %v5966
        %v6163 = vpack.c.b16 %v5971, %v5967
        %v6164 = vpack.c.b16 %v5972, %v5968
        %v6165 = vpack.c.b16 %v5977, %v5973
        %v6166 = vpack.c.b16 %v5978, %v5974
        %v6167 = vpack.c.b16 %v5979, %v5975
        %v6168 = vpack.c.b16 %v5980, %v5976
        %v6169 = vpack.c.b16 %v5985, %v5981
        %v6170 = vpack.c.b16 %v5986, %v5982
        %v6171 = vpack.c.b16 %v5987, %v5983
        %v6172 = vpack.c.b16 %v5988, %v5984
        %v6173 = vpack.c.b16 %v5993, %v5989
        %v6174 = vpack.c.b16 %v5994, %v5990
        %v6175 = vpack.c.b16 %v5995, %v5991
        %v6176 = vpack.c.b16 %v5996, %v5992
        %v6177 = vpack.c.b16 %v6001, %v5997
        %v6178 = vpack.c.b16 %v6002, %v5998
        %v6179 = vpack.c.b16 %v6003, %v5999
        %v6180 = vpack.c.b16 %v6004, %v6000
        %v6181 = vpack.c.b16 %v6009, %v6005
        %v6182 = vpack.c.b16 %v6010, %v6006
        %v6183 = vpack.c.b16 %v6011, %v6007
        %v6184 = vpack.c.b16 %v6012, %v6008
        %v6185 = vpack.c.b16 %v6017, %v6013
        %v6186 = vpack.c.b16 %v6018, %v6014
        %v6187 = vpack.c.b16 %v6019, %v6015
        %v6188 = vpack.c.b16 %v6020, %v6016
        %v6189 = vpack.c.b16 %v6025, %v6021
        %v6190 = vpack.c.b16 %v6026, %v6022
        %v6191 = vpack.c.b16 %v6027, %v6023
        %v6192 = vpack.c.b16 %v6028, %v6024
        %v6193 = vpack.c.b16 %v6033, %v6029
        %v6194 = vpack.c.b16 %v6034, %v6030
        %v6195 = vpack.c.b16 %v6035, %v6031
        %v6196 = vpack.c.b16 %v6036, %v6032
        %v6197 = vpack.c.b16 %v6041, %v6037
        %v6198 = vpack.c.b16 %v6042, %v6038
        %v6199 = vpack.c.b16 %v6043, %v6039
        %v6200 = vpack.c.b16 %v6044, %v6040
        %v6201 = vpack.c.b16 %v6049, %v6045
        %v6202 = vpack.c.b16 %v6050, %v6046
        %v6203 = vpack.c.b16 %v6051, %v6047
        %v6204 = vpack.c.b16 %v6052, %v6048
        %v6205 = vpack.c.b16 %v6057, %v6053
        %v6206 = vpack.c.b16 %v6058, %v6054
        %v6207 = vpack.c.b16 %v6059, %v6055
        %v6208 = vpack.c.b16 %v6060, %v6056
        %v6209 = vpack.c.b16 %v6065, %v6061
        %v6210 = vpack.c.b16 %v6066, %v6062
        %v6211 = vpack.c.b16 %v6067, %v6063
        %v6212 = vpack.c.b16 %v6068, %v6064
        %v6213 = vpack.c.b16 %v6073, %v6069
        %v6214 = vpack.c.b16 %v6074, %v6070
        %v6215 = vpack.c.b16 %v6075, %v6071
        %v6216 = vpack.c.b16 %v6076, %v6072
        %v6217 = vpack.c.b16 %v6081, %v6077
        %v6218 = vpack.c.b16 %v6082, %v6078
        %v6219 = vpack.c.b16 %v6083, %v6079
        %v6220 = vpack.c.b16 %v6084, %v6080
        %v6221 = vpack.c.b16 %v6089, %v6085
        %v6222 = vpack.c.b16 %v6090, %v6086
        %v6223 = vpack.c.b16 %v6091, %v6087
        %v6224 = vpack.c.b16 %v6092, %v6088
        %v6225 = vpack.c.b16 %v6097, %v6093
        %v6226 = vpack.c.b16 %v6098, %v6094
        %v6227 = vpack.c.b16 %v6099, %v6095
        %v6228 = vpack.c.b16 %v6100, %v6096
        %6357 = vmatprep.subr.bf16.mxu0 %v6102
        %6358 = vmatpush1.bf16.msra.mxu0 %v6101
        %6359 = vmatprep.subr.bf16.mxu0 %v6106
        %6360 = vmatpush1.bf16.msra.mxu0 %v6105
        %6361 = vmatprep.subr.bf16.mxu0 %v6110
        %6362 = vmatpush1.bf16.msra.mxu0 %v6109
        %6363 = vmatprep.subr.bf16.mxu0 %v6114
        %6364 = vmatpush1.bf16.msra.mxu0 %v6113
        %6365 = vmatprep.subr.bf16.mxu0 %v6118
        %6366 = vmatpush1.bf16.msra.mxu0 %v6117
        %6367 = vmatprep.subr.bf16.mxu0 %v6122
        %6368 = vmatpush1.bf16.msra.mxu0 %v6121
        %6369 = vmatprep.subr.bf16.mxu0 %v6126
        %6370 = vmatpush1.bf16.msra.mxu0 %v6125
        %6371 = vmatprep.subr.bf16.mxu0 %v6130
        %6372 = vmatpush1.bf16.msra.mxu0 %v6129
        %6373 = vmatprep.subr.bf16.mxu0 %v6134
        %6374 = vmatpush1.bf16.msra.mxu0 %v6133
        %6375 = vmatprep.subr.bf16.mxu0 %v6138
        %6376 = vmatpush1.bf16.msra.mxu0 %v6137
        %6377 = vmatprep.subr.bf16.mxu0 %v6142
        %6378 = vmatpush1.bf16.msra.mxu0 %v6141
        %6379 = vmatprep.subr.bf16.mxu0 %v6146
        %6380 = vmatpush1.bf16.msra.mxu0 %v6145
        %6381 = vmatprep.subr.bf16.mxu0 %v6150
        %6382 = vmatpush1.bf16.msra.mxu0 %v6149
        %6383 = vmatprep.subr.bf16.mxu0 %v6154
        %6384 = vmatpush1.bf16.msra.mxu0 %v6153
        %6385 = vmatprep.subr.bf16.mxu0 %v6158
        %6386 = vmatpush1.bf16.msra.mxu0 %v6157
        %6387 = vmatprep.subr.bf16.mxu0 %v6162
        %6388 = vmatpush1.bf16.msra.mxu0 %v6161
        %6389 = vmatprep.mubr.bf16.mxu0 %v5710
        %6390 = vmatmul.mubr.bf16.gmra.mrb[0].mxu0 %v5703
        %v6391 = vpop.f32.mrb[0].mxu0
        %v6392 = vadd.f32 0.0, %v6391
        %v6393 = vpop.f32.mrb[0].mxu0
        %v6394 = vadd.f32 0.0, %v6393
        %v6395 = vpop.f32.mrb[0].mxu0
        %v6396 = vpop.f32.mrb[0].mxu0
        %6397 = vdwg.mxu0
        %6398 = vmatprep.subr.bf16.mxu0 %v6166
        %6399 = vmatpush1.bf16.msra.mxu0 %v6165
        %6400 = vmatprep.subr.bf16.mxu0 %v6170
        %6401 = vmatpush1.bf16.msra.mxu0 %v6169
        %6402 = vmatprep.subr.bf16.mxu0 %v6174
        %6403 = vmatpush1.bf16.msra.mxu0 %v6173
        %6404 = vmatprep.subr.bf16.mxu0 %v6178
        %6405 = vmatpush1.bf16.msra.mxu0 %v6177
        %6406 = vmatprep.subr.bf16.mxu0 %v6182
        %6407 = vmatpush1.bf16.msra.mxu0 %v6181
        %6408 = vmatprep.subr.bf16.mxu0 %v6186
        %6409 = vmatpush1.bf16.msra.mxu0 %v6185
        %6410 = vmatprep.subr.bf16.mxu0 %v6190
        %6411 = vmatpush1.bf16.msra.mxu0 %v6189
        %6412 = vmatprep.subr.bf16.mxu0 %v6194
        %6413 = vmatpush1.bf16.msra.mxu0 %v6193
        %6414 = vmatprep.subr.bf16.mxu0 %v6198
        %6415 = vmatpush1.bf16.msra.mxu0 %v6197
        %6416 = vmatprep.subr.bf16.mxu0 %v6202
        %6417 = vmatpush1.bf16.msra.mxu0 %v6201
        %6418 = vmatprep.subr.bf16.mxu0 %v6206
        %6419 = vmatpush1.bf16.msra.mxu0 %v6205
        %6420 = vmatprep.subr.bf16.mxu0 %v6210
        %6421 = vmatpush1.bf16.msra.mxu0 %v6209
        %6422 = vmatprep.subr.bf16.mxu0 %v6214
        %6423 = vmatpush1.bf16.msra.mxu0 %v6213
        %6424 = vmatprep.subr.bf16.mxu0 %v6218
        %6425 = vmatpush1.bf16.msra.mxu0 %v6217
        %6426 = vmatprep.subr.bf16.mxu0 %v6222
        %6427 = vmatpush1.bf16.msra.mxu0 %v6221
        %6428 = vmatprep.subr.bf16.mxu0 %v6226
        %6429 = vmatpush1.bf16.msra.mxu0 %v6225
        %6430 = vmatprep.mubr.bf16.mxu0 %v5712
        %6431 = vmatmul.mubr.bf16.gmra.mrb[0].mxu0 %v5711
        %v6432 = vpop.f32.mrb[0].mxu0
        %v6433 = vadd.f32 %v6392, %v6432
        %v6434 = vpop.f32.mrb[0].mxu0
        %v6435 = vadd.f32 %v6394, %v6434
        %v6436 = vpop.f32.mrb[0].mxu0
        %v6437 = vpop.f32.mrb[0].mxu0
        %6438 = vdwg.mxu0
        %6439 = vmatprep.subr.bf16.mxu0 %v6104
        %6440 = vmatpush1.bf16.msra.mxu0 %v6103
        %6441 = vmatprep.subr.bf16.mxu0 %v6108
        %6442 = vmatpush1.bf16.msra.mxu0 %v6107
        %6443 = vmatprep.subr.bf16.mxu0 %v6112
        %6444 = vmatpush1.bf16.msra.mxu0 %v6111
        %6445 = vmatprep.subr.bf16.mxu0 %v6116
        %6446 = vmatpush1.bf16.msra.mxu0 %v6115
        %6447 = vmatprep.subr.bf16.mxu0 %v6120
        %6448 = vmatpush1.bf16.msra.mxu0 %v6119
        %6449 = vmatprep.subr.bf16.mxu0 %v6124
        %6450 = vmatpush1.bf16.msra.mxu0 %v6123
        %6451 = vmatprep.subr.bf16.mxu0 %v6128
        %6452 = vmatpush1.bf16.msra.mxu0 %v6127
        %6453 = vmatprep.subr.bf16.mxu0 %v6132
        %6454 = vmatpush1.bf16.msra.mxu0 %v6131
        %6455 = vmatprep.subr.bf16.mxu0 %v6136
        %6456 = vmatpush1.bf16.msra.mxu0 %v6135
        %6457 = vmatprep.subr.bf16.mxu0 %v6140
        %6458 = vmatpush1.bf16.msra.mxu0 %v6139
        %6459 = vmatprep.subr.bf16.mxu0 %v6144
        %6460 = vmatpush1.bf16.msra.mxu0 %v6143
        %6461 = vmatprep.subr.bf16.mxu0 %v6148
        %6462 = vmatpush1.bf16.msra.mxu0 %v6147
        %6463 = vmatprep.subr.bf16.mxu0 %v6152
        %6464 = vmatpush1.bf16.msra.mxu0 %v6151
        %6465 = vmatprep.subr.bf16.mxu0 %v6156
        %6466 = vmatpush1.bf16.msra.mxu0 %v6155
        %6467 = vmatprep.subr.bf16.mxu0 %v6160
        %6468 = vmatpush1.bf16.msra.mxu0 %v6159
        %6469 = vmatprep.subr.bf16.mxu0 %v6164
        %6470 = vmatpush1.bf16.msra.mxu0 %v6163
        %6471 = vmatprep.mubr.bf16.mxu0 %v5710
        %6472 = vmatmul.mubr.bf16.gmra.mrb[0].mxu0 %v5703
        %v6473 = vpop.f32.mrb[0].mxu0
        %v6474 = vadd.f32 0.0, %v6473
        %v6475 = vpop.f32.mrb[0].mxu0
        %v6476 = vadd.f32 0.0, %v6475
        %v6477 = vpop.f32.mrb[0].mxu0
        %v6478 = vpop.f32.mrb[0].mxu0
        %6479 = vdwg.mxu0
        %6480 = vmatprep.subr.bf16.mxu0 %v6168
        %6481 = vmatpush1.bf16.msra.mxu0 %v6167
        %6482 = vmatprep.subr.bf16.mxu0 %v6172
        %6483 = vmatpush1.bf16.msra.mxu0 %v6171
        %6484 = vmatprep.subr.bf16.mxu0 %v6176
        %6485 = vmatpush1.bf16.msra.mxu0 %v6175
        %6486 = vmatprep.subr.bf16.mxu0 %v6180
        %6487 = vmatpush1.bf16.msra.mxu0 %v6179
        %6488 = vmatprep.subr.bf16.mxu0 %v6184
        %6489 = vmatpush1.bf16.msra.mxu0 %v6183
        %6490 = vmatprep.subr.bf16.mxu0 %v6188
        %6491 = vmatpush1.bf16.msra.mxu0 %v6187
        %6492 = vmatprep.subr.bf16.mxu0 %v6192
        %6493 = vmatpush1.bf16.msra.mxu0 %v6191
        %6494 = vmatprep.subr.bf16.mxu0 %v6196
        %6495 = vmatpush1.bf16.msra.mxu0 %v6195
        %6496 = vmatprep.subr.bf16.mxu0 %v6200
        %6497 = vmatpush1.bf16.msra.mxu0 %v6199
        %6498 = vmatprep.subr.bf16.mxu0 %v6204
        %6499 = vmatpush1.bf16.msra.mxu0 %v6203
        %6500 = vmatprep.subr.bf16.mxu0 %v6208
        %6501 = vmatpush1.bf16.msra.mxu0 %v6207
        %6502 = vmatprep.subr.bf16.mxu0 %v6212
        %6503 = vmatpush1.bf16.msra.mxu0 %v6211
        %6504 = vmatprep.subr.bf16.mxu0 %v6216
        %6505 = vmatpush1.bf16.msra.mxu0 %v6215
        %6506 = vmatprep.subr.bf16.mxu0 %v6220
        %6507 = vmatpush1.bf16.msra.mxu0 %v6219
        %6508 = vmatprep.subr.bf16.mxu0 %v6224
        %6509 = vmatpush1.bf16.msra.mxu0 %v6223
        %6510 = vmatprep.subr.bf16.mxu0 %v6228
        %6511 = vmatpush1.bf16.msra.mxu0 %v6227
        %6512 = vmatprep.mubr.bf16.mxu0 %v5712
        %6513 = vmatmul.mubr.bf16.gmra.mrb[0].mxu0 %v5711
        %v6514 = vpop.f32.mrb[0].mxu0
        %v6515 = vadd.f32 %v6474, %v6514
        %v6516 = vpop.f32.mrb[0].mxu0
        %v6517 = vadd.f32 %v6476, %v6516
        %v6518 = vpop.f32.mrb[0].mxu0
        %v6519 = vpop.f32.mrb[0].mxu0
        %6520 = vdwg.mxu0
        %v6521 = vsub.f32 0.0, %v6515
        %v6522 = vsub.f32 0.0, %v6517
        %v6523 = vmul.f32 %v6521, 1.442695
        %v6524 = vpow.pop %v6523
        %v6525 = vmul.f32 %v6522, 1.442695
        %v6526 = vpow.pop %v6525
        %v6527 = vadd.f32 %v6524, 1.0
        %v6528 = vadd.f32 %v6526, 1.0
        %v6529 = vrcp.pop %v6527
        %v6530 = vmul.f32 %v6515, %v6529
        %v6531 = vrcp.pop %v6528
        %v6532 = vmul.f32 %v6517, %v6531
        %v6533 = vmul.f32 %v6433, %v6530
        %v6534 = vmul.f32 %v6435, %v6532
        %v6535 = vpack.c.bf16 %v6533, %v6533
        %v6536 = vpack.c.bf16 %v6534, %v6534
        %v6537 = vld [vmem:[#allocation24] sm:$0xf]
        %v6538 = vld [vmem:[%s706] sm:$0xff]
        %v6539 = vld [vmem:[%s706 + $0x8] sm:$0xff]
        %v6540 = vld [vmem:[%s706 + $0x10] sm:$0xff]
        %v6541 = vld [vmem:[%s706 + $0x18] sm:$0xff]
        %v6542 = vld [vmem:[%s706 + $0x20] sm:$0xff]
        %v6543 = vld [vmem:[%s706 + $0x28] sm:$0xff]
        %v6544 = vld [vmem:[%s706 + $0x30] sm:$0xff]
        %v6545 = vld [vmem:[%s706 + $0x38] sm:$0xff]
        %v6546 = vld [vmem:[%s706 + $0x40] sm:$0xff]
        %v6547 = vld [vmem:[%s706 + $0x48] sm:$0xff]
        %v6548 = vld [vmem:[%s706 + $0x50] sm:$0xff]
        %v6549 = vld [vmem:[%s706 + $0x58] sm:$0xff]
        %v6550 = vld [vmem:[%s706 + $0x60] sm:$0xff]
        %v6551 = vld [vmem:[%s706 + $0x68] sm:$0xff]
        %v6552 = vld [vmem:[%s706 + $0x70] sm:$0xff]
        %v6553 = vld [vmem:[%s706 + $0x78] sm:$0xff]
        %v6554 = vld [vmem:[%s706 + $0x80] sm:$0xff]
        %v6555 = vld [vmem:[%s706 + $0x88] sm:$0xff]
        %v6556 = vld [vmem:[%s706 + $0x90] sm:$0xff]
        %v6557 = vld [vmem:[%s706 + $0x98] sm:$0xff]
        %v6558 = vld [vmem:[%s706 + $0xa0] sm:$0xff]
        %v6559 = vld [vmem:[%s706 + $0xa8] sm:$0xff]
        %v6560 = vld [vmem:[%s706 + $0xb0] sm:$0xff]
        %v6561 = vld [vmem:[%s706 + $0xb8] sm:$0xff]
        %v6562 = vld [vmem:[%s706 + $0xc0] sm:$0xff]
        %v6563 = vld [vmem:[%s706 + $0xc8] sm:$0xff]
        %v6564 = vld [vmem:[%s706 + $0xd0] sm:$0xff]
        %v6565 = vld [vmem:[%s706 + $0xd8] sm:$0xff]
        %v6566 = vld [vmem:[%s706 + $0xe0] sm:$0xff]
        %v6567 = vld [vmem:[%s706 + $0xe8] sm:$0xff]
        %v6568 = vld [vmem:[%s706 + $0xf0] sm:$0xff]
        %v6569 = vld [vmem:[%s706 + $0xf8] sm:$0xff]
        %v6570 = vld [vmem:[%s706 + $0x100] sm:$0xff]
        %v6571 = vld [vmem:[%s706 + $0x108] sm:$0xff]
        %v6572 = vld [vmem:[%s706 + $0x110] sm:$0xff]
        %v6573 = vld [vmem:[%s706 + $0x118] sm:$0xff]
        %v6574 = vld [vmem:[%s706 + $0x120] sm:$0xff]
        %v6575 = vld [vmem:[%s706 + $0x128] sm:$0xff]
        %v6576 = vld [vmem:[%s706 + $0x130] sm:$0xff]
        %v6577 = vld [vmem:[%s706 + $0x138] sm:$0xff]
        %v6578 = vld [vmem:[%s706 + $0x140] sm:$0xff]
        %v6579 = vld [vmem:[%s706 + $0x148] sm:$0xff]
        %v6580 = vld [vmem:[%s706 + $0x150] sm:$0xff]
        %v6581 = vld [vmem:[%s706 + $0x158] sm:$0xff]
        %v6582 = vld [vmem:[%s706 + $0x160] sm:$0xff]
        %v6583 = vld [vmem:[%s706 + $0x168] sm:$0xff]
        %v6584 = vld [vmem:[%s706 + $0x170] sm:$0xff]
        %v6585 = vld [vmem:[%s706 + $0x178] sm:$0xff]
        %v6586 = vld [vmem:[%s706 + $0x180] sm:$0xff]
        %v6587 = vld [vmem:[%s706 + $0x188] sm:$0xff]
        %v6588 = vld [vmem:[%s706 + $0x190] sm:$0xff]
        %v6589 = vld [vmem:[%s706 + $0x198] sm:$0xff]
        %v6590 = vld [vmem:[%s706 + $0x1a0] sm:$0xff]
        %v6591 = vld [vmem:[%s706 + $0x1a8] sm:$0xff]
        %v6592 = vld [vmem:[%s706 + $0x1b0] sm:$0xff]
        %v6593 = vld [vmem:[%s706 + $0x1b8] sm:$0xff]
        %v6594 = vld [vmem:[%s706 + $0x1c0] sm:$0xff]
        %v6595 = vld [vmem:[%s706 + $0x1c8] sm:$0xff]
        %v6596 = vld [vmem:[%s706 + $0x1d0] sm:$0xff]
        %v6597 = vld [vmem:[%s706 + $0x1d8] sm:$0xff]
        %v6598 = vld [vmem:[%s706 + $0x1e0] sm:$0xff]
        %v6599 = vld [vmem:[%s706 + $0x1e8] sm:$0xff]
        %v6600 = vld [vmem:[%s706 + $0x1f0] sm:$0xff]
        %v6601 = vld [vmem:[%s706 + $0x1f8] sm:$0xff]
        %v6666 = vunpack.c.l.b16 %v6538
        %v6667 = vunpack.c.h.b16 %v6538
        %v6668 = vunpack.c.l.b16 %v6539
        %v6669 = vunpack.c.h.b16 %v6539
        %v6670 = vunpack.c.l.b16 %v6540
        %v6671 = vunpack.c.h.b16 %v6540
        %v6672 = vunpack.c.l.b16 %v6541
        %v6673 = vunpack.c.h.b16 %v6541
        %v6674 = vunpack.c.l.b16 %v6542
        %v6675 = vunpack.c.h.b16 %v6542
        %v6676 = vunpack.c.l.b16 %v6543
        %v6677 = vunpack.c.h.b16 %v6543
        %v6678 = vunpack.c.l.b16 %v6544
        %v6679 = vunpack.c.h.b16 %v6544
        %v6680 = vunpack.c.l.b16 %v6545
        %v6681 = vunpack.c.h.b16 %v6545
        %v6682 = vunpack.c.l.b16 %v6546
        %v6683 = vunpack.c.h.b16 %v6546
        %v6684 = vunpack.c.l.b16 %v6547
        %v6685 = vunpack.c.h.b16 %v6547
        %v6686 = vunpack.c.l.b16 %v6548
        %v6687 = vunpack.c.h.b16 %v6548
        %v6688 = vunpack.c.l.b16 %v6549
        %v6689 = vunpack.c.h.b16 %v6549
        %v6690 = vunpack.c.l.b16 %v6550
        %v6691 = vunpack.c.h.b16 %v6550
        %v6692 = vunpack.c.l.b16 %v6551
        %v6693 = vunpack.c.h.b16 %v6551
        %v6694 = vunpack.c.l.b16 %v6552
        %v6695 = vunpack.c.h.b16 %v6552
        %v6696 = vunpack.c.l.b16 %v6553
        %v6697 = vunpack.c.h.b16 %v6553
        %v6698 = vunpack.c.l.b16 %v6554
        %v6699 = vunpack.c.h.b16 %v6554
        %v6700 = vunpack.c.l.b16 %v6555
        %v6701 = vunpack.c.h.b16 %v6555
        %v6702 = vunpack.c.l.b16 %v6556
        %v6703 = vunpack.c.h.b16 %v6556
        %v6704 = vunpack.c.l.b16 %v6557
        %v6705 = vunpack.c.h.b16 %v6557
        %v6706 = vunpack.c.l.b16 %v6558
        %v6707 = vunpack.c.h.b16 %v6558
        %v6708 = vunpack.c.l.b16 %v6559
        %v6709 = vunpack.c.h.b16 %v6559
        %v6710 = vunpack.c.l.b16 %v6560
        %v6711 = vunpack.c.h.b16 %v6560
        %v6712 = vunpack.c.l.b16 %v6561
        %v6713 = vunpack.c.h.b16 %v6561
        %v6714 = vunpack.c.l.b16 %v6562
        %v6715 = vunpack.c.h.b16 %v6562
        %v6716 = vunpack.c.l.b16 %v6563
        %v6717 = vunpack.c.h.b16 %v6563
        %v6718 = vunpack.c.l.b16 %v6564
        %v6719 = vunpack.c.h.b16 %v6564
        %v6720 = vunpack.c.l.b16 %v6565
        %v6721 = vunpack.c.h.b16 %v6565
        %v6722 = vunpack.c.l.b16 %v6566
        %v6723 = vunpack.c.h.b16 %v6566
        %v6724 = vunpack.c.l.b16 %v6567
        %v6725 = vunpack.c.h.b16 %v6567
        %v6726 = vunpack.c.l.b16 %v6568
        %v6727 = vunpack.c.h.b16 %v6568
        %v6728 = vunpack.c.l.b16 %v6569
        %v6729 = vunpack.c.h.b16 %v6569
        %v6730 = vunpack.c.l.b16 %v6570
        %v6731 = vunpack.c.h.b16 %v6570
        %v6732 = vunpack.c.l.b16 %v6571
        %v6733 = vunpack.c.h.b16 %v6571
        %v6734 = vunpack.c.l.b16 %v6572
        %v6735 = vunpack.c.h.b16 %v6572
        %v6736 = vunpack.c.l.b16 %v6573
        %v6737 = vunpack.c.h.b16 %v6573
        %v6738 = vunpack.c.l.b16 %v6574
        %v6739 = vunpack.c.h.b16 %v6574
        %v6740 = vunpack.c.l.b16 %v6575
        %v6741 = vunpack.c.h.b16 %v6575
        %v6742 = vunpack.c.l.b16 %v6576
        %v6743 = vunpack.c.h.b16 %v6576
        %v6744 = vunpack.c.l.b16 %v6577
        %v6745 = vunpack.c.h.b16 %v6577
        %v6746 = vunpack.c.l.b16 %v6578
        %v6747 = vunpack.c.h.b16 %v6578
        %v6748 = vunpack.c.l.b16 %v6579
        %v6749 = vunpack.c.h.b16 %v6579
        %v6750 = vunpack.c.l.b16 %v6580
        %v6751 = vunpack.c.h.b16 %v6580
        %v6752 = vunpack.c.l.b16 %v6581
        %v6753 = vunpack.c.h.b16 %v6581
        %v6754 = vunpack.c.l.b16 %v6582
        %v6755 = vunpack.c.h.b16 %v6582
        %v6756 = vunpack.c.l.b16 %v6583
        %v6757 = vunpack.c.h.b16 %v6583
        %v6758 = vunpack.c.l.b16 %v6584
        %v6759 = vunpack.c.h.b16 %v6584
        %v6760 = vunpack.c.l.b16 %v6585
        %v6761 = vunpack.c.h.b16 %v6585
        %v6762 = vunpack.c.l.b16 %v6586
        %v6763 = vunpack.c.h.b16 %v6586
        %v6764 = vunpack.c.l.b16 %v6587
        %v6765 = vunpack.c.h.b16 %v6587
        %v6766 = vunpack.c.l.b16 %v6588
        %v6767 = vunpack.c.h.b16 %v6588
        %v6768 = vunpack.c.l.b16 %v6589
        %v6769 = vunpack.c.h.b16 %v6589
        %v6770 = vunpack.c.l.b16 %v6590
        %v6771 = vunpack.c.h.b16 %v6590
        %v6772 = vunpack.c.l.b16 %v6591
        %v6773 = vunpack.c.h.b16 %v6591
        %v6774 = vunpack.c.l.b16 %v6592
        %v6775 = vunpack.c.h.b16 %v6592
        %v6776 = vunpack.c.l.b16 %v6593
        %v6777 = vunpack.c.h.b16 %v6593
        %v6778 = vunpack.c.l.b16 %v6594
        %v6779 = vunpack.c.h.b16 %v6594
        %v6780 = vunpack.c.l.b16 %v6595
        %v6781 = vunpack.c.h.b16 %v6595
        %v6782 = vunpack.c.l.b16 %v6596
        %v6783 = vunpack.c.h.b16 %v6596
        %v6784 = vunpack.c.l.b16 %v6597
        %v6785 = vunpack.c.h.b16 %v6597
        %v6786 = vunpack.c.l.b16 %v6598
        %v6787 = vunpack.c.h.b16 %v6598
        %v6788 = vunpack.c.l.b16 %v6599
        %v6789 = vunpack.c.h.b16 %v6599
        %v6790 = vunpack.c.l.b16 %v6600
        %v6791 = vunpack.c.h.b16 %v6600
        %v6792 = vunpack.c.l.b16 %v6601
        %v6793 = vunpack.c.h.b16 %v6601
        %v6794 = vpack.c.b16 %v6670, %v6666
        %v6795 = vpack.c.b16 %v6671, %v6667
        %v6796 = vpack.c.b16 %v6672, %v6668
        %v6797 = vpack.c.b16 %v6673, %v6669
        %v6798 = vpack.c.b16 %v6678, %v6674
        %v6799 = vpack.c.b16 %v6679, %v6675
        %v6800 = vpack.c.b16 %v6680, %v6676
        %v6801 = vpack.c.b16 %v6681, %v6677
        %v6802 = vpack.c.b16 %v6686, %v6682
        %v6803 = vpack.c.b16 %v6687, %v6683
        %v6804 = vpack.c.b16 %v6688, %v6684
        %v6805 = vpack.c.b16 %v6689, %v6685
        %v6806 = vpack.c.b16 %v6694, %v6690
        %v6807 = vpack.c.b16 %v6695, %v6691
        %v6808 = vpack.c.b16 %v6696, %v6692
        %v6809 = vpack.c.b16 %v6697, %v6693
        %v6810 = vpack.c.b16 %v6702, %v6698
        %v6811 = vpack.c.b16 %v6703, %v6699
        %v6812 = vpack.c.b16 %v6704, %v6700
        %v6813 = vpack.c.b16 %v6705, %v6701
        %v6814 = vpack.c.b16 %v6710, %v6706
        %v6815 = vpack.c.b16 %v6711, %v6707
        %v6816 = vpack.c.b16 %v6712, %v6708
        %v6817 = vpack.c.b16 %v6713, %v6709
        %v6818 = vpack.c.b16 %v6718, %v6714
        %v6819 = vpack.c.b16 %v6719, %v6715
        %v6820 = vpack.c.b16 %v6720, %v6716
        %v6821 = vpack.c.b16 %v6721, %v6717
        %v6822 = vpack.c.b16 %v6726, %v6722
        %v6823 = vpack.c.b16 %v6727, %v6723
        %v6824 = vpack.c.b16 %v6728, %v6724
        %v6825 = vpack.c.b16 %v6729, %v6725
        %v6826 = vpack.c.b16 %v6734, %v6730
        %v6827 = vpack.c.b16 %v6735, %v6731
        %v6828 = vpack.c.b16 %v6736, %v6732
        %v6829 = vpack.c.b16 %v6737, %v6733
        %v6830 = vpack.c.b16 %v6742, %v6738
        %v6831 = vpack.c.b16 %v6743, %v6739
        %v6832 = vpack.c.b16 %v6744, %v6740
        %v6833 = vpack.c.b16 %v6745, %v6741
        %v6834 = vpack.c.b16 %v6750, %v6746
        %v6835 = vpack.c.b16 %v6751, %v6747
        %v6836 = vpack.c.b16 %v6752, %v6748
        %v6837 = vpack.c.b16 %v6753, %v6749
        %v6838 = vpack.c.b16 %v6758, %v6754
        %v6839 = vpack.c.b16 %v6759, %v6755
        %v6840 = vpack.c.b16 %v6760, %v6756
        %v6841 = vpack.c.b16 %v6761, %v6757
        %v6842 = vpack.c.b16 %v6766, %v6762
        %v6843 = vpack.c.b16 %v6767, %v6763
        %v6844 = vpack.c.b16 %v6768, %v6764
        %v6845 = vpack.c.b16 %v6769, %v6765
        %v6846 = vpack.c.b16 %v6774, %v6770
        %v6847 = vpack.c.b16 %v6775, %v6771
        %v6848 = vpack.c.b16 %v6776, %v6772
        %v6849 = vpack.c.b16 %v6777, %v6773
        %v6850 = vpack.c.b16 %v6782, %v6778
        %v6851 = vpack.c.b16 %v6783, %v6779
        %v6852 = vpack.c.b16 %v6784, %v6780
        %v6853 = vpack.c.b16 %v6785, %v6781
        %v6854 = vpack.c.b16 %v6790, %v6786
        %v6855 = vpack.c.b16 %v6791, %v6787
        %v6856 = vpack.c.b16 %v6792, %v6788
        %v6857 = vpack.c.b16 %v6793, %v6789
        %6922 = vmatprep.subr.bf16.mxu0 %v6795
        %6923 = vmatpush1.bf16.msra.mxu0 %v6794
        %6924 = vmatprep.subr.bf16.mxu0 %v6799
        %6925 = vmatpush1.bf16.msra.mxu0 %v6798
        %6926 = vmatprep.subr.bf16.mxu0 %v6803
        %6927 = vmatpush1.bf16.msra.mxu0 %v6802
        %6928 = vmatprep.subr.bf16.mxu0 %v6807
        %6929 = vmatpush1.bf16.msra.mxu0 %v6806
        %6930 = vmatprep.subr.bf16.mxu0 %v6811
        %6931 = vmatpush1.bf16.msra.mxu0 %v6810
        %6932 = vmatprep.subr.bf16.mxu0 %v6815
        %6933 = vmatpush1.bf16.msra.mxu0 %v6814
        %6934 = vmatprep.subr.bf16.mxu0 %v6819
        %6935 = vmatpush1.bf16.msra.mxu0 %v6818
        %6936 = vmatprep.subr.bf16.mxu0 %v6823
        %6937 = vmatpush1.bf16.msra.mxu0 %v6822
        %6938 = vmatprep.subr.bf16.mxu0 %v6827
        %6939 = vmatpush1.bf16.msra.mxu0 %v6826
        %6940 = vmatprep.subr.bf16.mxu0 %v6831
        %6941 = vmatpush1.bf16.msra.mxu0 %v6830
        %6942 = vmatprep.subr.bf16.mxu0 %v6835
        %6943 = vmatpush1.bf16.msra.mxu0 %v6834
        %6944 = vmatprep.subr.bf16.mxu0 %v6839
        %6945 = vmatpush1.bf16.msra.mxu0 %v6838
        %6946 = vmatprep.subr.bf16.mxu0 %v6843
        %6947 = vmatpush1.bf16.msra.mxu0 %v6842
        %6948 = vmatprep.subr.bf16.mxu0 %v6847
        %6949 = vmatpush1.bf16.msra.mxu0 %v6846
        %6950 = vmatprep.subr.bf16.mxu0 %v6851
        %6951 = vmatpush1.bf16.msra.mxu0 %v6850
        %6952 = vmatprep.subr.bf16.mxu0 %v6855
        %6953 = vmatpush1.bf16.msra.mxu0 %v6854
        %6954 = vmatprep.mubr.bf16.mxu0 %v6536
        %6955 = vmatmul.mubr.bf16.gmra.mrb[0].mxu0 %v6535
        %v6956 = vpop.f32.mrb[0].mxu0
        %v6957 = vadd.f32 0.0, %v6956
        %v6958 = vpop.f32.mrb[0].mxu0
        %v6959 = vadd.f32 0.0, %v6958
        %v6960 = vpop.f32.mrb[0].mxu0
        %v6961 = vpop.f32.mrb[0].mxu0
        %6962 = vdwg.mxu0
        %6963 = vmatprep.subr.bf16.mxu0 %v6797
        %6964 = vmatpush1.bf16.msra.mxu0 %v6796
        %6965 = vmatprep.subr.bf16.mxu0 %v6801
        %6966 = vmatpush1.bf16.msra.mxu0 %v6800
        %6967 = vmatprep.subr.bf16.mxu0 %v6805
        %6968 = vmatpush1.bf16.msra.mxu0 %v6804
        %6969 = vmatprep.subr.bf16.mxu0 %v6809
        %6970 = vmatpush1.bf16.msra.mxu0 %v6808
        %6971 = vmatprep.subr.bf16.mxu0 %v6813
        %6972 = vmatpush1.bf16.msra.mxu0 %v6812
        %6973 = vmatprep.subr.bf16.mxu0 %v6817
        %6974 = vmatpush1.bf16.msra.mxu0 %v6816
        %6975 = vmatprep.subr.bf16.mxu0 %v6821
        %6976 = vmatpush1.bf16.msra.mxu0 %v6820
        %6977 = vmatprep.subr.bf16.mxu0 %v6825
        %6978 = vmatpush1.bf16.msra.mxu0 %v6824
        %6979 = vmatprep.subr.bf16.mxu0 %v6829
        %6980 = vmatpush1.bf16.msra.mxu0 %v6828
        %6981 = vmatprep.subr.bf16.mxu0 %v6833
        %6982 = vmatpush1.bf16.msra.mxu0 %v6832
        %6983 = vmatprep.subr.bf16.mxu0 %v6837
        %6984 = vmatpush1.bf16.msra.mxu0 %v6836
        %6985 = vmatprep.subr.bf16.mxu0 %v6841
        %6986 = vmatpush1.bf16.msra.mxu0 %v6840
        %6987 = vmatprep.subr.bf16.mxu0 %v6845
        %6988 = vmatpush1.bf16.msra.mxu0 %v6844
        %6989 = vmatprep.subr.bf16.mxu0 %v6849
        %6990 = vmatpush1.bf16.msra.mxu0 %v6848
        %6991 = vmatprep.subr.bf16.mxu0 %v6853
        %6992 = vmatpush1.bf16.msra.mxu0 %v6852
        %6993 = vmatprep.subr.bf16.mxu0 %v6857
        %6994 = vmatpush1.bf16.msra.mxu0 %v6856
        %6995 = vmatprep.mubr.bf16.mxu0 %v6536
        %6996 = vmatmul.mubr.bf16.gmra.mrb[0].mxu0 %v6535
        %v6997 = vpop.f32.mrb[0].mxu0
        %v6998 = vadd.f32 0.0, %v6997
        %v6999 = vpop.f32.mrb[0].mxu0
        %v7000 = vadd.f32 0.0, %v6999
        %v7001 = vpop.f32.mrb[0].mxu0
        %v7002 = vpop.f32.mrb[0].mxu0
        %7003 = vdwg.mxu0
        %v7008 = vcombine.low %v6957, %v6959
        %v7009 = vcombine.low %v6998, %v7000
        %v7011 = vunpack.c.l.s4 1966171168
        %v7012 = vunpack.c.0.s8 %v7011
        %v7013 = vlaneseq
        %v7014 = vshrl.u32 %v7013, 7
        %v7015 = vsub.s32 %v7012, %v7014
        %v7016 = vrot.slane %v7008, %v7015
        %v7018 = vunpack.c.l.s4 1966171168
        %v7019 = vunpack.c.0.s8 %v7018
        %v7020 = vlaneseq
        %v7021 = vshrl.u32 %v7020, 7
        %v7022 = vsub.s32 %v7019, %v7021
        %v7023 = vrot.slane %v7009, %v7022
        %v7024 = vcombine.low %v7016, %v7023
        %v7026 = vunpack.c.l.s4 1966171168
        %v7027 = vunpack.c.0.s8 %v7026
        %v7028 = vlaneseq
        %v7029 = vshrl.u32 %v7028, 7
        %v7030 = vsub.s32 %v7027, %v7029
        %v7031 = vrot.slane %v7024, %v7030
        %v7033 = vadd.f32 %v6537, %v7031
        %v7034 = vlaneseq
        %vm7035 = vcmp.ge.s32.totalorder %v7034, 0
        %vm7036 = vcmp.lt.s32.totalorder %v7034, 512
        %vm7037 = vmand %vm7035, %vm7036
        %7038 = vst.msk [vmem:[#allocation24] sm:$0xf] %vm7037, %v7033
        // Predicated region
        $region129: #{tpu_custom_call.1} parent=71 // pred_check
          %p7039 = pneg %p381
        $region130: #{tpu_custom_call.1} parent=71 // pred_check_branch
          %7041 = sbr.rel (%p7039) target = $region132
        $region131: #{tpu_custom_call.1} parent=71 // pred_region
          %s7043 = ssub.s32 64, 64
          %7044 = vsyncadd [#allocation5], %s7043
          %s7045 = smul.addr %s42, 4
          %s7046 = smul.addr %s7045, 16
          %s7047 = scalar_lea.hbm %s13, %s7046
          %s7049 = sshll.u32 [#allocation24], 4
          %s7050 = int_to_ptr.vmem [resolvable:$true] %s7049
          %7052 = dma.vmem_to_hbm [thread:$0]  %s7050, 64, %s7047, [#allocation5]
        $region132: #{tpu_custom_call.1} parent=71 // pred_fallthru
          _
        // Predicated region
        $region133: #{tpu_custom_call.1} parent=71 // pred_check
          %p7053 = pneg %p407
        $region134: #{tpu_custom_call.1} parent=71 // pred_check_branch
          %7055 = sbr.rel (%p7053) target = $region136
        $region135: #{tpu_custom_call.1} parent=71 // pred_region
          %s7057 = ssub.s32 64, 64
          %7058 = vsyncadd [#allocation26], %s7057
          %s7059 = smul.addr %s42, 64
          %s7060 = scalar_lea.hbm %s14, %s7059
          %s7062 = sshll.u32 [#allocation25], 4
          %s7063 = int_to_ptr.vmem [resolvable:$true] %s7062
          %7065 = dma.vmem_to_hbm [thread:$0]  %s7063, 64, %s7060, [#allocation26]
        $region136: #{tpu_custom_call.1} parent=71 // pred_fallthru
          _
        // Predicated region
        $region137: #{tpu_custom_call.1} parent=71 // pred_check
          %p7066 = pneg %p433
        $region138: #{tpu_custom_call.1} parent=71 // pred_check_branch
          %7068 = sbr.rel (%p7066) target = $region140
        $region139: #{tpu_custom_call.1} parent=71 // pred_region
          %s7070 = ssub.s32 64, 64
          %7071 = vsyncadd [#allocation26], %s7070
          %s7072 = smul.addr %s42, 64
          %s7073 = scalar_lea.hbm %s15, %s7072
          %s7075 = sshll.u32 [#allocation27], 4
          %s7076 = int_to_ptr.vmem [resolvable:$true] %s7075
          %7078 = dma.vmem_to_hbm [thread:$0]  %s7076, 64, %s7073, [#allocation26]
        $region140: #{tpu_custom_call.1} parent=71 // pred_fallthru
          _
        // Predicated region
        $region141: #{tpu_custom_call.1} parent=71 // pred_check
          %p7079 = pneg %p381
        $region142: #{tpu_custom_call.1} parent=71 // pred_check_branch
          %7081 = sbr.rel (%p7079) target = $region144
        $region143: #{tpu_custom_call.1} parent=71 // pred_region
          %7082 = dma.done [#allocation5], 64
        $region144: #{tpu_custom_call.1} parent=71 // pred_fallthru
          _
        // Predicated region
        $region145: #{tpu_custom_call.1} parent=71 // pred_check
          %p7083 = pneg %p407
        $region146: #{tpu_custom_call.1} parent=71 // pred_check_branch
          %7085 = sbr.rel (%p7083) target = $region148
        $region147: #{tpu_custom_call.1} parent=71 // pred_region
          %7086 = dma.done [#allocation26], 64
        $region148: #{tpu_custom_call.1} parent=71 // pred_fallthru
          _
        // Predicated region
        $region149: #{tpu_custom_call.1} parent=71 // pred_check
          %p7087 = pneg %p433
        $region150: #{tpu_custom_call.1} parent=71 // pred_check_branch
          %7089 = sbr.rel (%p7087) target = $region152
        $region151: #{tpu_custom_call.1} parent=71 // pred_region
          %7090 = dma.done [#allocation26], 64
        $region152: #{tpu_custom_call.1} parent=71 // pred_fallthru
          _
      $region72: #{tpu_custom_call.1} parent=5 // pred_fallthru
        _
      %p7091 = scmp.le.s32.totalorder 2, %s33
      // Predicated region
      $region153: #{tpu_custom_call.1} parent=5 // pred_check
        %p7092 = pneg %p7091
      $region154: #{tpu_custom_call.1} parent=5 // pred_check_branch
        %7094 = sbr.rel (%p7092) target = $region156
      $region155: #{tpu_custom_call.1} parent=5 // pred_region
        %s7095 = ssub.s32 %s33, 2
      $region156: #{tpu_custom_call.1} parent=5 // pred_fallthru
        _
    $region6: #{tpu_custom_call.1} parent=1 // loop_footer
      %s37 = sadd.s32 1, %s33
    $region7: #{tpu_custom_call.1} parent=1 // loop_footer_branch
      %32 = sbr.rel target = $region3
    $region8: #{tpu_custom_call.1} parent=1 // loop_exit
      _
    %7096 = vsyncpa [#allocation4], 1
    %s7097 = scalar_lea.sflag [#allocation4], 1
    %7098 = vsyncpa %s7097, 1
    %7099 = vsyncpa [#allocation7], 1
    %7100 = vsyncpa [#allocation10], 1
    %7101 = vsyncpa [#allocation13], 1
    %7102 = vsyncpa [#allocation16], 1
    %7103 = vsyncpa [#allocation19], 1
    %7104 = vsyncpa [#allocation22], 1
    %s7105 = scalar_lea.sflag [#allocation22], 1
    %7106 = vsyncpa %s7105, 1
    %7107 = vsyncpa [#allocation5], 1
    %s7108 = scalar_lea.sflag [#allocation5], 1
    %7109 = vsyncpa %s7108, 1
    %7110 = vsyncpa [#allocation26], 1

</llo_original>
